<compile_context>
chip_gen: v7x
topology: tpu7x:2x2x1
jax: 0.10.0
libtpu: 0.0.40
codegen_flags: <defaults>
</compile_context>

<pallas_src>
import functools

import jax
import jax.numpy as jnp
import numpy as np
from jax import lax
from jax.experimental import pallas as pl
from jax.experimental.pallas import tpu as pltpu


# ------------------------------ fused kernel --------------------------------

def _basic_block_kernel(x_ref, w1_ref, s1_ref, b1_ref, w2_ref, s2_ref, b2_ref,
                        o_ref, xp_ref, hp_ref, *, H, W, RS):
    """Fused BasicBlock forward for one batch element (NHWC, C on lanes).

    x_ref  : (H, W, C)      f32   input (batch dim squeezed by BlockSpec)
    w*_ref : (9, C, C)      bf16  3x3 weights, tap-major (dy*3+dx), (Cin,Cout)
    s*/b*  : (1, C)         f32   folded-BN scale / bias
    o_ref  : (H, W, C)      f32   output
    xp_ref : (H+2, W+2, C)  bf16  VMEM zero-halo padded input
    hp_ref : (H+2, W+2, C)  bf16  VMEM zero-halo padded relu(bn1(conv1(x)))
    """
    C = x_ref.shape[-1]
    cdt = xp_ref.dtype
    n_strips = H // RS

    # Halo rows (top/bottom), rewritten every grid step: 4 aligned full-width
    # row stores (~18 KiB bf16 total) instead of re-zeroing the whole scratch.
    zrow = jnp.zeros((1, W + 2, C), cdt)
    xp_ref[0:1, :, :] = zrow
    xp_ref[H + 1:H + 2, :, :] = zrow
    hp_ref[0:1, :, :] = zrow
    hp_ref[H + 1:H + 2, :, :] = zrow

    # Interior of the x scratch: [0 | x | 0] assembled in registers so the ref
    # store is full-width / sublane-aligned (no masked partial stores), with
    # the bf16 downcast done on the way in.
    zcol = jnp.zeros((H, 1, C), cdt)
    xp_ref[1:H + 1, :, :] = jnp.concatenate(
        [zcol, x_ref[...].astype(cdt), zcol], axis=1)

    def conv3x3_strip(p_ref, w_ref, r0):
        # 3x3 conv (stride 1) for output rows [r0, r0+RS): 9 bf16 MXU matmuls
        # (M=RS*W, K=C, N=C) with an f32 accumulator that stays in vregs.
        # One shifted slab load per dx; the dy shift is a free leading-dim
        # slice of the in-register slab.
        acc = jnp.zeros((RS * W, C), jnp.float32)
        for dx in range(3):
            xs = p_ref[r0:r0 + RS + 2, dx:dx + W, :]       # (RS+2, W, C) bf16
            for dy in range(3):
                patch = xs[dy:dy + RS].reshape(RS * W, C)
                acc += jnp.dot(patch, w_ref[dy * 3 + dx],
                               preferred_element_type=jnp.float32)
        return acc

    # conv1 -> bn1 -> relu, one row strip at a time, into the h1 scratch
    # (the intermediate never leaves VMEM; stored bf16, full-width aligned).
    s1 = s1_ref[...]
    b1 = b1_ref[...]
    zcs = jnp.zeros((RS, 1, C), cdt)
    for si in range(n_strips):
        r0 = si * RS
        h1 = conv3x3_strip(xp_ref, w1_ref, r0)
        h1 = jnp.maximum(h1 * s1 + b1, 0.0)
        hp_ref[1 + r0:1 + r0 + RS, :, :] = jnp.concatenate(
            [zcs, h1.reshape(RS, W, C).astype(cdt), zcs], axis=1)

    # conv2 -> bn2 -> + identity shortcut (exact f32 x) -> relu.
    s2 = s2_ref[...]
    b2 = b2_ref[...]
    for si in range(n_strips):
        r0 = si * RS
        h2 = conv3x3_strip(hp_ref, w2_ref, r0)
        res = x_ref[r0:r0 + RS, :, :].reshape(RS * W, C)
        out = jnp.maximum(h2 * s2 + b2 + res, 0.0)
        o_ref[r0:r0 + RS, :, :] = out.reshape(RS, W, C).astype(o_ref.dtype)


# ------------------------------ pallas_call glue ----------------------------

@jax.jit
def basic_block_forward(x_nhwc, params):
    """BasicBlock forward, NHWC in / NHWC out (TPU-native layout, C=lanes)."""
    N, H, W, C = x_nhwc.shape
    rs = 8 if H % 8 == 0 else H          # row-strip height (acc stays in vregs)
    w1 = params["w1"].astype(jnp.bfloat16)   # bf16 MXU operands, f32 accumulate
    w2 = params["w2"].astype(jnp.bfloat16)
    kern = functools.partial(_basic_block_kernel, H=H, W=W, RS=rs)
    return pl.pallas_call(
        kern,
        out_shape=jax.ShapeDtypeStruct((N, H, W, C), x_nhwc.dtype),
        grid=(N,),
        in_specs=[
            pl.BlockSpec((None, H, W, C), lambda n: (n, 0, 0, 0)),   # x
            pl.BlockSpec((9, C, C), lambda n: (0, 0, 0)),            # w1 (resident)
            pl.BlockSpec((1, C), lambda n: (0, 0)),                  # bn1 scale
            pl.BlockSpec((1, C), lambda n: (0, 0)),                  # bn1 bias
            pl.BlockSpec((9, C, C), lambda n: (0, 0, 0)),            # w2 (resident)
            pl.BlockSpec((1, C), lambda n: (0, 0)),                  # bn2 scale
            pl.BlockSpec((1, C), lambda n: (0, 0)),                  # bn2 bias
        ],
        out_specs=pl.BlockSpec((None, H, W, C), lambda n: (n, 0, 0, 0)),
        scratch_shapes=[pltpu.VMEM((H + 2, W + 2, C), jnp.bfloat16),
                        pltpu.VMEM((H + 2, W + 2, C), jnp.bfloat16)],
        compiler_params=pltpu.CompilerParams(
            dimension_semantics=("parallel",)),
    )(x_nhwc, w1, params["s1"], params["b1"], w2, params["s2"], params["b2"])


# ------------------------------ parameters ----------------------------------

def fold_bn(gamma, beta, mean, var, eps=1e-5):
    scale = gamma / jnp.sqrt(var + eps)
    bias = beta - mean * scale
    return scale.reshape(1, -1), bias.reshape(1, -1)


def init_basic_block_params(key, in_planes, planes):
    assert in_planes == planes, "identity-shortcut (stride=1) path only"
    ks = jax.random.split(key, 10)
    # PyTorch conv weights are (Cout, Cin, 3, 3); we keep HWIO pre-flattened to
    # (9, Cin, Cout), tap-major (dy*3+dx), for direct in-kernel tap indexing.
    w1 = 0.1 * jax.random.normal(ks[0], (9, in_planes, planes), jnp.float32)
    w2 = 0.1 * jax.random.normal(ks[1], (9, planes, planes), jnp.float32)
    g1 = 1.0 + 0.1 * jax.random.normal(ks[2], (planes,), jnp.float32)
    b1 = 0.1 * jax.random.normal(ks[3], (planes,), jnp.float32)
    m1 = 0.1 * jax.random.normal(ks[4], (planes,), jnp.float32)
    v1 = jnp.abs(jax.random.normal(ks[5], (planes,), jnp.float32)) + 0.5
    g2 = 1.0 + 0.1 * jax.random.normal(ks[6], (planes,), jnp.float32)
    b2 = 0.1 * jax.random.normal(ks[7], (planes,), jnp.float32)
    m2 = 0.1 * jax.random.normal(ks[8], (planes,), jnp.float32)
    v2 = jnp.abs(jax.random.normal(ks[9], (planes,), jnp.float32)) + 0.5
    s1, bb1 = fold_bn(g1, b1, m1, v1)
    s2, bb2 = fold_bn(g2, b2, m2, v2)
    return dict(w1=w1, s1=s1, b1=bb1, w2=w2, s2=s2, b2=bb2)


# ------------------------------ reference -----------------------------------

def _conv3x3_ref(inp, w9):
    w = w9.reshape(3, 3, w9.shape[-2], w9.shape[-1])       # back to HWIO
    return lax.conv_general_dilated(
        inp, w, window_strides=(1, 1), padding=((1, 1), (1, 1)),
        dimension_numbers=("NHWC", "HWIO", "NHWC"),
        precision=lax.Precision.HIGHEST)


def basic_block_reference(x_nhwc, params, quantize_like_kernel=False):
    """Pure-JAX reference (lax.conv, NHWC).

    quantize_like_kernel=True reproduces the kernel's bf16 operand rounding
    (conv inputs / weights / stored intermediate) with f32 accumulation, for a
    tight numerical check; False is the exact-f32 module semantics.
    """
    if quantize_like_kernel:
        q = lambda a: a.astype(jnp.bfloat16).astype(jnp.float32)
    else:
        q = lambda a: a
    o = jnp.maximum(_conv3x3_ref(q(x_nhwc), q(params["w1"])) * params["s1"]
                    + params["b1"], 0.0)
    o = (_conv3x3_ref(q(o), q(params["w2"])) * params["s2"] + params["b2"]
         + x_nhwc)                              # identity shortcut stays f32
    return jnp.maximum(o, 0.0)


if __name__ == "__main__":
    key = jax.random.PRNGKey(0)
    k_x, k_p = jax.random.split(key)

    # in_planes == planes -> identity shortcut; C=128 keeps lanes/MXU dense;
    # N=2 keeps the "parallel" grid long enough to feed both v7x TensorCores.
    N, H, W, C = 2, 16, 16, 128
    x = jax.random.normal(k_x, (N, H, W, C), jnp.float32)
    params = init_basic_block_params(k_p, C, C)

    out = jax.block_until_ready(basic_block_forward(x, params))

    # Tight check against a reference with the same bf16 operand rounding.
    ref_q = basic_block_reference(x, params, quantize_like_kernel=True)
    np.testing.assert_allclose(np.asarray(out), np.asarray(ref_q),
                               rtol=1e-2, atol=1e-2)
    # Loose check against the exact-f32 module semantics (bf16 MXU operands).
    ref_f = basic_block_reference(x, params, quantize_like_kernel=False)
    np.testing.assert_allclose(np.asarray(out), np.asarray(ref_f),
                               rtol=2e-2, atol=3e-1)
    print("KERNEL_OK")
</pallas_src>

<mosaic_0001>
module attributes {stable_mosaic.version = 11 : i64} {
  func.func @_basic_block_kernel(%arg0: i32, %arg1: memref<1x16x16x128xf32, #tpu.memory_space<vmem>>, %arg2: memref<9x128x128xbf16, #tpu.memory_space<vmem>>, %arg3: memref<1x128xf32, #tpu.memory_space<vmem>>, %arg4: memref<1x128xf32, #tpu.memory_space<vmem>>, %arg5: memref<9x128x128xbf16, #tpu.memory_space<vmem>>, %arg6: memref<1x128xf32, #tpu.memory_space<vmem>>, %arg7: memref<1x128xf32, #tpu.memory_space<vmem>>, %arg8: memref<1x16x16x128xf32, #tpu.memory_space<vmem>>, %arg9: memref<18x18x128xbf16, #tpu.memory_space<vmem>>, %arg10: memref<18x18x128xbf16, #tpu.memory_space<vmem>>) attributes {dimension_semantics = [#tpu.dimension_semantics<parallel>], iteration_bounds = array<i64: 2>, scalar_prefetch = 0 : i64, scratch_operands = 2 : i64, tpu.core_type = #tpu.core_type<tc>, window_params = [{transform_indices = @transform_0, window_bounds = array<i64: 1, 16, 16, 128>}, {pipeline_mode = #tpu.pipeline_mode<synchronous>, transform_indices = @transform_1, window_bounds = array<i64: 9, 128, 128>}, {pipeline_mode = #tpu.pipeline_mode<synchronous>, transform_indices = @transform_2, window_bounds = array<i64: 1, 128>}, {pipeline_mode = #tpu.pipeline_mode<synchronous>, transform_indices = @transform_3, window_bounds = array<i64: 1, 128>}, {pipeline_mode = #tpu.pipeline_mode<synchronous>, transform_indices = @transform_4, window_bounds = array<i64: 9, 128, 128>}, {pipeline_mode = #tpu.pipeline_mode<synchronous>, transform_indices = @transform_5, window_bounds = array<i64: 1, 128>}, {pipeline_mode = #tpu.pipeline_mode<synchronous>, transform_indices = @transform_6, window_bounds = array<i64: 1, 128>}, {transform_indices = @transform_7, window_bounds = array<i64: 1, 16, 16, 128>}]} {
    %cst = arith.constant 0.000000e+00 : bf16
    %0 = vector.broadcast %cst : bf16 to vector<1x18x128xbf16>
    %c0 = arith.constant 0 : index
    %c0_0 = arith.constant 0 : index
    %c0_1 = arith.constant 0 : index
    %1 = vector.load %arg9[%c0, %c0_0, %c0_1] : memref<18x18x128xbf16, #tpu.memory_space<vmem>>, vector<1x18x128xbf16>
    tpu.vector_store %arg9[%c0, %c0_0, %c0_1], %0 {strides = array<i32>} : memref<18x18x128xbf16, #tpu.memory_space<vmem>>, vector<1x18x128xbf16>,
    %c17 = arith.constant 17 : index
    %c0_2 = arith.constant 0 : index
    %c0_3 = arith.constant 0 : index
    %2 = vector.load %arg9[%c17, %c0_2, %c0_3] : memref<18x18x128xbf16, #tpu.memory_space<vmem>>, vector<1x18x128xbf16>
    tpu.vector_store %arg9[%c17, %c0_2, %c0_3], %0 {strides = array<i32>} : memref<18x18x128xbf16, #tpu.memory_space<vmem>>, vector<1x18x128xbf16>,
    %c0_4 = arith.constant 0 : index
    %c0_5 = arith.constant 0 : index
    %c0_6 = arith.constant 0 : index
    %3 = vector.load %arg10[%c0_4, %c0_5, %c0_6] : memref<18x18x128xbf16, #tpu.memory_space<vmem>>, vector<1x18x128xbf16>
    tpu.vector_store %arg10[%c0_4, %c0_5, %c0_6], %0 {strides = array<i32>} : memref<18x18x128xbf16, #tpu.memory_space<vmem>>, vector<1x18x128xbf16>,
    %c17_7 = arith.constant 17 : index
    %c0_8 = arith.constant 0 : index
    %c0_9 = arith.constant 0 : index
    %4 = vector.load %arg10[%c17_7, %c0_8, %c0_9] : memref<18x18x128xbf16, #tpu.memory_space<vmem>>, vector<1x18x128xbf16>
    tpu.vector_store %arg10[%c17_7, %c0_8, %c0_9], %0 {strides = array<i32>} : memref<18x18x128xbf16, #tpu.memory_space<vmem>>, vector<1x18x128xbf16>,
    %cst_10 = arith.constant 0.000000e+00 : bf16
    %5 = vector.broadcast %cst_10 : bf16 to vector<16x1x128xbf16>
    %c0_11 = arith.constant 0 : index
    %c0_12 = arith.constant 0 : index
    %c0_13 = arith.constant 0 : index
    %c0_14 = arith.constant 0 : index
    %6 = vector.load %arg1[%c0_11, %c0_12, %c0_13, %c0_14] : memref<1x16x16x128xf32, #tpu.memory_space<vmem>>, vector<1x16x16x128xf32>
    %7 = vector.shape_cast %6 : vector<1x16x16x128xf32> to vector<16x16x128xf32>
    %8 = arith.truncf %7 : vector<16x16x128xf32> to vector<16x16x128xbf16>
    %9 = tpu.concatenate %5, %8, %5 in 1 : vector<16x1x128xbf16>, vector<16x16x128xbf16>, vector<16x1x128xbf16> -> vector<16x18x128xbf16>
    %c1 = arith.constant 1 : index
    %c0_15 = arith.constant 0 : index
    %c0_16 = arith.constant 0 : index
    %10 = vector.load %arg9[%c1, %c0_15, %c0_16] : memref<18x18x128xbf16, #tpu.memory_space<vmem>>, vector<16x18x128xbf16>
    tpu.vector_store %arg9[%c1, %c0_15, %c0_16], %9 {strides = array<i32>} : memref<18x18x128xbf16, #tpu.memory_space<vmem>>, vector<16x18x128xbf16>,
    %c0_17 = arith.constant 0 : index
    %c0_18 = arith.constant 0 : index
    %11 = vector.load %arg3[%c0_17, %c0_18] : memref<1x128xf32, #tpu.memory_space<vmem>>, vector<1x128xf32>
    %c0_19 = arith.constant 0 : index
    %c0_20 = arith.constant 0 : index
    %12 = vector.load %arg4[%c0_19, %c0_20] : memref<1x128xf32, #tpu.memory_space<vmem>>, vector<1x128xf32>
    %cst_21 = arith.constant 0.000000e+00 : bf16
    %13 = vector.broadcast %cst_21 : bf16 to vector<8x1x128xbf16>
    %cst_22 = arith.constant 0.000000e+00 : f32
    %14 = vector.broadcast %cst_22 : f32 to vector<128x128xf32>
    %c0_23 = arith.constant 0 : index
    %c0_24 = arith.constant 0 : index
    %c0_25 = arith.constant 0 : index
    %15 = vector.load %arg9[%c0_23, %c0_24, %c0_25] : memref<18x18x128xbf16, #tpu.memory_space<vmem>>, vector<10x16x128xbf16>
    %16 = vector.extract_strided_slice %15 {offsets = [0, 0, 0], sizes = [8, 16, 128], strides = [1, 1, 1]} : vector<10x16x128xbf16> to vector<8x16x128xbf16>
    %17 = vector.shape_cast %16 : vector<8x16x128xbf16> to vector<128x128xbf16>
    %c0_26 = arith.constant 0 : index
    %c0_27 = arith.constant 0 : index
    %c0_28 = arith.constant 0 : index
    %18 = vector.load %arg2[%c0_26, %c0_27, %c0_28] : memref<9x128x128xbf16, #tpu.memory_space<vmem>>, vector<1x128x128xbf16>
    %19 = vector.shape_cast %18 : vector<1x128x128xbf16> to vector<128x128xbf16>
    %cst_29 = arith.constant dense<0.000000e+00> : vector<128x128xf32>
    %20 = tpu.matmul %17, %19, %cst_29 {dimension_numbers = #tpu.dot_dimension_numbers<[1], [0], [0], [1], [0, 0, 1, 1], [], []>} : vector<128x128xbf16>, vector<128x128xbf16>, vector<128x128xf32> -> vector<128x128xf32>
    %21 = arith.addf %14, %20 : vector<128x128xf32>
    %22 = vector.extract_strided_slice %15 {offsets = [1, 0, 0], sizes = [8, 16, 128], strides = [1, 1, 1]} : vector<10x16x128xbf16> to vector<8x16x128xbf16>
    %23 = vector.shape_cast %22 : vector<8x16x128xbf16> to vector<128x128xbf16>
    %c3 = arith.constant 3 : index
    %c0_30 = arith.constant 0 : index
    %c0_31 = arith.constant 0 : index
    %24 = vector.load %arg2[%c3, %c0_30, %c0_31] : memref<9x128x128xbf16, #tpu.memory_space<vmem>>, vector<1x128x128xbf16>
    %25 = vector.shape_cast %24 : vector<1x128x128xbf16> to vector<128x128xbf16>
    %cst_32 = arith.constant dense<0.000000e+00> : vector<128x128xf32>
    %26 = tpu.matmul %23, %25, %cst_32 {dimension_numbers = #tpu.dot_dimension_numbers<[1], [0], [0], [1], [0, 0, 1, 1], [], []>} : vector<128x128xbf16>, vector<128x128xbf16>, vector<128x128xf32> -> vector<128x128xf32>
    %27 = arith.addf %21, %26 : vector<128x128xf32>
    %28 = vector.extract_strided_slice %15 {offsets = [2, 0, 0], sizes = [8, 16, 128], strides = [1, 1, 1]} : vector<10x16x128xbf16> to vector<8x16x128xbf16>
    %29 = vector.shape_cast %28 : vector<8x16x128xbf16> to vector<128x128xbf16>
    %c6 = arith.constant 6 : index
    %c0_33 = arith.constant 0 : index
    %c0_34 = arith.constant 0 : index
    %30 = vector.load %arg2[%c6, %c0_33, %c0_34] : memref<9x128x128xbf16, #tpu.memory_space<vmem>>, vector<1x128x128xbf16>
    %31 = vector.shape_cast %30 : vector<1x128x128xbf16> to vector<128x128xbf16>
    %cst_35 = arith.constant dense<0.000000e+00> : vector<128x128xf32>
    %32 = tpu.matmul %29, %31, %cst_35 {dimension_numbers = #tpu.dot_dimension_numbers<[1], [0], [0], [1], [0, 0, 1, 1], [], []>} : vector<128x128xbf16>, vector<128x128xbf16>, vector<128x128xf32> -> vector<128x128xf32>
    %33 = arith.addf %27, %32 : vector<128x128xf32>
    %c0_36 = arith.constant 0 : index
    %c1_37 = arith.constant 1 : index
    %c0_38 = arith.constant 0 : index
    %34 = vector.load %arg9[%c0_36, %c1_37, %c0_38] : memref<18x18x128xbf16, #tpu.memory_space<vmem>>, vector<10x16x128xbf16>
    %35 = vector.extract_strided_slice %34 {offsets = [0, 0, 0], sizes = [8, 16, 128], strides = [1, 1, 1]} : vector<10x16x128xbf16> to vector<8x16x128xbf16>
    %36 = vector.shape_cast %35 : vector<8x16x128xbf16> to vector<128x128xbf16>
    %c1_39 = arith.constant 1 : index
    %c0_40 = arith.constant 0 : index
    %c0_41 = arith.constant 0 : index
    %37 = vector.load %arg2[%c1_39, %c0_40, %c0_41] : memref<9x128x128xbf16, #tpu.memory_space<vmem>>, vector<1x128x128xbf16>
    %38 = vector.shape_cast %37 : vector<1x128x128xbf16> to vector<128x128xbf16>
    %cst_42 = arith.constant dense<0.000000e+00> : vector<128x128xf32>
    %39 = tpu.matmul %36, %38, %cst_42 {dimension_numbers = #tpu.dot_dimension_numbers<[1], [0], [0], [1], [0, 0, 1, 1], [], []>} : vector<128x128xbf16>, vector<128x128xbf16>, vector<128x128xf32> -> vector<128x128xf32>
    %40 = arith.addf %33, %39 : vector<128x128xf32>
    %41 = vector.extract_strided_slice %34 {offsets = [1, 0, 0], sizes = [8, 16, 128], strides = [1, 1, 1]} : vector<10x16x128xbf16> to vector<8x16x128xbf16>
    %42 = vector.shape_cast %41 : vector<8x16x128xbf16> to vector<128x128xbf16>
    %c4 = arith.constant 4 : index
    %c0_43 = arith.constant 0 : index
    %c0_44 = arith.constant 0 : index
    %43 = vector.load %arg2[%c4, %c0_43, %c0_44] : memref<9x128x128xbf16, #tpu.memory_space<vmem>>, vector<1x128x128xbf16>
    %44 = vector.shape_cast %43 : vector<1x128x128xbf16> to vector<128x128xbf16>
    %cst_45 = arith.constant dense<0.000000e+00> : vector<128x128xf32>
    %45 = tpu.matmul %42, %44, %cst_45 {dimension_numbers = #tpu.dot_dimension_numbers<[1], [0], [0], [1], [0, 0, 1, 1], [], []>} : vector<128x128xbf16>, vector<128x128xbf16>, vector<128x128xf32> -> vector<128x128xf32>
    %46 = arith.addf %40, %45 : vector<128x128xf32>
    %47 = vector.extract_strided_slice %34 {offsets = [2, 0, 0], sizes = [8, 16, 128], strides = [1, 1, 1]} : vector<10x16x128xbf16> to vector<8x16x128xbf16>
    %48 = vector.shape_cast %47 : vector<8x16x128xbf16> to vector<128x128xbf16>
    %c7 = arith.constant 7 : index
    %c0_46 = arith.constant 0 : index
    %c0_47 = arith.constant 0 : index
    %49 = vector.load %arg2[%c7, %c0_46, %c0_47] : memref<9x128x128xbf16, #tpu.memory_space<vmem>>, vector<1x128x128xbf16>
    %50 = vector.shape_cast %49 : vector<1x128x128xbf16> to vector<128x128xbf16>
    %cst_48 = arith.constant dense<0.000000e+00> : vector<128x128xf32>
    %51 = tpu.matmul %48, %50, %cst_48 {dimension_numbers = #tpu.dot_dimension_numbers<[1], [0], [0], [1], [0, 0, 1, 1], [], []>} : vector<128x128xbf16>, vector<128x128xbf16>, vector<128x128xf32> -> vector<128x128xf32>
    %52 = arith.addf %46, %51 : vector<128x128xf32>
    %c0_49 = arith.constant 0 : index
    %c2 = arith.constant 2 : index
    %c0_50 = arith.constant 0 : index
    %53 = vector.load %arg9[%c0_49, %c2, %c0_50] : memref<18x18x128xbf16, #tpu.memory_space<vmem>>, vector<10x16x128xbf16>
    %54 = vector.extract_strided_slice %53 {offsets = [0, 0, 0], sizes = [8, 16, 128], strides = [1, 1, 1]} : vector<10x16x128xbf16> to vector<8x16x128xbf16>
    %55 = vector.shape_cast %54 : vector<8x16x128xbf16> to vector<128x128xbf16>
    %c2_51 = arith.constant 2 : index
    %c0_52 = arith.constant 0 : index
    %c0_53 = arith.constant 0 : index
    %56 = vector.load %arg2[%c2_51, %c0_52, %c0_53] : memref<9x128x128xbf16, #tpu.memory_space<vmem>>, vector<1x128x128xbf16>
    %57 = vector.shape_cast %56 : vector<1x128x128xbf16> to vector<128x128xbf16>
    %cst_54 = arith.constant dense<0.000000e+00> : vector<128x128xf32>
    %58 = tpu.matmul %55, %57, %cst_54 {dimension_numbers = #tpu.dot_dimension_numbers<[1], [0], [0], [1], [0, 0, 1, 1], [], []>} : vector<128x128xbf16>, vector<128x128xbf16>, vector<128x128xf32> -> vector<128x128xf32>
    %59 = arith.addf %52, %58 : vector<128x128xf32>
    %60 = vector.extract_strided_slice %53 {offsets = [1, 0, 0], sizes = [8, 16, 128], strides = [1, 1, 1]} : vector<10x16x128xbf16> to vector<8x16x128xbf16>
    %61 = vector.shape_cast %60 : vector<8x16x128xbf16> to vector<128x128xbf16>
    %c5 = arith.constant 5 : index
    %c0_55 = arith.constant 0 : index
    %c0_56 = arith.constant 0 : index
    %62 = vector.load %arg2[%c5, %c0_55, %c0_56] : memref<9x128x128xbf16, #tpu.memory_space<vmem>>, vector<1x128x128xbf16>
    %63 = vector.shape_cast %62 : vector<1x128x128xbf16> to vector<128x128xbf16>
    %cst_57 = arith.constant dense<0.000000e+00> : vector<128x128xf32>
    %64 = tpu.matmul %61, %63, %cst_57 {dimension_numbers = #tpu.dot_dimension_numbers<[1], [0], [0], [1], [0, 0, 1, 1], [], []>} : vector<128x128xbf16>, vector<128x128xbf16>, vector<128x128xf32> -> vector<128x128xf32>
    %65 = arith.addf %59, %64 : vector<128x128xf32>
    %66 = vector.extract_strided_slice %53 {offsets = [2, 0, 0], sizes = [8, 16, 128], strides = [1, 1, 1]} : vector<10x16x128xbf16> to vector<8x16x128xbf16>
    %67 = vector.shape_cast %66 : vector<8x16x128xbf16> to vector<128x128xbf16>
    %c8 = arith.constant 8 : index
    %c0_58 = arith.constant 0 : index
    %c0_59 = arith.constant 0 : index
    %68 = vector.load %arg2[%c8, %c0_58, %c0_59] : memref<9x128x128xbf16, #tpu.memory_space<vmem>>, vector<1x128x128xbf16>
    %69 = vector.shape_cast %68 : vector<1x128x128xbf16> to vector<128x128xbf16>
    %cst_60 = arith.constant dense<0.000000e+00> : vector<128x128xf32>
    %70 = tpu.matmul %67, %69, %cst_60 {dimension_numbers = #tpu.dot_dimension_numbers<[1], [0], [0], [1], [0, 0, 1, 1], [], []>} : vector<128x128xbf16>, vector<128x128xbf16>, vector<128x128xf32> -> vector<128x128xf32>
    %71 = arith.addf %65, %70 : vector<128x128xf32>
    %72 = vector.broadcast %11 : vector<1x128xf32> to vector<128x128xf32>
    %73 = arith.mulf %71, %72 : vector<128x128xf32>
    %74 = vector.broadcast %12 : vector<1x128xf32> to vector<128x128xf32>
    %75 = arith.addf %73, %74 : vector<128x128xf32>
    %cst_61 = arith.constant 0.000000e+00 : f32
    %76 = vector.broadcast %cst_61 : f32 to vector<128x128xf32>
    %77 = arith.maximumf %75, %76 : vector<128x128xf32>
    %78 = vector.shape_cast %77 : vector<128x128xf32> to vector<8x16x128xf32>
    %79 = arith.truncf %78 : vector<8x16x128xf32> to vector<8x16x128xbf16>
    %80 = tpu.concatenate %13, %79, %13 in 1 : vector<8x1x128xbf16>, vector<8x16x128xbf16>, vector<8x1x128xbf16> -> vector<8x18x128xbf16>
    %c1_62 = arith.constant 1 : index
    %c0_63 = arith.constant 0 : index
    %c0_64 = arith.constant 0 : index
    %81 = vector.load %arg10[%c1_62, %c0_63, %c0_64] : memref<18x18x128xbf16, #tpu.memory_space<vmem>>, vector<8x18x128xbf16>
    tpu.vector_store %arg10[%c1_62, %c0_63, %c0_64], %80 {strides = array<i32>} : memref<18x18x128xbf16, #tpu.memory_space<vmem>>, vector<8x18x128xbf16>,
    %cst_65 = arith.constant 0.000000e+00 : f32
    %82 = vector.broadcast %cst_65 : f32 to vector<128x128xf32>
    %c8_66 = arith.constant 8 : index
    %c0_67 = arith.constant 0 : index
    %c0_68 = arith.constant 0 : index
    %83 = vector.load %arg9[%c8_66, %c0_67, %c0_68] : memref<18x18x128xbf16, #tpu.memory_space<vmem>>, vector<10x16x128xbf16>
    %84 = vector.extract_strided_slice %83 {offsets = [0, 0, 0], sizes = [8, 16, 128], strides = [1, 1, 1]} : vector<10x16x128xbf16> to vector<8x16x128xbf16>
    %85 = vector.shape_cast %84 : vector<8x16x128xbf16> to vector<128x128xbf16>
    %c0_69 = arith.constant 0 : index
    %c0_70 = arith.constant 0 : index
    %c0_71 = arith.constant 0 : index
    %86 = vector.load %arg2[%c0_69, %c0_70, %c0_71] : memref<9x128x128xbf16, #tpu.memory_space<vmem>>, vector<1x128x128xbf16>
    %87 = vector.shape_cast %86 : vector<1x128x128xbf16> to vector<128x128xbf16>
    %cst_72 = arith.constant dense<0.000000e+00> : vector<128x128xf32>
    %88 = tpu.matmul %85, %87, %cst_72 {dimension_numbers = #tpu.dot_dimension_numbers<[1], [0], [0], [1], [0, 0, 1, 1], [], []>} : vector<128x128xbf16>, vector<128x128xbf16>, vector<128x128xf32> -> vector<128x128xf32>
    %89 = arith.addf %82, %88 : vector<128x128xf32>
    %90 = vector.extract_strided_slice %83 {offsets = [1, 0, 0], sizes = [8, 16, 128], strides = [1, 1, 1]} : vector<10x16x128xbf16> to vector<8x16x128xbf16>
    %91 = vector.shape_cast %90 : vector<8x16x128xbf16> to vector<128x128xbf16>
    %c3_73 = arith.constant 3 : index
    %c0_74 = arith.constant 0 : index
    %c0_75 = arith.constant 0 : index
    %92 = vector.load %arg2[%c3_73, %c0_74, %c0_75] : memref<9x128x128xbf16, #tpu.memory_space<vmem>>, vector<1x128x128xbf16>
    %93 = vector.shape_cast %92 : vector<1x128x128xbf16> to vector<128x128xbf16>
    %cst_76 = arith.constant dense<0.000000e+00> : vector<128x128xf32>
    %94 = tpu.matmul %91, %93, %cst_76 {dimension_numbers = #tpu.dot_dimension_numbers<[1], [0], [0], [1], [0, 0, 1, 1], [], []>} : vector<128x128xbf16>, vector<128x128xbf16>, vector<128x128xf32> -> vector<128x128xf32>
    %95 = arith.addf %89, %94 : vector<128x128xf32>
    %96 = vector.extract_strided_slice %83 {offsets = [2, 0, 0], sizes = [8, 16, 128], strides = [1, 1, 1]} : vector<10x16x128xbf16> to vector<8x16x128xbf16>
    %97 = vector.shape_cast %96 : vector<8x16x128xbf16> to vector<128x128xbf16>
    %c6_77 = arith.constant 6 : index
    %c0_78 = arith.constant 0 : index
    %c0_79 = arith.constant 0 : index
    %98 = vector.load %arg2[%c6_77, %c0_78, %c0_79] : memref<9x128x128xbf16, #tpu.memory_space<vmem>>, vector<1x128x128xbf16>
    %99 = vector.shape_cast %98 : vector<1x128x128xbf16> to vector<128x128xbf16>
    %cst_80 = arith.constant dense<0.000000e+00> : vector<128x128xf32>
    %100 = tpu.matmul %97, %99, %cst_80 {dimension_numbers = #tpu.dot_dimension_numbers<[1], [0], [0], [1], [0, 0, 1, 1], [], []>} : vector<128x128xbf16>, vector<128x128xbf16>, vector<128x128xf32> -> vector<128x128xf32>
    %101 = arith.addf %95, %100 : vector<128x128xf32>
    %c8_81 = arith.constant 8 : index
    %c1_82 = arith.constant 1 : index
    %c0_83 = arith.constant 0 : index
    %102 = vector.load %arg9[%c8_81, %c1_82, %c0_83] : memref<18x18x128xbf16, #tpu.memory_space<vmem>>, vector<10x16x128xbf16>
    %103 = vector.extract_strided_slice %102 {offsets = [0, 0, 0], sizes = [8, 16, 128], strides = [1, 1, 1]} : vector<10x16x128xbf16> to vector<8x16x128xbf16>
    %104 = vector.shape_cast %103 : vector<8x16x128xbf16> to vector<128x128xbf16>
    %c1_84 = arith.constant 1 : index
    %c0_85 = arith.constant 0 : index
    %c0_86 = arith.constant 0 : index
    %105 = vector.load %arg2[%c1_84, %c0_85, %c0_86] : memref<9x128x128xbf16, #tpu.memory_space<vmem>>, vector<1x128x128xbf16>
    %106 = vector.shape_cast %105 : vector<1x128x128xbf16> to vector<128x128xbf16>
    %cst_87 = arith.constant dense<0.000000e+00> : vector<128x128xf32>
    %107 = tpu.matmul %104, %106, %cst_87 {dimension_numbers = #tpu.dot_dimension_numbers<[1], [0], [0], [1], [0, 0, 1, 1], [], []>} : vector<128x128xbf16>, vector<128x128xbf16>, vector<128x128xf32> -> vector<128x128xf32>
    %108 = arith.addf %101, %107 : vector<128x128xf32>
    %109 = vector.extract_strided_slice %102 {offsets = [1, 0, 0], sizes = [8, 16, 128], strides = [1, 1, 1]} : vector<10x16x128xbf16> to vector<8x16x128xbf16>
    %110 = vector.shape_cast %109 : vector<8x16x128xbf16> to vector<128x128xbf16>
    %c4_88 = arith.constant 4 : index
    %c0_89 = arith.constant 0 : index
    %c0_90 = arith.constant 0 : index
    %111 = vector.load %arg2[%c4_88, %c0_89, %c0_90] : memref<9x128x128xbf16, #tpu.memory_space<vmem>>, vector<1x128x128xbf16>
    %112 = vector.shape_cast %111 : vector<1x128x128xbf16> to vector<128x128xbf16>
    %cst_91 = arith.constant dense<0.000000e+00> : vector<128x128xf32>
    %113 = tpu.matmul %110, %112, %cst_91 {dimension_numbers = #tpu.dot_dimension_numbers<[1], [0], [0], [1], [0, 0, 1, 1], [], []>} : vector<128x128xbf16>, vector<128x128xbf16>, vector<128x128xf32> -> vector<128x128xf32>
    %114 = arith.addf %108, %113 : vector<128x128xf32>
    %115 = vector.extract_strided_slice %102 {offsets = [2, 0, 0], sizes = [8, 16, 128], strides = [1, 1, 1]} : vector<10x16x128xbf16> to vector<8x16x128xbf16>
    %116 = vector.shape_cast %115 : vector<8x16x128xbf16> to vector<128x128xbf16>
    %c7_92 = arith.constant 7 : index
    %c0_93 = arith.constant 0 : index
    %c0_94 = arith.constant 0 : index
    %117 = vector.load %arg2[%c7_92, %c0_93, %c0_94] : memref<9x128x128xbf16, #tpu.memory_space<vmem>>, vector<1x128x128xbf16>
    %118 = vector.shape_cast %117 : vector<1x128x128xbf16> to vector<128x128xbf16>
    %cst_95 = arith.constant dense<0.000000e+00> : vector<128x128xf32>
    %119 = tpu.matmul %116, %118, %cst_95 {dimension_numbers = #tpu.dot_dimension_numbers<[1], [0], [0], [1], [0, 0, 1, 1], [], []>} : vector<128x128xbf16>, vector<128x128xbf16>, vector<128x128xf32> -> vector<128x128xf32>
    %120 = arith.addf %114, %119 : vector<128x128xf32>
    %c8_96 = arith.constant 8 : index
    %c2_97 = arith.constant 2 : index
    %c0_98 = arith.constant 0 : index
    %121 = vector.load %arg9[%c8_96, %c2_97, %c0_98] : memref<18x18x128xbf16, #tpu.memory_space<vmem>>, vector<10x16x128xbf16>
    %122 = vector.extract_strided_slice %121 {offsets = [0, 0, 0], sizes = [8, 16, 128], strides = [1, 1, 1]} : vector<10x16x128xbf16> to vector<8x16x128xbf16>
    %123 = vector.shape_cast %122 : vector<8x16x128xbf16> to vector<128x128xbf16>
    %c2_99 = arith.constant 2 : index
    %c0_100 = arith.constant 0 : index
    %c0_101 = arith.constant 0 : index
    %124 = vector.load %arg2[%c2_99, %c0_100, %c0_101] : memref<9x128x128xbf16, #tpu.memory_space<vmem>>, vector<1x128x128xbf16>
    %125 = vector.shape_cast %124 : vector<1x128x128xbf16> to vector<128x128xbf16>
    %cst_102 = arith.constant dense<0.000000e+00> : vector<128x128xf32>
    %126 = tpu.matmul %123, %125, %cst_102 {dimension_numbers = #tpu.dot_dimension_numbers<[1], [0], [0], [1], [0, 0, 1, 1], [], []>} : vector<128x128xbf16>, vector<128x128xbf16>, vector<128x128xf32> -> vector<128x128xf32>
    %127 = arith.addf %120, %126 : vector<128x128xf32>
    %128 = vector.extract_strided_slice %121 {offsets = [1, 0, 0], sizes = [8, 16, 128], strides = [1, 1, 1]} : vector<10x16x128xbf16> to vector<8x16x128xbf16>
    %129 = vector.shape_cast %128 : vector<8x16x128xbf16> to vector<128x128xbf16>
    %c5_103 = arith.constant 5 : index
    %c0_104 = arith.constant 0 : index
    %c0_105 = arith.constant 0 : index
    %130 = vector.load %arg2[%c5_103, %c0_104, %c0_105] : memref<9x128x128xbf16, #tpu.memory_space<vmem>>, vector<1x128x128xbf16>
    %131 = vector.shape_cast %130 : vector<1x128x128xbf16> to vector<128x128xbf16>
    %cst_106 = arith.constant dense<0.000000e+00> : vector<128x128xf32>
    %132 = tpu.matmul %129, %131, %cst_106 {dimension_numbers = #tpu.dot_dimension_numbers<[1], [0], [0], [1], [0, 0, 1, 1], [], []>} : vector<128x128xbf16>, vector<128x128xbf16>, vector<128x128xf32> -> vector<128x128xf32>
    %133 = arith.addf %127, %132 : vector<128x128xf32>
    %134 = vector.extract_strided_slice %121 {offsets = [2, 0, 0], sizes = [8, 16, 128], strides = [1, 1, 1]} : vector<10x16x128xbf16> to vector<8x16x128xbf16>
    %135 = vector.shape_cast %134 : vector<8x16x128xbf16> to vector<128x128xbf16>
    %c8_107 = arith.constant 8 : index
    %c0_108 = arith.constant 0 : index
    %c0_109 = arith.constant 0 : index
    %136 = vector.load %arg2[%c8_107, %c0_108, %c0_109] : memref<9x128x128xbf16, #tpu.memory_space<vmem>>, vector<1x128x128xbf16>
    %137 = vector.shape_cast %136 : vector<1x128x128xbf16> to vector<128x128xbf16>
    %cst_110 = arith.constant dense<0.000000e+00> : vector<128x128xf32>
    %138 = tpu.matmul %135, %137, %cst_110 {dimension_numbers = #tpu.dot_dimension_numbers<[1], [0], [0], [1], [0, 0, 1, 1], [], []>} : vector<128x128xbf16>, vector<128x128xbf16>, vector<128x128xf32> -> vector<128x128xf32>
    %139 = arith.addf %133, %138 : vector<128x128xf32>
    %140 = vector.broadcast %11 : vector<1x128xf32> to vector<128x128xf32>
    %141 = arith.mulf %139, %140 : vector<128x128xf32>
    %142 = vector.broadcast %12 : vector<1x128xf32> to vector<128x128xf32>
    %143 = arith.addf %141, %142 : vector<128x128xf32>
    %cst_111 = arith.constant 0.000000e+00 : f32
    %144 = vector.broadcast %cst_111 : f32 to vector<128x128xf32>
    %145 = arith.maximumf %143, %144 : vector<128x128xf32>
    %146 = vector.shape_cast %145 : vector<128x128xf32> to vector<8x16x128xf32>
    %147 = arith.truncf %146 : vector<8x16x128xf32> to vector<8x16x128xbf16>
    %148 = tpu.concatenate %13, %147, %13 in 1 : vector<8x1x128xbf16>, vector<8x16x128xbf16>, vector<8x1x128xbf16> -> vector<8x18x128xbf16>
    %c9 = arith.constant 9 : index
    %c0_112 = arith.constant 0 : index
    %c0_113 = arith.constant 0 : index
    %149 = vector.load %arg10[%c9, %c0_112, %c0_113] : memref<18x18x128xbf16, #tpu.memory_space<vmem>>, vector<8x18x128xbf16>
    tpu.vector_store %arg10[%c9, %c0_112, %c0_113], %148 {strides = array<i32>} : memref<18x18x128xbf16, #tpu.memory_space<vmem>>, vector<8x18x128xbf16>,
    %c0_114 = arith.constant 0 : index
    %c0_115 = arith.constant 0 : index
    %150 = vector.load %arg6[%c0_114, %c0_115] : memref<1x128xf32, #tpu.memory_space<vmem>>, vector<1x128xf32>
    %c0_116 = arith.constant 0 : index
    %c0_117 = arith.constant 0 : index
    %151 = vector.load %arg7[%c0_116, %c0_117] : memref<1x128xf32, #tpu.memory_space<vmem>>, vector<1x128xf32>
    %cst_118 = arith.constant 0.000000e+00 : f32
    %152 = vector.broadcast %cst_118 : f32 to vector<128x128xf32>
    %c0_119 = arith.constant 0 : index
    %c0_120 = arith.constant 0 : index
    %c0_121 = arith.constant 0 : index
    %153 = vector.load %arg10[%c0_119, %c0_120, %c0_121] : memref<18x18x128xbf16, #tpu.memory_space<vmem>>, vector<10x16x128xbf16>
    %154 = vector.extract_strided_slice %153 {offsets = [0, 0, 0], sizes = [8, 16, 128], strides = [1, 1, 1]} : vector<10x16x128xbf16> to vector<8x16x128xbf16>
    %155 = vector.shape_cast %154 : vector<8x16x128xbf16> to vector<128x128xbf16>
    %c0_122 = arith.constant 0 : index
    %c0_123 = arith.constant 0 : index
    %c0_124 = arith.constant 0 : index
    %156 = vector.load %arg5[%c0_122, %c0_123, %c0_124] : memref<9x128x128xbf16, #tpu.memory_space<vmem>>, vector<1x128x128xbf16>
    %157 = vector.shape_cast %156 : vector<1x128x128xbf16> to vector<128x128xbf16>
    %cst_125 = arith.constant dense<0.000000e+00> : vector<128x128xf32>
    %158 = tpu.matmul %155, %157, %cst_125 {dimension_numbers = #tpu.dot_dimension_numbers<[1], [0], [0], [1], [0, 0, 1, 1], [], []>} : vector<128x128xbf16>, vector<128x128xbf16>, vector<128x128xf32> -> vector<128x128xf32>
    %159 = arith.addf %152, %158 : vector<128x128xf32>
    %160 = vector.extract_strided_slice %153 {offsets = [1, 0, 0], sizes = [8, 16, 128], strides = [1, 1, 1]} : vector<10x16x128xbf16> to vector<8x16x128xbf16>
    %161 = vector.shape_cast %160 : vector<8x16x128xbf16> to vector<128x128xbf16>
    %c3_126 = arith.constant 3 : index
    %c0_127 = arith.constant 0 : index
    %c0_128 = arith.constant 0 : index
    %162 = vector.load %arg5[%c3_126, %c0_127, %c0_128] : memref<9x128x128xbf16, #tpu.memory_space<vmem>>, vector<1x128x128xbf16>
    %163 = vector.shape_cast %162 : vector<1x128x128xbf16> to vector<128x128xbf16>
    %cst_129 = arith.constant dense<0.000000e+00> : vector<128x128xf32>
    %164 = tpu.matmul %161, %163, %cst_129 {dimension_numbers = #tpu.dot_dimension_numbers<[1], [0], [0], [1], [0, 0, 1, 1], [], []>} : vector<128x128xbf16>, vector<128x128xbf16>, vector<128x128xf32> -> vector<128x128xf32>
    %165 = arith.addf %159, %164 : vector<128x128xf32>
    %166 = vector.extract_strided_slice %153 {offsets = [2, 0, 0], sizes = [8, 16, 128], strides = [1, 1, 1]} : vector<10x16x128xbf16> to vector<8x16x128xbf16>
    %167 = vector.shape_cast %166 : vector<8x16x128xbf16> to vector<128x128xbf16>
    %c6_130 = arith.constant 6 : index
    %c0_131 = arith.constant 0 : index
    %c0_132 = arith.constant 0 : index
    %168 = vector.load %arg5[%c6_130, %c0_131, %c0_132] : memref<9x128x128xbf16, #tpu.memory_space<vmem>>, vector<1x128x128xbf16>
    %169 = vector.shape_cast %168 : vector<1x128x128xbf16> to vector<128x128xbf16>
    %cst_133 = arith.constant dense<0.000000e+00> : vector<128x128xf32>
    %170 = tpu.matmul %167, %169, %cst_133 {dimension_numbers = #tpu.dot_dimension_numbers<[1], [0], [0], [1], [0, 0, 1, 1], [], []>} : vector<128x128xbf16>, vector<128x128xbf16>, vector<128x128xf32> -> vector<128x128xf32>
    %171 = arith.addf %165, %170 : vector<128x128xf32>
    %c0_134 = arith.constant 0 : index
    %c1_135 = arith.constant 1 : index
    %c0_136 = arith.constant 0 : index
    %172 = vector.load %arg10[%c0_134, %c1_135, %c0_136] : memref<18x18x128xbf16, #tpu.memory_space<vmem>>, vector<10x16x128xbf16>
    %173 = vector.extract_strided_slice %172 {offsets = [0, 0, 0], sizes = [8, 16, 128], strides = [1, 1, 1]} : vector<10x16x128xbf16> to vector<8x16x128xbf16>
    %174 = vector.shape_cast %173 : vector<8x16x128xbf16> to vector<128x128xbf16>
    %c1_137 = arith.constant 1 : index
    %c0_138 = arith.constant 0 : index
    %c0_139 = arith.constant 0 : index
    %175 = vector.load %arg5[%c1_137, %c0_138, %c0_139] : memref<9x128x128xbf16, #tpu.memory_space<vmem>>, vector<1x128x128xbf16>
    %176 = vector.shape_cast %175 : vector<1x128x128xbf16> to vector<128x128xbf16>
    %cst_140 = arith.constant dense<0.000000e+00> : vector<128x128xf32>
    %177 = tpu.matmul %174, %176, %cst_140 {dimension_numbers = #tpu.dot_dimension_numbers<[1], [0], [0], [1], [0, 0, 1, 1], [], []>} : vector<128x128xbf16>, vector<128x128xbf16>, vector<128x128xf32> -> vector<128x128xf32>
    %178 = arith.addf %171, %177 : vector<128x128xf32>
    %179 = vector.extract_strided_slice %172 {offsets = [1, 0, 0], sizes = [8, 16, 128], strides = [1, 1, 1]} : vector<10x16x128xbf16> to vector<8x16x128xbf16>
    %180 = vector.shape_cast %179 : vector<8x16x128xbf16> to vector<128x128xbf16>
    %c4_141 = arith.constant 4 : index
    %c0_142 = arith.constant 0 : index
    %c0_143 = arith.constant 0 : index
    %181 = vector.load %arg5[%c4_141, %c0_142, %c0_143] : memref<9x128x128xbf16, #tpu.memory_space<vmem>>, vector<1x128x128xbf16>
    %182 = vector.shape_cast %181 : vector<1x128x128xbf16> to vector<128x128xbf16>
    %cst_144 = arith.constant dense<0.000000e+00> : vector<128x128xf32>
    %183 = tpu.matmul %180, %182, %cst_144 {dimension_numbers = #tpu.dot_dimension_numbers<[1], [0], [0], [1], [0, 0, 1, 1], [], []>} : vector<128x128xbf16>, vector<128x128xbf16>, vector<128x128xf32> -> vector<128x128xf32>
    %184 = arith.addf %178, %183 : vector<128x128xf32>
    %185 = vector.extract_strided_slice %172 {offsets = [2, 0, 0], sizes = [8, 16, 128], strides = [1, 1, 1]} : vector<10x16x128xbf16> to vector<8x16x128xbf16>
    %186 = vector.shape_cast %185 : vector<8x16x128xbf16> to vector<128x128xbf16>
    %c7_145 = arith.constant 7 : index
    %c0_146 = arith.constant 0 : index
    %c0_147 = arith.constant 0 : index
    %187 = vector.load %arg5[%c7_145, %c0_146, %c0_147] : memref<9x128x128xbf16, #tpu.memory_space<vmem>>, vector<1x128x128xbf16>
    %188 = vector.shape_cast %187 : vector<1x128x128xbf16> to vector<128x128xbf16>
    %cst_148 = arith.constant dense<0.000000e+00> : vector<128x128xf32>
    %189 = tpu.matmul %186, %188, %cst_148 {dimension_numbers = #tpu.dot_dimension_numbers<[1], [0], [0], [1], [0, 0, 1, 1], [], []>} : vector<128x128xbf16>, vector<128x128xbf16>, vector<128x128xf32> -> vector<128x128xf32>
    %190 = arith.addf %184, %189 : vector<128x128xf32>
    %c0_149 = arith.constant 0 : index
    %c2_150 = arith.constant 2 : index
    %c0_151 = arith.constant 0 : index
    %191 = vector.load %arg10[%c0_149, %c2_150, %c0_151] : memref<18x18x128xbf16, #tpu.memory_space<vmem>>, vector<10x16x128xbf16>
    %192 = vector.extract_strided_slice %191 {offsets = [0, 0, 0], sizes = [8, 16, 128], strides = [1, 1, 1]} : vector<10x16x128xbf16> to vector<8x16x128xbf16>
    %193 = vector.shape_cast %192 : vector<8x16x128xbf16> to vector<128x128xbf16>
    %c2_152 = arith.constant 2 : index
    %c0_153 = arith.constant 0 : index
    %c0_154 = arith.constant 0 : index
    %194 = vector.load %arg5[%c2_152, %c0_153, %c0_154] : memref<9x128x128xbf16, #tpu.memory_space<vmem>>, vector<1x128x128xbf16>
    %195 = vector.shape_cast %194 : vector<1x128x128xbf16> to vector<128x128xbf16>
    %cst_155 = arith.constant dense<0.000000e+00> : vector<128x128xf32>
    %196 = tpu.matmul %193, %195, %cst_155 {dimension_numbers = #tpu.dot_dimension_numbers<[1], [0], [0], [1], [0, 0, 1, 1], [], []>} : vector<128x128xbf16>, vector<128x128xbf16>, vector<128x128xf32> -> vector<128x128xf32>
    %197 = arith.addf %190, %196 : vector<128x128xf32>
    %198 = vector.extract_strided_slice %191 {offsets = [1, 0, 0], sizes = [8, 16, 128], strides = [1, 1, 1]} : vector<10x16x128xbf16> to vector<8x16x128xbf16>
    %199 = vector.shape_cast %198 : vector<8x16x128xbf16> to vector<128x128xbf16>
    %c5_156 = arith.constant 5 : index
    %c0_157 = arith.constant 0 : index
    %c0_158 = arith.constant 0 : index
    %200 = vector.load %arg5[%c5_156, %c0_157, %c0_158] : memref<9x128x128xbf16, #tpu.memory_space<vmem>>, vector<1x128x128xbf16>
    %201 = vector.shape_cast %200 : vector<1x128x128xbf16> to vector<128x128xbf16>
    %cst_159 = arith.constant dense<0.000000e+00> : vector<128x128xf32>
    %202 = tpu.matmul %199, %201, %cst_159 {dimension_numbers = #tpu.dot_dimension_numbers<[1], [0], [0], [1], [0, 0, 1, 1], [], []>} : vector<128x128xbf16>, vector<128x128xbf16>, vector<128x128xf32> -> vector<128x128xf32>
    %203 = arith.addf %197, %202 : vector<128x128xf32>
    %204 = vector.extract_strided_slice %191 {offsets = [2, 0, 0], sizes = [8, 16, 128], strides = [1, 1, 1]} : vector<10x16x128xbf16> to vector<8x16x128xbf16>
    %205 = vector.shape_cast %204 : vector<8x16x128xbf16> to vector<128x128xbf16>
    %c8_160 = arith.constant 8 : index
    %c0_161 = arith.constant 0 : index
    %c0_162 = arith.constant 0 : index
    %206 = vector.load %arg5[%c8_160, %c0_161, %c0_162] : memref<9x128x128xbf16, #tpu.memory_space<vmem>>, vector<1x128x128xbf16>
    %207 = vector.shape_cast %206 : vector<1x128x128xbf16> to vector<128x128xbf16>
    %cst_163 = arith.constant dense<0.000000e+00> : vector<128x128xf32>
    %208 = tpu.matmul %205, %207, %cst_163 {dimension_numbers = #tpu.dot_dimension_numbers<[1], [0], [0], [1], [0, 0, 1, 1], [], []>} : vector<128x128xbf16>, vector<128x128xbf16>, vector<128x128xf32> -> vector<128x128xf32>
    %209 = arith.addf %203, %208 : vector<128x128xf32>
    %c0_164 = arith.constant 0 : index
    %c0_165 = arith.constant 0 : index
    %c0_166 = arith.constant 0 : index
    %c0_167 = arith.constant 0 : index
    %210 = vector.load %arg1[%c0_164, %c0_165, %c0_166, %c0_167] : memref<1x16x16x128xf32, #tpu.memory_space<vmem>>, vector<1x8x16x128xf32>
    %211 = vector.shape_cast %210 : vector<1x8x16x128xf32> to vector<8x16x128xf32>
    %212 = vector.shape_cast %211 : vector<8x16x128xf32> to vector<128x128xf32>
    %213 = vector.broadcast %150 : vector<1x128xf32> to vector<128x128xf32>
    %214 = arith.mulf %209, %213 : vector<128x128xf32>
    %215 = vector.broadcast %151 : vector<1x128xf32> to vector<128x128xf32>
    %216 = arith.addf %214, %215 : vector<128x128xf32>
    %217 = arith.addf %216, %212 : vector<128x128xf32>
    %cst_168 = arith.constant 0.000000e+00 : f32
    %218 = vector.broadcast %cst_168 : f32 to vector<128x128xf32>
    %219 = arith.maximumf %217, %218 : vector<128x128xf32>
    %220 = vector.shape_cast %219 : vector<128x128xf32> to vector<8x16x128xf32>
    %c0_169 = arith.constant 0 : index
    %c0_170 = arith.constant 0 : index
    %c0_171 = arith.constant 0 : index
    %c0_172 = arith.constant 0 : index
    %221 = vector.load %arg8[%c0_169, %c0_170, %c0_171, %c0_172] : memref<1x16x16x128xf32, #tpu.memory_space<vmem>>, vector<1x8x16x128xf32>
    %222 = vector.shape_cast %221 : vector<1x8x16x128xf32> to vector<8x16x128xf32>
    %223 = vector.shape_cast %220 : vector<8x16x128xf32> to vector<1x8x16x128xf32>
    tpu.vector_store %arg8[%c0_169, %c0_170, %c0_171, %c0_172], %223 {strides = array<i32>} : memref<1x16x16x128xf32, #tpu.memory_space<vmem>>, vector<1x8x16x128xf32>,
    %cst_173 = arith.constant 0.000000e+00 : f32
    %224 = vector.broadcast %cst_173 : f32 to vector<128x128xf32>
    %c8_174 = arith.constant 8 : index
    %c0_175 = arith.constant 0 : index
    %c0_176 = arith.constant 0 : index
    %225 = vector.load %arg10[%c8_174, %c0_175, %c0_176] : memref<18x18x128xbf16, #tpu.memory_space<vmem>>, vector<10x16x128xbf16>
    %226 = vector.extract_strided_slice %225 {offsets = [0, 0, 0], sizes = [8, 16, 128], strides = [1, 1, 1]} : vector<10x16x128xbf16> to vector<8x16x128xbf16>
    %227 = vector.shape_cast %226 : vector<8x16x128xbf16> to vector<128x128xbf16>
    %c0_177 = arith.constant 0 : index
    %c0_178 = arith.constant 0 : index
    %c0_179 = arith.constant 0 : index
    %228 = vector.load %arg5[%c0_177, %c0_178, %c0_179] : memref<9x128x128xbf16, #tpu.memory_space<vmem>>, vector<1x128x128xbf16>
    %229 = vector.shape_cast %228 : vector<1x128x128xbf16> to vector<128x128xbf16>
    %cst_180 = arith.constant dense<0.000000e+00> : vector<128x128xf32>
    %230 = tpu.matmul %227, %229, %cst_180 {dimension_numbers = #tpu.dot_dimension_numbers<[1], [0], [0], [1], [0, 0, 1, 1], [], []>} : vector<128x128xbf16>, vector<128x128xbf16>, vector<128x128xf32> -> vector<128x128xf32>
    %231 = arith.addf %224, %230 : vector<128x128xf32>
    %232 = vector.extract_strided_slice %225 {offsets = [1, 0, 0], sizes = [8, 16, 128], strides = [1, 1, 1]} : vector<10x16x128xbf16> to vector<8x16x128xbf16>
    %233 = vector.shape_cast %232 : vector<8x16x128xbf16> to vector<128x128xbf16>
    %c3_181 = arith.constant 3 : index
    %c0_182 = arith.constant 0 : index
    %c0_183 = arith.constant 0 : index
    %234 = vector.load %arg5[%c3_181, %c0_182, %c0_183] : memref<9x128x128xbf16, #tpu.memory_space<vmem>>, vector<1x128x128xbf16>
    %235 = vector.shape_cast %234 : vector<1x128x128xbf16> to vector<128x128xbf16>
    %cst_184 = arith.constant dense<0.000000e+00> : vector<128x128xf32>
    %236 = tpu.matmul %233, %235, %cst_184 {dimension_numbers = #tpu.dot_dimension_numbers<[1], [0], [0], [1], [0, 0, 1, 1], [], []>} : vector<128x128xbf16>, vector<128x128xbf16>, vector<128x128xf32> -> vector<128x128xf32>
    %237 = arith.addf %231, %236 : vector<128x128xf32>
    %238 = vector.extract_strided_slice %225 {offsets = [2, 0, 0], sizes = [8, 16, 128], strides = [1, 1, 1]} : vector<10x16x128xbf16> to vector<8x16x128xbf16>
    %239 = vector.shape_cast %238 : vector<8x16x128xbf16> to vector<128x128xbf16>
    %c6_185 = arith.constant 6 : index
    %c0_186 = arith.constant 0 : index
    %c0_187 = arith.constant 0 : index
    %240 = vector.load %arg5[%c6_185, %c0_186, %c0_187] : memref<9x128x128xbf16, #tpu.memory_space<vmem>>, vector<1x128x128xbf16>
    %241 = vector.shape_cast %240 : vector<1x128x128xbf16> to vector<128x128xbf16>
    %cst_188 = arith.constant dense<0.000000e+00> : vector<128x128xf32>
    %242 = tpu.matmul %239, %241, %cst_188 {dimension_numbers = #tpu.dot_dimension_numbers<[1], [0], [0], [1], [0, 0, 1, 1], [], []>} : vector<128x128xbf16>, vector<128x128xbf16>, vector<128x128xf32> -> vector<128x128xf32>
    %243 = arith.addf %237, %242 : vector<128x128xf32>
    %c8_189 = arith.constant 8 : index
    %c1_190 = arith.constant 1 : index
    %c0_191 = arith.constant 0 : index
    %244 = vector.load %arg10[%c8_189, %c1_190, %c0_191] : memref<18x18x128xbf16, #tpu.memory_space<vmem>>, vector<10x16x128xbf16>
    %245 = vector.extract_strided_slice %244 {offsets = [0, 0, 0], sizes = [8, 16, 128], strides = [1, 1, 1]} : vector<10x16x128xbf16> to vector<8x16x128xbf16>
    %246 = vector.shape_cast %245 : vector<8x16x128xbf16> to vector<128x128xbf16>
    %c1_192 = arith.constant 1 : index
    %c0_193 = arith.constant 0 : index
    %c0_194 = arith.constant 0 : index
    %247 = vector.load %arg5[%c1_192, %c0_193, %c0_194] : memref<9x128x128xbf16, #tpu.memory_space<vmem>>, vector<1x128x128xbf16>
    %248 = vector.shape_cast %247 : vector<1x128x128xbf16> to vector<128x128xbf16>
    %cst_195 = arith.constant dense<0.000000e+00> : vector<128x128xf32>
    %249 = tpu.matmul %246, %248, %cst_195 {dimension_numbers = #tpu.dot_dimension_numbers<[1], [0], [0], [1], [0, 0, 1, 1], [], []>} : vector<128x128xbf16>, vector<128x128xbf16>, vector<128x128xf32> -> vector<128x128xf32>
    %250 = arith.addf %243, %249 : vector<128x128xf32>
    %251 = vector.extract_strided_slice %244 {offsets = [1, 0, 0], sizes = [8, 16, 128], strides = [1, 1, 1]} : vector<10x16x128xbf16> to vector<8x16x128xbf16>
    %252 = vector.shape_cast %251 : vector<8x16x128xbf16> to vector<128x128xbf16>
    %c4_196 = arith.constant 4 : index
    %c0_197 = arith.constant 0 : index
    %c0_198 = arith.constant 0 : index
    %253 = vector.load %arg5[%c4_196, %c0_197, %c0_198] : memref<9x128x128xbf16, #tpu.memory_space<vmem>>, vector<1x128x128xbf16>
    %254 = vector.shape_cast %253 : vector<1x128x128xbf16> to vector<128x128xbf16>
    %cst_199 = arith.constant dense<0.000000e+00> : vector<128x128xf32>
    %255 = tpu.matmul %252, %254, %cst_199 {dimension_numbers = #tpu.dot_dimension_numbers<[1], [0], [0], [1], [0, 0, 1, 1], [], []>} : vector<128x128xbf16>, vector<128x128xbf16>, vector<128x128xf32> -> vector<128x128xf32>
    %256 = arith.addf %250, %255 : vector<128x128xf32>
    %257 = vector.extract_strided_slice %244 {offsets = [2, 0, 0], sizes = [8, 16, 128], strides = [1, 1, 1]} : vector<10x16x128xbf16> to vector<8x16x128xbf16>
    %258 = vector.shape_cast %257 : vector<8x16x128xbf16> to vector<128x128xbf16>
    %c7_200 = arith.constant 7 : index
    %c0_201 = arith.constant 0 : index
    %c0_202 = arith.constant 0 : index
    %259 = vector.load %arg5[%c7_200, %c0_201, %c0_202] : memref<9x128x128xbf16, #tpu.memory_space<vmem>>, vector<1x128x128xbf16>
    %260 = vector.shape_cast %259 : vector<1x128x128xbf16> to vector<128x128xbf16>
    %cst_203 = arith.constant dense<0.000000e+00> : vector<128x128xf32>
    %261 = tpu.matmul %258, %260, %cst_203 {dimension_numbers = #tpu.dot_dimension_numbers<[1], [0], [0], [1], [0, 0, 1, 1], [], []>} : vector<128x128xbf16>, vector<128x128xbf16>, vector<128x128xf32> -> vector<128x128xf32>
    %262 = arith.addf %256, %261 : vector<128x128xf32>
    %c8_204 = arith.constant 8 : index
    %c2_205 = arith.constant 2 : index
    %c0_206 = arith.constant 0 : index
    %263 = vector.load %arg10[%c8_204, %c2_205, %c0_206] : memref<18x18x128xbf16, #tpu.memory_space<vmem>>, vector<10x16x128xbf16>
    %264 = vector.extract_strided_slice %263 {offsets = [0, 0, 0], sizes = [8, 16, 128], strides = [1, 1, 1]} : vector<10x16x128xbf16> to vector<8x16x128xbf16>
    %265 = vector.shape_cast %264 : vector<8x16x128xbf16> to vector<128x128xbf16>
    %c2_207 = arith.constant 2 : index
    %c0_208 = arith.constant 0 : index
    %c0_209 = arith.constant 0 : index
    %266 = vector.load %arg5[%c2_207, %c0_208, %c0_209] : memref<9x128x128xbf16, #tpu.memory_space<vmem>>, vector<1x128x128xbf16>
    %267 = vector.shape_cast %266 : vector<1x128x128xbf16> to vector<128x128xbf16>
    %cst_210 = arith.constant dense<0.000000e+00> : vector<128x128xf32>
    %268 = tpu.matmul %265, %267, %cst_210 {dimension_numbers = #tpu.dot_dimension_numbers<[1], [0], [0], [1], [0, 0, 1, 1], [], []>} : vector<128x128xbf16>, vector<128x128xbf16>, vector<128x128xf32> -> vector<128x128xf32>
    %269 = arith.addf %262, %268 : vector<128x128xf32>
    %270 = vector.extract_strided_slice %263 {offsets = [1, 0, 0], sizes = [8, 16, 128], strides = [1, 1, 1]} : vector<10x16x128xbf16> to vector<8x16x128xbf16>
    %271 = vector.shape_cast %270 : vector<8x16x128xbf16> to vector<128x128xbf16>
    %c5_211 = arith.constant 5 : index
    %c0_212 = arith.constant 0 : index
    %c0_213 = arith.constant 0 : index
    %272 = vector.load %arg5[%c5_211, %c0_212, %c0_213] : memref<9x128x128xbf16, #tpu.memory_space<vmem>>, vector<1x128x128xbf16>
    %273 = vector.shape_cast %272 : vector<1x128x128xbf16> to vector<128x128xbf16>
    %cst_214 = arith.constant dense<0.000000e+00> : vector<128x128xf32>
    %274 = tpu.matmul %271, %273, %cst_214 {dimension_numbers = #tpu.dot_dimension_numbers<[1], [0], [0], [1], [0, 0, 1, 1], [], []>} : vector<128x128xbf16>, vector<128x128xbf16>, vector<128x128xf32> -> vector<128x128xf32>
    %275 = arith.addf %269, %274 : vector<128x128xf32>
    %276 = vector.extract_strided_slice %263 {offsets = [2, 0, 0], sizes = [8, 16, 128], strides = [1, 1, 1]} : vector<10x16x128xbf16> to vector<8x16x128xbf16>
    %277 = vector.shape_cast %276 : vector<8x16x128xbf16> to vector<128x128xbf16>
    %c8_215 = arith.constant 8 : index
    %c0_216 = arith.constant 0 : index
    %c0_217 = arith.constant 0 : index
    %278 = vector.load %arg5[%c8_215, %c0_216, %c0_217] : memref<9x128x128xbf16, #tpu.memory_space<vmem>>, vector<1x128x128xbf16>
    %279 = vector.shape_cast %278 : vector<1x128x128xbf16> to vector<128x128xbf16>
    %cst_218 = arith.constant dense<0.000000e+00> : vector<128x128xf32>
    %280 = tpu.matmul %277, %279, %cst_218 {dimension_numbers = #tpu.dot_dimension_numbers<[1], [0], [0], [1], [0, 0, 1, 1], [], []>} : vector<128x128xbf16>, vector<128x128xbf16>, vector<128x128xf32> -> vector<128x128xf32>
    %281 = arith.addf %275, %280 : vector<128x128xf32>
    %c0_219 = arith.constant 0 : index
    %c8_220 = arith.constant 8 : index
    %c0_221 = arith.constant 0 : index
    %c0_222 = arith.constant 0 : index
    %282 = vector.load %arg1[%c0_219, %c8_220, %c0_221, %c0_222] : memref<1x16x16x128xf32, #tpu.memory_space<vmem>>, vector<1x8x16x128xf32>
    %283 = vector.shape_cast %282 : vector<1x8x16x128xf32> to vector<8x16x128xf32>
    %284 = vector.shape_cast %283 : vector<8x16x128xf32> to vector<128x128xf32>
    %285 = vector.broadcast %150 : vector<1x128xf32> to vector<128x128xf32>
    %286 = arith.mulf %281, %285 : vector<128x128xf32>
    %287 = vector.broadcast %151 : vector<1x128xf32> to vector<128x128xf32>
    %288 = arith.addf %286, %287 : vector<128x128xf32>
    %289 = arith.addf %288, %284 : vector<128x128xf32>
    %cst_223 = arith.constant 0.000000e+00 : f32
    %290 = vector.broadcast %cst_223 : f32 to vector<128x128xf32>
    %291 = arith.maximumf %289, %290 : vector<128x128xf32>
    %292 = vector.shape_cast %291 : vector<128x128xf32> to vector<8x16x128xf32>
    %c0_224 = arith.constant 0 : index
    %c8_225 = arith.constant 8 : index
    %c0_226 = arith.constant 0 : index
    %c0_227 = arith.constant 0 : index
    %293 = vector.load %arg8[%c0_224, %c8_225, %c0_226, %c0_227] : memref<1x16x16x128xf32, #tpu.memory_space<vmem>>, vector<1x8x16x128xf32>
    %294 = vector.shape_cast %293 : vector<1x8x16x128xf32> to vector<8x16x128xf32>
    %295 = vector.shape_cast %292 : vector<8x16x128xf32> to vector<1x8x16x128xf32>
    tpu.vector_store %arg8[%c0_224, %c8_225, %c0_226, %c0_227], %295 {strides = array<i32>} : memref<1x16x16x128xf32, #tpu.memory_space<vmem>>, vector<1x8x16x128xf32>,
    return
  }
  func.func @transform_0(%arg0: i32) -> (i32, i32, i32, i32) {
    %c0_i32 = arith.constant 0 : i32
    %c0_i32_0 = arith.constant 0 : i32
    %c0_i32_1 = arith.constant 0 : i32
    %c0_i32_2 = arith.constant 0 : i32
    return %arg0, %c0_i32, %c0_i32_0, %c0_i32_1 : i32, i32, i32, i32
  }
  func.func @transform_1(%arg0: i32) -> (i32, i32, i32) {
    %c0_i32 = arith.constant 0 : i32
    %c0_i32_0 = arith.constant 0 : i32
    %c0_i32_1 = arith.constant 0 : i32
    %c0_i32_2 = arith.constant 0 : i32
    return %c0_i32, %c0_i32_0, %c0_i32_1 : i32, i32, i32
  }
  func.func @transform_2(%arg0: i32) -> (i32, i32) {
    %c0_i32 = arith.constant 0 : i32
    %c0_i32_0 = arith.constant 0 : i32
    %c0_i32_1 = arith.constant 0 : i32
    return %c0_i32, %c0_i32_0 : i32, i32
  }
  func.func @transform_3(%arg0: i32) -> (i32, i32) {
    %c0_i32 = arith.constant 0 : i32
    %c0_i32_0 = arith.constant 0 : i32
    %c0_i32_1 = arith.constant 0 : i32
    return %c0_i32, %c0_i32_0 : i32, i32
  }
  func.func @transform_4(%arg0: i32) -> (i32, i32, i32) {
    %c0_i32 = arith.constant 0 : i32
    %c0_i32_0 = arith.constant 0 : i32
    %c0_i32_1 = arith.constant 0 : i32
    %c0_i32_2 = arith.constant 0 : i32
    return %c0_i32, %c0_i32_0, %c0_i32_1 : i32, i32, i32
  }
  func.func @transform_5(%arg0: i32) -> (i32, i32) {
    %c0_i32 = arith.constant 0 : i32
    %c0_i32_0 = arith.constant 0 : i32
    %c0_i32_1 = arith.constant 0 : i32
    return %c0_i32, %c0_i32_0 : i32, i32
  }
  func.func @transform_6(%arg0: i32) -> (i32, i32) {
    %c0_i32 = arith.constant 0 : i32
    %c0_i32_0 = arith.constant 0 : i32
    %c0_i32_1 = arith.constant 0 : i32
    return %c0_i32, %c0_i32_0 : i32, i32
  }
  func.func @transform_7(%arg0: i32) -> (i32, i32, i32, i32) {
    %c0_i32 = arith.constant 0 : i32
    %c0_i32_0 = arith.constant 0 : i32
    %c0_i32_1 = arith.constant 0 : i32
    %c0_i32_2 = arith.constant 0 : i32
    return %arg0, %c0_i32, %c0_i32_0, %c0_i32_1 : i32, i32, i32, i32
  }
}

</mosaic_0001>

<llo_original>
// kernel: basic_block_forward.1
$region0: #{basic_block_forward.1}
  #allocation0 [shape = 'u32[]', space=smem, size = 0x4, offset = 0x4, fixed_abs, tag = 'smem constant byte address 0x4 - core index']
  #allocation1 [shape = 'u32[144,128]{1,0:T(1,128)}', space=vmem, size = 0x12000, scoped, tag = 'internal scratch']
  #allocation2 [shape = 'bf16[18,18,128]{2,1,0:T(8,128)(2,1)}', space=vmem, size = 0x1b000, scoped, tag = 'scratch operand']
  #allocation3 [shape = 'bf16[18,18,128]{2,1,0:T(8,128)(2,1)}', space=vmem, size = 0x1b000, scoped, tag = 'scratch operand']
  %s0 = inlined_call_operand.vmem [shape: f32[2,16,16,128], index: 0, kind: input, shape index: {}]
  %s1 = inlined_call_operand.vmem [shape: bf16[9,128,128], index: 1, kind: input, shape index: {}]
  %s2 = inlined_call_operand.vmem [shape: f32[1,128], index: 2, kind: input, shape index: {}]
  %s3 = inlined_call_operand.vmem [shape: f32[1,128], index: 3, kind: input, shape index: {}]
  %s4 = inlined_call_operand.vmem [shape: bf16[9,128,128], index: 4, kind: input, shape index: {}]
  %s5 = inlined_call_operand.vmem [shape: f32[1,128], index: 5, kind: input, shape index: {}]
  %s6 = inlined_call_operand.vmem [shape: f32[1,128], index: 6, kind: input, shape index: {}]
  %s7 = inlined_call_operand.hbm [shape: f32[2,16,16,128], index: 7, kind: output, shape index: {}]
  %s8 = sld [smem:[#allocation0]]
  $region61: #{basic_block_forward.1} parent=0
    _
  %s10 = ssub.s32 1, %s8
  %s11 = scalar_select 0, %s10, %s8
  $region1: #{basic_block_forward.1} parent=0
    #allocation4 [shape = 'u8[262144]{0}', space=vmem, size = 0x40000, scoped, tag = 'output window, operand 0']
    #allocation5 [shape = 's32[2]{0}', space=sflag, size = 0x8, scoped, tag = 'scoped memory for basic_block_forward.1']
    %12 = vsyncpa [#allocation5], 0
    %s13 = scalar_lea.sflag [#allocation5], 1
    %14 = vsyncpa %s13, 0
    loop: start=0, step=1, limit=4
    $region2: #{basic_block_forward.1} parent=1 // loop_pre_header
      _
    $region3: #{basic_block_forward.1} parent=1 // loop_header
      %s16 = sphi 0, %s20
      %p17 = scmp.ge.s32.totalorder %s16, 4
      %s26 = sphi 0, %s28
      %s29 = sphi 0, %s26
      %s30 = sphi 0, %s29
      %s46 = sphi 0, %s30
      %s50 = sphi 0, %s50
      %s52 = sphi 0, %s50
      %s53 = sphi 0, %s52
      %s67 = sphi 0, %s53
      %s71 = sphi 0, %s71
      %s73 = sphi 0, %s71
      %s74 = sphi 0, %s73
      %s88 = sphi 0, %s74
      %s92 = sphi 0, %s92
      %s94 = sphi 0, %s92
      %s95 = sphi 0, %s94
      %s109 = sphi 0, %s95
      %s113 = sphi 0, %s113
      %s115 = sphi 0, %s113
      %s116 = sphi 0, %s115
      %s130 = sphi 0, %s116
      %s134 = sphi 0, %s134
      %s136 = sphi 0, %s134
      %s137 = sphi 0, %s136
      %s151 = sphi 0, %s137
      %s155 = sphi 0, %s155
      %s157 = sphi 0, %s155
      %s158 = sphi 0, %s157
      %s172 = sphi 0, %s158
      %s178 = sphi 0, %s180
      %s181 = sphi 0, %s178
      %s182 = sphi 0, %s181
      %s198 = sphi 0, %s182
    $region4: #{basic_block_forward.1} parent=1 // loop_header_branch
      %19 = sbr.rel (%p17) target = $region8
    $region5: #{basic_block_forward.1} parent=1 // loop_body
      %s21 = ssub.s32 %s16, 1
      %s22 = ssub.s32 %s16, 2
      %s23 = sadd.s32 %s16, 1
      %s24 = ssub.s32 %s16, %s23
      %p25 = scmp.eq.s32.totalorder %s24, 0
      %s27 = sadd.s32 %s26, 1
      %s28 = scalar_select %p25, %s26, %s27
      %p31 = pneg %p25
      %p32 = scmp.eq.s32.totalorder %s16, 1
      %p33 = por %p31, %p32
      %p34 = scmp.ne.s32.totalorder %s26, %s29
      %p35 = scmp.eq.s32.totalorder %s16, 0
      %p36 = por %p34, %p35
      %p37 = scmp.ne.s32.totalorder %s26, %s29
      %p38 = scmp.eq.s32.totalorder %s21, 1
      %p39 = por %p37, %p38
      %p40 = scmp.ne.s32.totalorder %s29, %s30
      %p41 = scmp.eq.s32.totalorder %s21, 0
      %p42 = por %p40, %p41
      %p43 = scmp.ne.s32.totalorder %s29, %s30
      %p44 = scmp.eq.s32.totalorder %s22, 1
      %p45 = por %p43, %p44
      %p47 = scmp.ne.s32.totalorder %s30, %s46
      %p48 = scmp.eq.s32.totalorder %s22, 0
      %p49 = por %p47, %p48
      %s51 = sadd.s32 %s50, 1
      %p54 = scmp.eq.s32.totalorder %s16, 1
      %p55 = scmp.ne.s32.totalorder %s50, %s52
      %p56 = scmp.eq.s32.totalorder %s16, 0
      %p57 = por %p55, %p56
      %p58 = scmp.ne.s32.totalorder %s50, %s52
      %p59 = scmp.eq.s32.totalorder %s21, 1
      %p60 = por %p58, %p59
      %p61 = scmp.ne.s32.totalorder %s52, %s53
      %p62 = scmp.eq.s32.totalorder %s21, 0
      %p63 = por %p61, %p62
      %p64 = scmp.ne.s32.totalorder %s52, %s53
      %p65 = scmp.eq.s32.totalorder %s22, 1
      %p66 = por %p64, %p65
      %p68 = scmp.ne.s32.totalorder %s53, %s67
      %p69 = scmp.eq.s32.totalorder %s22, 0
      %p70 = por %p68, %p69
      %s72 = sadd.s32 %s71, 1
      %p75 = scmp.eq.s32.totalorder %s16, 1
      %p76 = scmp.ne.s32.totalorder %s71, %s73
      %p77 = scmp.eq.s32.totalorder %s16, 0
      %p78 = por %p76, %p77
      %p79 = scmp.ne.s32.totalorder %s71, %s73
      %p80 = scmp.eq.s32.totalorder %s21, 1
      %p81 = por %p79, %p80
      %p82 = scmp.ne.s32.totalorder %s73, %s74
      %p83 = scmp.eq.s32.totalorder %s21, 0
      %p84 = por %p82, %p83
      %p85 = scmp.ne.s32.totalorder %s73, %s74
      %p86 = scmp.eq.s32.totalorder %s22, 1
      %p87 = por %p85, %p86
      %p89 = scmp.ne.s32.totalorder %s74, %s88
      %p90 = scmp.eq.s32.totalorder %s22, 0
      %p91 = por %p89, %p90
      %s93 = sadd.s32 %s92, 1
      %p96 = scmp.eq.s32.totalorder %s16, 1
      %p97 = scmp.ne.s32.totalorder %s92, %s94
      %p98 = scmp.eq.s32.totalorder %s16, 0
      %p99 = por %p97, %p98
      %p100 = scmp.ne.s32.totalorder %s92, %s94
      %p101 = scmp.eq.s32.totalorder %s21, 1
      %p102 = por %p100, %p101
      %p103 = scmp.ne.s32.totalorder %s94, %s95
      %p104 = scmp.eq.s32.totalorder %s21, 0
      %p105 = por %p103, %p104
      %p106 = scmp.ne.s32.totalorder %s94, %s95
      %p107 = scmp.eq.s32.totalorder %s22, 1
      %p108 = por %p106, %p107
      %p110 = scmp.ne.s32.totalorder %s95, %s109
      %p111 = scmp.eq.s32.totalorder %s22, 0
      %p112 = por %p110, %p111
      %s114 = sadd.s32 %s113, 1
      %p117 = scmp.eq.s32.totalorder %s16, 1
      %p118 = scmp.ne.s32.totalorder %s113, %s115
      %p119 = scmp.eq.s32.totalorder %s16, 0
      %p120 = por %p118, %p119
      %p121 = scmp.ne.s32.totalorder %s113, %s115
      %p122 = scmp.eq.s32.totalorder %s21, 1
      %p123 = por %p121, %p122
      %p124 = scmp.ne.s32.totalorder %s115, %s116
      %p125 = scmp.eq.s32.totalorder %s21, 0
      %p126 = por %p124, %p125
      %p127 = scmp.ne.s32.totalorder %s115, %s116
      %p128 = scmp.eq.s32.totalorder %s22, 1
      %p129 = por %p127, %p128
      %p131 = scmp.ne.s32.totalorder %s116, %s130
      %p132 = scmp.eq.s32.totalorder %s22, 0
      %p133 = por %p131, %p132
      %s135 = sadd.s32 %s134, 1
      %p138 = scmp.eq.s32.totalorder %s16, 1
      %p139 = scmp.ne.s32.totalorder %s134, %s136
      %p140 = scmp.eq.s32.totalorder %s16, 0
      %p141 = por %p139, %p140
      %p142 = scmp.ne.s32.totalorder %s134, %s136
      %p143 = scmp.eq.s32.totalorder %s21, 1
      %p144 = por %p142, %p143
      %p145 = scmp.ne.s32.totalorder %s136, %s137
      %p146 = scmp.eq.s32.totalorder %s21, 0
      %p147 = por %p145, %p146
      %p148 = scmp.ne.s32.totalorder %s136, %s137
      %p149 = scmp.eq.s32.totalorder %s22, 1
      %p150 = por %p148, %p149
      %p152 = scmp.ne.s32.totalorder %s137, %s151
      %p153 = scmp.eq.s32.totalorder %s22, 0
      %p154 = por %p152, %p153
      %s156 = sadd.s32 %s155, 1
      %p159 = scmp.eq.s32.totalorder %s16, 1
      %p160 = scmp.ne.s32.totalorder %s155, %s157
      %p161 = scmp.eq.s32.totalorder %s16, 0
      %p162 = por %p160, %p161
      %p163 = scmp.ne.s32.totalorder %s155, %s157
      %p164 = scmp.eq.s32.totalorder %s21, 1
      %p165 = por %p163, %p164
      %p166 = scmp.ne.s32.totalorder %s157, %s158
      %p167 = scmp.eq.s32.totalorder %s21, 0
      %p168 = por %p166, %p167
      %p169 = scmp.ne.s32.totalorder %s157, %s158
      %p170 = scmp.eq.s32.totalorder %s22, 1
      %p171 = por %p169, %p170
      %p173 = scmp.ne.s32.totalorder %s158, %s172
      %p174 = scmp.eq.s32.totalorder %s22, 0
      %p175 = por %p173, %p174
      %s176 = ssub.s32 %s16, %s23
      %p177 = scmp.eq.s32.totalorder %s176, 0
      %s179 = sadd.s32 %s178, 1
      %s180 = scalar_select %p177, %s178, %s179
      %p183 = pneg %p177
      %p184 = scmp.eq.s32.totalorder %s16, 1
      %p185 = por %p183, %p184
      %p186 = scmp.ne.s32.totalorder %s178, %s181
      %p187 = scmp.eq.s32.totalorder %s16, 0
      %p188 = por %p186, %p187
      %p189 = scmp.ne.s32.totalorder %s178, %s181
      %p190 = scmp.eq.s32.totalorder %s21, 1
      %p191 = por %p189, %p190
      %p192 = scmp.ne.s32.totalorder %s181, %s182
      %p193 = scmp.eq.s32.totalorder %s21, 0
      %p194 = por %p192, %p193
      %p195 = scmp.ne.s32.totalorder %s181, %s182
      %p196 = scmp.eq.s32.totalorder %s22, 1
      %p197 = por %p195, %p196
      %p199 = scmp.ne.s32.totalorder %s182, %s198
      %p200 = scmp.eq.s32.totalorder %s22, 0
      %p201 = por %p199, %p200
      %p202 = scmp.le.s32.totalorder 1, %s16
      %p203 = scmp.lt.s32.totalorder %s16, 3
      %p204 = pnand %p202, %p203
      %p205 = pneg %p204
      // Predicated region
      $region9: #{basic_block_forward.1} parent=5 // pred_check
        _
      $region10: #{basic_block_forward.1} parent=5 // pred_check_branch
        %207 = sbr.rel (%p204) target = $region12
      $region11: #{basic_block_forward.1} parent=5 // pred_region
        %s208 = ssub.s32 %s16, 1
        // Predicated region
        $region13: #{basic_block_forward.1} parent=11 // pred_check
          %p209 = pneg %p63
        $region14: #{basic_block_forward.1} parent=11 // pred_check_branch
          %211 = sbr.rel (%p209) target = $region16
        $region15: #{basic_block_forward.1} parent=11 // pred_region
          _
        $region16: #{basic_block_forward.1} parent=11 // pred_fallthru
          _
        // Predicated region
        $region17: #{basic_block_forward.1} parent=11 // pred_check
          %p212 = pneg %p84
        $region18: #{basic_block_forward.1} parent=11 // pred_check_branch
          %214 = sbr.rel (%p212) target = $region20
        $region19: #{basic_block_forward.1} parent=11 // pred_region
          _
        $region20: #{basic_block_forward.1} parent=11 // pred_fallthru
          _
        // Predicated region
        $region21: #{basic_block_forward.1} parent=11 // pred_check
          %p215 = pneg %p105
        $region22: #{basic_block_forward.1} parent=11 // pred_check_branch
          %217 = sbr.rel (%p215) target = $region24
        $region23: #{basic_block_forward.1} parent=11 // pred_region
          _
        $region24: #{basic_block_forward.1} parent=11 // pred_fallthru
          _
        // Predicated region
        $region25: #{basic_block_forward.1} parent=11 // pred_check
          %p218 = pneg %p126
        $region26: #{basic_block_forward.1} parent=11 // pred_check_branch
          %220 = sbr.rel (%p218) target = $region28
        $region27: #{basic_block_forward.1} parent=11 // pred_region
          _
        $region28: #{basic_block_forward.1} parent=11 // pred_fallthru
          _
        // Predicated region
        $region29: #{basic_block_forward.1} parent=11 // pred_check
          %p221 = pneg %p147
        $region30: #{basic_block_forward.1} parent=11 // pred_check_branch
          %223 = sbr.rel (%p221) target = $region32
        $region31: #{basic_block_forward.1} parent=11 // pred_region
          _
        $region32: #{basic_block_forward.1} parent=11 // pred_fallthru
          _
        // Predicated region
        $region33: #{basic_block_forward.1} parent=11 // pred_check
          %p224 = pneg %p168
        $region34: #{basic_block_forward.1} parent=11 // pred_check_branch
          %226 = sbr.rel (%p224) target = $region36
        $region35: #{basic_block_forward.1} parent=11 // pred_region
          _
        $region36: #{basic_block_forward.1} parent=11 // pred_fallthru
          _
      $region12: #{basic_block_forward.1} parent=5 // pred_fallthru
        _
      %p227 = scmp.lt.s32.totalorder %s16, 2
      // Predicated region
      $region37: #{basic_block_forward.1} parent=5 // pred_check
        %p228 = pneg %p227
      $region38: #{basic_block_forward.1} parent=5 // pred_check_branch
        %230 = sbr.rel (%p228) target = $region40
      $region39: #{basic_block_forward.1} parent=5 // pred_region
        // Predicated region
        $region41: #{basic_block_forward.1} parent=39 // pred_check
          %p231 = pneg %p36
        $region42: #{basic_block_forward.1} parent=39 // pred_check_branch
          %233 = sbr.rel (%p231) target = $region44
        $region43: #{basic_block_forward.1} parent=39 // pred_region
          %p234 = scmp.lt.s32.totalorder %s16, 1
          %s235 = scalar_select %p234, %s16, 1
          %s236 = smul.addr %s235, 32
          %s237 = smul.addr %s236, 8
          %s238 = scalar_lea.vmem %s0, %s237
        $region44: #{basic_block_forward.1} parent=39 // pred_fallthru
          _
      $region40: #{basic_block_forward.1} parent=5 // pred_fallthru
        _
      %p239 = scmp.le.s32.totalorder 1, %s16
      %p240 = scmp.lt.s32.totalorder %s16, 3
      %p241 = pnand %p239, %p240
      %p242 = pneg %p241
      // Predicated region
      $region45: #{basic_block_forward.1} parent=5 // pred_check
        _
      $region46: #{basic_block_forward.1} parent=5 // pred_check_branch
        %244 = sbr.rel (%p241) target = $region48
      $region47: #{basic_block_forward.1} parent=5 // pred_region
        %s245 = ssub.s32 %s16, 1
        %p246 = scmp.lt.s32.totalorder %s21, 1
        %s247 = scalar_select %p246, %s21, 1
        %s248 = smul.addr %s247, 32
        %s249 = smul.addr %s248, 8
        %s250 = scalar_lea.vmem %s0, %s249
        %p251 = pneg %p42
        %p252 = pneg %p39
        %p253 = pneg %p63
        %p254 = pneg %p60
        %p255 = pneg %p84
        %p256 = pneg %p81
        %p257 = pneg %p105
        %p258 = pneg %p102
        %p259 = pneg %p126
        %p260 = pneg %p123
        %p261 = pneg %p147
        %p262 = pneg %p144
        %p263 = pneg %p168
        %p264 = pneg %p165
        %p265 = pneg %p194
        %p266 = pneg %p191
        %s267 = sand.u32 %s181, 1
        %s268 = scalar_lea.sflag [#allocation5], %s267
        %s269 = sand.u32 %s181, 1
        %s270 = smul.addr %s269, 256
        %s271 = scalar_lea.vmem [#allocation4], %s270
        %p272 = scmp.lt.s32.totalorder %s21, 1
        %s273 = scalar_select %p272, %s21, 1
        %s274 = smul.addr %s273, 32
        %s275 = smul.addr %s274, 8
        %s276 = scalar_lea.vmem %s0, %s275
        %278 = vst [vmem:[#allocation2] sm:$0xf] 0
        %279 = vst [vmem:[#allocation2 + $0x4] sm:$0xf] 0
        %280 = vst [vmem:[#allocation2 + $0x8] sm:$0x1] 0
        %s281 = scalar_lea.vmem [#allocation2], 204
        %282 = vst [vmem:[%s281] sm:$0xf] 0
        %283 = vst [vmem:[%s281 + $0x4] sm:$0xf] 0
        %284 = vst [vmem:[%s281 + $0x8] sm:$0x1] 0
        %285 = vst [vmem:[#allocation3] sm:$0xf] 0
        %286 = vst [vmem:[#allocation3 + $0x4] sm:$0xf] 0
        %287 = vst [vmem:[#allocation3 + $0x8] sm:$0x1] 0
        %s288 = scalar_lea.vmem [#allocation3], 204
        %289 = vst [vmem:[%s288] sm:$0xf] 0
        %290 = vst [vmem:[%s288 + $0x4] sm:$0xf] 0
        %291 = vst [vmem:[%s288 + $0x8] sm:$0x1] 0
        %v292 = vld [vmem:[%s276] sm:$0xff]
        %v293 = vld [vmem:[%s276 + $0x8] sm:$0xff]
        %v294 = vld [vmem:[%s276 + $0x10] sm:$0xff]
        %v295 = vld [vmem:[%s276 + $0x18] sm:$0xff]
        %v296 = vld [vmem:[%s276 + $0x20] sm:$0xff]
        %v297 = vld [vmem:[%s276 + $0x28] sm:$0xff]
        %v298 = vld [vmem:[%s276 + $0x30] sm:$0xff]
        %v299 = vld [vmem:[%s276 + $0x38] sm:$0xff]
        %v300 = vld [vmem:[%s276 + $0x40] sm:$0xff]
        %v301 = vld [vmem:[%s276 + $0x48] sm:$0xff]
        %v302 = vld [vmem:[%s276 + $0x50] sm:$0xff]
        %v303 = vld [vmem:[%s276 + $0x58] sm:$0xff]
        %v304 = vld [vmem:[%s276 + $0x60] sm:$0xff]
        %v305 = vld [vmem:[%s276 + $0x68] sm:$0xff]
        %v306 = vld [vmem:[%s276 + $0x70] sm:$0xff]
        %v307 = vld [vmem:[%s276 + $0x78] sm:$0xff]
        %v308 = vld [vmem:[%s276 + $0x80] sm:$0xff]
        %v309 = vld [vmem:[%s276 + $0x88] sm:$0xff]
        %v310 = vld [vmem:[%s276 + $0x90] sm:$0xff]
        %v311 = vld [vmem:[%s276 + $0x98] sm:$0xff]
        %v312 = vld [vmem:[%s276 + $0xa0] sm:$0xff]
        %v313 = vld [vmem:[%s276 + $0xa8] sm:$0xff]
        %v314 = vld [vmem:[%s276 + $0xb0] sm:$0xff]
        %v315 = vld [vmem:[%s276 + $0xb8] sm:$0xff]
        %v316 = vld [vmem:[%s276 + $0xc0] sm:$0xff]
        %v317 = vld [vmem:[%s276 + $0xc8] sm:$0xff]
        %v318 = vld [vmem:[%s276 + $0xd0] sm:$0xff]
        %v319 = vld [vmem:[%s276 + $0xd8] sm:$0xff]
        %v320 = vld [vmem:[%s276 + $0xe0] sm:$0xff]
        %v321 = vld [vmem:[%s276 + $0xe8] sm:$0xff]
        %v322 = vld [vmem:[%s276 + $0xf0] sm:$0xff]
        %v323 = vld [vmem:[%s276 + $0xf8] sm:$0xff]
        %v324 = vpack.c.bf16 %v293, %v292
        %v325 = vpack.c.bf16 %v295, %v294
        %v326 = vpack.c.bf16 %v297, %v296
        %v327 = vpack.c.bf16 %v299, %v298
        %v328 = vpack.c.bf16 %v301, %v300
        %v329 = vpack.c.bf16 %v303, %v302
        %v330 = vpack.c.bf16 %v305, %v304
        %v331 = vpack.c.bf16 %v307, %v306
        %v332 = vpack.c.bf16 %v309, %v308
        %v333 = vpack.c.bf16 %v311, %v310
        %v334 = vpack.c.bf16 %v313, %v312
        %v335 = vpack.c.bf16 %v315, %v314
        %v336 = vpack.c.bf16 %v317, %v316
        %v337 = vpack.c.bf16 %v319, %v318
        %v338 = vpack.c.bf16 %v321, %v320
        %v339 = vpack.c.bf16 %v323, %v322
        %v341 = vshrl.u32 %v324, 16
        %v343 = vrot.slane %v341, 7
        %v344 = vshll.u32 %v324, 16
        %v346 = vor.u32 %v343, %v344
        %v348 = vshrl.u32 %v325, 16
        %v350 = vrot.slane %v348, 7
        %v351 = vshll.u32 %v325, 16
        %v353 = vor.u32 %v350, %v351
        %v355 = vshrl.u32 %v326, 16
        %v357 = vrot.slane %v355, 7
        %v358 = vshll.u32 %v326, 16
        %v360 = vor.u32 %v357, %v358
        %v362 = vshrl.u32 %v327, 16
        %v364 = vrot.slane %v362, 7
        %v365 = vshll.u32 %v327, 16
        %v367 = vor.u32 %v364, %v365
        %v369 = vshrl.u32 %v328, 16
        %v371 = vrot.slane %v369, 7
        %v372 = vshll.u32 %v328, 16
        %v374 = vor.u32 %v371, %v372
        %v376 = vshrl.u32 %v329, 16
        %v378 = vrot.slane %v376, 7
        %v379 = vshll.u32 %v329, 16
        %v381 = vor.u32 %v378, %v379
        %v383 = vshrl.u32 %v330, 16
        %v385 = vrot.slane %v383, 7
        %v386 = vshll.u32 %v330, 16
        %v388 = vor.u32 %v385, %v386
        %v390 = vshrl.u32 %v331, 16
        %v392 = vrot.slane %v390, 7
        %v393 = vshll.u32 %v331, 16
        %v395 = vor.u32 %v392, %v393
        %v397 = vshrl.u32 %v332, 16
        %v399 = vrot.slane %v397, 7
        %v400 = vshll.u32 %v332, 16
        %v402 = vor.u32 %v399, %v400
        %v404 = vshrl.u32 %v333, 16
        %v406 = vrot.slane %v404, 7
        %v407 = vshll.u32 %v333, 16
        %v409 = vor.u32 %v406, %v407
        %v411 = vshrl.u32 %v334, 16
        %v413 = vrot.slane %v411, 7
        %v414 = vshll.u32 %v334, 16
        %v416 = vor.u32 %v413, %v414
        %v418 = vshrl.u32 %v335, 16
        %v420 = vrot.slane %v418, 7
        %v421 = vshll.u32 %v335, 16
        %v423 = vor.u32 %v420, %v421
        %v425 = vshrl.u32 %v336, 16
        %v427 = vrot.slane %v425, 7
        %v428 = vshll.u32 %v336, 16
        %v430 = vor.u32 %v427, %v428
        %v432 = vshrl.u32 %v337, 16
        %v434 = vrot.slane %v432, 7
        %v435 = vshll.u32 %v337, 16
        %v437 = vor.u32 %v434, %v435
        %v439 = vshrl.u32 %v338, 16
        %v441 = vrot.slane %v439, 7
        %v442 = vshll.u32 %v338, 16
        %v444 = vor.u32 %v441, %v442
        %v446 = vshrl.u32 %v339, 16
        %v448 = vrot.slane %v446, 7
        %v449 = vshll.u32 %v339, 16
        %v451 = vor.u32 %v448, %v449
        %vm484 = vcmask 1040384
        %vm485 = vsmask.f32 256
        %vm486 = vmand %vm484, %vm485
        %v487 = vsel %vm486, 0, %v346
        %v488 = vsel %vm486, 0, %v353
        %v489 = vsel %vm486, 0, %v360
        %v490 = vsel %vm486, 0, %v367
        %v491 = vsel %vm486, 0, %v374
        %v492 = vsel %vm486, 0, %v381
        %v493 = vsel %vm486, 0, %v388
        %v494 = vsel %vm486, 0, %v395
        %v495 = vsel %vm486, 0, %v402
        %v496 = vsel %vm486, 0, %v409
        %v497 = vsel %vm486, 0, %v416
        %v498 = vsel %vm486, 0, %v423
        %v499 = vsel %vm486, 0, %v430
        %v500 = vsel %vm486, 0, %v437
        %v501 = vsel %vm486, 0, %v444
        %v502 = vsel %vm486, 0, %v451
        %v503 = vsel %vm486, %v343, 0
        %v504 = vsel %vm486, %v350, 0
        %v505 = vsel %vm486, %v357, 0
        %v506 = vsel %vm486, %v364, 0
        %v507 = vsel %vm486, %v371, 0
        %v508 = vsel %vm486, %v378, 0
        %v509 = vsel %vm486, %v385, 0
        %v510 = vsel %vm486, %v392, 0
        %v511 = vsel %vm486, %v399, 0
        %v512 = vsel %vm486, %v406, 0
        %v513 = vsel %vm486, %v413, 0
        %v514 = vsel %vm486, %v420, 0
        %v515 = vsel %vm486, %v427, 0
        %v516 = vsel %vm486, %v434, 0
        %v517 = vsel %vm486, %v441, 0
        %v518 = vsel %vm486, %v448, 0
        %v551 = vunpack.c.l.b16 %v487
        %v552 = vunpack.c.h.b16 %v487
        %v553 = vunpack.c.l.b16 %v503
        %v554 = vunpack.c.l.b16 %v488
        %v555 = vunpack.c.h.b16 %v488
        %v556 = vunpack.c.l.b16 %v504
        %v557 = vunpack.c.l.b16 %v489
        %v558 = vunpack.c.h.b16 %v489
        %v559 = vunpack.c.l.b16 %v505
        %v560 = vunpack.c.l.b16 %v490
        %v561 = vunpack.c.h.b16 %v490
        %v562 = vunpack.c.l.b16 %v506
        %v563 = vunpack.c.l.b16 %v491
        %v564 = vunpack.c.h.b16 %v491
        %v565 = vunpack.c.l.b16 %v507
        %v566 = vunpack.c.l.b16 %v492
        %v567 = vunpack.c.h.b16 %v492
        %v568 = vunpack.c.l.b16 %v508
        %v569 = vunpack.c.l.b16 %v493
        %v570 = vunpack.c.h.b16 %v493
        %v571 = vunpack.c.l.b16 %v509
        %v572 = vunpack.c.l.b16 %v494
        %v573 = vunpack.c.h.b16 %v494
        %v574 = vunpack.c.l.b16 %v510
        %v575 = vunpack.c.l.b16 %v495
        %v576 = vunpack.c.h.b16 %v495
        %v577 = vunpack.c.l.b16 %v511
        %v578 = vunpack.c.l.b16 %v496
        %v579 = vunpack.c.h.b16 %v496
        %v580 = vunpack.c.l.b16 %v512
        %v581 = vunpack.c.l.b16 %v497
        %v582 = vunpack.c.h.b16 %v497
        %v583 = vunpack.c.l.b16 %v513
        %v584 = vunpack.c.l.b16 %v498
        %v585 = vunpack.c.h.b16 %v498
        %v586 = vunpack.c.l.b16 %v514
        %v587 = vunpack.c.l.b16 %v499
        %v588 = vunpack.c.h.b16 %v499
        %v589 = vunpack.c.l.b16 %v515
        %v590 = vunpack.c.l.b16 %v500
        %v591 = vunpack.c.h.b16 %v500
        %v592 = vunpack.c.l.b16 %v516
        %v593 = vunpack.c.l.b16 %v501
        %v594 = vunpack.c.h.b16 %v501
        %v595 = vunpack.c.l.b16 %v517
        %v596 = vunpack.c.l.b16 %v502
        %v597 = vunpack.c.h.b16 %v502
        %v598 = vunpack.c.l.b16 %v518
        %v599 = vpack.c.b16 %v551, %v551
        %v600 = vpack.c.b16 %v552, %v552
        %v601 = vpack.c.b16 %v553, %v553
        %v602 = vpack.c.b16 %v554, %v554
        %v603 = vpack.c.b16 %v555, %v555
        %v604 = vpack.c.b16 %v556, %v556
        %v605 = vpack.c.b16 %v557, %v557
        %v606 = vpack.c.b16 %v558, %v558
        %v607 = vpack.c.b16 %v559, %v559
        %v608 = vpack.c.b16 %v560, %v560
        %v609 = vpack.c.b16 %v561, %v561
        %v610 = vpack.c.b16 %v562, %v562
        %v611 = vpack.c.b16 %v563, %v563
        %v612 = vpack.c.b16 %v564, %v564
        %v613 = vpack.c.b16 %v565, %v565
        %v614 = vpack.c.b16 %v566, %v566
        %v615 = vpack.c.b16 %v567, %v567
        %v616 = vpack.c.b16 %v568, %v568
        %v617 = vpack.c.b16 %v569, %v569
        %v618 = vpack.c.b16 %v570, %v570
        %v619 = vpack.c.b16 %v571, %v571
        %v620 = vpack.c.b16 %v572, %v572
        %v621 = vpack.c.b16 %v573, %v573
        %v622 = vpack.c.b16 %v574, %v574
        %v623 = vpack.c.b16 %v575, %v575
        %v624 = vpack.c.b16 %v576, %v576
        %v625 = vpack.c.b16 %v577, %v577
        %v626 = vpack.c.b16 %v578, %v578
        %v627 = vpack.c.b16 %v579, %v579
        %v628 = vpack.c.b16 %v580, %v580
        %v629 = vpack.c.b16 %v581, %v581
        %v630 = vpack.c.b16 %v582, %v582
        %v631 = vpack.c.b16 %v583, %v583
        %v632 = vpack.c.b16 %v584, %v584
        %v633 = vpack.c.b16 %v585, %v585
        %v634 = vpack.c.b16 %v586, %v586
        %v635 = vpack.c.b16 %v587, %v587
        %v636 = vpack.c.b16 %v588, %v588
        %v637 = vpack.c.b16 %v589, %v589
        %v638 = vpack.c.b16 %v590, %v590
        %v639 = vpack.c.b16 %v591, %v591
        %v640 = vpack.c.b16 %v592, %v592
        %v641 = vpack.c.b16 %v593, %v593
        %v642 = vpack.c.b16 %v594, %v594
        %v643 = vpack.c.b16 %v595, %v595
        %v644 = vpack.c.b16 %v596, %v596
        %v645 = vpack.c.b16 %v597, %v597
        %v646 = vpack.c.b16 %v598, %v598
        %s695 = scalar_lea.vmem [#allocation2], 12
        %696 = vst [vmem:[%s695] sm:$0xf] %v599
        %697 = vst [vmem:[%s695 + $0x4] sm:$0xf] %v600
        %698 = vst [vmem:[%s695 + $0x8] sm:$0x1] %v601
        %699 = vst [vmem:[%s695 + $0xc] sm:$0xf] %v602
        %700 = vst [vmem:[%s695 + $0x10] sm:$0xf] %v603
        %701 = vst [vmem:[%s695 + $0x14] sm:$0x1] %v604
        %702 = vst [vmem:[%s695 + $0x18] sm:$0xf] %v605
        %703 = vst [vmem:[%s695 + $0x1c] sm:$0xf] %v606
        %704 = vst [vmem:[%s695 + $0x20] sm:$0x1] %v607
        %705 = vst [vmem:[%s695 + $0x24] sm:$0xf] %v608
        %706 = vst [vmem:[%s695 + $0x28] sm:$0xf] %v609
        %707 = vst [vmem:[%s695 + $0x2c] sm:$0x1] %v610
        %708 = vst [vmem:[%s695 + $0x30] sm:$0xf] %v611
        %709 = vst [vmem:[%s695 + $0x34] sm:$0xf] %v612
        %710 = vst [vmem:[%s695 + $0x38] sm:$0x1] %v613
        %711 = vst [vmem:[%s695 + $0x3c] sm:$0xf] %v614
        %712 = vst [vmem:[%s695 + $0x40] sm:$0xf] %v615
        %713 = vst [vmem:[%s695 + $0x44] sm:$0x1] %v616
        %714 = vst [vmem:[%s695 + $0x48] sm:$0xf] %v617
        %715 = vst [vmem:[%s695 + $0x4c] sm:$0xf] %v618
        %716 = vst [vmem:[%s695 + $0x50] sm:$0x1] %v619
        %717 = vst [vmem:[%s695 + $0x54] sm:$0xf] %v620
        %718 = vst [vmem:[%s695 + $0x58] sm:$0xf] %v621
        %719 = vst [vmem:[%s695 + $0x5c] sm:$0x1] %v622
        %720 = vst [vmem:[%s695 + $0x60] sm:$0xf] %v623
        %721 = vst [vmem:[%s695 + $0x64] sm:$0xf] %v624
        %722 = vst [vmem:[%s695 + $0x68] sm:$0x1] %v625
        %723 = vst [vmem:[%s695 + $0x6c] sm:$0xf] %v626
        %724 = vst [vmem:[%s695 + $0x70] sm:$0xf] %v627
        %725 = vst [vmem:[%s695 + $0x74] sm:$0x1] %v628
        %726 = vst [vmem:[%s695 + $0x78] sm:$0xf] %v629
        %727 = vst [vmem:[%s695 + $0x7c] sm:$0xf] %v630
        %728 = vst [vmem:[%s695 + $0x80] sm:$0x1] %v631
        %729 = vst [vmem:[%s695 + $0x84] sm:$0xf] %v632
        %730 = vst [vmem:[%s695 + $0x88] sm:$0xf] %v633
        %731 = vst [vmem:[%s695 + $0x8c] sm:$0x1] %v634
        %732 = vst [vmem:[%s695 + $0x90] sm:$0xf] %v635
        %733 = vst [vmem:[%s695 + $0x94] sm:$0xf] %v636
        %734 = vst [vmem:[%s695 + $0x98] sm:$0x1] %v637
        %735 = vst [vmem:[%s695 + $0x9c] sm:$0xf] %v638
        %736 = vst [vmem:[%s695 + $0xa0] sm:$0xf] %v639
        %737 = vst [vmem:[%s695 + $0xa4] sm:$0x1] %v640
        %738 = vst [vmem:[%s695 + $0xa8] sm:$0xf] %v641
        %739 = vst [vmem:[%s695 + $0xac] sm:$0xf] %v642
        %740 = vst [vmem:[%s695 + $0xb0] sm:$0x1] %v643
        %741 = vst [vmem:[%s695 + $0xb4] sm:$0xf] %v644
        %742 = vst [vmem:[%s695 + $0xb8] sm:$0xf] %v645
        %743 = vst [vmem:[%s695 + $0xbc] sm:$0x1] %v646
        %v744 = vld [vmem:[%s2] sm:$0x1]
        %v745 = vld [vmem:[%s3] sm:$0x1]
        %v746 = vld [vmem:[#allocation2] sm:$0xf]
        %v747 = vld [vmem:[#allocation2 + $0x4] sm:$0xf]
        %v748 = vld [vmem:[#allocation2 + $0xc] sm:$0xf]
        %v749 = vld [vmem:[#allocation2 + $0x10] sm:$0xf]
        %v750 = vld [vmem:[#allocation2 + $0x18] sm:$0xf]
        %v751 = vld [vmem:[#allocation2 + $0x1c] sm:$0xf]
        %v752 = vld [vmem:[#allocation2 + $0x24] sm:$0xf]
        %v753 = vld [vmem:[#allocation2 + $0x28] sm:$0xf]
        %v754 = vld [vmem:[#allocation2 + $0x30] sm:$0xf]
        %v755 = vld [vmem:[#allocation2 + $0x34] sm:$0xf]
        %v756 = vld [vmem:[#allocation2 + $0x3c] sm:$0xf]
        %v757 = vld [vmem:[#allocation2 + $0x40] sm:$0xf]
        %v758 = vld [vmem:[#allocation2 + $0x48] sm:$0xf]
        %v759 = vld [vmem:[#allocation2 + $0x4c] sm:$0xf]
        %v760 = vld [vmem:[#allocation2 + $0x54] sm:$0xf]
        %v761 = vld [vmem:[#allocation2 + $0x58] sm:$0xf]
        %v762 = vld [vmem:[#allocation2 + $0x60] sm:$0xf]
        %v763 = vld [vmem:[#allocation2 + $0x64] sm:$0xf]
        %v764 = vld [vmem:[#allocation2 + $0x6c] sm:$0xf]
        %v765 = vld [vmem:[#allocation2 + $0x70] sm:$0xf]
        %v766 = vld [vmem:[%s1] sm:$0xf]
        %v767 = vld [vmem:[%s1 + $0x4] sm:$0xf]
        %v768 = vld [vmem:[%s1 + $0x8] sm:$0xf]
        %v769 = vld [vmem:[%s1 + $0xc] sm:$0xf]
        %v770 = vld [vmem:[%s1 + $0x10] sm:$0xf]
        %v771 = vld [vmem:[%s1 + $0x14] sm:$0xf]
        %v772 = vld [vmem:[%s1 + $0x18] sm:$0xf]
        %v773 = vld [vmem:[%s1 + $0x1c] sm:$0xf]
        %v774 = vld [vmem:[%s1 + $0x20] sm:$0xf]
        %v775 = vld [vmem:[%s1 + $0x24] sm:$0xf]
        %v776 = vld [vmem:[%s1 + $0x28] sm:$0xf]
        %v777 = vld [vmem:[%s1 + $0x2c] sm:$0xf]
        %v778 = vld [vmem:[%s1 + $0x30] sm:$0xf]
        %v779 = vld [vmem:[%s1 + $0x34] sm:$0xf]
        %v780 = vld [vmem:[%s1 + $0x38] sm:$0xf]
        %v781 = vld [vmem:[%s1 + $0x3c] sm:$0xf]
        %s782 = scalar_lea.vmem %s1, 192
        %v783 = vld [vmem:[%s782] sm:$0xf]
        %v784 = vld [vmem:[%s782 + $0x4] sm:$0xf]
        %v785 = vld [vmem:[%s782 + $0x8] sm:$0xf]
        %v786 = vld [vmem:[%s782 + $0xc] sm:$0xf]
        %v787 = vld [vmem:[%s782 + $0x10] sm:$0xf]
        %v788 = vld [vmem:[%s782 + $0x14] sm:$0xf]
        %v789 = vld [vmem:[%s782 + $0x18] sm:$0xf]
        %v790 = vld [vmem:[%s782 + $0x1c] sm:$0xf]
        %v791 = vld [vmem:[%s782 + $0x20] sm:$0xf]
        %v792 = vld [vmem:[%s782 + $0x24] sm:$0xf]
        %v793 = vld [vmem:[%s782 + $0x28] sm:$0xf]
        %v794 = vld [vmem:[%s782 + $0x2c] sm:$0xf]
        %v795 = vld [vmem:[%s782 + $0x30] sm:$0xf]
        %v796 = vld [vmem:[%s782 + $0x34] sm:$0xf]
        %v797 = vld [vmem:[%s782 + $0x38] sm:$0xf]
        %v798 = vld [vmem:[%s782 + $0x3c] sm:$0xf]
        %v815 = vunpack.c.l.b16 %v748
        %v816 = vunpack.c.l.b16 %v749
        %v817 = vunpack.c.l.b16 %v750
        %v818 = vunpack.c.l.b16 %v751
        %v819 = vunpack.c.l.b16 %v752
        %v820 = vunpack.c.l.b16 %v753
        %v821 = vunpack.c.l.b16 %v754
        %v822 = vunpack.c.l.b16 %v755
        %v823 = vunpack.c.l.b16 %v756
        %v824 = vunpack.c.l.b16 %v757
        %v825 = vunpack.c.l.b16 %v758
        %v826 = vunpack.c.l.b16 %v759
        %v827 = vunpack.c.l.b16 %v760
        %v828 = vunpack.c.l.b16 %v761
        %v829 = vunpack.c.l.b16 %v762
        %v830 = vunpack.c.l.b16 %v763
        %v831 = vpack.c.b16 %v816, %v815
        %v832 = vpack.c.b16 %v818, %v817
        %v833 = vpack.c.b16 %v820, %v819
        %v834 = vpack.c.b16 %v822, %v821
        %v835 = vpack.c.b16 %v824, %v823
        %v836 = vpack.c.b16 %v826, %v825
        %v837 = vpack.c.b16 %v828, %v827
        %v838 = vpack.c.b16 %v830, %v829
        %v863 = vunpack.c.l.b16 %v783
        %v864 = vunpack.c.l.b16 %v784
        %v865 = vunpack.c.l.b16 %v785
        %v866 = vunpack.c.l.b16 %v786
        %v867 = vunpack.c.l.b16 %v787
        %v868 = vunpack.c.l.b16 %v788
        %v869 = vunpack.c.l.b16 %v789
        %v870 = vunpack.c.l.b16 %v790
        %v871 = vunpack.c.l.b16 %v791
        %v872 = vunpack.c.l.b16 %v792
        %v873 = vunpack.c.l.b16 %v793
        %v874 = vunpack.c.l.b16 %v794
        %v875 = vunpack.c.l.b16 %v795
        %v876 = vunpack.c.l.b16 %v796
        %v877 = vunpack.c.l.b16 %v797
        %v878 = vunpack.c.l.b16 %v798
        %v879 = vpack.c.b16 %v864, %v863
        %v880 = vpack.c.b16 %v866, %v865
        %v881 = vpack.c.b16 %v868, %v867
        %v882 = vpack.c.b16 %v870, %v869
        %v883 = vpack.c.b16 %v872, %v871
        %v884 = vpack.c.b16 %v874, %v873
        %v885 = vpack.c.b16 %v876, %v875
        %v886 = vpack.c.b16 %v878, %v877
        %895 = vmatprep.subr.bf16.mxu0 0
        %896 = vmatpush1.bf16.msra.mxu0 %v879
        %897 = vmatprep.subr.bf16.mxu0 0
        %898 = vmatpush1.bf16.msra.mxu0 %v880
        %899 = vmatprep.subr.bf16.mxu0 0
        %900 = vmatpush1.bf16.msra.mxu0 %v881
        %901 = vmatprep.subr.bf16.mxu0 0
        %902 = vmatpush1.bf16.msra.mxu0 %v882
        %903 = vmatprep.subr.bf16.mxu0 0
        %904 = vmatpush1.bf16.msra.mxu0 %v883
        %905 = vmatprep.subr.bf16.mxu0 0
        %906 = vmatpush1.bf16.msra.mxu0 %v884
        %907 = vmatprep.subr.bf16.mxu0 0
        %908 = vmatpush1.bf16.msra.mxu0 %v885
        %909 = vmatprep.subr.bf16.mxu0 0
        %910 = vmatpush1.bf16.msra.mxu0 %v886
        %911 = vmatprep.subr.bf16.mxu0 0
        %912 = vmatpush1.bf16.msra.mxu0 0
        %913 = vmatprep.subr.bf16.mxu0 0
        %914 = vmatpush1.bf16.msra.mxu0 0
        %915 = vmatprep.subr.bf16.mxu0 0
        %916 = vmatpush1.bf16.msra.mxu0 0
        %917 = vmatprep.subr.bf16.mxu0 0
        %918 = vmatpush1.bf16.msra.mxu0 0
        %919 = vmatprep.subr.bf16.mxu0 0
        %920 = vmatpush1.bf16.msra.mxu0 0
        %921 = vmatprep.subr.bf16.mxu0 0
        %922 = vmatpush1.bf16.msra.mxu0 0
        %923 = vmatprep.subr.bf16.mxu0 0
        %924 = vmatpush1.bf16.msra.mxu0 0
        %925 = vmatprep.subr.bf16.mxu0 0
        %926 = vmatpush1.bf16.msra.mxu0 0
        %927 = vmatprep.mubr.bf16.mxu0 0
        %928 = vmatmul.mubr.bf16.gmra.mrb[0].mxu0 %v831
        %v929 = vpop.f32.mrb[0].mxu0
        %v930 = vadd.f32 0.0, %v929
        %v931 = vpop.f32.mrb[0].mxu0
        %v932 = vpop.f32.mrb[0].mxu0
        %v933 = vadd.f32 0.0, %v932
        %v934 = vpop.f32.mrb[0].mxu0
        %935 = vmatprep.mubr.bf16.mxu0 0
        %936 = vmatmul.mubr.bf16.gmra.mrb[0].mxu0 %v832
        %v937 = vpop.f32.mrb[0].mxu0
        %v938 = vadd.f32 0.0, %v937
        %v939 = vpop.f32.mrb[0].mxu0
        %v940 = vpop.f32.mrb[0].mxu0
        %v941 = vadd.f32 0.0, %v940
        %v942 = vpop.f32.mrb[0].mxu0
        %943 = vmatprep.mubr.bf16.mxu0 0
        %944 = vmatmul.mubr.bf16.gmra.mrb[0].mxu0 %v833
        %v945 = vpop.f32.mrb[0].mxu0
        %v946 = vadd.f32 0.0, %v945
        %v947 = vpop.f32.mrb[0].mxu0
        %v948 = vpop.f32.mrb[0].mxu0
        %v949 = vadd.f32 0.0, %v948
        %v950 = vpop.f32.mrb[0].mxu0
        %951 = vmatprep.mubr.bf16.mxu0 0
        %952 = vmatmul.mubr.bf16.gmra.mrb[0].mxu0 %v834
        %v953 = vpop.f32.mrb[0].mxu0
        %v954 = vadd.f32 0.0, %v953
        %v955 = vpop.f32.mrb[0].mxu0
        %v956 = vpop.f32.mrb[0].mxu0
        %v957 = vadd.f32 0.0, %v956
        %v958 = vpop.f32.mrb[0].mxu0
        %959 = vmatprep.mubr.bf16.mxu0 0
        %960 = vmatmul.mubr.bf16.gmra.mrb[0].mxu0 %v835
        %v961 = vpop.f32.mrb[0].mxu0
        %v962 = vadd.f32 0.0, %v961
        %v963 = vpop.f32.mrb[0].mxu0
        %v964 = vpop.f32.mrb[0].mxu0
        %v965 = vadd.f32 0.0, %v964
        %v966 = vpop.f32.mrb[0].mxu0
        %967 = vmatprep.mubr.bf16.mxu0 0
        %968 = vmatmul.mubr.bf16.gmra.mrb[0].mxu0 %v836
        %v969 = vpop.f32.mrb[0].mxu0
        %v970 = vadd.f32 0.0, %v969
        %v971 = vpop.f32.mrb[0].mxu0
        %v972 = vpop.f32.mrb[0].mxu0
        %v973 = vadd.f32 0.0, %v972
        %v974 = vpop.f32.mrb[0].mxu0
        %975 = vmatprep.mubr.bf16.mxu0 0
        %976 = vmatmul.mubr.bf16.gmra.mrb[0].mxu0 %v837
        %v977 = vpop.f32.mrb[0].mxu0
        %v978 = vadd.f32 0.0, %v977
        %v979 = vpop.f32.mrb[0].mxu0
        %v980 = vpop.f32.mrb[0].mxu0
        %v981 = vadd.f32 0.0, %v980
        %v982 = vpop.f32.mrb[0].mxu0
        %983 = vmatprep.mubr.bf16.mxu0 0
        %984 = vmatmul.mubr.bf16.gmra.mrb[0].mxu0 %v838
        %v985 = vpop.f32.mrb[0].mxu0
        %v986 = vadd.f32 0.0, %v985
        %v987 = vpop.f32.mrb[0].mxu0
        %v988 = vpop.f32.mrb[0].mxu0
        %v989 = vadd.f32 0.0, %v988
        %v990 = vpop.f32.mrb[0].mxu0
        %991 = vdwg.mxu0
        %v994 = vunpack.c.l.b16 %v746
        %v995 = vunpack.c.l.b16 %v747
        %v996 = vpack.c.b16 %v995, %v994
        %v1014 = vunpack.c.l.b16 %v766
        %v1015 = vunpack.c.l.b16 %v767
        %v1016 = vunpack.c.l.b16 %v768
        %v1017 = vunpack.c.l.b16 %v769
        %v1018 = vunpack.c.l.b16 %v770
        %v1019 = vunpack.c.l.b16 %v771
        %v1020 = vunpack.c.l.b16 %v772
        %v1021 = vunpack.c.l.b16 %v773
        %v1022 = vunpack.c.l.b16 %v774
        %v1023 = vunpack.c.l.b16 %v775
        %v1024 = vunpack.c.l.b16 %v776
        %v1025 = vunpack.c.l.b16 %v777
        %v1026 = vunpack.c.l.b16 %v778
        %v1027 = vunpack.c.l.b16 %v779
        %v1028 = vunpack.c.l.b16 %v780
        %v1029 = vunpack.c.l.b16 %v781
        %v1030 = vpack.c.b16 %v1015, %v1014
        %v1031 = vpack.c.b16 %v1017, %v1016
        %v1032 = vpack.c.b16 %v1019, %v1018
        %v1033 = vpack.c.b16 %v1021, %v1020
        %v1034 = vpack.c.b16 %v1023, %v1022
        %v1035 = vpack.c.b16 %v1025, %v1024
        %v1036 = vpack.c.b16 %v1027, %v1026
        %v1037 = vpack.c.b16 %v1029, %v1028
        %1046 = vmatprep.subr.bf16.mxu0 0
        %1047 = vmatpush1.bf16.msra.mxu0 %v1030
        %1048 = vmatprep.subr.bf16.mxu0 0
        %1049 = vmatpush1.bf16.msra.mxu0 %v1031
        %1050 = vmatprep.subr.bf16.mxu0 0
        %1051 = vmatpush1.bf16.msra.mxu0 %v1032
        %1052 = vmatprep.subr.bf16.mxu0 0
        %1053 = vmatpush1.bf16.msra.mxu0 %v1033
        %1054 = vmatprep.subr.bf16.mxu0 0
        %1055 = vmatpush1.bf16.msra.mxu0 %v1034
        %1056 = vmatprep.subr.bf16.mxu0 0
        %1057 = vmatpush1.bf16.msra.mxu0 %v1035
        %1058 = vmatprep.subr.bf16.mxu0 0
        %1059 = vmatpush1.bf16.msra.mxu0 %v1036
        %1060 = vmatprep.subr.bf16.mxu0 0
        %1061 = vmatpush1.bf16.msra.mxu0 %v1037
        %1062 = vmatprep.subr.bf16.mxu0 0
        %1063 = vmatpush1.bf16.msra.mxu0 0
        %1064 = vmatprep.subr.bf16.mxu0 0
        %1065 = vmatpush1.bf16.msra.mxu0 0
        %1066 = vmatprep.subr.bf16.mxu0 0
        %1067 = vmatpush1.bf16.msra.mxu0 0
        %1068 = vmatprep.subr.bf16.mxu0 0
        %1069 = vmatpush1.bf16.msra.mxu0 0
        %1070 = vmatprep.subr.bf16.mxu0 0
        %1071 = vmatpush1.bf16.msra.mxu0 0
        %1072 = vmatprep.subr.bf16.mxu0 0
        %1073 = vmatpush1.bf16.msra.mxu0 0
        %1074 = vmatprep.subr.bf16.mxu0 0
        %1075 = vmatpush1.bf16.msra.mxu0 0
        %1076 = vmatprep.subr.bf16.mxu0 0
        %1077 = vmatpush1.bf16.msra.mxu0 0
        %1078 = vmatprep.mubr.bf16.mxu0 0
        %1079 = vmatmul.mubr.bf16.gmra.mrb[0].mxu0 %v996
        %v1080 = vpop.f32.mrb[0].mxu0
        %v1081 = vadd.f32 %v930, %v1080
        %v1082 = vpop.f32.mrb[0].mxu0
        %v1083 = vpop.f32.mrb[0].mxu0
        %v1084 = vadd.f32 %v933, %v1083
        %v1085 = vpop.f32.mrb[0].mxu0
        %1086 = vmatprep.mubr.bf16.mxu0 0
        %1087 = vmatmul.mubr.bf16.gmra.mrb[0].mxu0 %v831
        %v1088 = vpop.f32.mrb[0].mxu0
        %v1089 = vadd.f32 %v938, %v1088
        %v1090 = vpop.f32.mrb[0].mxu0
        %v1091 = vpop.f32.mrb[0].mxu0
        %v1092 = vadd.f32 %v941, %v1091
        %v1093 = vpop.f32.mrb[0].mxu0
        %1094 = vmatprep.mubr.bf16.mxu0 0
        %1095 = vmatmul.mubr.bf16.gmra.mrb[0].mxu0 %v832
        %v1096 = vpop.f32.mrb[0].mxu0
        %v1097 = vadd.f32 %v946, %v1096
        %v1098 = vpop.f32.mrb[0].mxu0
        %v1099 = vpop.f32.mrb[0].mxu0
        %v1100 = vadd.f32 %v949, %v1099
        %v1101 = vpop.f32.mrb[0].mxu0
        %1102 = vmatprep.mubr.bf16.mxu0 0
        %1103 = vmatmul.mubr.bf16.gmra.mrb[0].mxu0 %v833
        %v1104 = vpop.f32.mrb[0].mxu0
        %v1105 = vadd.f32 %v954, %v1104
        %v1106 = vpop.f32.mrb[0].mxu0
        %v1107 = vpop.f32.mrb[0].mxu0
        %v1108 = vadd.f32 %v957, %v1107
        %v1109 = vpop.f32.mrb[0].mxu0
        %1110 = vmatprep.mubr.bf16.mxu0 0
        %1111 = vmatmul.mubr.bf16.gmra.mrb[0].mxu0 %v834
        %v1112 = vpop.f32.mrb[0].mxu0
        %v1113 = vadd.f32 %v962, %v1112
        %v1114 = vpop.f32.mrb[0].mxu0
        %v1115 = vpop.f32.mrb[0].mxu0
        %v1116 = vadd.f32 %v965, %v1115
        %v1117 = vpop.f32.mrb[0].mxu0
        %1118 = vmatprep.mubr.bf16.mxu0 0
        %1119 = vmatmul.mubr.bf16.gmra.mrb[0].mxu0 %v835
        %v1120 = vpop.f32.mrb[0].mxu0
        %v1121 = vadd.f32 %v970, %v1120
        %v1122 = vpop.f32.mrb[0].mxu0
        %v1123 = vpop.f32.mrb[0].mxu0
        %v1124 = vadd.f32 %v973, %v1123
        %v1125 = vpop.f32.mrb[0].mxu0
        %1126 = vmatprep.mubr.bf16.mxu0 0
        %1127 = vmatmul.mubr.bf16.gmra.mrb[0].mxu0 %v836
        %v1128 = vpop.f32.mrb[0].mxu0
        %v1129 = vadd.f32 %v978, %v1128
        %v1130 = vpop.f32.mrb[0].mxu0
        %v1131 = vpop.f32.mrb[0].mxu0
        %v1132 = vadd.f32 %v981, %v1131
        %v1133 = vpop.f32.mrb[0].mxu0
        %1134 = vmatprep.mubr.bf16.mxu0 0
        %1135 = vmatmul.mubr.bf16.gmra.mrb[0].mxu0 %v837
        %v1136 = vpop.f32.mrb[0].mxu0
        %v1137 = vadd.f32 %v986, %v1136
        %v1138 = vpop.f32.mrb[0].mxu0
        %v1139 = vpop.f32.mrb[0].mxu0
        %v1140 = vadd.f32 %v989, %v1139
        %v1141 = vpop.f32.mrb[0].mxu0
        %1142 = vdwg.mxu0
        %s1143 = scalar_lea.vmem %s1, 384
        %v1144 = vld [vmem:[%s1143] sm:$0xf]
        %v1145 = vld [vmem:[%s1143 + $0x4] sm:$0xf]
        %v1146 = vld [vmem:[%s1143 + $0x8] sm:$0xf]
        %v1147 = vld [vmem:[%s1143 + $0xc] sm:$0xf]
        %v1148 = vld [vmem:[%s1143 + $0x10] sm:$0xf]
        %v1149 = vld [vmem:[%s1143 + $0x14] sm:$0xf]
        %v1150 = vld [vmem:[%s1143 + $0x18] sm:$0xf]
        %v1151 = vld [vmem:[%s1143 + $0x1c] sm:$0xf]
        %v1152 = vld [vmem:[%s1143 + $0x20] sm:$0xf]
        %v1153 = vld [vmem:[%s1143 + $0x24] sm:$0xf]
        %v1154 = vld [vmem:[%s1143 + $0x28] sm:$0xf]
        %v1155 = vld [vmem:[%s1143 + $0x2c] sm:$0xf]
        %v1156 = vld [vmem:[%s1143 + $0x30] sm:$0xf]
        %v1157 = vld [vmem:[%s1143 + $0x34] sm:$0xf]
        %v1158 = vld [vmem:[%s1143 + $0x38] sm:$0xf]
        %v1159 = vld [vmem:[%s1143 + $0x3c] sm:$0xf]
        %v1162 = vunpack.c.l.b16 %v764
        %v1163 = vunpack.c.l.b16 %v765
        %v1164 = vpack.c.b16 %v1163, %v1162
        %v1182 = vunpack.c.l.b16 %v1144
        %v1183 = vunpack.c.l.b16 %v1145
        %v1184 = vunpack.c.l.b16 %v1146
        %v1185 = vunpack.c.l.b16 %v1147
        %v1186 = vunpack.c.l.b16 %v1148
        %v1187 = vunpack.c.l.b16 %v1149
        %v1188 = vunpack.c.l.b16 %v1150
        %v1189 = vunpack.c.l.b16 %v1151
        %v1190 = vunpack.c.l.b16 %v1152
        %v1191 = vunpack.c.l.b16 %v1153
        %v1192 = vunpack.c.l.b16 %v1154
        %v1193 = vunpack.c.l.b16 %v1155
        %v1194 = vunpack.c.l.b16 %v1156
        %v1195 = vunpack.c.l.b16 %v1157
        %v1196 = vunpack.c.l.b16 %v1158
        %v1197 = vunpack.c.l.b16 %v1159
        %v1198 = vpack.c.b16 %v1183, %v1182
        %v1199 = vpack.c.b16 %v1185, %v1184
        %v1200 = vpack.c.b16 %v1187, %v1186
        %v1201 = vpack.c.b16 %v1189, %v1188
        %v1202 = vpack.c.b16 %v1191, %v1190
        %v1203 = vpack.c.b16 %v1193, %v1192
        %v1204 = vpack.c.b16 %v1195, %v1194
        %v1205 = vpack.c.b16 %v1197, %v1196
        %1214 = vmatprep.subr.bf16.mxu0 0
        %1215 = vmatpush1.bf16.msra.mxu0 %v1198
        %1216 = vmatprep.subr.bf16.mxu0 0
        %1217 = vmatpush1.bf16.msra.mxu0 %v1199
        %1218 = vmatprep.subr.bf16.mxu0 0
        %1219 = vmatpush1.bf16.msra.mxu0 %v1200
        %1220 = vmatprep.subr.bf16.mxu0 0
        %1221 = vmatpush1.bf16.msra.mxu0 %v1201
        %1222 = vmatprep.subr.bf16.mxu0 0
        %1223 = vmatpush1.bf16.msra.mxu0 %v1202
        %1224 = vmatprep.subr.bf16.mxu0 0
        %1225 = vmatpush1.bf16.msra.mxu0 %v1203
        %1226 = vmatprep.subr.bf16.mxu0 0
        %1227 = vmatpush1.bf16.msra.mxu0 %v1204
        %1228 = vmatprep.subr.bf16.mxu0 0
        %1229 = vmatpush1.bf16.msra.mxu0 %v1205
        %1230 = vmatprep.subr.bf16.mxu0 0
        %1231 = vmatpush1.bf16.msra.mxu0 0
        %1232 = vmatprep.subr.bf16.mxu0 0
        %1233 = vmatpush1.bf16.msra.mxu0 0
        %1234 = vmatprep.subr.bf16.mxu0 0
        %1235 = vmatpush1.bf16.msra.mxu0 0
        %1236 = vmatprep.subr.bf16.mxu0 0
        %1237 = vmatpush1.bf16.msra.mxu0 0
        %1238 = vmatprep.subr.bf16.mxu0 0
        %1239 = vmatpush1.bf16.msra.mxu0 0
        %1240 = vmatprep.subr.bf16.mxu0 0
        %1241 = vmatpush1.bf16.msra.mxu0 0
        %1242 = vmatprep.subr.bf16.mxu0 0
        %1243 = vmatpush1.bf16.msra.mxu0 0
        %1244 = vmatprep.subr.bf16.mxu0 0
        %1245 = vmatpush1.bf16.msra.mxu0 0
        %1246 = vmatprep.mubr.bf16.mxu0 0
        %1247 = vmatmul.mubr.bf16.gmra.mrb[0].mxu0 %v832
        %v1248 = vpop.f32.mrb[0].mxu0
        %v1249 = vadd.f32 0.0, %v1248
        %v1250 = vpop.f32.mrb[0].mxu0
        %v1251 = vpop.f32.mrb[0].mxu0
        %v1252 = vadd.f32 0.0, %v1251
        %v1253 = vpop.f32.mrb[0].mxu0
        %1254 = vmatprep.mubr.bf16.mxu0 0
        %1255 = vmatmul.mubr.bf16.gmra.mrb[0].mxu0 %v833
        %v1256 = vpop.f32.mrb[0].mxu0
        %v1257 = vadd.f32 0.0, %v1256
        %v1258 = vpop.f32.mrb[0].mxu0
        %v1259 = vpop.f32.mrb[0].mxu0
        %v1260 = vadd.f32 0.0, %v1259
        %v1261 = vpop.f32.mrb[0].mxu0
        %1262 = vmatprep.mubr.bf16.mxu0 0
        %1263 = vmatmul.mubr.bf16.gmra.mrb[0].mxu0 %v834
        %v1264 = vpop.f32.mrb[0].mxu0
        %v1265 = vadd.f32 0.0, %v1264
        %v1266 = vpop.f32.mrb[0].mxu0
        %v1267 = vpop.f32.mrb[0].mxu0
        %v1268 = vadd.f32 0.0, %v1267
        %v1269 = vpop.f32.mrb[0].mxu0
        %1270 = vmatprep.mubr.bf16.mxu0 0
        %1271 = vmatmul.mubr.bf16.gmra.mrb[0].mxu0 %v835
        %v1272 = vpop.f32.mrb[0].mxu0
        %v1273 = vadd.f32 0.0, %v1272
        %v1274 = vpop.f32.mrb[0].mxu0
        %v1275 = vpop.f32.mrb[0].mxu0
        %v1276 = vadd.f32 0.0, %v1275
        %v1277 = vpop.f32.mrb[0].mxu0
        %1278 = vmatprep.mubr.bf16.mxu0 0
        %1279 = vmatmul.mubr.bf16.gmra.mrb[0].mxu0 %v836
        %v1280 = vpop.f32.mrb[0].mxu0
        %v1281 = vadd.f32 0.0, %v1280
        %v1282 = vpop.f32.mrb[0].mxu0
        %v1283 = vpop.f32.mrb[0].mxu0
        %v1284 = vadd.f32 0.0, %v1283
        %v1285 = vpop.f32.mrb[0].mxu0
        %1286 = vmatprep.mubr.bf16.mxu0 0
        %1287 = vmatmul.mubr.bf16.gmra.mrb[0].mxu0 %v837
        %v1288 = vpop.f32.mrb[0].mxu0
        %v1289 = vadd.f32 0.0, %v1288
        %v1290 = vpop.f32.mrb[0].mxu0
        %v1291 = vpop.f32.mrb[0].mxu0
        %v1292 = vadd.f32 0.0, %v1291
        %v1293 = vpop.f32.mrb[0].mxu0
        %1294 = vmatprep.mubr.bf16.mxu0 0
        %1295 = vmatmul.mubr.bf16.gmra.mrb[0].mxu0 %v838
        %v1296 = vpop.f32.mrb[0].mxu0
        %v1297 = vadd.f32 0.0, %v1296
        %v1298 = vpop.f32.mrb[0].mxu0
        %v1299 = vpop.f32.mrb[0].mxu0
        %v1300 = vadd.f32 0.0, %v1299
        %v1301 = vpop.f32.mrb[0].mxu0
        %1302 = vmatprep.mubr.bf16.mxu0 0
        %1303 = vmatmul.mubr.bf16.gmra.mrb[0].mxu0 %v1164
        %v1304 = vpop.f32.mrb[0].mxu0
        %v1305 = vadd.f32 0.0, %v1304
        %v1306 = vpop.f32.mrb[0].mxu0
        %v1307 = vpop.f32.mrb[0].mxu0
        %v1308 = vadd.f32 0.0, %v1307
        %v1309 = vpop.f32.mrb[0].mxu0
        %1310 = vdwg.mxu0
        %v1311 = vadd.f32 %v1081, %v1249
        %v1312 = vadd.f32 %v1084, %v1252
        %v1313 = vadd.f32 %v1089, %v1257
        %v1314 = vadd.f32 %v1092, %v1260
        %v1315 = vadd.f32 %v1097, %v1265
        %v1316 = vadd.f32 %v1100, %v1268
        %v1317 = vadd.f32 %v1105, %v1273
        %v1318 = vadd.f32 %v1108, %v1276
        %v1319 = vadd.f32 %v1113, %v1281
        %v1320 = vadd.f32 %v1116, %v1284
        %v1321 = vadd.f32 %v1121, %v1289
        %v1322 = vadd.f32 %v1124, %v1292
        %v1323 = vadd.f32 %v1129, %v1297
        %v1324 = vadd.f32 %v1132, %v1300
        %v1325 = vadd.f32 %v1137, %v1305
        %v1326 = vadd.f32 %v1140, %v1308
        %v1327 = vld [vmem:[#allocation2] sm:$0xf]
        %v1328 = vld [vmem:[#allocation2 + $0x4] sm:$0xf]
        %v1329 = vld [vmem:[#allocation2 + $0x8] sm:$0x1]
        %v1330 = vld [vmem:[#allocation2 + $0xc] sm:$0xf]
        %v1331 = vld [vmem:[#allocation2 + $0x10] sm:$0xf]
        %v1332 = vld [vmem:[#allocation2 + $0x14] sm:$0x1]
        %v1333 = vld [vmem:[#allocation2 + $0x18] sm:$0xf]
        %v1334 = vld [vmem:[#allocation2 + $0x1c] sm:$0xf]
        %v1335 = vld [vmem:[#allocation2 + $0x20] sm:$0x1]
        %v1336 = vld [vmem:[#allocation2 + $0x24] sm:$0xf]
        %v1337 = vld [vmem:[#allocation2 + $0x28] sm:$0xf]
        %v1338 = vld [vmem:[#allocation2 + $0x2c] sm:$0x1]
        %v1339 = vld [vmem:[#allocation2 + $0x30] sm:$0xf]
        %v1340 = vld [vmem:[#allocation2 + $0x34] sm:$0xf]
        %v1341 = vld [vmem:[#allocation2 + $0x38] sm:$0x1]
        %v1342 = vld [vmem:[#allocation2 + $0x3c] sm:$0xf]
        %v1343 = vld [vmem:[#allocation2 + $0x40] sm:$0xf]
        %v1344 = vld [vmem:[#allocation2 + $0x44] sm:$0x1]
        %v1345 = vld [vmem:[#allocation2 + $0x48] sm:$0xf]
        %v1346 = vld [vmem:[#allocation2 + $0x4c] sm:$0xf]
        %v1347 = vld [vmem:[#allocation2 + $0x50] sm:$0x1]
        %v1348 = vld [vmem:[#allocation2 + $0x54] sm:$0xf]
        %v1349 = vld [vmem:[#allocation2 + $0x58] sm:$0xf]
        %v1350 = vld [vmem:[#allocation2 + $0x5c] sm:$0x1]
        %v1351 = vld [vmem:[#allocation2 + $0x60] sm:$0xf]
        %v1352 = vld [vmem:[#allocation2 + $0x64] sm:$0xf]
        %v1353 = vld [vmem:[#allocation2 + $0x68] sm:$0x1]
        %v1354 = vld [vmem:[#allocation2 + $0x6c] sm:$0xf]
        %v1355 = vld [vmem:[#allocation2 + $0x70] sm:$0xf]
        %v1356 = vld [vmem:[#allocation2 + $0x74] sm:$0x1]
        %vm1357 = vsmask.f32 3328
        %vm1358 = vsmask.f32 7440
        %vm1359 = vmor %vm1357, %vm1358
        %v1361 = vshrl.u32 %v1327, 16
        %v1363 = vrot.slane %v1361, 4
        %v1364 = vshll.u32 %v1327, 16
        %v1366 = vrot.slane %v1364, 5
        %v1367 = vor.u32 %v1363, %v1366
        %v1368 = vrot.slane %v1367, 4
        %v1370 = vshll.u32 %v1328, 16
        %v1372 = vrot.slane %v1370, 5
        %v1373 = vsel %vm1359, %v1368, %v1372
        %v1374 = vshrl.u32 %v1328, 16
        %v1376 = vrot.slane %v1374, 4
        %v1377 = vor.u32 %v1376, %v1372
        %v1378 = vrot.slane %v1377, 4
        %v1380 = vshll.u32 %v1329, 16
        %v1382 = vrot.slane %v1380, 5
        %v1383 = vsel %vm1359, %v1378, %v1382
        %v1385 = vshrl.u32 %v1330, 16
        %v1387 = vrot.slane %v1385, 4
        %v1388 = vshll.u32 %v1330, 16
        %v1390 = vrot.slane %v1388, 5
        %v1391 = vor.u32 %v1387, %v1390
        %v1392 = vrot.slane %v1391, 4
        %v1394 = vshll.u32 %v1331, 16
        %v1396 = vrot.slane %v1394, 5
        %v1397 = vsel %vm1359, %v1392, %v1396
        %v1398 = vshrl.u32 %v1331, 16
        %v1400 = vrot.slane %v1398, 4
        %v1401 = vor.u32 %v1400, %v1396
        %v1402 = vrot.slane %v1401, 4
        %v1404 = vshll.u32 %v1332, 16
        %v1406 = vrot.slane %v1404, 5
        %v1407 = vsel %vm1359, %v1402, %v1406
        %v1409 = vshrl.u32 %v1333, 16
        %v1411 = vrot.slane %v1409, 4
        %v1412 = vshll.u32 %v1333, 16
        %v1414 = vrot.slane %v1412, 5
        %v1415 = vor.u32 %v1411, %v1414
        %v1416 = vrot.slane %v1415, 4
        %v1418 = vshll.u32 %v1334, 16
        %v1420 = vrot.slane %v1418, 5
        %v1421 = vsel %vm1359, %v1416, %v1420
        %v1422 = vshrl.u32 %v1334, 16
        %v1424 = vrot.slane %v1422, 4
        %v1425 = vor.u32 %v1424, %v1420
        %v1426 = vrot.slane %v1425, 4
        %v1428 = vshll.u32 %v1335, 16
        %v1430 = vrot.slane %v1428, 5
        %v1431 = vsel %vm1359, %v1426, %v1430
        %v1433 = vshrl.u32 %v1336, 16
        %v1435 = vrot.slane %v1433, 4
        %v1436 = vshll.u32 %v1336, 16
        %v1438 = vrot.slane %v1436, 5
        %v1439 = vor.u32 %v1435, %v1438
        %v1440 = vrot.slane %v1439, 4
        %v1442 = vshll.u32 %v1337, 16
        %v1444 = vrot.slane %v1442, 5
        %v1445 = vsel %vm1359, %v1440, %v1444
        %v1446 = vshrl.u32 %v1337, 16
        %v1448 = vrot.slane %v1446, 4
        %v1449 = vor.u32 %v1448, %v1444
        %v1450 = vrot.slane %v1449, 4
        %v1452 = vshll.u32 %v1338, 16
        %v1454 = vrot.slane %v1452, 5
        %v1455 = vsel %vm1359, %v1450, %v1454
        %v1457 = vshrl.u32 %v1339, 16
        %v1459 = vrot.slane %v1457, 4
        %v1460 = vshll.u32 %v1339, 16
        %v1462 = vrot.slane %v1460, 5
        %v1463 = vor.u32 %v1459, %v1462
        %v1464 = vrot.slane %v1463, 4
        %v1466 = vshll.u32 %v1340, 16
        %v1468 = vrot.slane %v1466, 5
        %v1469 = vsel %vm1359, %v1464, %v1468
        %v1470 = vshrl.u32 %v1340, 16
        %v1472 = vrot.slane %v1470, 4
        %v1473 = vor.u32 %v1472, %v1468
        %v1474 = vrot.slane %v1473, 4
        %v1476 = vshll.u32 %v1341, 16
        %v1478 = vrot.slane %v1476, 5
        %v1479 = vsel %vm1359, %v1474, %v1478
        %v1481 = vshrl.u32 %v1342, 16
        %v1483 = vrot.slane %v1481, 4
        %v1484 = vshll.u32 %v1342, 16
        %v1486 = vrot.slane %v1484, 5
        %v1487 = vor.u32 %v1483, %v1486
        %v1488 = vrot.slane %v1487, 4
        %v1490 = vshll.u32 %v1343, 16
        %v1492 = vrot.slane %v1490, 5
        %v1493 = vsel %vm1359, %v1488, %v1492
        %v1494 = vshrl.u32 %v1343, 16
        %v1496 = vrot.slane %v1494, 4
        %v1497 = vor.u32 %v1496, %v1492
        %v1498 = vrot.slane %v1497, 4
        %v1500 = vshll.u32 %v1344, 16
        %v1502 = vrot.slane %v1500, 5
        %v1503 = vsel %vm1359, %v1498, %v1502
        %v1505 = vshrl.u32 %v1345, 16
        %v1507 = vrot.slane %v1505, 4
        %v1508 = vshll.u32 %v1345, 16
        %v1510 = vrot.slane %v1508, 5
        %v1511 = vor.u32 %v1507, %v1510
        %v1512 = vrot.slane %v1511, 4
        %v1514 = vshll.u32 %v1346, 16
        %v1516 = vrot.slane %v1514, 5
        %v1517 = vsel %vm1359, %v1512, %v1516
        %v1518 = vshrl.u32 %v1346, 16
        %v1520 = vrot.slane %v1518, 4
        %v1521 = vor.u32 %v1520, %v1516
        %v1522 = vrot.slane %v1521, 4
        %v1524 = vshll.u32 %v1347, 16
        %v1526 = vrot.slane %v1524, 5
        %v1527 = vsel %vm1359, %v1522, %v1526
        %v1529 = vshrl.u32 %v1348, 16
        %v1531 = vrot.slane %v1529, 4
        %v1532 = vshll.u32 %v1348, 16
        %v1534 = vrot.slane %v1532, 5
        %v1535 = vor.u32 %v1531, %v1534
        %v1536 = vrot.slane %v1535, 4
        %v1538 = vshll.u32 %v1349, 16
        %v1540 = vrot.slane %v1538, 5
        %v1541 = vsel %vm1359, %v1536, %v1540
        %v1542 = vshrl.u32 %v1349, 16
        %v1544 = vrot.slane %v1542, 4
        %v1545 = vor.u32 %v1544, %v1540
        %v1546 = vrot.slane %v1545, 4
        %v1548 = vshll.u32 %v1350, 16
        %v1550 = vrot.slane %v1548, 5
        %v1551 = vsel %vm1359, %v1546, %v1550
        %s1552 = scalar_lea.vmem %s1, 64
        %v1553 = vld [vmem:[%s1552] sm:$0xf]
        %v1554 = vld [vmem:[%s1552 + $0x4] sm:$0xf]
        %v1555 = vld [vmem:[%s1552 + $0x8] sm:$0xf]
        %v1556 = vld [vmem:[%s1552 + $0xc] sm:$0xf]
        %v1557 = vld [vmem:[%s1552 + $0x10] sm:$0xf]
        %v1558 = vld [vmem:[%s1552 + $0x14] sm:$0xf]
        %v1559 = vld [vmem:[%s1552 + $0x18] sm:$0xf]
        %v1560 = vld [vmem:[%s1552 + $0x1c] sm:$0xf]
        %v1561 = vld [vmem:[%s1552 + $0x20] sm:$0xf]
        %v1562 = vld [vmem:[%s1552 + $0x24] sm:$0xf]
        %v1563 = vld [vmem:[%s1552 + $0x28] sm:$0xf]
        %v1564 = vld [vmem:[%s1552 + $0x2c] sm:$0xf]
        %v1565 = vld [vmem:[%s1552 + $0x30] sm:$0xf]
        %v1566 = vld [vmem:[%s1552 + $0x34] sm:$0xf]
        %v1567 = vld [vmem:[%s1552 + $0x38] sm:$0xf]
        %v1568 = vld [vmem:[%s1552 + $0x3c] sm:$0xf]
        %v1569 = vunpack.c.l.b16 %v1373
        %v1570 = vunpack.c.l.b16 %v1383
        %v1571 = vunpack.c.l.b16 %v1397
        %v1572 = vunpack.c.l.b16 %v1407
        %v1573 = vunpack.c.l.b16 %v1421
        %v1574 = vunpack.c.l.b16 %v1431
        %v1575 = vunpack.c.l.b16 %v1445
        %v1576 = vunpack.c.l.b16 %v1455
        %v1577 = vunpack.c.l.b16 %v1469
        %v1578 = vunpack.c.l.b16 %v1479
        %v1579 = vunpack.c.l.b16 %v1493
        %v1580 = vunpack.c.l.b16 %v1503
        %v1581 = vunpack.c.l.b16 %v1517
        %v1582 = vunpack.c.l.b16 %v1527
        %v1583 = vunpack.c.l.b16 %v1541
        %v1584 = vunpack.c.l.b16 %v1551
        %v1585 = vpack.c.b16 %v1570, %v1569
        %v1586 = vpack.c.b16 %v1572, %v1571
        %v1587 = vpack.c.b16 %v1574, %v1573
        %v1588 = vpack.c.b16 %v1576, %v1575
        %v1589 = vpack.c.b16 %v1578, %v1577
        %v1590 = vpack.c.b16 %v1580, %v1579
        %v1591 = vpack.c.b16 %v1582, %v1581
        %v1592 = vpack.c.b16 %v1584, %v1583
        %v1617 = vunpack.c.l.b16 %v1553
        %v1618 = vunpack.c.l.b16 %v1554
        %v1619 = vunpack.c.l.b16 %v1555
        %v1620 = vunpack.c.l.b16 %v1556
        %v1621 = vunpack.c.l.b16 %v1557
        %v1622 = vunpack.c.l.b16 %v1558
        %v1623 = vunpack.c.l.b16 %v1559
        %v1624 = vunpack.c.l.b16 %v1560
        %v1625 = vunpack.c.l.b16 %v1561
        %v1626 = vunpack.c.l.b16 %v1562
        %v1627 = vunpack.c.l.b16 %v1563
        %v1628 = vunpack.c.l.b16 %v1564
        %v1629 = vunpack.c.l.b16 %v1565
        %v1630 = vunpack.c.l.b16 %v1566
        %v1631 = vunpack.c.l.b16 %v1567
        %v1632 = vunpack.c.l.b16 %v1568
        %v1633 = vpack.c.b16 %v1618, %v1617
        %v1634 = vpack.c.b16 %v1620, %v1619
        %v1635 = vpack.c.b16 %v1622, %v1621
        %v1636 = vpack.c.b16 %v1624, %v1623
        %v1637 = vpack.c.b16 %v1626, %v1625
        %v1638 = vpack.c.b16 %v1628, %v1627
        %v1639 = vpack.c.b16 %v1630, %v1629
        %v1640 = vpack.c.b16 %v1632, %v1631
        %1649 = vmatprep.subr.bf16.mxu0 0
        %1650 = vmatpush1.bf16.msra.mxu0 %v1633
        %1651 = vmatprep.subr.bf16.mxu0 0
        %1652 = vmatpush1.bf16.msra.mxu0 %v1634
        %1653 = vmatprep.subr.bf16.mxu0 0
        %1654 = vmatpush1.bf16.msra.mxu0 %v1635
        %1655 = vmatprep.subr.bf16.mxu0 0
        %1656 = vmatpush1.bf16.msra.mxu0 %v1636
        %1657 = vmatprep.subr.bf16.mxu0 0
        %1658 = vmatpush1.bf16.msra.mxu0 %v1637
        %1659 = vmatprep.subr.bf16.mxu0 0
        %1660 = vmatpush1.bf16.msra.mxu0 %v1638
        %1661 = vmatprep.subr.bf16.mxu0 0
        %1662 = vmatpush1.bf16.msra.mxu0 %v1639
        %1663 = vmatprep.subr.bf16.mxu0 0
        %1664 = vmatpush1.bf16.msra.mxu0 %v1640
        %1665 = vmatprep.subr.bf16.mxu0 0
        %1666 = vmatpush1.bf16.msra.mxu0 0
        %1667 = vmatprep.subr.bf16.mxu0 0
        %1668 = vmatpush1.bf16.msra.mxu0 0
        %1669 = vmatprep.subr.bf16.mxu0 0
        %1670 = vmatpush1.bf16.msra.mxu0 0
        %1671 = vmatprep.subr.bf16.mxu0 0
        %1672 = vmatpush1.bf16.msra.mxu0 0
        %1673 = vmatprep.subr.bf16.mxu0 0
        %1674 = vmatpush1.bf16.msra.mxu0 0
        %1675 = vmatprep.subr.bf16.mxu0 0
        %1676 = vmatpush1.bf16.msra.mxu0 0
        %1677 = vmatprep.subr.bf16.mxu0 0
        %1678 = vmatpush1.bf16.msra.mxu0 0
        %1679 = vmatprep.subr.bf16.mxu0 0
        %1680 = vmatpush1.bf16.msra.mxu0 0
        %1681 = vmatprep.mubr.bf16.mxu0 0
        %1682 = vmatmul.mubr.bf16.gmra.mrb[0].mxu0 %v1585
        %v1683 = vpop.f32.mrb[0].mxu0
        %v1684 = vadd.f32 0.0, %v1683
        %v1685 = vpop.f32.mrb[0].mxu0
        %v1686 = vpop.f32.mrb[0].mxu0
        %v1687 = vadd.f32 0.0, %v1686
        %v1688 = vpop.f32.mrb[0].mxu0
        %1689 = vmatprep.mubr.bf16.mxu0 0
        %1690 = vmatmul.mubr.bf16.gmra.mrb[0].mxu0 %v1586
        %v1691 = vpop.f32.mrb[0].mxu0
        %v1692 = vadd.f32 0.0, %v1691
        %v1693 = vpop.f32.mrb[0].mxu0
        %v1694 = vpop.f32.mrb[0].mxu0
        %v1695 = vadd.f32 0.0, %v1694
        %v1696 = vpop.f32.mrb[0].mxu0
        %1697 = vmatprep.mubr.bf16.mxu0 0
        %1698 = vmatmul.mubr.bf16.gmra.mrb[0].mxu0 %v1587
        %v1699 = vpop.f32.mrb[0].mxu0
        %v1700 = vadd.f32 0.0, %v1699
        %v1701 = vpop.f32.mrb[0].mxu0
        %v1702 = vpop.f32.mrb[0].mxu0
        %v1703 = vadd.f32 0.0, %v1702
        %v1704 = vpop.f32.mrb[0].mxu0
        %1705 = vmatprep.mubr.bf16.mxu0 0
        %1706 = vmatmul.mubr.bf16.gmra.mrb[0].mxu0 %v1588
        %v1707 = vpop.f32.mrb[0].mxu0
        %v1708 = vadd.f32 0.0, %v1707
        %v1709 = vpop.f32.mrb[0].mxu0
        %v1710 = vpop.f32.mrb[0].mxu0
        %v1711 = vadd.f32 0.0, %v1710
        %v1712 = vpop.f32.mrb[0].mxu0
        %1713 = vmatprep.mubr.bf16.mxu0 0
        %1714 = vmatmul.mubr.bf16.gmra.mrb[0].mxu0 %v1589
        %v1715 = vpop.f32.mrb[0].mxu0
        %v1716 = vadd.f32 0.0, %v1715
        %v1717 = vpop.f32.mrb[0].mxu0
        %v1718 = vpop.f32.mrb[0].mxu0
        %v1719 = vadd.f32 0.0, %v1718
        %v1720 = vpop.f32.mrb[0].mxu0
        %1721 = vmatprep.mubr.bf16.mxu0 0
        %1722 = vmatmul.mubr.bf16.gmra.mrb[0].mxu0 %v1590
        %v1723 = vpop.f32.mrb[0].mxu0
        %v1724 = vadd.f32 0.0, %v1723
        %v1725 = vpop.f32.mrb[0].mxu0
        %v1726 = vpop.f32.mrb[0].mxu0
        %v1727 = vadd.f32 0.0, %v1726
        %v1728 = vpop.f32.mrb[0].mxu0
        %1729 = vmatprep.mubr.bf16.mxu0 0
        %1730 = vmatmul.mubr.bf16.gmra.mrb[0].mxu0 %v1591
        %v1731 = vpop.f32.mrb[0].mxu0
        %v1732 = vadd.f32 0.0, %v1731
        %v1733 = vpop.f32.mrb[0].mxu0
        %v1734 = vpop.f32.mrb[0].mxu0
        %v1735 = vadd.f32 0.0, %v1734
        %v1736 = vpop.f32.mrb[0].mxu0
        %1737 = vmatprep.mubr.bf16.mxu0 0
        %1738 = vmatmul.mubr.bf16.gmra.mrb[0].mxu0 %v1592
        %v1739 = vpop.f32.mrb[0].mxu0
        %v1740 = vadd.f32 0.0, %v1739
        %v1741 = vpop.f32.mrb[0].mxu0
        %v1742 = vpop.f32.mrb[0].mxu0
        %v1743 = vadd.f32 0.0, %v1742
        %v1744 = vpop.f32.mrb[0].mxu0
        %1745 = vdwg.mxu0
        %v1746 = vadd.f32 %v1311, %v1684
        %v1747 = vadd.f32 %v1312, %v1687
        %v1748 = vadd.f32 %v1313, %v1692
        %v1749 = vadd.f32 %v1314, %v1695
        %v1750 = vadd.f32 %v1315, %v1700
        %v1751 = vadd.f32 %v1316, %v1703
        %v1752 = vadd.f32 %v1317, %v1708
        %v1753 = vadd.f32 %v1318, %v1711
        %v1754 = vadd.f32 %v1319, %v1716
        %v1755 = vadd.f32 %v1320, %v1719
        %v1756 = vadd.f32 %v1321, %v1724
        %v1757 = vadd.f32 %v1322, %v1727
        %v1758 = vadd.f32 %v1323, %v1732
        %v1759 = vadd.f32 %v1324, %v1735
        %v1760 = vadd.f32 %v1325, %v1740
        %v1761 = vadd.f32 %v1326, %v1743
        %v1763 = vshrl.u32 %v1351, 16
        %v1765 = vrot.slane %v1763, 4
        %v1766 = vshll.u32 %v1351, 16
        %v1768 = vrot.slane %v1766, 5
        %v1769 = vor.u32 %v1765, %v1768
        %v1770 = vrot.slane %v1769, 4
        %v1772 = vshll.u32 %v1352, 16
        %v1774 = vrot.slane %v1772, 5
        %v1775 = vsel %vm1359, %v1770, %v1774
        %v1776 = vshrl.u32 %v1352, 16
        %v1778 = vrot.slane %v1776, 4
        %v1779 = vor.u32 %v1778, %v1774
        %v1780 = vrot.slane %v1779, 4
        %v1782 = vshll.u32 %v1353, 16
        %v1784 = vrot.slane %v1782, 5
        %v1785 = vsel %vm1359, %v1780, %v1784
        %s1786 = scalar_lea.vmem %s1, 256
        %v1787 = vld [vmem:[%s1786] sm:$0xf]
        %v1788 = vld [vmem:[%s1786 + $0x4] sm:$0xf]
        %v1789 = vld [vmem:[%s1786 + $0x8] sm:$0xf]
        %v1790 = vld [vmem:[%s1786 + $0xc] sm:$0xf]
        %v1791 = vld [vmem:[%s1786 + $0x10] sm:$0xf]
        %v1792 = vld [vmem:[%s1786 + $0x14] sm:$0xf]
        %v1793 = vld [vmem:[%s1786 + $0x18] sm:$0xf]
        %v1794 = vld [vmem:[%s1786 + $0x1c] sm:$0xf]
        %v1795 = vld [vmem:[%s1786 + $0x20] sm:$0xf]
        %v1796 = vld [vmem:[%s1786 + $0x24] sm:$0xf]
        %v1797 = vld [vmem:[%s1786 + $0x28] sm:$0xf]
        %v1798 = vld [vmem:[%s1786 + $0x2c] sm:$0xf]
        %v1799 = vld [vmem:[%s1786 + $0x30] sm:$0xf]
        %v1800 = vld [vmem:[%s1786 + $0x34] sm:$0xf]
        %v1801 = vld [vmem:[%s1786 + $0x38] sm:$0xf]
        %v1802 = vld [vmem:[%s1786 + $0x3c] sm:$0xf]
        %v1803 = vunpack.c.l.b16 %v1775
        %v1804 = vunpack.c.l.b16 %v1785
        %v1805 = vpack.c.b16 %v1804, %v1803
        %v1823 = vunpack.c.l.b16 %v1787
        %v1824 = vunpack.c.l.b16 %v1788
        %v1825 = vunpack.c.l.b16 %v1789
        %v1826 = vunpack.c.l.b16 %v1790
        %v1827 = vunpack.c.l.b16 %v1791
        %v1828 = vunpack.c.l.b16 %v1792
        %v1829 = vunpack.c.l.b16 %v1793
        %v1830 = vunpack.c.l.b16 %v1794
        %v1831 = vunpack.c.l.b16 %v1795
        %v1832 = vunpack.c.l.b16 %v1796
        %v1833 = vunpack.c.l.b16 %v1797
        %v1834 = vunpack.c.l.b16 %v1798
        %v1835 = vunpack.c.l.b16 %v1799
        %v1836 = vunpack.c.l.b16 %v1800
        %v1837 = vunpack.c.l.b16 %v1801
        %v1838 = vunpack.c.l.b16 %v1802
        %v1839 = vpack.c.b16 %v1824, %v1823
        %v1840 = vpack.c.b16 %v1826, %v1825
        %v1841 = vpack.c.b16 %v1828, %v1827
        %v1842 = vpack.c.b16 %v1830, %v1829
        %v1843 = vpack.c.b16 %v1832, %v1831
        %v1844 = vpack.c.b16 %v1834, %v1833
        %v1845 = vpack.c.b16 %v1836, %v1835
        %v1846 = vpack.c.b16 %v1838, %v1837
        %1855 = vmatprep.subr.bf16.mxu0 0
        %1856 = vmatpush1.bf16.msra.mxu0 %v1839
        %1857 = vmatprep.subr.bf16.mxu0 0
        %1858 = vmatpush1.bf16.msra.mxu0 %v1840
        %1859 = vmatprep.subr.bf16.mxu0 0
        %1860 = vmatpush1.bf16.msra.mxu0 %v1841
        %1861 = vmatprep.subr.bf16.mxu0 0
        %1862 = vmatpush1.bf16.msra.mxu0 %v1842
        %1863 = vmatprep.subr.bf16.mxu0 0
        %1864 = vmatpush1.bf16.msra.mxu0 %v1843
        %1865 = vmatprep.subr.bf16.mxu0 0
        %1866 = vmatpush1.bf16.msra.mxu0 %v1844
        %1867 = vmatprep.subr.bf16.mxu0 0
        %1868 = vmatpush1.bf16.msra.mxu0 %v1845
        %1869 = vmatprep.subr.bf16.mxu0 0
        %1870 = vmatpush1.bf16.msra.mxu0 %v1846
        %1871 = vmatprep.subr.bf16.mxu0 0
        %1872 = vmatpush1.bf16.msra.mxu0 0
        %1873 = vmatprep.subr.bf16.mxu0 0
        %1874 = vmatpush1.bf16.msra.mxu0 0
        %1875 = vmatprep.subr.bf16.mxu0 0
        %1876 = vmatpush1.bf16.msra.mxu0 0
        %1877 = vmatprep.subr.bf16.mxu0 0
        %1878 = vmatpush1.bf16.msra.mxu0 0
        %1879 = vmatprep.subr.bf16.mxu0 0
        %1880 = vmatpush1.bf16.msra.mxu0 0
        %1881 = vmatprep.subr.bf16.mxu0 0
        %1882 = vmatpush1.bf16.msra.mxu0 0
        %1883 = vmatprep.subr.bf16.mxu0 0
        %1884 = vmatpush1.bf16.msra.mxu0 0
        %1885 = vmatprep.subr.bf16.mxu0 0
        %1886 = vmatpush1.bf16.msra.mxu0 0
        %1887 = vmatprep.mubr.bf16.mxu0 0
        %1888 = vmatmul.mubr.bf16.gmra.mrb[0].mxu0 %v1586
        %v1889 = vpop.f32.mrb[0].mxu0
        %v1890 = vadd.f32 0.0, %v1889
        %v1891 = vpop.f32.mrb[0].mxu0
        %v1892 = vpop.f32.mrb[0].mxu0
        %v1893 = vadd.f32 0.0, %v1892
        %v1894 = vpop.f32.mrb[0].mxu0
        %1895 = vmatprep.mubr.bf16.mxu0 0
        %1896 = vmatmul.mubr.bf16.gmra.mrb[0].mxu0 %v1587
        %v1897 = vpop.f32.mrb[0].mxu0
        %v1898 = vadd.f32 0.0, %v1897
        %v1899 = vpop.f32.mrb[0].mxu0
        %v1900 = vpop.f32.mrb[0].mxu0
        %v1901 = vadd.f32 0.0, %v1900
        %v1902 = vpop.f32.mrb[0].mxu0
        %1903 = vmatprep.mubr.bf16.mxu0 0
        %1904 = vmatmul.mubr.bf16.gmra.mrb[0].mxu0 %v1588
        %v1905 = vpop.f32.mrb[0].mxu0
        %v1906 = vadd.f32 0.0, %v1905
        %v1907 = vpop.f32.mrb[0].mxu0
        %v1908 = vpop.f32.mrb[0].mxu0
        %v1909 = vadd.f32 0.0, %v1908
        %v1910 = vpop.f32.mrb[0].mxu0
        %1911 = vmatprep.mubr.bf16.mxu0 0
        %1912 = vmatmul.mubr.bf16.gmra.mrb[0].mxu0 %v1589
        %v1913 = vpop.f32.mrb[0].mxu0
        %v1914 = vadd.f32 0.0, %v1913
        %v1915 = vpop.f32.mrb[0].mxu0
        %v1916 = vpop.f32.mrb[0].mxu0
        %v1917 = vadd.f32 0.0, %v1916
        %v1918 = vpop.f32.mrb[0].mxu0
        %1919 = vmatprep.mubr.bf16.mxu0 0
        %1920 = vmatmul.mubr.bf16.gmra.mrb[0].mxu0 %v1590
        %v1921 = vpop.f32.mrb[0].mxu0
        %v1922 = vadd.f32 0.0, %v1921
        %v1923 = vpop.f32.mrb[0].mxu0
        %v1924 = vpop.f32.mrb[0].mxu0
        %v1925 = vadd.f32 0.0, %v1924
        %v1926 = vpop.f32.mrb[0].mxu0
        %1927 = vmatprep.mubr.bf16.mxu0 0
        %1928 = vmatmul.mubr.bf16.gmra.mrb[0].mxu0 %v1591
        %v1929 = vpop.f32.mrb[0].mxu0
        %v1930 = vadd.f32 0.0, %v1929
        %v1931 = vpop.f32.mrb[0].mxu0
        %v1932 = vpop.f32.mrb[0].mxu0
        %v1933 = vadd.f32 0.0, %v1932
        %v1934 = vpop.f32.mrb[0].mxu0
        %1935 = vmatprep.mubr.bf16.mxu0 0
        %1936 = vmatmul.mubr.bf16.gmra.mrb[0].mxu0 %v1592
        %v1937 = vpop.f32.mrb[0].mxu0
        %v1938 = vadd.f32 0.0, %v1937
        %v1939 = vpop.f32.mrb[0].mxu0
        %v1940 = vpop.f32.mrb[0].mxu0
        %v1941 = vadd.f32 0.0, %v1940
        %v1942 = vpop.f32.mrb[0].mxu0
        %1943 = vmatprep.mubr.bf16.mxu0 0
        %1944 = vmatmul.mubr.bf16.gmra.mrb[0].mxu0 %v1805
        %v1945 = vpop.f32.mrb[0].mxu0
        %v1946 = vadd.f32 0.0, %v1945
        %v1947 = vpop.f32.mrb[0].mxu0
        %v1948 = vpop.f32.mrb[0].mxu0
        %v1949 = vadd.f32 0.0, %v1948
        %v1950 = vpop.f32.mrb[0].mxu0
        %1951 = vdwg.mxu0
        %v1952 = vadd.f32 %v1746, %v1890
        %v1953 = vadd.f32 %v1747, %v1893
        %v1954 = vadd.f32 %v1748, %v1898
        %v1955 = vadd.f32 %v1749, %v1901
        %v1956 = vadd.f32 %v1750, %v1906
        %v1957 = vadd.f32 %v1751, %v1909
        %v1958 = vadd.f32 %v1752, %v1914
        %v1959 = vadd.f32 %v1753, %v1917
        %v1960 = vadd.f32 %v1754, %v1922
        %v1961 = vadd.f32 %v1755, %v1925
        %v1962 = vadd.f32 %v1756, %v1930
        %v1963 = vadd.f32 %v1757, %v1933
        %v1964 = vadd.f32 %v1758, %v1938
        %v1965 = vadd.f32 %v1759, %v1941
        %v1966 = vadd.f32 %v1760, %v1946
        %v1967 = vadd.f32 %v1761, %v1949
        %v1969 = vshrl.u32 %v1354, 16
        %v1971 = vrot.slane %v1969, 4
        %v1972 = vshll.u32 %v1354, 16
        %v1974 = vrot.slane %v1972, 5
        %v1975 = vor.u32 %v1971, %v1974
        %v1976 = vrot.slane %v1975, 4
        %v1978 = vshll.u32 %v1355, 16
        %v1980 = vrot.slane %v1978, 5
        %v1981 = vsel %vm1359, %v1976, %v1980
        %v1982 = vshrl.u32 %v1355, 16
        %v1984 = vrot.slane %v1982, 4
        %v1985 = vor.u32 %v1984, %v1980
        %v1986 = vrot.slane %v1985, 4
        %v1988 = vshll.u32 %v1356, 16
        %v1990 = vrot.slane %v1988, 5
        %v1991 = vsel %vm1359, %v1986, %v1990
        %s1992 = scalar_lea.vmem %s1, 448
        %v1993 = vld [vmem:[%s1992] sm:$0xf]
        %v1994 = vld [vmem:[%s1992 + $0x4] sm:$0xf]
        %v1995 = vld [vmem:[%s1992 + $0x8] sm:$0xf]
        %v1996 = vld [vmem:[%s1992 + $0xc] sm:$0xf]
        %v1997 = vld [vmem:[%s1992 + $0x10] sm:$0xf]
        %v1998 = vld [vmem:[%s1992 + $0x14] sm:$0xf]
        %v1999 = vld [vmem:[%s1992 + $0x18] sm:$0xf]
        %v2000 = vld [vmem:[%s1992 + $0x1c] sm:$0xf]
        %v2001 = vld [vmem:[%s1992 + $0x20] sm:$0xf]
        %v2002 = vld [vmem:[%s1992 + $0x24] sm:$0xf]
        %v2003 = vld [vmem:[%s1992 + $0x28] sm:$0xf]
        %v2004 = vld [vmem:[%s1992 + $0x2c] sm:$0xf]
        %v2005 = vld [vmem:[%s1992 + $0x30] sm:$0xf]
        %v2006 = vld [vmem:[%s1992 + $0x34] sm:$0xf]
        %v2007 = vld [vmem:[%s1992 + $0x38] sm:$0xf]
        %v2008 = vld [vmem:[%s1992 + $0x3c] sm:$0xf]
        %v2009 = vunpack.c.l.b16 %v1981
        %v2010 = vunpack.c.l.b16 %v1991
        %v2011 = vpack.c.b16 %v2010, %v2009
        %v2029 = vunpack.c.l.b16 %v1993
        %v2030 = vunpack.c.l.b16 %v1994
        %v2031 = vunpack.c.l.b16 %v1995
        %v2032 = vunpack.c.l.b16 %v1996
        %v2033 = vunpack.c.l.b16 %v1997
        %v2034 = vunpack.c.l.b16 %v1998
        %v2035 = vunpack.c.l.b16 %v1999
        %v2036 = vunpack.c.l.b16 %v2000
        %v2037 = vunpack.c.l.b16 %v2001
        %v2038 = vunpack.c.l.b16 %v2002
        %v2039 = vunpack.c.l.b16 %v2003
        %v2040 = vunpack.c.l.b16 %v2004
        %v2041 = vunpack.c.l.b16 %v2005
        %v2042 = vunpack.c.l.b16 %v2006
        %v2043 = vunpack.c.l.b16 %v2007
        %v2044 = vunpack.c.l.b16 %v2008
        %v2045 = vpack.c.b16 %v2030, %v2029
        %v2046 = vpack.c.b16 %v2032, %v2031
        %v2047 = vpack.c.b16 %v2034, %v2033
        %v2048 = vpack.c.b16 %v2036, %v2035
        %v2049 = vpack.c.b16 %v2038, %v2037
        %v2050 = vpack.c.b16 %v2040, %v2039
        %v2051 = vpack.c.b16 %v2042, %v2041
        %v2052 = vpack.c.b16 %v2044, %v2043
        %2061 = vmatprep.subr.bf16.mxu0 0
        %2062 = vmatpush1.bf16.msra.mxu0 %v2045
        %2063 = vmatprep.subr.bf16.mxu0 0
        %2064 = vmatpush1.bf16.msra.mxu0 %v2046
        %2065 = vmatprep.subr.bf16.mxu0 0
        %2066 = vmatpush1.bf16.msra.mxu0 %v2047
        %2067 = vmatprep.subr.bf16.mxu0 0
        %2068 = vmatpush1.bf16.msra.mxu0 %v2048
        %2069 = vmatprep.subr.bf16.mxu0 0
        %2070 = vmatpush1.bf16.msra.mxu0 %v2049
        %2071 = vmatprep.subr.bf16.mxu0 0
        %2072 = vmatpush1.bf16.msra.mxu0 %v2050
        %2073 = vmatprep.subr.bf16.mxu0 0
        %2074 = vmatpush1.bf16.msra.mxu0 %v2051
        %2075 = vmatprep.subr.bf16.mxu0 0
        %2076 = vmatpush1.bf16.msra.mxu0 %v2052
        %2077 = vmatprep.subr.bf16.mxu0 0
        %2078 = vmatpush1.bf16.msra.mxu0 0
        %2079 = vmatprep.subr.bf16.mxu0 0
        %2080 = vmatpush1.bf16.msra.mxu0 0
        %2081 = vmatprep.subr.bf16.mxu0 0
        %2082 = vmatpush1.bf16.msra.mxu0 0
        %2083 = vmatprep.subr.bf16.mxu0 0
        %2084 = vmatpush1.bf16.msra.mxu0 0
        %2085 = vmatprep.subr.bf16.mxu0 0
        %2086 = vmatpush1.bf16.msra.mxu0 0
        %2087 = vmatprep.subr.bf16.mxu0 0
        %2088 = vmatpush1.bf16.msra.mxu0 0
        %2089 = vmatprep.subr.bf16.mxu0 0
        %2090 = vmatpush1.bf16.msra.mxu0 0
        %2091 = vmatprep.subr.bf16.mxu0 0
        %2092 = vmatpush1.bf16.msra.mxu0 0
        %2093 = vmatprep.mubr.bf16.mxu0 0
        %2094 = vmatmul.mubr.bf16.gmra.mrb[0].mxu0 %v1587
        %v2095 = vpop.f32.mrb[0].mxu0
        %v2096 = vadd.f32 0.0, %v2095
        %v2097 = vpop.f32.mrb[0].mxu0
        %v2098 = vpop.f32.mrb[0].mxu0
        %v2099 = vadd.f32 0.0, %v2098
        %v2100 = vpop.f32.mrb[0].mxu0
        %2101 = vmatprep.mubr.bf16.mxu0 0
        %2102 = vmatmul.mubr.bf16.gmra.mrb[0].mxu0 %v1588
        %v2103 = vpop.f32.mrb[0].mxu0
        %v2104 = vadd.f32 0.0, %v2103
        %v2105 = vpop.f32.mrb[0].mxu0
        %v2106 = vpop.f32.mrb[0].mxu0
        %v2107 = vadd.f32 0.0, %v2106
        %v2108 = vpop.f32.mrb[0].mxu0
        %2109 = vmatprep.mubr.bf16.mxu0 0
        %2110 = vmatmul.mubr.bf16.gmra.mrb[0].mxu0 %v1589
        %v2111 = vpop.f32.mrb[0].mxu0
        %v2112 = vadd.f32 0.0, %v2111
        %v2113 = vpop.f32.mrb[0].mxu0
        %v2114 = vpop.f32.mrb[0].mxu0
        %v2115 = vadd.f32 0.0, %v2114
        %v2116 = vpop.f32.mrb[0].mxu0
        %2117 = vmatprep.mubr.bf16.mxu0 0
        %2118 = vmatmul.mubr.bf16.gmra.mrb[0].mxu0 %v1590
        %v2119 = vpop.f32.mrb[0].mxu0
        %v2120 = vadd.f32 0.0, %v2119
        %v2121 = vpop.f32.mrb[0].mxu0
        %v2122 = vpop.f32.mrb[0].mxu0
        %v2123 = vadd.f32 0.0, %v2122
        %v2124 = vpop.f32.mrb[0].mxu0
        %2125 = vmatprep.mubr.bf16.mxu0 0
        %2126 = vmatmul.mubr.bf16.gmra.mrb[0].mxu0 %v1591
        %v2127 = vpop.f32.mrb[0].mxu0
        %v2128 = vadd.f32 0.0, %v2127
        %v2129 = vpop.f32.mrb[0].mxu0
        %v2130 = vpop.f32.mrb[0].mxu0
        %v2131 = vadd.f32 0.0, %v2130
        %v2132 = vpop.f32.mrb[0].mxu0
        %2133 = vmatprep.mubr.bf16.mxu0 0
        %2134 = vmatmul.mubr.bf16.gmra.mrb[0].mxu0 %v1592
        %v2135 = vpop.f32.mrb[0].mxu0
        %v2136 = vadd.f32 0.0, %v2135
        %v2137 = vpop.f32.mrb[0].mxu0
        %v2138 = vpop.f32.mrb[0].mxu0
        %v2139 = vadd.f32 0.0, %v2138
        %v2140 = vpop.f32.mrb[0].mxu0
        %2141 = vmatprep.mubr.bf16.mxu0 0
        %2142 = vmatmul.mubr.bf16.gmra.mrb[0].mxu0 %v1805
        %v2143 = vpop.f32.mrb[0].mxu0
        %v2144 = vadd.f32 0.0, %v2143
        %v2145 = vpop.f32.mrb[0].mxu0
        %v2146 = vpop.f32.mrb[0].mxu0
        %v2147 = vadd.f32 0.0, %v2146
        %v2148 = vpop.f32.mrb[0].mxu0
        %2149 = vmatprep.mubr.bf16.mxu0 0
        %2150 = vmatmul.mubr.bf16.gmra.mrb[0].mxu0 %v2011
        %v2151 = vpop.f32.mrb[0].mxu0
        %v2152 = vadd.f32 0.0, %v2151
        %v2153 = vpop.f32.mrb[0].mxu0
        %v2154 = vpop.f32.mrb[0].mxu0
        %v2155 = vadd.f32 0.0, %v2154
        %v2156 = vpop.f32.mrb[0].mxu0
        %2157 = vdwg.mxu0
        %v2158 = vadd.f32 %v1952, %v2096
        %v2159 = vadd.f32 %v1953, %v2099
        %v2160 = vadd.f32 %v1954, %v2104
        %v2161 = vadd.f32 %v1955, %v2107
        %v2162 = vadd.f32 %v1956, %v2112
        %v2163 = vadd.f32 %v1957, %v2115
        %v2164 = vadd.f32 %v1958, %v2120
        %v2165 = vadd.f32 %v1959, %v2123
        %v2166 = vadd.f32 %v1960, %v2128
        %v2167 = vadd.f32 %v1961, %v2131
        %v2168 = vadd.f32 %v1962, %v2136
        %v2169 = vadd.f32 %v1963, %v2139
        %v2170 = vadd.f32 %v1964, %v2144
        %v2171 = vadd.f32 %v1965, %v2147
        %v2172 = vadd.f32 %v1966, %v2152
        %v2173 = vadd.f32 %v1967, %v2155
        %v2174 = vld [vmem:[#allocation2] sm:$0xe]
        %v2175 = vld [vmem:[#allocation2 + $0xc] sm:$0xe]
        %v2176 = vld [vmem:[#allocation2 + $0x18] sm:$0xe]
        %v2177 = vld [vmem:[#allocation2 + $0x24] sm:$0xe]
        %v2178 = vld [vmem:[#allocation2 + $0x30] sm:$0xe]
        %v2179 = vld [vmem:[#allocation2 + $0x3c] sm:$0xe]
        %v2180 = vld [vmem:[#allocation2 + $0x48] sm:$0xe]
        %v2181 = vld [vmem:[#allocation2 + $0x54] sm:$0xe]
        %v2182 = vld [vmem:[#allocation2 + $0x60] sm:$0xe]
        %v2183 = vld [vmem:[#allocation2 + $0x6c] sm:$0xe]
        %vm2208 = vcmask 1042432
        %vm2209 = vcmask 1046532
        %vm2210 = vmor %vm2208, %vm2209
        %v2211 = vrot.slane %v2174, 5
        %v2212 = vrot.slane %v2211, 4
        %v2213 = vrot.slane %v1328, 5
        %v2214 = vsel %vm2210, %v2212, %v2213
        %v2215 = vrot.slane %v2213, 4
        %v2216 = vrot.slane %v1329, 5
        %v2217 = vsel %vm2210, %v2215, %v2216
        %v2218 = vrot.slane %v2175, 5
        %v2219 = vrot.slane %v2218, 4
        %v2220 = vrot.slane %v1331, 5
        %v2221 = vsel %vm2210, %v2219, %v2220
        %v2222 = vrot.slane %v2220, 4
        %v2223 = vrot.slane %v1332, 5
        %v2224 = vsel %vm2210, %v2222, %v2223
        %v2225 = vrot.slane %v2176, 5
        %v2226 = vrot.slane %v2225, 4
        %v2227 = vrot.slane %v1334, 5
        %v2228 = vsel %vm2210, %v2226, %v2227
        %v2229 = vrot.slane %v2227, 4
        %v2230 = vrot.slane %v1335, 5
        %v2231 = vsel %vm2210, %v2229, %v2230
        %v2232 = vrot.slane %v2177, 5
        %v2233 = vrot.slane %v2232, 4
        %v2234 = vrot.slane %v1337, 5
        %v2235 = vsel %vm2210, %v2233, %v2234
        %v2236 = vrot.slane %v2234, 4
        %v2237 = vrot.slane %v1338, 5
        %v2238 = vsel %vm2210, %v2236, %v2237
        %v2239 = vrot.slane %v2178, 5
        %v2240 = vrot.slane %v2239, 4
        %v2241 = vrot.slane %v1340, 5
        %v2242 = vsel %vm2210, %v2240, %v2241
        %v2243 = vrot.slane %v2241, 4
        %v2244 = vrot.slane %v1341, 5
        %v2245 = vsel %vm2210, %v2243, %v2244
        %v2246 = vrot.slane %v2179, 5
        %v2247 = vrot.slane %v2246, 4
        %v2248 = vrot.slane %v1343, 5
        %v2249 = vsel %vm2210, %v2247, %v2248
        %v2250 = vrot.slane %v2248, 4
        %v2251 = vrot.slane %v1344, 5
        %v2252 = vsel %vm2210, %v2250, %v2251
        %v2253 = vrot.slane %v2180, 5
        %v2254 = vrot.slane %v2253, 4
        %v2255 = vrot.slane %v1346, 5
        %v2256 = vsel %vm2210, %v2254, %v2255
        %v2257 = vrot.slane %v2255, 4
        %v2258 = vrot.slane %v1347, 5
        %v2259 = vsel %vm2210, %v2257, %v2258
        %v2260 = vrot.slane %v2181, 5
        %v2261 = vrot.slane %v2260, 4
        %v2262 = vrot.slane %v1349, 5
        %v2263 = vsel %vm2210, %v2261, %v2262
        %v2264 = vrot.slane %v2262, 4
        %v2265 = vrot.slane %v1350, 5
        %v2266 = vsel %vm2210, %v2264, %v2265
        %s2267 = scalar_lea.vmem %s1, 128
        %v2268 = vld [vmem:[%s2267] sm:$0xf]
        %v2269 = vld [vmem:[%s2267 + $0x4] sm:$0xf]
        %v2270 = vld [vmem:[%s2267 + $0x8] sm:$0xf]
        %v2271 = vld [vmem:[%s2267 + $0xc] sm:$0xf]
        %v2272 = vld [vmem:[%s2267 + $0x10] sm:$0xf]
        %v2273 = vld [vmem:[%s2267 + $0x14] sm:$0xf]
        %v2274 = vld [vmem:[%s2267 + $0x18] sm:$0xf]
        %v2275 = vld [vmem:[%s2267 + $0x1c] sm:$0xf]
        %v2276 = vld [vmem:[%s2267 + $0x20] sm:$0xf]
        %v2277 = vld [vmem:[%s2267 + $0x24] sm:$0xf]
        %v2278 = vld [vmem:[%s2267 + $0x28] sm:$0xf]
        %v2279 = vld [vmem:[%s2267 + $0x2c] sm:$0xf]
        %v2280 = vld [vmem:[%s2267 + $0x30] sm:$0xf]
        %v2281 = vld [vmem:[%s2267 + $0x34] sm:$0xf]
        %v2282 = vld [vmem:[%s2267 + $0x38] sm:$0xf]
        %v2283 = vld [vmem:[%s2267 + $0x3c] sm:$0xf]
        %v2284 = vunpack.c.l.b16 %v2214
        %v2285 = vunpack.c.l.b16 %v2217
        %v2286 = vunpack.c.l.b16 %v2221
        %v2287 = vunpack.c.l.b16 %v2224
        %v2288 = vunpack.c.l.b16 %v2228
        %v2289 = vunpack.c.l.b16 %v2231
        %v2290 = vunpack.c.l.b16 %v2235
        %v2291 = vunpack.c.l.b16 %v2238
        %v2292 = vunpack.c.l.b16 %v2242
        %v2293 = vunpack.c.l.b16 %v2245
        %v2294 = vunpack.c.l.b16 %v2249
        %v2295 = vunpack.c.l.b16 %v2252
        %v2296 = vunpack.c.l.b16 %v2256
        %v2297 = vunpack.c.l.b16 %v2259
        %v2298 = vunpack.c.l.b16 %v2263
        %v2299 = vunpack.c.l.b16 %v2266
        %v2300 = vpack.c.b16 %v2285, %v2284
        %v2301 = vpack.c.b16 %v2287, %v2286
        %v2302 = vpack.c.b16 %v2289, %v2288
        %v2303 = vpack.c.b16 %v2291, %v2290
        %v2304 = vpack.c.b16 %v2293, %v2292
        %v2305 = vpack.c.b16 %v2295, %v2294
        %v2306 = vpack.c.b16 %v2297, %v2296
        %v2307 = vpack.c.b16 %v2299, %v2298
        %v2332 = vunpack.c.l.b16 %v2268
        %v2333 = vunpack.c.l.b16 %v2269
        %v2334 = vunpack.c.l.b16 %v2270
        %v2335 = vunpack.c.l.b16 %v2271
        %v2336 = vunpack.c.l.b16 %v2272
        %v2337 = vunpack.c.l.b16 %v2273
        %v2338 = vunpack.c.l.b16 %v2274
        %v2339 = vunpack.c.l.b16 %v2275
        %v2340 = vunpack.c.l.b16 %v2276
        %v2341 = vunpack.c.l.b16 %v2277
        %v2342 = vunpack.c.l.b16 %v2278
        %v2343 = vunpack.c.l.b16 %v2279
        %v2344 = vunpack.c.l.b16 %v2280
        %v2345 = vunpack.c.l.b16 %v2281
        %v2346 = vunpack.c.l.b16 %v2282
        %v2347 = vunpack.c.l.b16 %v2283
        %v2348 = vpack.c.b16 %v2333, %v2332
        %v2349 = vpack.c.b16 %v2335, %v2334
        %v2350 = vpack.c.b16 %v2337, %v2336
        %v2351 = vpack.c.b16 %v2339, %v2338
        %v2352 = vpack.c.b16 %v2341, %v2340
        %v2353 = vpack.c.b16 %v2343, %v2342
        %v2354 = vpack.c.b16 %v2345, %v2344
        %v2355 = vpack.c.b16 %v2347, %v2346
        %2364 = vmatprep.subr.bf16.mxu0 0
        %2365 = vmatpush1.bf16.msra.mxu0 %v2348
        %2366 = vmatprep.subr.bf16.mxu0 0
        %2367 = vmatpush1.bf16.msra.mxu0 %v2349
        %2368 = vmatprep.subr.bf16.mxu0 0
        %2369 = vmatpush1.bf16.msra.mxu0 %v2350
        %2370 = vmatprep.subr.bf16.mxu0 0
        %2371 = vmatpush1.bf16.msra.mxu0 %v2351
        %2372 = vmatprep.subr.bf16.mxu0 0
        %2373 = vmatpush1.bf16.msra.mxu0 %v2352
        %2374 = vmatprep.subr.bf16.mxu0 0
        %2375 = vmatpush1.bf16.msra.mxu0 %v2353
        %2376 = vmatprep.subr.bf16.mxu0 0
        %2377 = vmatpush1.bf16.msra.mxu0 %v2354
        %2378 = vmatprep.subr.bf16.mxu0 0
        %2379 = vmatpush1.bf16.msra.mxu0 %v2355
        %2380 = vmatprep.subr.bf16.mxu0 0
        %2381 = vmatpush1.bf16.msra.mxu0 0
        %2382 = vmatprep.subr.bf16.mxu0 0
        %2383 = vmatpush1.bf16.msra.mxu0 0
        %2384 = vmatprep.subr.bf16.mxu0 0
        %2385 = vmatpush1.bf16.msra.mxu0 0
        %2386 = vmatprep.subr.bf16.mxu0 0
        %2387 = vmatpush1.bf16.msra.mxu0 0
        %2388 = vmatprep.subr.bf16.mxu0 0
        %2389 = vmatpush1.bf16.msra.mxu0 0
        %2390 = vmatprep.subr.bf16.mxu0 0
        %2391 = vmatpush1.bf16.msra.mxu0 0
        %2392 = vmatprep.subr.bf16.mxu0 0
        %2393 = vmatpush1.bf16.msra.mxu0 0
        %2394 = vmatprep.subr.bf16.mxu0 0
        %2395 = vmatpush1.bf16.msra.mxu0 0
        %2396 = vmatprep.mubr.bf16.mxu0 0
        %2397 = vmatmul.mubr.bf16.gmra.mrb[0].mxu0 %v2300
        %v2398 = vpop.f32.mrb[0].mxu0
        %v2399 = vadd.f32 0.0, %v2398
        %v2400 = vpop.f32.mrb[0].mxu0
        %v2401 = vpop.f32.mrb[0].mxu0
        %v2402 = vadd.f32 0.0, %v2401
        %v2403 = vpop.f32.mrb[0].mxu0
        %2404 = vmatprep.mubr.bf16.mxu0 0
        %2405 = vmatmul.mubr.bf16.gmra.mrb[0].mxu0 %v2301
        %v2406 = vpop.f32.mrb[0].mxu0
        %v2407 = vadd.f32 0.0, %v2406
        %v2408 = vpop.f32.mrb[0].mxu0
        %v2409 = vpop.f32.mrb[0].mxu0
        %v2410 = vadd.f32 0.0, %v2409
        %v2411 = vpop.f32.mrb[0].mxu0
        %2412 = vmatprep.mubr.bf16.mxu0 0
        %2413 = vmatmul.mubr.bf16.gmra.mrb[0].mxu0 %v2302
        %v2414 = vpop.f32.mrb[0].mxu0
        %v2415 = vadd.f32 0.0, %v2414
        %v2416 = vpop.f32.mrb[0].mxu0
        %v2417 = vpop.f32.mrb[0].mxu0
        %v2418 = vadd.f32 0.0, %v2417
        %v2419 = vpop.f32.mrb[0].mxu0
        %2420 = vmatprep.mubr.bf16.mxu0 0
        %2421 = vmatmul.mubr.bf16.gmra.mrb[0].mxu0 %v2303
        %v2422 = vpop.f32.mrb[0].mxu0
        %v2423 = vadd.f32 0.0, %v2422
        %v2424 = vpop.f32.mrb[0].mxu0
        %v2425 = vpop.f32.mrb[0].mxu0
        %v2426 = vadd.f32 0.0, %v2425
        %v2427 = vpop.f32.mrb[0].mxu0
        %2428 = vmatprep.mubr.bf16.mxu0 0
        %2429 = vmatmul.mubr.bf16.gmra.mrb[0].mxu0 %v2304
        %v2430 = vpop.f32.mrb[0].mxu0
        %v2431 = vadd.f32 0.0, %v2430
        %v2432 = vpop.f32.mrb[0].mxu0
        %v2433 = vpop.f32.mrb[0].mxu0
        %v2434 = vadd.f32 0.0, %v2433
        %v2435 = vpop.f32.mrb[0].mxu0
        %2436 = vmatprep.mubr.bf16.mxu0 0
        %2437 = vmatmul.mubr.bf16.gmra.mrb[0].mxu0 %v2305
        %v2438 = vpop.f32.mrb[0].mxu0
        %v2439 = vadd.f32 0.0, %v2438
        %v2440 = vpop.f32.mrb[0].mxu0
        %v2441 = vpop.f32.mrb[0].mxu0
        %v2442 = vadd.f32 0.0, %v2441
        %v2443 = vpop.f32.mrb[0].mxu0
        %2444 = vmatprep.mubr.bf16.mxu0 0
        %2445 = vmatmul.mubr.bf16.gmra.mrb[0].mxu0 %v2306
        %v2446 = vpop.f32.mrb[0].mxu0
        %v2447 = vadd.f32 0.0, %v2446
        %v2448 = vpop.f32.mrb[0].mxu0
        %v2449 = vpop.f32.mrb[0].mxu0
        %v2450 = vadd.f32 0.0, %v2449
        %v2451 = vpop.f32.mrb[0].mxu0
        %2452 = vmatprep.mubr.bf16.mxu0 0
        %2453 = vmatmul.mubr.bf16.gmra.mrb[0].mxu0 %v2307
        %v2454 = vpop.f32.mrb[0].mxu0
        %v2455 = vadd.f32 0.0, %v2454
        %v2456 = vpop.f32.mrb[0].mxu0
        %v2457 = vpop.f32.mrb[0].mxu0
        %v2458 = vadd.f32 0.0, %v2457
        %v2459 = vpop.f32.mrb[0].mxu0
        %2460 = vdwg.mxu0
        %v2461 = vadd.f32 %v2158, %v2399
        %v2462 = vadd.f32 %v2159, %v2402
        %v2463 = vadd.f32 %v2160, %v2407
        %v2464 = vadd.f32 %v2161, %v2410
        %v2465 = vadd.f32 %v2162, %v2415
        %v2466 = vadd.f32 %v2163, %v2418
        %v2467 = vadd.f32 %v2164, %v2423
        %v2468 = vadd.f32 %v2165, %v2426
        %v2469 = vadd.f32 %v2166, %v2431
        %v2470 = vadd.f32 %v2167, %v2434
        %v2471 = vadd.f32 %v2168, %v2439
        %v2472 = vadd.f32 %v2169, %v2442
        %v2473 = vadd.f32 %v2170, %v2447
        %v2474 = vadd.f32 %v2171, %v2450
        %v2475 = vadd.f32 %v2172, %v2455
        %v2476 = vadd.f32 %v2173, %v2458
        %v2480 = vrot.slane %v2182, 5
        %v2481 = vrot.slane %v2480, 4
        %v2482 = vrot.slane %v1352, 5
        %v2483 = vsel %vm2210, %v2481, %v2482
        %v2484 = vrot.slane %v2482, 4
        %v2485 = vrot.slane %v1353, 5
        %v2486 = vsel %vm2210, %v2484, %v2485
        %s2487 = scalar_lea.vmem %s1, 320
        %v2488 = vld [vmem:[%s2487] sm:$0xf]
        %v2489 = vld [vmem:[%s2487 + $0x4] sm:$0xf]
        %v2490 = vld [vmem:[%s2487 + $0x8] sm:$0xf]
        %v2491 = vld [vmem:[%s2487 + $0xc] sm:$0xf]
        %v2492 = vld [vmem:[%s2487 + $0x10] sm:$0xf]
        %v2493 = vld [vmem:[%s2487 + $0x14] sm:$0xf]
        %v2494 = vld [vmem:[%s2487 + $0x18] sm:$0xf]
        %v2495 = vld [vmem:[%s2487 + $0x1c] sm:$0xf]
        %v2496 = vld [vmem:[%s2487 + $0x20] sm:$0xf]
        %v2497 = vld [vmem:[%s2487 + $0x24] sm:$0xf]
        %v2498 = vld [vmem:[%s2487 + $0x28] sm:$0xf]
        %v2499 = vld [vmem:[%s2487 + $0x2c] sm:$0xf]
        %v2500 = vld [vmem:[%s2487 + $0x30] sm:$0xf]
        %v2501 = vld [vmem:[%s2487 + $0x34] sm:$0xf]
        %v2502 = vld [vmem:[%s2487 + $0x38] sm:$0xf]
        %v2503 = vld [vmem:[%s2487 + $0x3c] sm:$0xf]
        %v2504 = vunpack.c.l.b16 %v2483
        %v2505 = vunpack.c.l.b16 %v2486
        %v2506 = vpack.c.b16 %v2505, %v2504
        %v2524 = vunpack.c.l.b16 %v2488
        %v2525 = vunpack.c.l.b16 %v2489
        %v2526 = vunpack.c.l.b16 %v2490
        %v2527 = vunpack.c.l.b16 %v2491
        %v2528 = vunpack.c.l.b16 %v2492
        %v2529 = vunpack.c.l.b16 %v2493
        %v2530 = vunpack.c.l.b16 %v2494
        %v2531 = vunpack.c.l.b16 %v2495
        %v2532 = vunpack.c.l.b16 %v2496
        %v2533 = vunpack.c.l.b16 %v2497
        %v2534 = vunpack.c.l.b16 %v2498
        %v2535 = vunpack.c.l.b16 %v2499
        %v2536 = vunpack.c.l.b16 %v2500
        %v2537 = vunpack.c.l.b16 %v2501
        %v2538 = vunpack.c.l.b16 %v2502
        %v2539 = vunpack.c.l.b16 %v2503
        %v2540 = vpack.c.b16 %v2525, %v2524
        %v2541 = vpack.c.b16 %v2527, %v2526
        %v2542 = vpack.c.b16 %v2529, %v2528
        %v2543 = vpack.c.b16 %v2531, %v2530
        %v2544 = vpack.c.b16 %v2533, %v2532
        %v2545 = vpack.c.b16 %v2535, %v2534
        %v2546 = vpack.c.b16 %v2537, %v2536
        %v2547 = vpack.c.b16 %v2539, %v2538
        %2556 = vmatprep.subr.bf16.mxu0 0
        %2557 = vmatpush1.bf16.msra.mxu0 %v2540
        %2558 = vmatprep.subr.bf16.mxu0 0
        %2559 = vmatpush1.bf16.msra.mxu0 %v2541
        %2560 = vmatprep.subr.bf16.mxu0 0
        %2561 = vmatpush1.bf16.msra.mxu0 %v2542
        %2562 = vmatprep.subr.bf16.mxu0 0
        %2563 = vmatpush1.bf16.msra.mxu0 %v2543
        %2564 = vmatprep.subr.bf16.mxu0 0
        %2565 = vmatpush1.bf16.msra.mxu0 %v2544
        %2566 = vmatprep.subr.bf16.mxu0 0
        %2567 = vmatpush1.bf16.msra.mxu0 %v2545
        %2568 = vmatprep.subr.bf16.mxu0 0
        %2569 = vmatpush1.bf16.msra.mxu0 %v2546
        %2570 = vmatprep.subr.bf16.mxu0 0
        %2571 = vmatpush1.bf16.msra.mxu0 %v2547
        %2572 = vmatprep.subr.bf16.mxu0 0
        %2573 = vmatpush1.bf16.msra.mxu0 0
        %2574 = vmatprep.subr.bf16.mxu0 0
        %2575 = vmatpush1.bf16.msra.mxu0 0
        %2576 = vmatprep.subr.bf16.mxu0 0
        %2577 = vmatpush1.bf16.msra.mxu0 0
        %2578 = vmatprep.subr.bf16.mxu0 0
        %2579 = vmatpush1.bf16.msra.mxu0 0
        %2580 = vmatprep.subr.bf16.mxu0 0
        %2581 = vmatpush1.bf16.msra.mxu0 0
        %2582 = vmatprep.subr.bf16.mxu0 0
        %2583 = vmatpush1.bf16.msra.mxu0 0
        %2584 = vmatprep.subr.bf16.mxu0 0
        %2585 = vmatpush1.bf16.msra.mxu0 0
        %2586 = vmatprep.subr.bf16.mxu0 0
        %2587 = vmatpush1.bf16.msra.mxu0 0
        %2588 = vmatprep.mubr.bf16.mxu0 0
        %2589 = vmatmul.mubr.bf16.gmra.mrb[0].mxu0 %v2301
        %v2590 = vpop.f32.mrb[0].mxu0
        %v2591 = vadd.f32 0.0, %v2590
        %v2592 = vpop.f32.mrb[0].mxu0
        %v2593 = vpop.f32.mrb[0].mxu0
        %v2594 = vadd.f32 0.0, %v2593
        %v2595 = vpop.f32.mrb[0].mxu0
        %2596 = vmatprep.mubr.bf16.mxu0 0
        %2597 = vmatmul.mubr.bf16.gmra.mrb[0].mxu0 %v2302
        %v2598 = vpop.f32.mrb[0].mxu0
        %v2599 = vadd.f32 0.0, %v2598
        %v2600 = vpop.f32.mrb[0].mxu0
        %v2601 = vpop.f32.mrb[0].mxu0
        %v2602 = vadd.f32 0.0, %v2601
        %v2603 = vpop.f32.mrb[0].mxu0
        %2604 = vmatprep.mubr.bf16.mxu0 0
        %2605 = vmatmul.mubr.bf16.gmra.mrb[0].mxu0 %v2303
        %v2606 = vpop.f32.mrb[0].mxu0
        %v2607 = vadd.f32 0.0, %v2606
        %v2608 = vpop.f32.mrb[0].mxu0
        %v2609 = vpop.f32.mrb[0].mxu0
        %v2610 = vadd.f32 0.0, %v2609
        %v2611 = vpop.f32.mrb[0].mxu0
        %2612 = vmatprep.mubr.bf16.mxu0 0
        %2613 = vmatmul.mubr.bf16.gmra.mrb[0].mxu0 %v2304
        %v2614 = vpop.f32.mrb[0].mxu0
        %v2615 = vadd.f32 0.0, %v2614
        %v2616 = vpop.f32.mrb[0].mxu0
        %v2617 = vpop.f32.mrb[0].mxu0
        %v2618 = vadd.f32 0.0, %v2617
        %v2619 = vpop.f32.mrb[0].mxu0
        %2620 = vmatprep.mubr.bf16.mxu0 0
        %2621 = vmatmul.mubr.bf16.gmra.mrb[0].mxu0 %v2305
        %v2622 = vpop.f32.mrb[0].mxu0
        %v2623 = vadd.f32 0.0, %v2622
        %v2624 = vpop.f32.mrb[0].mxu0
        %v2625 = vpop.f32.mrb[0].mxu0
        %v2626 = vadd.f32 0.0, %v2625
        %v2627 = vpop.f32.mrb[0].mxu0
        %2628 = vmatprep.mubr.bf16.mxu0 0
        %2629 = vmatmul.mubr.bf16.gmra.mrb[0].mxu0 %v2306
        %v2630 = vpop.f32.mrb[0].mxu0
        %v2631 = vadd.f32 0.0, %v2630
        %v2632 = vpop.f32.mrb[0].mxu0
        %v2633 = vpop.f32.mrb[0].mxu0
        %v2634 = vadd.f32 0.0, %v2633
        %v2635 = vpop.f32.mrb[0].mxu0
        %2636 = vmatprep.mubr.bf16.mxu0 0
        %2637 = vmatmul.mubr.bf16.gmra.mrb[0].mxu0 %v2307
        %v2638 = vpop.f32.mrb[0].mxu0
        %v2639 = vadd.f32 0.0, %v2638
        %v2640 = vpop.f32.mrb[0].mxu0
        %v2641 = vpop.f32.mrb[0].mxu0
        %v2642 = vadd.f32 0.0, %v2641
        %v2643 = vpop.f32.mrb[0].mxu0
        %2644 = vmatprep.mubr.bf16.mxu0 0
        %2645 = vmatmul.mubr.bf16.gmra.mrb[0].mxu0 %v2506
        %v2646 = vpop.f32.mrb[0].mxu0
        %v2647 = vadd.f32 0.0, %v2646
        %v2648 = vpop.f32.mrb[0].mxu0
        %v2649 = vpop.f32.mrb[0].mxu0
        %v2650 = vadd.f32 0.0, %v2649
        %v2651 = vpop.f32.mrb[0].mxu0
        %2652 = vdwg.mxu0
        %v2653 = vadd.f32 %v2461, %v2591
        %v2654 = vadd.f32 %v2462, %v2594
        %v2655 = vadd.f32 %v2463, %v2599
        %v2656 = vadd.f32 %v2464, %v2602
        %v2657 = vadd.f32 %v2465, %v2607
        %v2658 = vadd.f32 %v2466, %v2610
        %v2659 = vadd.f32 %v2467, %v2615
        %v2660 = vadd.f32 %v2468, %v2618
        %v2661 = vadd.f32 %v2469, %v2623
        %v2662 = vadd.f32 %v2470, %v2626
        %v2663 = vadd.f32 %v2471, %v2631
        %v2664 = vadd.f32 %v2472, %v2634
        %v2665 = vadd.f32 %v2473, %v2639
        %v2666 = vadd.f32 %v2474, %v2642
        %v2667 = vadd.f32 %v2475, %v2647
        %v2668 = vadd.f32 %v2476, %v2650
        %v2672 = vrot.slane %v2183, 5
        %v2673 = vrot.slane %v2672, 4
        %v2674 = vrot.slane %v1355, 5
        %v2675 = vsel %vm2210, %v2673, %v2674
        %v2676 = vrot.slane %v2674, 4
        %v2677 = vrot.slane %v1356, 5
        %v2678 = vsel %vm2210, %v2676, %v2677
        %s2679 = scalar_lea.vmem %s1, 512
        %v2680 = vld [vmem:[%s2679] sm:$0xf]
        %v2681 = vld [vmem:[%s2679 + $0x4] sm:$0xf]
        %v2682 = vld [vmem:[%s2679 + $0x8] sm:$0xf]
        %v2683 = vld [vmem:[%s2679 + $0xc] sm:$0xf]
        %v2684 = vld [vmem:[%s2679 + $0x10] sm:$0xf]
        %v2685 = vld [vmem:[%s2679 + $0x14] sm:$0xf]
        %v2686 = vld [vmem:[%s2679 + $0x18] sm:$0xf]
        %v2687 = vld [vmem:[%s2679 + $0x1c] sm:$0xf]
        %v2688 = vld [vmem:[%s2679 + $0x20] sm:$0xf]
        %v2689 = vld [vmem:[%s2679 + $0x24] sm:$0xf]
        %v2690 = vld [vmem:[%s2679 + $0x28] sm:$0xf]
        %v2691 = vld [vmem:[%s2679 + $0x2c] sm:$0xf]
        %v2692 = vld [vmem:[%s2679 + $0x30] sm:$0xf]
        %v2693 = vld [vmem:[%s2679 + $0x34] sm:$0xf]
        %v2694 = vld [vmem:[%s2679 + $0x38] sm:$0xf]
        %v2695 = vld [vmem:[%s2679 + $0x3c] sm:$0xf]
        %v2696 = vunpack.c.l.b16 %v2675
        %v2697 = vunpack.c.l.b16 %v2678
        %v2698 = vpack.c.b16 %v2697, %v2696
        %v2716 = vunpack.c.l.b16 %v2680
        %v2717 = vunpack.c.l.b16 %v2681
        %v2718 = vunpack.c.l.b16 %v2682
        %v2719 = vunpack.c.l.b16 %v2683
        %v2720 = vunpack.c.l.b16 %v2684
        %v2721 = vunpack.c.l.b16 %v2685
        %v2722 = vunpack.c.l.b16 %v2686
        %v2723 = vunpack.c.l.b16 %v2687
        %v2724 = vunpack.c.l.b16 %v2688
        %v2725 = vunpack.c.l.b16 %v2689
        %v2726 = vunpack.c.l.b16 %v2690
        %v2727 = vunpack.c.l.b16 %v2691
        %v2728 = vunpack.c.l.b16 %v2692
        %v2729 = vunpack.c.l.b16 %v2693
        %v2730 = vunpack.c.l.b16 %v2694
        %v2731 = vunpack.c.l.b16 %v2695
        %v2732 = vpack.c.b16 %v2717, %v2716
        %v2733 = vpack.c.b16 %v2719, %v2718
        %v2734 = vpack.c.b16 %v2721, %v2720
        %v2735 = vpack.c.b16 %v2723, %v2722
        %v2736 = vpack.c.b16 %v2725, %v2724
        %v2737 = vpack.c.b16 %v2727, %v2726
        %v2738 = vpack.c.b16 %v2729, %v2728
        %v2739 = vpack.c.b16 %v2731, %v2730
        %2748 = vmatprep.subr.bf16.mxu0 0
        %2749 = vmatpush1.bf16.msra.mxu0 %v2732
        %2750 = vmatprep.subr.bf16.mxu0 0
        %2751 = vmatpush1.bf16.msra.mxu0 %v2733
        %2752 = vmatprep.subr.bf16.mxu0 0
        %2753 = vmatpush1.bf16.msra.mxu0 %v2734
        %2754 = vmatprep.subr.bf16.mxu0 0
        %2755 = vmatpush1.bf16.msra.mxu0 %v2735
        %2756 = vmatprep.subr.bf16.mxu0 0
        %2757 = vmatpush1.bf16.msra.mxu0 %v2736
        %2758 = vmatprep.subr.bf16.mxu0 0
        %2759 = vmatpush1.bf16.msra.mxu0 %v2737
        %2760 = vmatprep.subr.bf16.mxu0 0
        %2761 = vmatpush1.bf16.msra.mxu0 %v2738
        %2762 = vmatprep.subr.bf16.mxu0 0
        %2763 = vmatpush1.bf16.msra.mxu0 %v2739
        %2764 = vmatprep.subr.bf16.mxu0 0
        %2765 = vmatpush1.bf16.msra.mxu0 0
        %2766 = vmatprep.subr.bf16.mxu0 0
        %2767 = vmatpush1.bf16.msra.mxu0 0
        %2768 = vmatprep.subr.bf16.mxu0 0
        %2769 = vmatpush1.bf16.msra.mxu0 0
        %2770 = vmatprep.subr.bf16.mxu0 0
        %2771 = vmatpush1.bf16.msra.mxu0 0
        %2772 = vmatprep.subr.bf16.mxu0 0
        %2773 = vmatpush1.bf16.msra.mxu0 0
        %2774 = vmatprep.subr.bf16.mxu0 0
        %2775 = vmatpush1.bf16.msra.mxu0 0
        %2776 = vmatprep.subr.bf16.mxu0 0
        %2777 = vmatpush1.bf16.msra.mxu0 0
        %2778 = vmatprep.subr.bf16.mxu0 0
        %2779 = vmatpush1.bf16.msra.mxu0 0
        %2780 = vmatprep.mubr.bf16.mxu0 0
        %2781 = vmatmul.mubr.bf16.gmra.mrb[0].mxu0 %v2302
        %v2782 = vpop.f32.mrb[0].mxu0
        %v2783 = vadd.f32 0.0, %v2782
        %v2784 = vpop.f32.mrb[0].mxu0
        %v2785 = vpop.f32.mrb[0].mxu0
        %v2786 = vadd.f32 0.0, %v2785
        %v2787 = vpop.f32.mrb[0].mxu0
        %2788 = vmatprep.mubr.bf16.mxu0 0
        %2789 = vmatmul.mubr.bf16.gmra.mrb[0].mxu0 %v2303
        %v2790 = vpop.f32.mrb[0].mxu0
        %v2791 = vadd.f32 0.0, %v2790
        %v2792 = vpop.f32.mrb[0].mxu0
        %v2793 = vpop.f32.mrb[0].mxu0
        %v2794 = vadd.f32 0.0, %v2793
        %v2795 = vpop.f32.mrb[0].mxu0
        %2796 = vmatprep.mubr.bf16.mxu0 0
        %2797 = vmatmul.mubr.bf16.gmra.mrb[0].mxu0 %v2304
        %v2798 = vpop.f32.mrb[0].mxu0
        %v2799 = vadd.f32 0.0, %v2798
        %v2800 = vpop.f32.mrb[0].mxu0
        %v2801 = vpop.f32.mrb[0].mxu0
        %v2802 = vadd.f32 0.0, %v2801
        %v2803 = vpop.f32.mrb[0].mxu0
        %2804 = vmatprep.mubr.bf16.mxu0 0
        %2805 = vmatmul.mubr.bf16.gmra.mrb[0].mxu0 %v2305
        %v2806 = vpop.f32.mrb[0].mxu0
        %v2807 = vadd.f32 0.0, %v2806
        %v2808 = vpop.f32.mrb[0].mxu0
        %v2809 = vpop.f32.mrb[0].mxu0
        %v2810 = vadd.f32 0.0, %v2809
        %v2811 = vpop.f32.mrb[0].mxu0
        %2812 = vmatprep.mubr.bf16.mxu0 0
        %2813 = vmatmul.mubr.bf16.gmra.mrb[0].mxu0 %v2306
        %v2814 = vpop.f32.mrb[0].mxu0
        %v2815 = vadd.f32 0.0, %v2814
        %v2816 = vpop.f32.mrb[0].mxu0
        %v2817 = vpop.f32.mrb[0].mxu0
        %v2818 = vadd.f32 0.0, %v2817
        %v2819 = vpop.f32.mrb[0].mxu0
        %2820 = vmatprep.mubr.bf16.mxu0 0
        %2821 = vmatmul.mubr.bf16.gmra.mrb[0].mxu0 %v2307
        %v2822 = vpop.f32.mrb[0].mxu0
        %v2823 = vadd.f32 0.0, %v2822
        %v2824 = vpop.f32.mrb[0].mxu0
        %v2825 = vpop.f32.mrb[0].mxu0
        %v2826 = vadd.f32 0.0, %v2825
        %v2827 = vpop.f32.mrb[0].mxu0
        %2828 = vmatprep.mubr.bf16.mxu0 0
        %2829 = vmatmul.mubr.bf16.gmra.mrb[0].mxu0 %v2506
        %v2830 = vpop.f32.mrb[0].mxu0
        %v2831 = vadd.f32 0.0, %v2830
        %v2832 = vpop.f32.mrb[0].mxu0
        %v2833 = vpop.f32.mrb[0].mxu0
        %v2834 = vadd.f32 0.0, %v2833
        %v2835 = vpop.f32.mrb[0].mxu0
        %2836 = vmatprep.mubr.bf16.mxu0 0
        %2837 = vmatmul.mubr.bf16.gmra.mrb[0].mxu0 %v2698
        %v2838 = vpop.f32.mrb[0].mxu0
        %v2839 = vadd.f32 0.0, %v2838
        %v2840 = vpop.f32.mrb[0].mxu0
        %v2841 = vpop.f32.mrb[0].mxu0
        %v2842 = vadd.f32 0.0, %v2841
        %v2843 = vpop.f32.mrb[0].mxu0
        %2844 = vdwg.mxu0
        %v2845 = vadd.f32 %v2653, %v2783
        %v2846 = vadd.f32 %v2654, %v2786
        %v2847 = vadd.f32 %v2655, %v2791
        %v2848 = vadd.f32 %v2656, %v2794
        %v2849 = vadd.f32 %v2657, %v2799
        %v2850 = vadd.f32 %v2658, %v2802
        %v2851 = vadd.f32 %v2659, %v2807
        %v2852 = vadd.f32 %v2660, %v2810
        %v2853 = vadd.f32 %v2661, %v2815
        %v2854 = vadd.f32 %v2662, %v2818
        %v2855 = vadd.f32 %v2663, %v2823
        %v2856 = vadd.f32 %v2664, %v2826
        %v2857 = vadd.f32 %v2665, %v2831
        %v2858 = vadd.f32 %v2666, %v2834
        %v2859 = vadd.f32 %v2667, %v2839
        %v2860 = vadd.f32 %v2668, %v2842
        %v2862 = vlaneseq
        %v2863 = vshrl.u32 %v2862, 7
        %v2864 = vsub.s32 0, %v2863
        %v2865 = vrot.slane %v744, %v2864
        %v2867 = vmul.f32 %v2845, %v2865
        %v2868 = vmul.f32 %v2846, %v2865
        %v2869 = vmul.f32 %v2847, %v2865
        %v2870 = vmul.f32 %v2848, %v2865
        %v2871 = vmul.f32 %v2849, %v2865
        %v2872 = vmul.f32 %v2850, %v2865
        %v2873 = vmul.f32 %v2851, %v2865
        %v2874 = vmul.f32 %v2852, %v2865
        %v2875 = vmul.f32 %v2853, %v2865
        %v2876 = vmul.f32 %v2854, %v2865
        %v2877 = vmul.f32 %v2855, %v2865
        %v2878 = vmul.f32 %v2856, %v2865
        %v2879 = vmul.f32 %v2857, %v2865
        %v2880 = vmul.f32 %v2858, %v2865
        %v2881 = vmul.f32 %v2859, %v2865
        %v2882 = vmul.f32 %v2860, %v2865
        %v2884 = vlaneseq
        %v2885 = vshrl.u32 %v2884, 7
        %v2886 = vsub.s32 0, %v2885
        %v2887 = vrot.slane %v745, %v2886
        %v2889 = vadd.f32 %v2867, %v2887
        %v2890 = vadd.f32 %v2868, %v2887
        %v2891 = vadd.f32 %v2869, %v2887
        %v2892 = vadd.f32 %v2870, %v2887
        %v2893 = vadd.f32 %v2871, %v2887
        %v2894 = vadd.f32 %v2872, %v2887
        %v2895 = vadd.f32 %v2873, %v2887
        %v2896 = vadd.f32 %v2874, %v2887
        %v2897 = vadd.f32 %v2875, %v2887
        %v2898 = vadd.f32 %v2876, %v2887
        %v2899 = vadd.f32 %v2877, %v2887
        %v2900 = vadd.f32 %v2878, %v2887
        %v2901 = vadd.f32 %v2879, %v2887
        %v2902 = vadd.f32 %v2880, %v2887
        %v2903 = vadd.f32 %v2881, %v2887
        %v2904 = vadd.f32 %v2882, %v2887
        %v2905 = vmax.f32 %v2889, 0.0
        %v2906 = vmax.f32 %v2890, 0.0
        %v2907 = vmax.f32 %v2891, 0.0
        %v2908 = vmax.f32 %v2892, 0.0
        %v2909 = vmax.f32 %v2893, 0.0
        %v2910 = vmax.f32 %v2894, 0.0
        %v2911 = vmax.f32 %v2895, 0.0
        %v2912 = vmax.f32 %v2896, 0.0
        %v2913 = vmax.f32 %v2897, 0.0
        %v2914 = vmax.f32 %v2898, 0.0
        %v2915 = vmax.f32 %v2899, 0.0
        %v2916 = vmax.f32 %v2900, 0.0
        %v2917 = vmax.f32 %v2901, 0.0
        %v2918 = vmax.f32 %v2902, 0.0
        %v2919 = vmax.f32 %v2903, 0.0
        %v2920 = vmax.f32 %v2904, 0.0
        %v2921 = vpack.c.bf16 %v2906, %v2905
        %v2922 = vpack.c.bf16 %v2908, %v2907
        %v2923 = vpack.c.bf16 %v2910, %v2909
        %v2924 = vpack.c.bf16 %v2912, %v2911
        %v2925 = vpack.c.bf16 %v2914, %v2913
        %v2926 = vpack.c.bf16 %v2916, %v2915
        %v2927 = vpack.c.bf16 %v2918, %v2917
        %v2928 = vpack.c.bf16 %v2920, %v2919
        %v2930 = vshrl.u32 %v2921, 16
        %v2932 = vrot.slane %v2930, 7
        %v2933 = vshll.u32 %v2921, 16
        %v2935 = vor.u32 %v2932, %v2933
        %v2937 = vshrl.u32 %v2922, 16
        %v2939 = vrot.slane %v2937, 7
        %v2940 = vshll.u32 %v2922, 16
        %v2942 = vor.u32 %v2939, %v2940
        %v2944 = vshrl.u32 %v2923, 16
        %v2946 = vrot.slane %v2944, 7
        %v2947 = vshll.u32 %v2923, 16
        %v2949 = vor.u32 %v2946, %v2947
        %v2951 = vshrl.u32 %v2924, 16
        %v2953 = vrot.slane %v2951, 7
        %v2954 = vshll.u32 %v2924, 16
        %v2956 = vor.u32 %v2953, %v2954
        %v2958 = vshrl.u32 %v2925, 16
        %v2960 = vrot.slane %v2958, 7
        %v2961 = vshll.u32 %v2925, 16
        %v2963 = vor.u32 %v2960, %v2961
        %v2965 = vshrl.u32 %v2926, 16
        %v2967 = vrot.slane %v2965, 7
        %v2968 = vshll.u32 %v2926, 16
        %v2970 = vor.u32 %v2967, %v2968
        %v2972 = vshrl.u32 %v2927, 16
        %v2974 = vrot.slane %v2972, 7
        %v2975 = vshll.u32 %v2927, 16
        %v2977 = vor.u32 %v2974, %v2975
        %v2979 = vshrl.u32 %v2928, 16
        %v2981 = vrot.slane %v2979, 7
        %v2982 = vshll.u32 %v2928, 16
        %v2984 = vor.u32 %v2981, %v2982
        %v3001 = vsel %vm486, 0, %v2935
        %v3002 = vsel %vm486, 0, %v2942
        %v3003 = vsel %vm486, 0, %v2949
        %v3004 = vsel %vm486, 0, %v2956
        %v3005 = vsel %vm486, 0, %v2963
        %v3006 = vsel %vm486, 0, %v2970
        %v3007 = vsel %vm486, 0, %v2977
        %v3008 = vsel %vm486, 0, %v2984
        %v3009 = vsel %vm486, %v2932, 0
        %v3010 = vsel %vm486, %v2939, 0
        %v3011 = vsel %vm486, %v2946, 0
        %v3012 = vsel %vm486, %v2953, 0
        %v3013 = vsel %vm486, %v2960, 0
        %v3014 = vsel %vm486, %v2967, 0
        %v3015 = vsel %vm486, %v2974, 0
        %v3016 = vsel %vm486, %v2981, 0
        %v3033 = vunpack.c.l.b16 %v3001
        %v3034 = vunpack.c.h.b16 %v3001
        %v3035 = vunpack.c.l.b16 %v3009
        %v3036 = vunpack.c.l.b16 %v3002
        %v3037 = vunpack.c.h.b16 %v3002
        %v3038 = vunpack.c.l.b16 %v3010
        %v3039 = vunpack.c.l.b16 %v3003
        %v3040 = vunpack.c.h.b16 %v3003
        %v3041 = vunpack.c.l.b16 %v3011
        %v3042 = vunpack.c.l.b16 %v3004
        %v3043 = vunpack.c.h.b16 %v3004
        %v3044 = vunpack.c.l.b16 %v3012
        %v3045 = vunpack.c.l.b16 %v3005
        %v3046 = vunpack.c.h.b16 %v3005
        %v3047 = vunpack.c.l.b16 %v3013
        %v3048 = vunpack.c.l.b16 %v3006
        %v3049 = vunpack.c.h.b16 %v3006
        %v3050 = vunpack.c.l.b16 %v3014
        %v3051 = vunpack.c.l.b16 %v3007
        %v3052 = vunpack.c.h.b16 %v3007
        %v3053 = vunpack.c.l.b16 %v3015
        %v3054 = vunpack.c.l.b16 %v3008
        %v3055 = vunpack.c.h.b16 %v3008
        %v3056 = vunpack.c.l.b16 %v3016
        %v3057 = vpack.c.b16 %v3033, %v3033
        %v3058 = vpack.c.b16 %v3034, %v3034
        %v3059 = vpack.c.b16 %v3035, %v3035
        %v3060 = vpack.c.b16 %v3036, %v3036
        %v3061 = vpack.c.b16 %v3037, %v3037
        %v3062 = vpack.c.b16 %v3038, %v3038
        %v3063 = vpack.c.b16 %v3039, %v3039
        %v3064 = vpack.c.b16 %v3040, %v3040
        %v3065 = vpack.c.b16 %v3041, %v3041
        %v3066 = vpack.c.b16 %v3042, %v3042
        %v3067 = vpack.c.b16 %v3043, %v3043
        %v3068 = vpack.c.b16 %v3044, %v3044
        %v3069 = vpack.c.b16 %v3045, %v3045
        %v3070 = vpack.c.b16 %v3046, %v3046
        %v3071 = vpack.c.b16 %v3047, %v3047
        %v3072 = vpack.c.b16 %v3048, %v3048
        %v3073 = vpack.c.b16 %v3049, %v3049
        %v3074 = vpack.c.b16 %v3050, %v3050
        %v3075 = vpack.c.b16 %v3051, %v3051
        %v3076 = vpack.c.b16 %v3052, %v3052
        %v3077 = vpack.c.b16 %v3053, %v3053
        %v3078 = vpack.c.b16 %v3054, %v3054
        %v3079 = vpack.c.b16 %v3055, %v3055
        %v3080 = vpack.c.b16 %v3056, %v3056
        %s3105 = scalar_lea.vmem [#allocation3], 12
        %3106 = vst [vmem:[%s3105] sm:$0xf] %v3057
        %3107 = vst [vmem:[%s3105 + $0x4] sm:$0xf] %v3058
        %3108 = vst [vmem:[%s3105 + $0x8] sm:$0x1] %v3059
        %3109 = vst [vmem:[%s3105 + $0xc] sm:$0xf] %v3060
        %3110 = vst [vmem:[%s3105 + $0x10] sm:$0xf] %v3061
        %3111 = vst [vmem:[%s3105 + $0x14] sm:$0x1] %v3062
        %3112 = vst [vmem:[%s3105 + $0x18] sm:$0xf] %v3063
        %3113 = vst [vmem:[%s3105 + $0x1c] sm:$0xf] %v3064
        %3114 = vst [vmem:[%s3105 + $0x20] sm:$0x1] %v3065
        %3115 = vst [vmem:[%s3105 + $0x24] sm:$0xf] %v3066
        %3116 = vst [vmem:[%s3105 + $0x28] sm:$0xf] %v3067
        %3117 = vst [vmem:[%s3105 + $0x2c] sm:$0x1] %v3068
        %3118 = vst [vmem:[%s3105 + $0x30] sm:$0xf] %v3069
        %3119 = vst [vmem:[%s3105 + $0x34] sm:$0xf] %v3070
        %3120 = vst [vmem:[%s3105 + $0x38] sm:$0x1] %v3071
        %3121 = vst [vmem:[%s3105 + $0x3c] sm:$0xf] %v3072
        %3122 = vst [vmem:[%s3105 + $0x40] sm:$0xf] %v3073
        %3123 = vst [vmem:[%s3105 + $0x44] sm:$0x1] %v3074
        %3124 = vst [vmem:[%s3105 + $0x48] sm:$0xf] %v3075
        %3125 = vst [vmem:[%s3105 + $0x4c] sm:$0xf] %v3076
        %3126 = vst [vmem:[%s3105 + $0x50] sm:$0x1] %v3077
        %3127 = vst [vmem:[%s3105 + $0x54] sm:$0xf] %v3078
        %3128 = vst [vmem:[%s3105 + $0x58] sm:$0xf] %v3079
        %3129 = vst [vmem:[%s3105 + $0x5c] sm:$0x1] %v3080
        %s3130 = scalar_lea.vmem [#allocation2], 96
        %v3131 = vld [vmem:[%s3130] sm:$0xf]
        %v3132 = vld [vmem:[%s3130 + $0x4] sm:$0xf]
        %v3133 = vld [vmem:[%s3130 + $0xc] sm:$0xf]
        %v3134 = vld [vmem:[%s3130 + $0x10] sm:$0xf]
        %v3135 = vld [vmem:[%s3130 + $0x18] sm:$0xf]
        %v3136 = vld [vmem:[%s3130 + $0x1c] sm:$0xf]
        %v3137 = vld [vmem:[%s3130 + $0x24] sm:$0xf]
        %v3138 = vld [vmem:[%s3130 + $0x28] sm:$0xf]
        %v3139 = vld [vmem:[%s3130 + $0x30] sm:$0xf]
        %v3140 = vld [vmem:[%s3130 + $0x34] sm:$0xf]
        %v3141 = vld [vmem:[%s3130 + $0x3c] sm:$0xf]
        %v3142 = vld [vmem:[%s3130 + $0x40] sm:$0xf]
        %v3143 = vld [vmem:[%s3130 + $0x48] sm:$0xf]
        %v3144 = vld [vmem:[%s3130 + $0x4c] sm:$0xf]
        %v3145 = vld [vmem:[%s3130 + $0x54] sm:$0xf]
        %v3146 = vld [vmem:[%s3130 + $0x58] sm:$0xf]
        %v3147 = vld [vmem:[%s3130 + $0x60] sm:$0xf]
        %v3148 = vld [vmem:[%s3130 + $0x64] sm:$0xf]
        %v3149 = vld [vmem:[%s3130 + $0x6c] sm:$0xf]
        %v3150 = vld [vmem:[%s3130 + $0x70] sm:$0xf]
        %v3151 = vld [vmem:[%s1] sm:$0xf]
        %v3152 = vld [vmem:[%s1 + $0x4] sm:$0xf]
        %v3153 = vld [vmem:[%s1 + $0x8] sm:$0xf]
        %v3154 = vld [vmem:[%s1 + $0xc] sm:$0xf]
        %v3155 = vld [vmem:[%s1 + $0x10] sm:$0xf]
        %v3156 = vld [vmem:[%s1 + $0x14] sm:$0xf]
        %v3157 = vld [vmem:[%s1 + $0x18] sm:$0xf]
        %v3158 = vld [vmem:[%s1 + $0x1c] sm:$0xf]
        %v3159 = vld [vmem:[%s1 + $0x20] sm:$0xf]
        %v3160 = vld [vmem:[%s1 + $0x24] sm:$0xf]
        %v3161 = vld [vmem:[%s1 + $0x28] sm:$0xf]
        %v3162 = vld [vmem:[%s1 + $0x2c] sm:$0xf]
        %v3163 = vld [vmem:[%s1 + $0x30] sm:$0xf]
        %v3164 = vld [vmem:[%s1 + $0x34] sm:$0xf]
        %v3165 = vld [vmem:[%s1 + $0x38] sm:$0xf]
        %v3166 = vld [vmem:[%s1 + $0x3c] sm:$0xf]
        %v3167 = vld [vmem:[%s782] sm:$0xf]
        %v3168 = vld [vmem:[%s782 + $0x4] sm:$0xf]
        %v3169 = vld [vmem:[%s782 + $0x8] sm:$0xf]
        %v3170 = vld [vmem:[%s782 + $0xc] sm:$0xf]
        %v3171 = vld [vmem:[%s782 + $0x10] sm:$0xf]
        %v3172 = vld [vmem:[%s782 + $0x14] sm:$0xf]
        %v3173 = vld [vmem:[%s782 + $0x18] sm:$0xf]
        %v3174 = vld [vmem:[%s782 + $0x1c] sm:$0xf]
        %v3175 = vld [vmem:[%s782 + $0x20] sm:$0xf]
        %v3176 = vld [vmem:[%s782 + $0x24] sm:$0xf]
        %v3177 = vld [vmem:[%s782 + $0x28] sm:$0xf]
        %v3178 = vld [vmem:[%s782 + $0x2c] sm:$0xf]
        %v3179 = vld [vmem:[%s782 + $0x30] sm:$0xf]
        %v3180 = vld [vmem:[%s782 + $0x34] sm:$0xf]
        %v3181 = vld [vmem:[%s782 + $0x38] sm:$0xf]
        %v3182 = vld [vmem:[%s782 + $0x3c] sm:$0xf]
        %v3199 = vunpack.c.l.b16 %v3133
        %v3200 = vunpack.c.l.b16 %v3134
        %v3201 = vunpack.c.l.b16 %v3135
        %v3202 = vunpack.c.l.b16 %v3136
        %v3203 = vunpack.c.l.b16 %v3137
        %v3204 = vunpack.c.l.b16 %v3138
        %v3205 = vunpack.c.l.b16 %v3139
        %v3206 = vunpack.c.l.b16 %v3140
        %v3207 = vunpack.c.l.b16 %v3141
        %v3208 = vunpack.c.l.b16 %v3142
        %v3209 = vunpack.c.l.b16 %v3143
        %v3210 = vunpack.c.l.b16 %v3144
        %v3211 = vunpack.c.l.b16 %v3145
        %v3212 = vunpack.c.l.b16 %v3146
        %v3213 = vunpack.c.l.b16 %v3147
        %v3214 = vunpack.c.l.b16 %v3148
        %v3215 = vpack.c.b16 %v3200, %v3199
        %v3216 = vpack.c.b16 %v3202, %v3201
        %v3217 = vpack.c.b16 %v3204, %v3203
        %v3218 = vpack.c.b16 %v3206, %v3205
        %v3219 = vpack.c.b16 %v3208, %v3207
        %v3220 = vpack.c.b16 %v3210, %v3209
        %v3221 = vpack.c.b16 %v3212, %v3211
        %v3222 = vpack.c.b16 %v3214, %v3213
        %v3247 = vunpack.c.l.b16 %v3167
        %v3248 = vunpack.c.l.b16 %v3168
        %v3249 = vunpack.c.l.b16 %v3169
        %v3250 = vunpack.c.l.b16 %v3170
        %v3251 = vunpack.c.l.b16 %v3171
        %v3252 = vunpack.c.l.b16 %v3172
        %v3253 = vunpack.c.l.b16 %v3173
        %v3254 = vunpack.c.l.b16 %v3174
        %v3255 = vunpack.c.l.b16 %v3175
        %v3256 = vunpack.c.l.b16 %v3176
        %v3257 = vunpack.c.l.b16 %v3177
        %v3258 = vunpack.c.l.b16 %v3178
        %v3259 = vunpack.c.l.b16 %v3179
        %v3260 = vunpack.c.l.b16 %v3180
        %v3261 = vunpack.c.l.b16 %v3181
        %v3262 = vunpack.c.l.b16 %v3182
        %v3263 = vpack.c.b16 %v3248, %v3247
        %v3264 = vpack.c.b16 %v3250, %v3249
        %v3265 = vpack.c.b16 %v3252, %v3251
        %v3266 = vpack.c.b16 %v3254, %v3253
        %v3267 = vpack.c.b16 %v3256, %v3255
        %v3268 = vpack.c.b16 %v3258, %v3257
        %v3269 = vpack.c.b16 %v3260, %v3259
        %v3270 = vpack.c.b16 %v3262, %v3261
        %3279 = vmatprep.subr.bf16.mxu0 0
        %3280 = vmatpush1.bf16.msra.mxu0 %v3263
        %3281 = vmatprep.subr.bf16.mxu0 0
        %3282 = vmatpush1.bf16.msra.mxu0 %v3264
        %3283 = vmatprep.subr.bf16.mxu0 0
        %3284 = vmatpush1.bf16.msra.mxu0 %v3265
        %3285 = vmatprep.subr.bf16.mxu0 0
        %3286 = vmatpush1.bf16.msra.mxu0 %v3266
        %3287 = vmatprep.subr.bf16.mxu0 0
        %3288 = vmatpush1.bf16.msra.mxu0 %v3267
        %3289 = vmatprep.subr.bf16.mxu0 0
        %3290 = vmatpush1.bf16.msra.mxu0 %v3268
        %3291 = vmatprep.subr.bf16.mxu0 0
        %3292 = vmatpush1.bf16.msra.mxu0 %v3269
        %3293 = vmatprep.subr.bf16.mxu0 0
        %3294 = vmatpush1.bf16.msra.mxu0 %v3270
        %3295 = vmatprep.subr.bf16.mxu0 0
        %3296 = vmatpush1.bf16.msra.mxu0 0
        %3297 = vmatprep.subr.bf16.mxu0 0
        %3298 = vmatpush1.bf16.msra.mxu0 0
        %3299 = vmatprep.subr.bf16.mxu0 0
        %3300 = vmatpush1.bf16.msra.mxu0 0
        %3301 = vmatprep.subr.bf16.mxu0 0
        %3302 = vmatpush1.bf16.msra.mxu0 0
        %3303 = vmatprep.subr.bf16.mxu0 0
        %3304 = vmatpush1.bf16.msra.mxu0 0
        %3305 = vmatprep.subr.bf16.mxu0 0
        %3306 = vmatpush1.bf16.msra.mxu0 0
        %3307 = vmatprep.subr.bf16.mxu0 0
        %3308 = vmatpush1.bf16.msra.mxu0 0
        %3309 = vmatprep.subr.bf16.mxu0 0
        %3310 = vmatpush1.bf16.msra.mxu0 0
        %3311 = vmatprep.mubr.bf16.mxu0 0
        %3312 = vmatmul.mubr.bf16.gmra.mrb[0].mxu0 %v3215
        %v3313 = vpop.f32.mrb[0].mxu0
        %v3314 = vadd.f32 0.0, %v3313
        %v3315 = vpop.f32.mrb[0].mxu0
        %v3316 = vpop.f32.mrb[0].mxu0
        %v3317 = vadd.f32 0.0, %v3316
        %v3318 = vpop.f32.mrb[0].mxu0
        %3319 = vmatprep.mubr.bf16.mxu0 0
        %3320 = vmatmul.mubr.bf16.gmra.mrb[0].mxu0 %v3216
        %v3321 = vpop.f32.mrb[0].mxu0
        %v3322 = vadd.f32 0.0, %v3321
        %v3323 = vpop.f32.mrb[0].mxu0
        %v3324 = vpop.f32.mrb[0].mxu0
        %v3325 = vadd.f32 0.0, %v3324
        %v3326 = vpop.f32.mrb[0].mxu0
        %3327 = vmatprep.mubr.bf16.mxu0 0
        %3328 = vmatmul.mubr.bf16.gmra.mrb[0].mxu0 %v3217
        %v3329 = vpop.f32.mrb[0].mxu0
        %v3330 = vadd.f32 0.0, %v3329
        %v3331 = vpop.f32.mrb[0].mxu0
        %v3332 = vpop.f32.mrb[0].mxu0
        %v3333 = vadd.f32 0.0, %v3332
        %v3334 = vpop.f32.mrb[0].mxu0
        %3335 = vmatprep.mubr.bf16.mxu0 0
        %3336 = vmatmul.mubr.bf16.gmra.mrb[0].mxu0 %v3218
        %v3337 = vpop.f32.mrb[0].mxu0
        %v3338 = vadd.f32 0.0, %v3337
        %v3339 = vpop.f32.mrb[0].mxu0
        %v3340 = vpop.f32.mrb[0].mxu0
        %v3341 = vadd.f32 0.0, %v3340
        %v3342 = vpop.f32.mrb[0].mxu0
        %3343 = vmatprep.mubr.bf16.mxu0 0
        %3344 = vmatmul.mubr.bf16.gmra.mrb[0].mxu0 %v3219
        %v3345 = vpop.f32.mrb[0].mxu0
        %v3346 = vadd.f32 0.0, %v3345
        %v3347 = vpop.f32.mrb[0].mxu0
        %v3348 = vpop.f32.mrb[0].mxu0
        %v3349 = vadd.f32 0.0, %v3348
        %v3350 = vpop.f32.mrb[0].mxu0
        %3351 = vmatprep.mubr.bf16.mxu0 0
        %3352 = vmatmul.mubr.bf16.gmra.mrb[0].mxu0 %v3220
        %v3353 = vpop.f32.mrb[0].mxu0
        %v3354 = vadd.f32 0.0, %v3353
        %v3355 = vpop.f32.mrb[0].mxu0
        %v3356 = vpop.f32.mrb[0].mxu0
        %v3357 = vadd.f32 0.0, %v3356
        %v3358 = vpop.f32.mrb[0].mxu0
        %3359 = vmatprep.mubr.bf16.mxu0 0
        %3360 = vmatmul.mubr.bf16.gmra.mrb[0].mxu0 %v3221
        %v3361 = vpop.f32.mrb[0].mxu0
        %v3362 = vadd.f32 0.0, %v3361
        %v3363 = vpop.f32.mrb[0].mxu0
        %v3364 = vpop.f32.mrb[0].mxu0
        %v3365 = vadd.f32 0.0, %v3364
        %v3366 = vpop.f32.mrb[0].mxu0
        %3367 = vmatprep.mubr.bf16.mxu0 0
        %3368 = vmatmul.mubr.bf16.gmra.mrb[0].mxu0 %v3222
        %v3369 = vpop.f32.mrb[0].mxu0
        %v3370 = vadd.f32 0.0, %v3369
        %v3371 = vpop.f32.mrb[0].mxu0
        %v3372 = vpop.f32.mrb[0].mxu0
        %v3373 = vadd.f32 0.0, %v3372
        %v3374 = vpop.f32.mrb[0].mxu0
        %3375 = vdwg.mxu0
        %v3378 = vunpack.c.l.b16 %v3131
        %v3379 = vunpack.c.l.b16 %v3132
        %v3380 = vpack.c.b16 %v3379, %v3378
        %v3398 = vunpack.c.l.b16 %v3151
        %v3399 = vunpack.c.l.b16 %v3152
        %v3400 = vunpack.c.l.b16 %v3153
        %v3401 = vunpack.c.l.b16 %v3154
        %v3402 = vunpack.c.l.b16 %v3155
        %v3403 = vunpack.c.l.b16 %v3156
        %v3404 = vunpack.c.l.b16 %v3157
        %v3405 = vunpack.c.l.b16 %v3158
        %v3406 = vunpack.c.l.b16 %v3159
        %v3407 = vunpack.c.l.b16 %v3160
        %v3408 = vunpack.c.l.b16 %v3161
        %v3409 = vunpack.c.l.b16 %v3162
        %v3410 = vunpack.c.l.b16 %v3163
        %v3411 = vunpack.c.l.b16 %v3164
        %v3412 = vunpack.c.l.b16 %v3165
        %v3413 = vunpack.c.l.b16 %v3166
        %v3414 = vpack.c.b16 %v3399, %v3398
        %v3415 = vpack.c.b16 %v3401, %v3400
        %v3416 = vpack.c.b16 %v3403, %v3402
        %v3417 = vpack.c.b16 %v3405, %v3404
        %v3418 = vpack.c.b16 %v3407, %v3406
        %v3419 = vpack.c.b16 %v3409, %v3408
        %v3420 = vpack.c.b16 %v3411, %v3410
        %v3421 = vpack.c.b16 %v3413, %v3412
        %3430 = vmatprep.subr.bf16.mxu0 0
        %3431 = vmatpush1.bf16.msra.mxu0 %v3414
        %3432 = vmatprep.subr.bf16.mxu0 0
        %3433 = vmatpush1.bf16.msra.mxu0 %v3415
        %3434 = vmatprep.subr.bf16.mxu0 0
        %3435 = vmatpush1.bf16.msra.mxu0 %v3416
        %3436 = vmatprep.subr.bf16.mxu0 0
        %3437 = vmatpush1.bf16.msra.mxu0 %v3417
        %3438 = vmatprep.subr.bf16.mxu0 0
        %3439 = vmatpush1.bf16.msra.mxu0 %v3418
        %3440 = vmatprep.subr.bf16.mxu0 0
        %3441 = vmatpush1.bf16.msra.mxu0 %v3419
        %3442 = vmatprep.subr.bf16.mxu0 0
        %3443 = vmatpush1.bf16.msra.mxu0 %v3420
        %3444 = vmatprep.subr.bf16.mxu0 0
        %3445 = vmatpush1.bf16.msra.mxu0 %v3421
        %3446 = vmatprep.subr.bf16.mxu0 0
        %3447 = vmatpush1.bf16.msra.mxu0 0
        %3448 = vmatprep.subr.bf16.mxu0 0
        %3449 = vmatpush1.bf16.msra.mxu0 0
        %3450 = vmatprep.subr.bf16.mxu0 0
        %3451 = vmatpush1.bf16.msra.mxu0 0
        %3452 = vmatprep.subr.bf16.mxu0 0
        %3453 = vmatpush1.bf16.msra.mxu0 0
        %3454 = vmatprep.subr.bf16.mxu0 0
        %3455 = vmatpush1.bf16.msra.mxu0 0
        %3456 = vmatprep.subr.bf16.mxu0 0
        %3457 = vmatpush1.bf16.msra.mxu0 0
        %3458 = vmatprep.subr.bf16.mxu0 0
        %3459 = vmatpush1.bf16.msra.mxu0 0
        %3460 = vmatprep.subr.bf16.mxu0 0
        %3461 = vmatpush1.bf16.msra.mxu0 0
        %3462 = vmatprep.mubr.bf16.mxu0 0
        %3463 = vmatmul.mubr.bf16.gmra.mrb[0].mxu0 %v3380
        %v3464 = vpop.f32.mrb[0].mxu0
        %v3465 = vadd.f32 %v3314, %v3464
        %v3466 = vpop.f32.mrb[0].mxu0
        %v3467 = vpop.f32.mrb[0].mxu0
        %v3468 = vadd.f32 %v3317, %v3467
        %v3469 = vpop.f32.mrb[0].mxu0
        %3470 = vmatprep.mubr.bf16.mxu0 0
        %3471 = vmatmul.mubr.bf16.gmra.mrb[0].mxu0 %v3215
        %v3472 = vpop.f32.mrb[0].mxu0
        %v3473 = vadd.f32 %v3322, %v3472
        %v3474 = vpop.f32.mrb[0].mxu0
        %v3475 = vpop.f32.mrb[0].mxu0
        %v3476 = vadd.f32 %v3325, %v3475
        %v3477 = vpop.f32.mrb[0].mxu0
        %3478 = vmatprep.mubr.bf16.mxu0 0
        %3479 = vmatmul.mubr.bf16.gmra.mrb[0].mxu0 %v3216
        %v3480 = vpop.f32.mrb[0].mxu0
        %v3481 = vadd.f32 %v3330, %v3480
        %v3482 = vpop.f32.mrb[0].mxu0
        %v3483 = vpop.f32.mrb[0].mxu0
        %v3484 = vadd.f32 %v3333, %v3483
        %v3485 = vpop.f32.mrb[0].mxu0
        %3486 = vmatprep.mubr.bf16.mxu0 0
        %3487 = vmatmul.mubr.bf16.gmra.mrb[0].mxu0 %v3217
        %v3488 = vpop.f32.mrb[0].mxu0
        %v3489 = vadd.f32 %v3338, %v3488
        %v3490 = vpop.f32.mrb[0].mxu0
        %v3491 = vpop.f32.mrb[0].mxu0
        %v3492 = vadd.f32 %v3341, %v3491
        %v3493 = vpop.f32.mrb[0].mxu0
        %3494 = vmatprep.mubr.bf16.mxu0 0
        %3495 = vmatmul.mubr.bf16.gmra.mrb[0].mxu0 %v3218
        %v3496 = vpop.f32.mrb[0].mxu0
        %v3497 = vadd.f32 %v3346, %v3496
        %v3498 = vpop.f32.mrb[0].mxu0
        %v3499 = vpop.f32.mrb[0].mxu0
        %v3500 = vadd.f32 %v3349, %v3499
        %v3501 = vpop.f32.mrb[0].mxu0
        %3502 = vmatprep.mubr.bf16.mxu0 0
        %3503 = vmatmul.mubr.bf16.gmra.mrb[0].mxu0 %v3219
        %v3504 = vpop.f32.mrb[0].mxu0
        %v3505 = vadd.f32 %v3354, %v3504
        %v3506 = vpop.f32.mrb[0].mxu0
        %v3507 = vpop.f32.mrb[0].mxu0
        %v3508 = vadd.f32 %v3357, %v3507
        %v3509 = vpop.f32.mrb[0].mxu0
        %3510 = vmatprep.mubr.bf16.mxu0 0
        %3511 = vmatmul.mubr.bf16.gmra.mrb[0].mxu0 %v3220
        %v3512 = vpop.f32.mrb[0].mxu0
        %v3513 = vadd.f32 %v3362, %v3512
        %v3514 = vpop.f32.mrb[0].mxu0
        %v3515 = vpop.f32.mrb[0].mxu0
        %v3516 = vadd.f32 %v3365, %v3515
        %v3517 = vpop.f32.mrb[0].mxu0
        %3518 = vmatprep.mubr.bf16.mxu0 0
        %3519 = vmatmul.mubr.bf16.gmra.mrb[0].mxu0 %v3221
        %v3520 = vpop.f32.mrb[0].mxu0
        %v3521 = vadd.f32 %v3370, %v3520
        %v3522 = vpop.f32.mrb[0].mxu0
        %v3523 = vpop.f32.mrb[0].mxu0
        %v3524 = vadd.f32 %v3373, %v3523
        %v3525 = vpop.f32.mrb[0].mxu0
        %3526 = vdwg.mxu0
        %v3527 = vld [vmem:[%s1143] sm:$0xf]
        %v3528 = vld [vmem:[%s1143 + $0x4] sm:$0xf]
        %v3529 = vld [vmem:[%s1143 + $0x8] sm:$0xf]
        %v3530 = vld [vmem:[%s1143 + $0xc] sm:$0xf]
        %v3531 = vld [vmem:[%s1143 + $0x10] sm:$0xf]
        %v3532 = vld [vmem:[%s1143 + $0x14] sm:$0xf]
        %v3533 = vld [vmem:[%s1143 + $0x18] sm:$0xf]
        %v3534 = vld [vmem:[%s1143 + $0x1c] sm:$0xf]
        %v3535 = vld [vmem:[%s1143 + $0x20] sm:$0xf]
        %v3536 = vld [vmem:[%s1143 + $0x24] sm:$0xf]
        %v3537 = vld [vmem:[%s1143 + $0x28] sm:$0xf]
        %v3538 = vld [vmem:[%s1143 + $0x2c] sm:$0xf]
        %v3539 = vld [vmem:[%s1143 + $0x30] sm:$0xf]
        %v3540 = vld [vmem:[%s1143 + $0x34] sm:$0xf]
        %v3541 = vld [vmem:[%s1143 + $0x38] sm:$0xf]
        %v3542 = vld [vmem:[%s1143 + $0x3c] sm:$0xf]
        %v3545 = vunpack.c.l.b16 %v3149
        %v3546 = vunpack.c.l.b16 %v3150
        %v3547 = vpack.c.b16 %v3546, %v3545
        %v3565 = vunpack.c.l.b16 %v3527
        %v3566 = vunpack.c.l.b16 %v3528
        %v3567 = vunpack.c.l.b16 %v3529
        %v3568 = vunpack.c.l.b16 %v3530
        %v3569 = vunpack.c.l.b16 %v3531
        %v3570 = vunpack.c.l.b16 %v3532
        %v3571 = vunpack.c.l.b16 %v3533
        %v3572 = vunpack.c.l.b16 %v3534
        %v3573 = vunpack.c.l.b16 %v3535
        %v3574 = vunpack.c.l.b16 %v3536
        %v3575 = vunpack.c.l.b16 %v3537
        %v3576 = vunpack.c.l.b16 %v3538
        %v3577 = vunpack.c.l.b16 %v3539
        %v3578 = vunpack.c.l.b16 %v3540
        %v3579 = vunpack.c.l.b16 %v3541
        %v3580 = vunpack.c.l.b16 %v3542
        %v3581 = vpack.c.b16 %v3566, %v3565
        %v3582 = vpack.c.b16 %v3568, %v3567
        %v3583 = vpack.c.b16 %v3570, %v3569
        %v3584 = vpack.c.b16 %v3572, %v3571
        %v3585 = vpack.c.b16 %v3574, %v3573
        %v3586 = vpack.c.b16 %v3576, %v3575
        %v3587 = vpack.c.b16 %v3578, %v3577
        %v3588 = vpack.c.b16 %v3580, %v3579
        %3597 = vmatprep.subr.bf16.mxu0 0
        %3598 = vmatpush1.bf16.msra.mxu0 %v3581
        %3599 = vmatprep.subr.bf16.mxu0 0
        %3600 = vmatpush1.bf16.msra.mxu0 %v3582
        %3601 = vmatprep.subr.bf16.mxu0 0
        %3602 = vmatpush1.bf16.msra.mxu0 %v3583
        %3603 = vmatprep.subr.bf16.mxu0 0
        %3604 = vmatpush1.bf16.msra.mxu0 %v3584
        %3605 = vmatprep.subr.bf16.mxu0 0
        %3606 = vmatpush1.bf16.msra.mxu0 %v3585
        %3607 = vmatprep.subr.bf16.mxu0 0
        %3608 = vmatpush1.bf16.msra.mxu0 %v3586
        %3609 = vmatprep.subr.bf16.mxu0 0
        %3610 = vmatpush1.bf16.msra.mxu0 %v3587
        %3611 = vmatprep.subr.bf16.mxu0 0
        %3612 = vmatpush1.bf16.msra.mxu0 %v3588
        %3613 = vmatprep.subr.bf16.mxu0 0
        %3614 = vmatpush1.bf16.msra.mxu0 0
        %3615 = vmatprep.subr.bf16.mxu0 0
        %3616 = vmatpush1.bf16.msra.mxu0 0
        %3617 = vmatprep.subr.bf16.mxu0 0
        %3618 = vmatpush1.bf16.msra.mxu0 0
        %3619 = vmatprep.subr.bf16.mxu0 0
        %3620 = vmatpush1.bf16.msra.mxu0 0
        %3621 = vmatprep.subr.bf16.mxu0 0
        %3622 = vmatpush1.bf16.msra.mxu0 0
        %3623 = vmatprep.subr.bf16.mxu0 0
        %3624 = vmatpush1.bf16.msra.mxu0 0
        %3625 = vmatprep.subr.bf16.mxu0 0
        %3626 = vmatpush1.bf16.msra.mxu0 0
        %3627 = vmatprep.subr.bf16.mxu0 0
        %3628 = vmatpush1.bf16.msra.mxu0 0
        %3629 = vmatprep.mubr.bf16.mxu0 0
        %3630 = vmatmul.mubr.bf16.gmra.mrb[0].mxu0 %v3216
        %v3631 = vpop.f32.mrb[0].mxu0
        %v3632 = vadd.f32 0.0, %v3631
        %v3633 = vpop.f32.mrb[0].mxu0
        %v3634 = vpop.f32.mrb[0].mxu0
        %v3635 = vadd.f32 0.0, %v3634
        %v3636 = vpop.f32.mrb[0].mxu0
        %3637 = vmatprep.mubr.bf16.mxu0 0
        %3638 = vmatmul.mubr.bf16.gmra.mrb[0].mxu0 %v3217
        %v3639 = vpop.f32.mrb[0].mxu0
        %v3640 = vadd.f32 0.0, %v3639
        %v3641 = vpop.f32.mrb[0].mxu0
        %v3642 = vpop.f32.mrb[0].mxu0
        %v3643 = vadd.f32 0.0, %v3642
        %v3644 = vpop.f32.mrb[0].mxu0
        %3645 = vmatprep.mubr.bf16.mxu0 0
        %3646 = vmatmul.mubr.bf16.gmra.mrb[0].mxu0 %v3218
        %v3647 = vpop.f32.mrb[0].mxu0
        %v3648 = vadd.f32 0.0, %v3647
        %v3649 = vpop.f32.mrb[0].mxu0
        %v3650 = vpop.f32.mrb[0].mxu0
        %v3651 = vadd.f32 0.0, %v3650
        %v3652 = vpop.f32.mrb[0].mxu0
        %3653 = vmatprep.mubr.bf16.mxu0 0
        %3654 = vmatmul.mubr.bf16.gmra.mrb[0].mxu0 %v3219
        %v3655 = vpop.f32.mrb[0].mxu0
        %v3656 = vadd.f32 0.0, %v3655
        %v3657 = vpop.f32.mrb[0].mxu0
        %v3658 = vpop.f32.mrb[0].mxu0
        %v3659 = vadd.f32 0.0, %v3658
        %v3660 = vpop.f32.mrb[0].mxu0
        %3661 = vmatprep.mubr.bf16.mxu0 0
        %3662 = vmatmul.mubr.bf16.gmra.mrb[0].mxu0 %v3220
        %v3663 = vpop.f32.mrb[0].mxu0
        %v3664 = vadd.f32 0.0, %v3663
        %v3665 = vpop.f32.mrb[0].mxu0
        %v3666 = vpop.f32.mrb[0].mxu0
        %v3667 = vadd.f32 0.0, %v3666
        %v3668 = vpop.f32.mrb[0].mxu0
        %3669 = vmatprep.mubr.bf16.mxu0 0
        %3670 = vmatmul.mubr.bf16.gmra.mrb[0].mxu0 %v3221
        %v3671 = vpop.f32.mrb[0].mxu0
        %v3672 = vadd.f32 0.0, %v3671
        %v3673 = vpop.f32.mrb[0].mxu0
        %v3674 = vpop.f32.mrb[0].mxu0
        %v3675 = vadd.f32 0.0, %v3674
        %v3676 = vpop.f32.mrb[0].mxu0
        %3677 = vmatprep.mubr.bf16.mxu0 0
        %3678 = vmatmul.mubr.bf16.gmra.mrb[0].mxu0 %v3222
        %v3679 = vpop.f32.mrb[0].mxu0
        %v3680 = vadd.f32 0.0, %v3679
        %v3681 = vpop.f32.mrb[0].mxu0
        %v3682 = vpop.f32.mrb[0].mxu0
        %v3683 = vadd.f32 0.0, %v3682
        %v3684 = vpop.f32.mrb[0].mxu0
        %3685 = vmatprep.mubr.bf16.mxu0 0
        %3686 = vmatmul.mubr.bf16.gmra.mrb[0].mxu0 %v3547
        %v3687 = vpop.f32.mrb[0].mxu0
        %v3688 = vadd.f32 0.0, %v3687
        %v3689 = vpop.f32.mrb[0].mxu0
        %v3690 = vpop.f32.mrb[0].mxu0
        %v3691 = vadd.f32 0.0, %v3690
        %v3692 = vpop.f32.mrb[0].mxu0
        %3693 = vdwg.mxu0
        %v3694 = vadd.f32 %v3465, %v3632
        %v3695 = vadd.f32 %v3468, %v3635
        %v3696 = vadd.f32 %v3473, %v3640
        %v3697 = vadd.f32 %v3476, %v3643
        %v3698 = vadd.f32 %v3481, %v3648
        %v3699 = vadd.f32 %v3484, %v3651
        %v3700 = vadd.f32 %v3489, %v3656
        %v3701 = vadd.f32 %v3492, %v3659
        %v3702 = vadd.f32 %v3497, %v3664
        %v3703 = vadd.f32 %v3500, %v3667
        %v3704 = vadd.f32 %v3505, %v3672
        %v3705 = vadd.f32 %v3508, %v3675
        %v3706 = vadd.f32 %v3513, %v3680
        %v3707 = vadd.f32 %v3516, %v3683
        %v3708 = vadd.f32 %v3521, %v3688
        %v3709 = vadd.f32 %v3524, %v3691
        %v3710 = vld [vmem:[%s3130] sm:$0xf]
        %v3711 = vld [vmem:[%s3130 + $0x4] sm:$0xf]
        %v3712 = vld [vmem:[%s3130 + $0x8] sm:$0x1]
        %v3713 = vld [vmem:[%s3130 + $0xc] sm:$0xf]
        %v3714 = vld [vmem:[%s3130 + $0x10] sm:$0xf]
        %v3715 = vld [vmem:[%s3130 + $0x14] sm:$0x1]
        %v3716 = vld [vmem:[%s3130 + $0x18] sm:$0xf]
        %v3717 = vld [vmem:[%s3130 + $0x1c] sm:$0xf]
        %v3718 = vld [vmem:[%s3130 + $0x20] sm:$0x1]
        %v3719 = vld [vmem:[%s3130 + $0x24] sm:$0xf]
        %v3720 = vld [vmem:[%s3130 + $0x28] sm:$0xf]
        %v3721 = vld [vmem:[%s3130 + $0x2c] sm:$0x1]
        %v3722 = vld [vmem:[%s3130 + $0x30] sm:$0xf]
        %v3723 = vld [vmem:[%s3130 + $0x34] sm:$0xf]
        %v3724 = vld [vmem:[%s3130 + $0x38] sm:$0x1]
        %v3725 = vld [vmem:[%s3130 + $0x3c] sm:$0xf]
        %v3726 = vld [vmem:[%s3130 + $0x40] sm:$0xf]
        %v3727 = vld [vmem:[%s3130 + $0x44] sm:$0x1]
        %v3728 = vld [vmem:[%s3130 + $0x48] sm:$0xf]
        %v3729 = vld [vmem:[%s3130 + $0x4c] sm:$0xf]
        %v3730 = vld [vmem:[%s3130 + $0x50] sm:$0x1]
        %v3731 = vld [vmem:[%s3130 + $0x54] sm:$0xf]
        %v3732 = vld [vmem:[%s3130 + $0x58] sm:$0xf]
        %v3733 = vld [vmem:[%s3130 + $0x5c] sm:$0x1]
        %v3734 = vld [vmem:[%s3130 + $0x60] sm:$0xf]
        %v3735 = vld [vmem:[%s3130 + $0x64] sm:$0xf]
        %v3736 = vld [vmem:[%s3130 + $0x68] sm:$0x1]
        %v3737 = vld [vmem:[%s3130 + $0x6c] sm:$0xf]
        %v3738 = vld [vmem:[%s3130 + $0x70] sm:$0xf]
        %v3739 = vld [vmem:[%s3130 + $0x74] sm:$0x1]
        %v3741 = vshrl.u32 %v3710, 16
        %v3743 = vrot.slane %v3741, 4
        %v3744 = vshll.u32 %v3710, 16
        %v3746 = vrot.slane %v3744, 5
        %v3747 = vor.u32 %v3743, %v3746
        %v3748 = vrot.slane %v3747, 4
        %v3750 = vshll.u32 %v3711, 16
        %v3752 = vrot.slane %v3750, 5
        %v3753 = vsel %vm1359, %v3748, %v3752
        %v3754 = vshrl.u32 %v3711, 16
        %v3756 = vrot.slane %v3754, 4
        %v3757 = vor.u32 %v3756, %v3752
        %v3758 = vrot.slane %v3757, 4
        %v3760 = vshll.u32 %v3712, 16
        %v3762 = vrot.slane %v3760, 5
        %v3763 = vsel %vm1359, %v3758, %v3762
        %v3765 = vshrl.u32 %v3713, 16
        %v3767 = vrot.slane %v3765, 4
        %v3768 = vshll.u32 %v3713, 16
        %v3770 = vrot.slane %v3768, 5
        %v3771 = vor.u32 %v3767, %v3770
        %v3772 = vrot.slane %v3771, 4
        %v3774 = vshll.u32 %v3714, 16
        %v3776 = vrot.slane %v3774, 5
        %v3777 = vsel %vm1359, %v3772, %v3776
        %v3778 = vshrl.u32 %v3714, 16
        %v3780 = vrot.slane %v3778, 4
        %v3781 = vor.u32 %v3780, %v3776
        %v3782 = vrot.slane %v3781, 4
        %v3784 = vshll.u32 %v3715, 16
        %v3786 = vrot.slane %v3784, 5
        %v3787 = vsel %vm1359, %v3782, %v3786
        %v3789 = vshrl.u32 %v3716, 16
        %v3791 = vrot.slane %v3789, 4
        %v3792 = vshll.u32 %v3716, 16
        %v3794 = vrot.slane %v3792, 5
        %v3795 = vor.u32 %v3791, %v3794
        %v3796 = vrot.slane %v3795, 4
        %v3798 = vshll.u32 %v3717, 16
        %v3800 = vrot.slane %v3798, 5
        %v3801 = vsel %vm1359, %v3796, %v3800
        %v3802 = vshrl.u32 %v3717, 16
        %v3804 = vrot.slane %v3802, 4
        %v3805 = vor.u32 %v3804, %v3800
        %v3806 = vrot.slane %v3805, 4
        %v3808 = vshll.u32 %v3718, 16
        %v3810 = vrot.slane %v3808, 5
        %v3811 = vsel %vm1359, %v3806, %v3810
        %v3813 = vshrl.u32 %v3719, 16
        %v3815 = vrot.slane %v3813, 4
        %v3816 = vshll.u32 %v3719, 16
        %v3818 = vrot.slane %v3816, 5
        %v3819 = vor.u32 %v3815, %v3818
        %v3820 = vrot.slane %v3819, 4
        %v3822 = vshll.u32 %v3720, 16
        %v3824 = vrot.slane %v3822, 5
        %v3825 = vsel %vm1359, %v3820, %v3824
        %v3826 = vshrl.u32 %v3720, 16
        %v3828 = vrot.slane %v3826, 4
        %v3829 = vor.u32 %v3828, %v3824
        %v3830 = vrot.slane %v3829, 4
        %v3832 = vshll.u32 %v3721, 16
        %v3834 = vrot.slane %v3832, 5
        %v3835 = vsel %vm1359, %v3830, %v3834
        %v3837 = vshrl.u32 %v3722, 16
        %v3839 = vrot.slane %v3837, 4
        %v3840 = vshll.u32 %v3722, 16
        %v3842 = vrot.slane %v3840, 5
        %v3843 = vor.u32 %v3839, %v3842
        %v3844 = vrot.slane %v3843, 4
        %v3846 = vshll.u32 %v3723, 16
        %v3848 = vrot.slane %v3846, 5
        %v3849 = vsel %vm1359, %v3844, %v3848
        %v3850 = vshrl.u32 %v3723, 16
        %v3852 = vrot.slane %v3850, 4
        %v3853 = vor.u32 %v3852, %v3848
        %v3854 = vrot.slane %v3853, 4
        %v3856 = vshll.u32 %v3724, 16
        %v3858 = vrot.slane %v3856, 5
        %v3859 = vsel %vm1359, %v3854, %v3858
        %v3861 = vshrl.u32 %v3725, 16
        %v3863 = vrot.slane %v3861, 4
        %v3864 = vshll.u32 %v3725, 16
        %v3866 = vrot.slane %v3864, 5
        %v3867 = vor.u32 %v3863, %v3866
        %v3868 = vrot.slane %v3867, 4
        %v3870 = vshll.u32 %v3726, 16
        %v3872 = vrot.slane %v3870, 5
        %v3873 = vsel %vm1359, %v3868, %v3872
        %v3874 = vshrl.u32 %v3726, 16
        %v3876 = vrot.slane %v3874, 4
        %v3877 = vor.u32 %v3876, %v3872
        %v3878 = vrot.slane %v3877, 4
        %v3880 = vshll.u32 %v3727, 16
        %v3882 = vrot.slane %v3880, 5
        %v3883 = vsel %vm1359, %v3878, %v3882
        %v3885 = vshrl.u32 %v3728, 16
        %v3887 = vrot.slane %v3885, 4
        %v3888 = vshll.u32 %v3728, 16
        %v3890 = vrot.slane %v3888, 5
        %v3891 = vor.u32 %v3887, %v3890
        %v3892 = vrot.slane %v3891, 4
        %v3894 = vshll.u32 %v3729, 16
        %v3896 = vrot.slane %v3894, 5
        %v3897 = vsel %vm1359, %v3892, %v3896
        %v3898 = vshrl.u32 %v3729, 16
        %v3900 = vrot.slane %v3898, 4
        %v3901 = vor.u32 %v3900, %v3896
        %v3902 = vrot.slane %v3901, 4
        %v3904 = vshll.u32 %v3730, 16
        %v3906 = vrot.slane %v3904, 5
        %v3907 = vsel %vm1359, %v3902, %v3906
        %v3909 = vshrl.u32 %v3731, 16
        %v3911 = vrot.slane %v3909, 4
        %v3912 = vshll.u32 %v3731, 16
        %v3914 = vrot.slane %v3912, 5
        %v3915 = vor.u32 %v3911, %v3914
        %v3916 = vrot.slane %v3915, 4
        %v3918 = vshll.u32 %v3732, 16
        %v3920 = vrot.slane %v3918, 5
        %v3921 = vsel %vm1359, %v3916, %v3920
        %v3922 = vshrl.u32 %v3732, 16
        %v3924 = vrot.slane %v3922, 4
        %v3925 = vor.u32 %v3924, %v3920
        %v3926 = vrot.slane %v3925, 4
        %v3928 = vshll.u32 %v3733, 16
        %v3930 = vrot.slane %v3928, 5
        %v3931 = vsel %vm1359, %v3926, %v3930
        %v3932 = vld [vmem:[%s1552] sm:$0xf]
        %v3933 = vld [vmem:[%s1552 + $0x4] sm:$0xf]
        %v3934 = vld [vmem:[%s1552 + $0x8] sm:$0xf]
        %v3935 = vld [vmem:[%s1552 + $0xc] sm:$0xf]
        %v3936 = vld [vmem:[%s1552 + $0x10] sm:$0xf]
        %v3937 = vld [vmem:[%s1552 + $0x14] sm:$0xf]
        %v3938 = vld [vmem:[%s1552 + $0x18] sm:$0xf]
        %v3939 = vld [vmem:[%s1552 + $0x1c] sm:$0xf]
        %v3940 = vld [vmem:[%s1552 + $0x20] sm:$0xf]
        %v3941 = vld [vmem:[%s1552 + $0x24] sm:$0xf]
        %v3942 = vld [vmem:[%s1552 + $0x28] sm:$0xf]
        %v3943 = vld [vmem:[%s1552 + $0x2c] sm:$0xf]
        %v3944 = vld [vmem:[%s1552 + $0x30] sm:$0xf]
        %v3945 = vld [vmem:[%s1552 + $0x34] sm:$0xf]
        %v3946 = vld [vmem:[%s1552 + $0x38] sm:$0xf]
        %v3947 = vld [vmem:[%s1552 + $0x3c] sm:$0xf]
        %v3948 = vunpack.c.l.b16 %v3753
        %v3949 = vunpack.c.l.b16 %v3763
        %v3950 = vunpack.c.l.b16 %v3777
        %v3951 = vunpack.c.l.b16 %v3787
        %v3952 = vunpack.c.l.b16 %v3801
        %v3953 = vunpack.c.l.b16 %v3811
        %v3954 = vunpack.c.l.b16 %v3825
        %v3955 = vunpack.c.l.b16 %v3835
        %v3956 = vunpack.c.l.b16 %v3849
        %v3957 = vunpack.c.l.b16 %v3859
        %v3958 = vunpack.c.l.b16 %v3873
        %v3959 = vunpack.c.l.b16 %v3883
        %v3960 = vunpack.c.l.b16 %v3897
        %v3961 = vunpack.c.l.b16 %v3907
        %v3962 = vunpack.c.l.b16 %v3921
        %v3963 = vunpack.c.l.b16 %v3931
        %v3964 = vpack.c.b16 %v3949, %v3948
        %v3965 = vpack.c.b16 %v3951, %v3950
        %v3966 = vpack.c.b16 %v3953, %v3952
        %v3967 = vpack.c.b16 %v3955, %v3954
        %v3968 = vpack.c.b16 %v3957, %v3956
        %v3969 = vpack.c.b16 %v3959, %v3958
        %v3970 = vpack.c.b16 %v3961, %v3960
        %v3971 = vpack.c.b16 %v3963, %v3962
        %v3996 = vunpack.c.l.b16 %v3932
        %v3997 = vunpack.c.l.b16 %v3933
        %v3998 = vunpack.c.l.b16 %v3934
        %v3999 = vunpack.c.l.b16 %v3935
        %v4000 = vunpack.c.l.b16 %v3936
        %v4001 = vunpack.c.l.b16 %v3937
        %v4002 = vunpack.c.l.b16 %v3938
        %v4003 = vunpack.c.l.b16 %v3939
        %v4004 = vunpack.c.l.b16 %v3940
        %v4005 = vunpack.c.l.b16 %v3941
        %v4006 = vunpack.c.l.b16 %v3942
        %v4007 = vunpack.c.l.b16 %v3943
        %v4008 = vunpack.c.l.b16 %v3944
        %v4009 = vunpack.c.l.b16 %v3945
        %v4010 = vunpack.c.l.b16 %v3946
        %v4011 = vunpack.c.l.b16 %v3947
        %v4012 = vpack.c.b16 %v3997, %v3996
        %v4013 = vpack.c.b16 %v3999, %v3998
        %v4014 = vpack.c.b16 %v4001, %v4000
        %v4015 = vpack.c.b16 %v4003, %v4002
        %v4016 = vpack.c.b16 %v4005, %v4004
        %v4017 = vpack.c.b16 %v4007, %v4006
        %v4018 = vpack.c.b16 %v4009, %v4008
        %v4019 = vpack.c.b16 %v4011, %v4010
        %4028 = vmatprep.subr.bf16.mxu0 0
        %4029 = vmatpush1.bf16.msra.mxu0 %v4012
        %4030 = vmatprep.subr.bf16.mxu0 0
        %4031 = vmatpush1.bf16.msra.mxu0 %v4013
        %4032 = vmatprep.subr.bf16.mxu0 0
        %4033 = vmatpush1.bf16.msra.mxu0 %v4014
        %4034 = vmatprep.subr.bf16.mxu0 0
        %4035 = vmatpush1.bf16.msra.mxu0 %v4015
        %4036 = vmatprep.subr.bf16.mxu0 0
        %4037 = vmatpush1.bf16.msra.mxu0 %v4016
        %4038 = vmatprep.subr.bf16.mxu0 0
        %4039 = vmatpush1.bf16.msra.mxu0 %v4017
        %4040 = vmatprep.subr.bf16.mxu0 0
        %4041 = vmatpush1.bf16.msra.mxu0 %v4018
        %4042 = vmatprep.subr.bf16.mxu0 0
        %4043 = vmatpush1.bf16.msra.mxu0 %v4019
        %4044 = vmatprep.subr.bf16.mxu0 0
        %4045 = vmatpush1.bf16.msra.mxu0 0
        %4046 = vmatprep.subr.bf16.mxu0 0
        %4047 = vmatpush1.bf16.msra.mxu0 0
        %4048 = vmatprep.subr.bf16.mxu0 0
        %4049 = vmatpush1.bf16.msra.mxu0 0
        %4050 = vmatprep.subr.bf16.mxu0 0
        %4051 = vmatpush1.bf16.msra.mxu0 0
        %4052 = vmatprep.subr.bf16.mxu0 0
        %4053 = vmatpush1.bf16.msra.mxu0 0
        %4054 = vmatprep.subr.bf16.mxu0 0
        %4055 = vmatpush1.bf16.msra.mxu0 0
        %4056 = vmatprep.subr.bf16.mxu0 0
        %4057 = vmatpush1.bf16.msra.mxu0 0
        %4058 = vmatprep.subr.bf16.mxu0 0
        %4059 = vmatpush1.bf16.msra.mxu0 0
        %4060 = vmatprep.mubr.bf16.mxu0 0
        %4061 = vmatmul.mubr.bf16.gmra.mrb[0].mxu0 %v3964
        %v4062 = vpop.f32.mrb[0].mxu0
        %v4063 = vadd.f32 0.0, %v4062
        %v4064 = vpop.f32.mrb[0].mxu0
        %v4065 = vpop.f32.mrb[0].mxu0
        %v4066 = vadd.f32 0.0, %v4065
        %v4067 = vpop.f32.mrb[0].mxu0
        %4068 = vmatprep.mubr.bf16.mxu0 0
        %4069 = vmatmul.mubr.bf16.gmra.mrb[0].mxu0 %v3965
        %v4070 = vpop.f32.mrb[0].mxu0
        %v4071 = vadd.f32 0.0, %v4070
        %v4072 = vpop.f32.mrb[0].mxu0
        %v4073 = vpop.f32.mrb[0].mxu0
        %v4074 = vadd.f32 0.0, %v4073
        %v4075 = vpop.f32.mrb[0].mxu0
        %4076 = vmatprep.mubr.bf16.mxu0 0
        %4077 = vmatmul.mubr.bf16.gmra.mrb[0].mxu0 %v3966
        %v4078 = vpop.f32.mrb[0].mxu0
        %v4079 = vadd.f32 0.0, %v4078
        %v4080 = vpop.f32.mrb[0].mxu0
        %v4081 = vpop.f32.mrb[0].mxu0
        %v4082 = vadd.f32 0.0, %v4081
        %v4083 = vpop.f32.mrb[0].mxu0
        %4084 = vmatprep.mubr.bf16.mxu0 0
        %4085 = vmatmul.mubr.bf16.gmra.mrb[0].mxu0 %v3967
        %v4086 = vpop.f32.mrb[0].mxu0
        %v4087 = vadd.f32 0.0, %v4086
        %v4088 = vpop.f32.mrb[0].mxu0
        %v4089 = vpop.f32.mrb[0].mxu0
        %v4090 = vadd.f32 0.0, %v4089
        %v4091 = vpop.f32.mrb[0].mxu0
        %4092 = vmatprep.mubr.bf16.mxu0 0
        %4093 = vmatmul.mubr.bf16.gmra.mrb[0].mxu0 %v3968
        %v4094 = vpop.f32.mrb[0].mxu0
        %v4095 = vadd.f32 0.0, %v4094
        %v4096 = vpop.f32.mrb[0].mxu0
        %v4097 = vpop.f32.mrb[0].mxu0
        %v4098 = vadd.f32 0.0, %v4097
        %v4099 = vpop.f32.mrb[0].mxu0
        %4100 = vmatprep.mubr.bf16.mxu0 0
        %4101 = vmatmul.mubr.bf16.gmra.mrb[0].mxu0 %v3969
        %v4102 = vpop.f32.mrb[0].mxu0
        %v4103 = vadd.f32 0.0, %v4102
        %v4104 = vpop.f32.mrb[0].mxu0
        %v4105 = vpop.f32.mrb[0].mxu0
        %v4106 = vadd.f32 0.0, %v4105
        %v4107 = vpop.f32.mrb[0].mxu0
        %4108 = vmatprep.mubr.bf16.mxu0 0
        %4109 = vmatmul.mubr.bf16.gmra.mrb[0].mxu0 %v3970
        %v4110 = vpop.f32.mrb[0].mxu0
        %v4111 = vadd.f32 0.0, %v4110
        %v4112 = vpop.f32.mrb[0].mxu0
        %v4113 = vpop.f32.mrb[0].mxu0
        %v4114 = vadd.f32 0.0, %v4113
        %v4115 = vpop.f32.mrb[0].mxu0
        %4116 = vmatprep.mubr.bf16.mxu0 0
        %4117 = vmatmul.mubr.bf16.gmra.mrb[0].mxu0 %v3971
        %v4118 = vpop.f32.mrb[0].mxu0
        %v4119 = vadd.f32 0.0, %v4118
        %v4120 = vpop.f32.mrb[0].mxu0
        %v4121 = vpop.f32.mrb[0].mxu0
        %v4122 = vadd.f32 0.0, %v4121
        %v4123 = vpop.f32.mrb[0].mxu0
        %4124 = vdwg.mxu0
        %v4125 = vadd.f32 %v3694, %v4063
        %v4126 = vadd.f32 %v3695, %v4066
        %v4127 = vadd.f32 %v3696, %v4071
        %v4128 = vadd.f32 %v3697, %v4074
        %v4129 = vadd.f32 %v3698, %v4079
        %v4130 = vadd.f32 %v3699, %v4082
        %v4131 = vadd.f32 %v3700, %v4087
        %v4132 = vadd.f32 %v3701, %v4090
        %v4133 = vadd.f32 %v3702, %v4095
        %v4134 = vadd.f32 %v3703, %v4098
        %v4135 = vadd.f32 %v3704, %v4103
        %v4136 = vadd.f32 %v3705, %v4106
        %v4137 = vadd.f32 %v3706, %v4111
        %v4138 = vadd.f32 %v3707, %v4114
        %v4139 = vadd.f32 %v3708, %v4119
        %v4140 = vadd.f32 %v3709, %v4122
        %v4142 = vshrl.u32 %v3734, 16
        %v4144 = vrot.slane %v4142, 4
        %v4145 = vshll.u32 %v3734, 16
        %v4147 = vrot.slane %v4145, 5
        %v4148 = vor.u32 %v4144, %v4147
        %v4149 = vrot.slane %v4148, 4
        %v4151 = vshll.u32 %v3735, 16
        %v4153 = vrot.slane %v4151, 5
        %v4154 = vsel %vm1359, %v4149, %v4153
        %v4155 = vshrl.u32 %v3735, 16
        %v4157 = vrot.slane %v4155, 4
        %v4158 = vor.u32 %v4157, %v4153
        %v4159 = vrot.slane %v4158, 4
        %v4161 = vshll.u32 %v3736, 16
        %v4163 = vrot.slane %v4161, 5
        %v4164 = vsel %vm1359, %v4159, %v4163
        %v4165 = vld [vmem:[%s1786] sm:$0xf]
        %v4166 = vld [vmem:[%s1786 + $0x4] sm:$0xf]
        %v4167 = vld [vmem:[%s1786 + $0x8] sm:$0xf]
        %v4168 = vld [vmem:[%s1786 + $0xc] sm:$0xf]
        %v4169 = vld [vmem:[%s1786 + $0x10] sm:$0xf]
        %v4170 = vld [vmem:[%s1786 + $0x14] sm:$0xf]
        %v4171 = vld [vmem:[%s1786 + $0x18] sm:$0xf]
        %v4172 = vld [vmem:[%s1786 + $0x1c] sm:$0xf]
        %v4173 = vld [vmem:[%s1786 + $0x20] sm:$0xf]
        %v4174 = vld [vmem:[%s1786 + $0x24] sm:$0xf]
        %v4175 = vld [vmem:[%s1786 + $0x28] sm:$0xf]
        %v4176 = vld [vmem:[%s1786 + $0x2c] sm:$0xf]
        %v4177 = vld [vmem:[%s1786 + $0x30] sm:$0xf]
        %v4178 = vld [vmem:[%s1786 + $0x34] sm:$0xf]
        %v4179 = vld [vmem:[%s1786 + $0x38] sm:$0xf]
        %v4180 = vld [vmem:[%s1786 + $0x3c] sm:$0xf]
        %v4181 = vunpack.c.l.b16 %v4154
        %v4182 = vunpack.c.l.b16 %v4164
        %v4183 = vpack.c.b16 %v4182, %v4181
        %v4201 = vunpack.c.l.b16 %v4165
        %v4202 = vunpack.c.l.b16 %v4166
        %v4203 = vunpack.c.l.b16 %v4167
        %v4204 = vunpack.c.l.b16 %v4168
        %v4205 = vunpack.c.l.b16 %v4169
        %v4206 = vunpack.c.l.b16 %v4170
        %v4207 = vunpack.c.l.b16 %v4171
        %v4208 = vunpack.c.l.b16 %v4172
        %v4209 = vunpack.c.l.b16 %v4173
        %v4210 = vunpack.c.l.b16 %v4174
        %v4211 = vunpack.c.l.b16 %v4175
        %v4212 = vunpack.c.l.b16 %v4176
        %v4213 = vunpack.c.l.b16 %v4177
        %v4214 = vunpack.c.l.b16 %v4178
        %v4215 = vunpack.c.l.b16 %v4179
        %v4216 = vunpack.c.l.b16 %v4180
        %v4217 = vpack.c.b16 %v4202, %v4201
        %v4218 = vpack.c.b16 %v4204, %v4203
        %v4219 = vpack.c.b16 %v4206, %v4205
        %v4220 = vpack.c.b16 %v4208, %v4207
        %v4221 = vpack.c.b16 %v4210, %v4209
        %v4222 = vpack.c.b16 %v4212, %v4211
        %v4223 = vpack.c.b16 %v4214, %v4213
        %v4224 = vpack.c.b16 %v4216, %v4215
        %4233 = vmatprep.subr.bf16.mxu0 0
        %4234 = vmatpush1.bf16.msra.mxu0 %v4217
        %4235 = vmatprep.subr.bf16.mxu0 0
        %4236 = vmatpush1.bf16.msra.mxu0 %v4218
        %4237 = vmatprep.subr.bf16.mxu0 0
        %4238 = vmatpush1.bf16.msra.mxu0 %v4219
        %4239 = vmatprep.subr.bf16.mxu0 0
        %4240 = vmatpush1.bf16.msra.mxu0 %v4220
        %4241 = vmatprep.subr.bf16.mxu0 0
        %4242 = vmatpush1.bf16.msra.mxu0 %v4221
        %4243 = vmatprep.subr.bf16.mxu0 0
        %4244 = vmatpush1.bf16.msra.mxu0 %v4222
        %4245 = vmatprep.subr.bf16.mxu0 0
        %4246 = vmatpush1.bf16.msra.mxu0 %v4223
        %4247 = vmatprep.subr.bf16.mxu0 0
        %4248 = vmatpush1.bf16.msra.mxu0 %v4224
        %4249 = vmatprep.subr.bf16.mxu0 0
        %4250 = vmatpush1.bf16.msra.mxu0 0
        %4251 = vmatprep.subr.bf16.mxu0 0
        %4252 = vmatpush1.bf16.msra.mxu0 0
        %4253 = vmatprep.subr.bf16.mxu0 0
        %4254 = vmatpush1.bf16.msra.mxu0 0
        %4255 = vmatprep.subr.bf16.mxu0 0
        %4256 = vmatpush1.bf16.msra.mxu0 0
        %4257 = vmatprep.subr.bf16.mxu0 0
        %4258 = vmatpush1.bf16.msra.mxu0 0
        %4259 = vmatprep.subr.bf16.mxu0 0
        %4260 = vmatpush1.bf16.msra.mxu0 0
        %4261 = vmatprep.subr.bf16.mxu0 0
        %4262 = vmatpush1.bf16.msra.mxu0 0
        %4263 = vmatprep.subr.bf16.mxu0 0
        %4264 = vmatpush1.bf16.msra.mxu0 0
        %4265 = vmatprep.mubr.bf16.mxu0 0
        %4266 = vmatmul.mubr.bf16.gmra.mrb[0].mxu0 %v3965
        %v4267 = vpop.f32.mrb[0].mxu0
        %v4268 = vadd.f32 0.0, %v4267
        %v4269 = vpop.f32.mrb[0].mxu0
        %v4270 = vpop.f32.mrb[0].mxu0
        %v4271 = vadd.f32 0.0, %v4270
        %v4272 = vpop.f32.mrb[0].mxu0
        %4273 = vmatprep.mubr.bf16.mxu0 0
        %4274 = vmatmul.mubr.bf16.gmra.mrb[0].mxu0 %v3966
        %v4275 = vpop.f32.mrb[0].mxu0
        %v4276 = vadd.f32 0.0, %v4275
        %v4277 = vpop.f32.mrb[0].mxu0
        %v4278 = vpop.f32.mrb[0].mxu0
        %v4279 = vadd.f32 0.0, %v4278
        %v4280 = vpop.f32.mrb[0].mxu0
        %4281 = vmatprep.mubr.bf16.mxu0 0
        %4282 = vmatmul.mubr.bf16.gmra.mrb[0].mxu0 %v3967
        %v4283 = vpop.f32.mrb[0].mxu0
        %v4284 = vadd.f32 0.0, %v4283
        %v4285 = vpop.f32.mrb[0].mxu0
        %v4286 = vpop.f32.mrb[0].mxu0
        %v4287 = vadd.f32 0.0, %v4286
        %v4288 = vpop.f32.mrb[0].mxu0
        %4289 = vmatprep.mubr.bf16.mxu0 0
        %4290 = vmatmul.mubr.bf16.gmra.mrb[0].mxu0 %v3968
        %v4291 = vpop.f32.mrb[0].mxu0
        %v4292 = vadd.f32 0.0, %v4291
        %v4293 = vpop.f32.mrb[0].mxu0
        %v4294 = vpop.f32.mrb[0].mxu0
        %v4295 = vadd.f32 0.0, %v4294
        %v4296 = vpop.f32.mrb[0].mxu0
        %4297 = vmatprep.mubr.bf16.mxu0 0
        %4298 = vmatmul.mubr.bf16.gmra.mrb[0].mxu0 %v3969
        %v4299 = vpop.f32.mrb[0].mxu0
        %v4300 = vadd.f32 0.0, %v4299
        %v4301 = vpop.f32.mrb[0].mxu0
        %v4302 = vpop.f32.mrb[0].mxu0
        %v4303 = vadd.f32 0.0, %v4302
        %v4304 = vpop.f32.mrb[0].mxu0
        %4305 = vmatprep.mubr.bf16.mxu0 0
        %4306 = vmatmul.mubr.bf16.gmra.mrb[0].mxu0 %v3970
        %v4307 = vpop.f32.mrb[0].mxu0
        %v4308 = vadd.f32 0.0, %v4307
        %v4309 = vpop.f32.mrb[0].mxu0
        %v4310 = vpop.f32.mrb[0].mxu0
        %v4311 = vadd.f32 0.0, %v4310
        %v4312 = vpop.f32.mrb[0].mxu0
        %4313 = vmatprep.mubr.bf16.mxu0 0
        %4314 = vmatmul.mubr.bf16.gmra.mrb[0].mxu0 %v3971
        %v4315 = vpop.f32.mrb[0].mxu0
        %v4316 = vadd.f32 0.0, %v4315
        %v4317 = vpop.f32.mrb[0].mxu0
        %v4318 = vpop.f32.mrb[0].mxu0
        %v4319 = vadd.f32 0.0, %v4318
        %v4320 = vpop.f32.mrb[0].mxu0
        %4321 = vmatprep.mubr.bf16.mxu0 0
        %4322 = vmatmul.mubr.bf16.gmra.mrb[0].mxu0 %v4183
        %v4323 = vpop.f32.mrb[0].mxu0
        %v4324 = vadd.f32 0.0, %v4323
        %v4325 = vpop.f32.mrb[0].mxu0
        %v4326 = vpop.f32.mrb[0].mxu0
        %v4327 = vadd.f32 0.0, %v4326
        %v4328 = vpop.f32.mrb[0].mxu0
        %4329 = vdwg.mxu0
        %v4330 = vadd.f32 %v4125, %v4268
        %v4331 = vadd.f32 %v4126, %v4271
        %v4332 = vadd.f32 %v4127, %v4276
        %v4333 = vadd.f32 %v4128, %v4279
        %v4334 = vadd.f32 %v4129, %v4284
        %v4335 = vadd.f32 %v4130, %v4287
        %v4336 = vadd.f32 %v4131, %v4292
        %v4337 = vadd.f32 %v4132, %v4295
        %v4338 = vadd.f32 %v4133, %v4300
        %v4339 = vadd.f32 %v4134, %v4303
        %v4340 = vadd.f32 %v4135, %v4308
        %v4341 = vadd.f32 %v4136, %v4311
        %v4342 = vadd.f32 %v4137, %v4316
        %v4343 = vadd.f32 %v4138, %v4319
        %v4344 = vadd.f32 %v4139, %v4324
        %v4345 = vadd.f32 %v4140, %v4327
        %v4347 = vshrl.u32 %v3737, 16
        %v4349 = vrot.slane %v4347, 4
        %v4350 = vshll.u32 %v3737, 16
        %v4352 = vrot.slane %v4350, 5
        %v4353 = vor.u32 %v4349, %v4352
        %v4354 = vrot.slane %v4353, 4
        %v4356 = vshll.u32 %v3738, 16
        %v4358 = vrot.slane %v4356, 5
        %v4359 = vsel %vm1359, %v4354, %v4358
        %v4360 = vshrl.u32 %v3738, 16
        %v4362 = vrot.slane %v4360, 4
        %v4363 = vor.u32 %v4362, %v4358
        %v4364 = vrot.slane %v4363, 4
        %v4366 = vshll.u32 %v3739, 16
        %v4368 = vrot.slane %v4366, 5
        %v4369 = vsel %vm1359, %v4364, %v4368
        %v4370 = vld [vmem:[%s1992] sm:$0xf]
        %v4371 = vld [vmem:[%s1992 + $0x4] sm:$0xf]
        %v4372 = vld [vmem:[%s1992 + $0x8] sm:$0xf]
        %v4373 = vld [vmem:[%s1992 + $0xc] sm:$0xf]
        %v4374 = vld [vmem:[%s1992 + $0x10] sm:$0xf]
        %v4375 = vld [vmem:[%s1992 + $0x14] sm:$0xf]
        %v4376 = vld [vmem:[%s1992 + $0x18] sm:$0xf]
        %v4377 = vld [vmem:[%s1992 + $0x1c] sm:$0xf]
        %v4378 = vld [vmem:[%s1992 + $0x20] sm:$0xf]
        %v4379 = vld [vmem:[%s1992 + $0x24] sm:$0xf]
        %v4380 = vld [vmem:[%s1992 + $0x28] sm:$0xf]
        %v4381 = vld [vmem:[%s1992 + $0x2c] sm:$0xf]
        %v4382 = vld [vmem:[%s1992 + $0x30] sm:$0xf]
        %v4383 = vld [vmem:[%s1992 + $0x34] sm:$0xf]
        %v4384 = vld [vmem:[%s1992 + $0x38] sm:$0xf]
        %v4385 = vld [vmem:[%s1992 + $0x3c] sm:$0xf]
        %v4386 = vunpack.c.l.b16 %v4359
        %v4387 = vunpack.c.l.b16 %v4369
        %v4388 = vpack.c.b16 %v4387, %v4386
        %v4406 = vunpack.c.l.b16 %v4370
        %v4407 = vunpack.c.l.b16 %v4371
        %v4408 = vunpack.c.l.b16 %v4372
        %v4409 = vunpack.c.l.b16 %v4373
        %v4410 = vunpack.c.l.b16 %v4374
        %v4411 = vunpack.c.l.b16 %v4375
        %v4412 = vunpack.c.l.b16 %v4376
        %v4413 = vunpack.c.l.b16 %v4377
        %v4414 = vunpack.c.l.b16 %v4378
        %v4415 = vunpack.c.l.b16 %v4379
        %v4416 = vunpack.c.l.b16 %v4380
        %v4417 = vunpack.c.l.b16 %v4381
        %v4418 = vunpack.c.l.b16 %v4382
        %v4419 = vunpack.c.l.b16 %v4383
        %v4420 = vunpack.c.l.b16 %v4384
        %v4421 = vunpack.c.l.b16 %v4385
        %v4422 = vpack.c.b16 %v4407, %v4406
        %v4423 = vpack.c.b16 %v4409, %v4408
        %v4424 = vpack.c.b16 %v4411, %v4410
        %v4425 = vpack.c.b16 %v4413, %v4412
        %v4426 = vpack.c.b16 %v4415, %v4414
        %v4427 = vpack.c.b16 %v4417, %v4416
        %v4428 = vpack.c.b16 %v4419, %v4418
        %v4429 = vpack.c.b16 %v4421, %v4420
        %4438 = vmatprep.subr.bf16.mxu0 0
        %4439 = vmatpush1.bf16.msra.mxu0 %v4422
        %4440 = vmatprep.subr.bf16.mxu0 0
        %4441 = vmatpush1.bf16.msra.mxu0 %v4423
        %4442 = vmatprep.subr.bf16.mxu0 0
        %4443 = vmatpush1.bf16.msra.mxu0 %v4424
        %4444 = vmatprep.subr.bf16.mxu0 0
        %4445 = vmatpush1.bf16.msra.mxu0 %v4425
        %4446 = vmatprep.subr.bf16.mxu0 0
        %4447 = vmatpush1.bf16.msra.mxu0 %v4426
        %4448 = vmatprep.subr.bf16.mxu0 0
        %4449 = vmatpush1.bf16.msra.mxu0 %v4427
        %4450 = vmatprep.subr.bf16.mxu0 0
        %4451 = vmatpush1.bf16.msra.mxu0 %v4428
        %4452 = vmatprep.subr.bf16.mxu0 0
        %4453 = vmatpush1.bf16.msra.mxu0 %v4429
        %4454 = vmatprep.subr.bf16.mxu0 0
        %4455 = vmatpush1.bf16.msra.mxu0 0
        %4456 = vmatprep.subr.bf16.mxu0 0
        %4457 = vmatpush1.bf16.msra.mxu0 0
        %4458 = vmatprep.subr.bf16.mxu0 0
        %4459 = vmatpush1.bf16.msra.mxu0 0
        %4460 = vmatprep.subr.bf16.mxu0 0
        %4461 = vmatpush1.bf16.msra.mxu0 0
        %4462 = vmatprep.subr.bf16.mxu0 0
        %4463 = vmatpush1.bf16.msra.mxu0 0
        %4464 = vmatprep.subr.bf16.mxu0 0
        %4465 = vmatpush1.bf16.msra.mxu0 0
        %4466 = vmatprep.subr.bf16.mxu0 0
        %4467 = vmatpush1.bf16.msra.mxu0 0
        %4468 = vmatprep.subr.bf16.mxu0 0
        %4469 = vmatpush1.bf16.msra.mxu0 0
        %4470 = vmatprep.mubr.bf16.mxu0 0
        %4471 = vmatmul.mubr.bf16.gmra.mrb[0].mxu0 %v3966
        %v4472 = vpop.f32.mrb[0].mxu0
        %v4473 = vadd.f32 0.0, %v4472
        %v4474 = vpop.f32.mrb[0].mxu0
        %v4475 = vpop.f32.mrb[0].mxu0
        %v4476 = vadd.f32 0.0, %v4475
        %v4477 = vpop.f32.mrb[0].mxu0
        %4478 = vmatprep.mubr.bf16.mxu0 0
        %4479 = vmatmul.mubr.bf16.gmra.mrb[0].mxu0 %v3967
        %v4480 = vpop.f32.mrb[0].mxu0
        %v4481 = vadd.f32 0.0, %v4480
        %v4482 = vpop.f32.mrb[0].mxu0
        %v4483 = vpop.f32.mrb[0].mxu0
        %v4484 = vadd.f32 0.0, %v4483
        %v4485 = vpop.f32.mrb[0].mxu0
        %4486 = vmatprep.mubr.bf16.mxu0 0
        %4487 = vmatmul.mubr.bf16.gmra.mrb[0].mxu0 %v3968
        %v4488 = vpop.f32.mrb[0].mxu0
        %v4489 = vadd.f32 0.0, %v4488
        %v4490 = vpop.f32.mrb[0].mxu0
        %v4491 = vpop.f32.mrb[0].mxu0
        %v4492 = vadd.f32 0.0, %v4491
        %v4493 = vpop.f32.mrb[0].mxu0
        %4494 = vmatprep.mubr.bf16.mxu0 0
        %4495 = vmatmul.mubr.bf16.gmra.mrb[0].mxu0 %v3969
        %v4496 = vpop.f32.mrb[0].mxu0
        %v4497 = vadd.f32 0.0, %v4496
        %v4498 = vpop.f32.mrb[0].mxu0
        %v4499 = vpop.f32.mrb[0].mxu0
        %v4500 = vadd.f32 0.0, %v4499
        %v4501 = vpop.f32.mrb[0].mxu0
        %4502 = vmatprep.mubr.bf16.mxu0 0
        %4503 = vmatmul.mubr.bf16.gmra.mrb[0].mxu0 %v3970
        %v4504 = vpop.f32.mrb[0].mxu0
        %v4505 = vadd.f32 0.0, %v4504
        %v4506 = vpop.f32.mrb[0].mxu0
        %v4507 = vpop.f32.mrb[0].mxu0
        %v4508 = vadd.f32 0.0, %v4507
        %v4509 = vpop.f32.mrb[0].mxu0
        %4510 = vmatprep.mubr.bf16.mxu0 0
        %4511 = vmatmul.mubr.bf16.gmra.mrb[0].mxu0 %v3971
        %v4512 = vpop.f32.mrb[0].mxu0
        %v4513 = vadd.f32 0.0, %v4512
        %v4514 = vpop.f32.mrb[0].mxu0
        %v4515 = vpop.f32.mrb[0].mxu0
        %v4516 = vadd.f32 0.0, %v4515
        %v4517 = vpop.f32.mrb[0].mxu0
        %4518 = vmatprep.mubr.bf16.mxu0 0
        %4519 = vmatmul.mubr.bf16.gmra.mrb[0].mxu0 %v4183
        %v4520 = vpop.f32.mrb[0].mxu0
        %v4521 = vadd.f32 0.0, %v4520
        %v4522 = vpop.f32.mrb[0].mxu0
        %v4523 = vpop.f32.mrb[0].mxu0
        %v4524 = vadd.f32 0.0, %v4523
        %v4525 = vpop.f32.mrb[0].mxu0
        %4526 = vmatprep.mubr.bf16.mxu0 0
        %4527 = vmatmul.mubr.bf16.gmra.mrb[0].mxu0 %v4388
        %v4528 = vpop.f32.mrb[0].mxu0
        %v4529 = vadd.f32 0.0, %v4528
        %v4530 = vpop.f32.mrb[0].mxu0
        %v4531 = vpop.f32.mrb[0].mxu0
        %v4532 = vadd.f32 0.0, %v4531
        %v4533 = vpop.f32.mrb[0].mxu0
        %4534 = vdwg.mxu0
        %v4535 = vadd.f32 %v4330, %v4473
        %v4536 = vadd.f32 %v4331, %v4476
        %v4537 = vadd.f32 %v4332, %v4481
        %v4538 = vadd.f32 %v4333, %v4484
        %v4539 = vadd.f32 %v4334, %v4489
        %v4540 = vadd.f32 %v4335, %v4492
        %v4541 = vadd.f32 %v4336, %v4497
        %v4542 = vadd.f32 %v4337, %v4500
        %v4543 = vadd.f32 %v4338, %v4505
        %v4544 = vadd.f32 %v4339, %v4508
        %v4545 = vadd.f32 %v4340, %v4513
        %v4546 = vadd.f32 %v4341, %v4516
        %v4547 = vadd.f32 %v4342, %v4521
        %v4548 = vadd.f32 %v4343, %v4524
        %v4549 = vadd.f32 %v4344, %v4529
        %v4550 = vadd.f32 %v4345, %v4532
        %v4551 = vld [vmem:[%s3130] sm:$0xe]
        %v4552 = vld [vmem:[%s3130 + $0xc] sm:$0xe]
        %v4553 = vld [vmem:[%s3130 + $0x18] sm:$0xe]
        %v4554 = vld [vmem:[%s3130 + $0x24] sm:$0xe]
        %v4555 = vld [vmem:[%s3130 + $0x30] sm:$0xe]
        %v4556 = vld [vmem:[%s3130 + $0x3c] sm:$0xe]
        %v4557 = vld [vmem:[%s3130 + $0x48] sm:$0xe]
        %v4558 = vld [vmem:[%s3130 + $0x54] sm:$0xe]
        %v4559 = vld [vmem:[%s3130 + $0x60] sm:$0xe]
        %v4560 = vld [vmem:[%s3130 + $0x6c] sm:$0xe]
        %v4585 = vrot.slane %v4551, 5
        %v4586 = vrot.slane %v4585, 4
        %v4587 = vrot.slane %v3711, 5
        %v4588 = vsel %vm2210, %v4586, %v4587
        %v4589 = vrot.slane %v4587, 4
        %v4590 = vrot.slane %v3712, 5
        %v4591 = vsel %vm2210, %v4589, %v4590
        %v4592 = vrot.slane %v4552, 5
        %v4593 = vrot.slane %v4592, 4
        %v4594 = vrot.slane %v3714, 5
        %v4595 = vsel %vm2210, %v4593, %v4594
        %v4596 = vrot.slane %v4594, 4
        %v4597 = vrot.slane %v3715, 5
        %v4598 = vsel %vm2210, %v4596, %v4597
        %v4599 = vrot.slane %v4553, 5
        %v4600 = vrot.slane %v4599, 4
        %v4601 = vrot.slane %v3717, 5
        %v4602 = vsel %vm2210, %v4600, %v4601
        %v4603 = vrot.slane %v4601, 4
        %v4604 = vrot.slane %v3718, 5
        %v4605 = vsel %vm2210, %v4603, %v4604
        %v4606 = vrot.slane %v4554, 5
        %v4607 = vrot.slane %v4606, 4
        %v4608 = vrot.slane %v3720, 5
        %v4609 = vsel %vm2210, %v4607, %v4608
        %v4610 = vrot.slane %v4608, 4
        %v4611 = vrot.slane %v3721, 5
        %v4612 = vsel %vm2210, %v4610, %v4611
        %v4613 = vrot.slane %v4555, 5
        %v4614 = vrot.slane %v4613, 4
        %v4615 = vrot.slane %v3723, 5
        %v4616 = vsel %vm2210, %v4614, %v4615
        %v4617 = vrot.slane %v4615, 4
        %v4618 = vrot.slane %v3724, 5
        %v4619 = vsel %vm2210, %v4617, %v4618
        %v4620 = vrot.slane %v4556, 5
        %v4621 = vrot.slane %v4620, 4
        %v4622 = vrot.slane %v3726, 5
        %v4623 = vsel %vm2210, %v4621, %v4622
        %v4624 = vrot.slane %v4622, 4
        %v4625 = vrot.slane %v3727, 5
        %v4626 = vsel %vm2210, %v4624, %v4625
        %v4627 = vrot.slane %v4557, 5
        %v4628 = vrot.slane %v4627, 4
        %v4629 = vrot.slane %v3729, 5
        %v4630 = vsel %vm2210, %v4628, %v4629
        %v4631 = vrot.slane %v4629, 4
        %v4632 = vrot.slane %v3730, 5
        %v4633 = vsel %vm2210, %v4631, %v4632
        %v4634 = vrot.slane %v4558, 5
        %v4635 = vrot.slane %v4634, 4
        %v4636 = vrot.slane %v3732, 5
        %v4637 = vsel %vm2210, %v4635, %v4636
        %v4638 = vrot.slane %v4636, 4
        %v4639 = vrot.slane %v3733, 5
        %v4640 = vsel %vm2210, %v4638, %v4639
        %v4641 = vld [vmem:[%s2267] sm:$0xf]
        %v4642 = vld [vmem:[%s2267 + $0x4] sm:$0xf]
        %v4643 = vld [vmem:[%s2267 + $0x8] sm:$0xf]
        %v4644 = vld [vmem:[%s2267 + $0xc] sm:$0xf]
        %v4645 = vld [vmem:[%s2267 + $0x10] sm:$0xf]
        %v4646 = vld [vmem:[%s2267 + $0x14] sm:$0xf]
        %v4647 = vld [vmem:[%s2267 + $0x18] sm:$0xf]
        %v4648 = vld [vmem:[%s2267 + $0x1c] sm:$0xf]
        %v4649 = vld [vmem:[%s2267 + $0x20] sm:$0xf]
        %v4650 = vld [vmem:[%s2267 + $0x24] sm:$0xf]
        %v4651 = vld [vmem:[%s2267 + $0x28] sm:$0xf]
        %v4652 = vld [vmem:[%s2267 + $0x2c] sm:$0xf]
        %v4653 = vld [vmem:[%s2267 + $0x30] sm:$0xf]
        %v4654 = vld [vmem:[%s2267 + $0x34] sm:$0xf]
        %v4655 = vld [vmem:[%s2267 + $0x38] sm:$0xf]
        %v4656 = vld [vmem:[%s2267 + $0x3c] sm:$0xf]
        %v4657 = vunpack.c.l.b16 %v4588
        %v4658 = vunpack.c.l.b16 %v4591
        %v4659 = vunpack.c.l.b16 %v4595
        %v4660 = vunpack.c.l.b16 %v4598
        %v4661 = vunpack.c.l.b16 %v4602
        %v4662 = vunpack.c.l.b16 %v4605
        %v4663 = vunpack.c.l.b16 %v4609
        %v4664 = vunpack.c.l.b16 %v4612
        %v4665 = vunpack.c.l.b16 %v4616
        %v4666 = vunpack.c.l.b16 %v4619
        %v4667 = vunpack.c.l.b16 %v4623
        %v4668 = vunpack.c.l.b16 %v4626
        %v4669 = vunpack.c.l.b16 %v4630
        %v4670 = vunpack.c.l.b16 %v4633
        %v4671 = vunpack.c.l.b16 %v4637
        %v4672 = vunpack.c.l.b16 %v4640
        %v4673 = vpack.c.b16 %v4658, %v4657
        %v4674 = vpack.c.b16 %v4660, %v4659
        %v4675 = vpack.c.b16 %v4662, %v4661
        %v4676 = vpack.c.b16 %v4664, %v4663
        %v4677 = vpack.c.b16 %v4666, %v4665
        %v4678 = vpack.c.b16 %v4668, %v4667
        %v4679 = vpack.c.b16 %v4670, %v4669
        %v4680 = vpack.c.b16 %v4672, %v4671
        %v4705 = vunpack.c.l.b16 %v4641
        %v4706 = vunpack.c.l.b16 %v4642
        %v4707 = vunpack.c.l.b16 %v4643
        %v4708 = vunpack.c.l.b16 %v4644
        %v4709 = vunpack.c.l.b16 %v4645
        %v4710 = vunpack.c.l.b16 %v4646
        %v4711 = vunpack.c.l.b16 %v4647
        %v4712 = vunpack.c.l.b16 %v4648
        %v4713 = vunpack.c.l.b16 %v4649
        %v4714 = vunpack.c.l.b16 %v4650
        %v4715 = vunpack.c.l.b16 %v4651
        %v4716 = vunpack.c.l.b16 %v4652
        %v4717 = vunpack.c.l.b16 %v4653
        %v4718 = vunpack.c.l.b16 %v4654
        %v4719 = vunpack.c.l.b16 %v4655
        %v4720 = vunpack.c.l.b16 %v4656
        %v4721 = vpack.c.b16 %v4706, %v4705
        %v4722 = vpack.c.b16 %v4708, %v4707
        %v4723 = vpack.c.b16 %v4710, %v4709
        %v4724 = vpack.c.b16 %v4712, %v4711
        %v4725 = vpack.c.b16 %v4714, %v4713
        %v4726 = vpack.c.b16 %v4716, %v4715
        %v4727 = vpack.c.b16 %v4718, %v4717
        %v4728 = vpack.c.b16 %v4720, %v4719
        %4737 = vmatprep.subr.bf16.mxu0 0
        %4738 = vmatpush1.bf16.msra.mxu0 %v4721
        %4739 = vmatprep.subr.bf16.mxu0 0
        %4740 = vmatpush1.bf16.msra.mxu0 %v4722
        %4741 = vmatprep.subr.bf16.mxu0 0
        %4742 = vmatpush1.bf16.msra.mxu0 %v4723
        %4743 = vmatprep.subr.bf16.mxu0 0
        %4744 = vmatpush1.bf16.msra.mxu0 %v4724
        %4745 = vmatprep.subr.bf16.mxu0 0
        %4746 = vmatpush1.bf16.msra.mxu0 %v4725
        %4747 = vmatprep.subr.bf16.mxu0 0
        %4748 = vmatpush1.bf16.msra.mxu0 %v4726
        %4749 = vmatprep.subr.bf16.mxu0 0
        %4750 = vmatpush1.bf16.msra.mxu0 %v4727
        %4751 = vmatprep.subr.bf16.mxu0 0
        %4752 = vmatpush1.bf16.msra.mxu0 %v4728
        %4753 = vmatprep.subr.bf16.mxu0 0
        %4754 = vmatpush1.bf16.msra.mxu0 0
        %4755 = vmatprep.subr.bf16.mxu0 0
        %4756 = vmatpush1.bf16.msra.mxu0 0
        %4757 = vmatprep.subr.bf16.mxu0 0
        %4758 = vmatpush1.bf16.msra.mxu0 0
        %4759 = vmatprep.subr.bf16.mxu0 0
        %4760 = vmatpush1.bf16.msra.mxu0 0
        %4761 = vmatprep.subr.bf16.mxu0 0
        %4762 = vmatpush1.bf16.msra.mxu0 0
        %4763 = vmatprep.subr.bf16.mxu0 0
        %4764 = vmatpush1.bf16.msra.mxu0 0
        %4765 = vmatprep.subr.bf16.mxu0 0
        %4766 = vmatpush1.bf16.msra.mxu0 0
        %4767 = vmatprep.subr.bf16.mxu0 0
        %4768 = vmatpush1.bf16.msra.mxu0 0
        %4769 = vmatprep.mubr.bf16.mxu0 0
        %4770 = vmatmul.mubr.bf16.gmra.mrb[0].mxu0 %v4673
        %v4771 = vpop.f32.mrb[0].mxu0
        %v4772 = vadd.f32 0.0, %v4771
        %v4773 = vpop.f32.mrb[0].mxu0
        %v4774 = vpop.f32.mrb[0].mxu0
        %v4775 = vadd.f32 0.0, %v4774
        %v4776 = vpop.f32.mrb[0].mxu0
        %4777 = vmatprep.mubr.bf16.mxu0 0
        %4778 = vmatmul.mubr.bf16.gmra.mrb[0].mxu0 %v4674
        %v4779 = vpop.f32.mrb[0].mxu0
        %v4780 = vadd.f32 0.0, %v4779
        %v4781 = vpop.f32.mrb[0].mxu0
        %v4782 = vpop.f32.mrb[0].mxu0
        %v4783 = vadd.f32 0.0, %v4782
        %v4784 = vpop.f32.mrb[0].mxu0
        %4785 = vmatprep.mubr.bf16.mxu0 0
        %4786 = vmatmul.mubr.bf16.gmra.mrb[0].mxu0 %v4675
        %v4787 = vpop.f32.mrb[0].mxu0
        %v4788 = vadd.f32 0.0, %v4787
        %v4789 = vpop.f32.mrb[0].mxu0
        %v4790 = vpop.f32.mrb[0].mxu0
        %v4791 = vadd.f32 0.0, %v4790
        %v4792 = vpop.f32.mrb[0].mxu0
        %4793 = vmatprep.mubr.bf16.mxu0 0
        %4794 = vmatmul.mubr.bf16.gmra.mrb[0].mxu0 %v4676
        %v4795 = vpop.f32.mrb[0].mxu0
        %v4796 = vadd.f32 0.0, %v4795
        %v4797 = vpop.f32.mrb[0].mxu0
        %v4798 = vpop.f32.mrb[0].mxu0
        %v4799 = vadd.f32 0.0, %v4798
        %v4800 = vpop.f32.mrb[0].mxu0
        %4801 = vmatprep.mubr.bf16.mxu0 0
        %4802 = vmatmul.mubr.bf16.gmra.mrb[0].mxu0 %v4677
        %v4803 = vpop.f32.mrb[0].mxu0
        %v4804 = vadd.f32 0.0, %v4803
        %v4805 = vpop.f32.mrb[0].mxu0
        %v4806 = vpop.f32.mrb[0].mxu0
        %v4807 = vadd.f32 0.0, %v4806
        %v4808 = vpop.f32.mrb[0].mxu0
        %4809 = vmatprep.mubr.bf16.mxu0 0
        %4810 = vmatmul.mubr.bf16.gmra.mrb[0].mxu0 %v4678
        %v4811 = vpop.f32.mrb[0].mxu0
        %v4812 = vadd.f32 0.0, %v4811
        %v4813 = vpop.f32.mrb[0].mxu0
        %v4814 = vpop.f32.mrb[0].mxu0
        %v4815 = vadd.f32 0.0, %v4814
        %v4816 = vpop.f32.mrb[0].mxu0
        %4817 = vmatprep.mubr.bf16.mxu0 0
        %4818 = vmatmul.mubr.bf16.gmra.mrb[0].mxu0 %v4679
        %v4819 = vpop.f32.mrb[0].mxu0
        %v4820 = vadd.f32 0.0, %v4819
        %v4821 = vpop.f32.mrb[0].mxu0
        %v4822 = vpop.f32.mrb[0].mxu0
        %v4823 = vadd.f32 0.0, %v4822
        %v4824 = vpop.f32.mrb[0].mxu0
        %4825 = vmatprep.mubr.bf16.mxu0 0
        %4826 = vmatmul.mubr.bf16.gmra.mrb[0].mxu0 %v4680
        %v4827 = vpop.f32.mrb[0].mxu0
        %v4828 = vadd.f32 0.0, %v4827
        %v4829 = vpop.f32.mrb[0].mxu0
        %v4830 = vpop.f32.mrb[0].mxu0
        %v4831 = vadd.f32 0.0, %v4830
        %v4832 = vpop.f32.mrb[0].mxu0
        %4833 = vdwg.mxu0
        %v4834 = vadd.f32 %v4535, %v4772
        %v4835 = vadd.f32 %v4536, %v4775
        %v4836 = vadd.f32 %v4537, %v4780
        %v4837 = vadd.f32 %v4538, %v4783
        %v4838 = vadd.f32 %v4539, %v4788
        %v4839 = vadd.f32 %v4540, %v4791
        %v4840 = vadd.f32 %v4541, %v4796
        %v4841 = vadd.f32 %v4542, %v4799
        %v4842 = vadd.f32 %v4543, %v4804
        %v4843 = vadd.f32 %v4544, %v4807
        %v4844 = vadd.f32 %v4545, %v4812
        %v4845 = vadd.f32 %v4546, %v4815
        %v4846 = vadd.f32 %v4547, %v4820
        %v4847 = vadd.f32 %v4548, %v4823
        %v4848 = vadd.f32 %v4549, %v4828
        %v4849 = vadd.f32 %v4550, %v4831
        %v4853 = vrot.slane %v4559, 5
        %v4854 = vrot.slane %v4853, 4
        %v4855 = vrot.slane %v3735, 5
        %v4856 = vsel %vm2210, %v4854, %v4855
        %v4857 = vrot.slane %v4855, 4
        %v4858 = vrot.slane %v3736, 5
        %v4859 = vsel %vm2210, %v4857, %v4858
        %v4860 = vld [vmem:[%s2487] sm:$0xf]
        %v4861 = vld [vmem:[%s2487 + $0x4] sm:$0xf]
        %v4862 = vld [vmem:[%s2487 + $0x8] sm:$0xf]
        %v4863 = vld [vmem:[%s2487 + $0xc] sm:$0xf]
        %v4864 = vld [vmem:[%s2487 + $0x10] sm:$0xf]
        %v4865 = vld [vmem:[%s2487 + $0x14] sm:$0xf]
        %v4866 = vld [vmem:[%s2487 + $0x18] sm:$0xf]
        %v4867 = vld [vmem:[%s2487 + $0x1c] sm:$0xf]
        %v4868 = vld [vmem:[%s2487 + $0x20] sm:$0xf]
        %v4869 = vld [vmem:[%s2487 + $0x24] sm:$0xf]
        %v4870 = vld [vmem:[%s2487 + $0x28] sm:$0xf]
        %v4871 = vld [vmem:[%s2487 + $0x2c] sm:$0xf]
        %v4872 = vld [vmem:[%s2487 + $0x30] sm:$0xf]
        %v4873 = vld [vmem:[%s2487 + $0x34] sm:$0xf]
        %v4874 = vld [vmem:[%s2487 + $0x38] sm:$0xf]
        %v4875 = vld [vmem:[%s2487 + $0x3c] sm:$0xf]
        %v4876 = vunpack.c.l.b16 %v4856
        %v4877 = vunpack.c.l.b16 %v4859
        %v4878 = vpack.c.b16 %v4877, %v4876
        %v4896 = vunpack.c.l.b16 %v4860
        %v4897 = vunpack.c.l.b16 %v4861
        %v4898 = vunpack.c.l.b16 %v4862
        %v4899 = vunpack.c.l.b16 %v4863
        %v4900 = vunpack.c.l.b16 %v4864
        %v4901 = vunpack.c.l.b16 %v4865
        %v4902 = vunpack.c.l.b16 %v4866
        %v4903 = vunpack.c.l.b16 %v4867
        %v4904 = vunpack.c.l.b16 %v4868
        %v4905 = vunpack.c.l.b16 %v4869
        %v4906 = vunpack.c.l.b16 %v4870
        %v4907 = vunpack.c.l.b16 %v4871
        %v4908 = vunpack.c.l.b16 %v4872
        %v4909 = vunpack.c.l.b16 %v4873
        %v4910 = vunpack.c.l.b16 %v4874
        %v4911 = vunpack.c.l.b16 %v4875
        %v4912 = vpack.c.b16 %v4897, %v4896
        %v4913 = vpack.c.b16 %v4899, %v4898
        %v4914 = vpack.c.b16 %v4901, %v4900
        %v4915 = vpack.c.b16 %v4903, %v4902
        %v4916 = vpack.c.b16 %v4905, %v4904
        %v4917 = vpack.c.b16 %v4907, %v4906
        %v4918 = vpack.c.b16 %v4909, %v4908
        %v4919 = vpack.c.b16 %v4911, %v4910
        %4928 = vmatprep.subr.bf16.mxu0 0
        %4929 = vmatpush1.bf16.msra.mxu0 %v4912
        %4930 = vmatprep.subr.bf16.mxu0 0
        %4931 = vmatpush1.bf16.msra.mxu0 %v4913
        %4932 = vmatprep.subr.bf16.mxu0 0
        %4933 = vmatpush1.bf16.msra.mxu0 %v4914
        %4934 = vmatprep.subr.bf16.mxu0 0
        %4935 = vmatpush1.bf16.msra.mxu0 %v4915
        %4936 = vmatprep.subr.bf16.mxu0 0
        %4937 = vmatpush1.bf16.msra.mxu0 %v4916
        %4938 = vmatprep.subr.bf16.mxu0 0
        %4939 = vmatpush1.bf16.msra.mxu0 %v4917
        %4940 = vmatprep.subr.bf16.mxu0 0
        %4941 = vmatpush1.bf16.msra.mxu0 %v4918
        %4942 = vmatprep.subr.bf16.mxu0 0
        %4943 = vmatpush1.bf16.msra.mxu0 %v4919
        %4944 = vmatprep.subr.bf16.mxu0 0
        %4945 = vmatpush1.bf16.msra.mxu0 0
        %4946 = vmatprep.subr.bf16.mxu0 0
        %4947 = vmatpush1.bf16.msra.mxu0 0
        %4948 = vmatprep.subr.bf16.mxu0 0
        %4949 = vmatpush1.bf16.msra.mxu0 0
        %4950 = vmatprep.subr.bf16.mxu0 0
        %4951 = vmatpush1.bf16.msra.mxu0 0
        %4952 = vmatprep.subr.bf16.mxu0 0
        %4953 = vmatpush1.bf16.msra.mxu0 0
        %4954 = vmatprep.subr.bf16.mxu0 0
        %4955 = vmatpush1.bf16.msra.mxu0 0
        %4956 = vmatprep.subr.bf16.mxu0 0
        %4957 = vmatpush1.bf16.msra.mxu0 0
        %4958 = vmatprep.subr.bf16.mxu0 0
        %4959 = vmatpush1.bf16.msra.mxu0 0
        %4960 = vmatprep.mubr.bf16.mxu0 0
        %4961 = vmatmul.mubr.bf16.gmra.mrb[0].mxu0 %v4674
        %v4962 = vpop.f32.mrb[0].mxu0
        %v4963 = vadd.f32 0.0, %v4962
        %v4964 = vpop.f32.mrb[0].mxu0
        %v4965 = vpop.f32.mrb[0].mxu0
        %v4966 = vadd.f32 0.0, %v4965
        %v4967 = vpop.f32.mrb[0].mxu0
        %4968 = vmatprep.mubr.bf16.mxu0 0
        %4969 = vmatmul.mubr.bf16.gmra.mrb[0].mxu0 %v4675
        %v4970 = vpop.f32.mrb[0].mxu0
        %v4971 = vadd.f32 0.0, %v4970
        %v4972 = vpop.f32.mrb[0].mxu0
        %v4973 = vpop.f32.mrb[0].mxu0
        %v4974 = vadd.f32 0.0, %v4973
        %v4975 = vpop.f32.mrb[0].mxu0
        %4976 = vmatprep.mubr.bf16.mxu0 0
        %4977 = vmatmul.mubr.bf16.gmra.mrb[0].mxu0 %v4676
        %v4978 = vpop.f32.mrb[0].mxu0
        %v4979 = vadd.f32 0.0, %v4978
        %v4980 = vpop.f32.mrb[0].mxu0
        %v4981 = vpop.f32.mrb[0].mxu0
        %v4982 = vadd.f32 0.0, %v4981
        %v4983 = vpop.f32.mrb[0].mxu0
        %4984 = vmatprep.mubr.bf16.mxu0 0
        %4985 = vmatmul.mubr.bf16.gmra.mrb[0].mxu0 %v4677
        %v4986 = vpop.f32.mrb[0].mxu0
        %v4987 = vadd.f32 0.0, %v4986
        %v4988 = vpop.f32.mrb[0].mxu0
        %v4989 = vpop.f32.mrb[0].mxu0
        %v4990 = vadd.f32 0.0, %v4989
        %v4991 = vpop.f32.mrb[0].mxu0
        %4992 = vmatprep.mubr.bf16.mxu0 0
        %4993 = vmatmul.mubr.bf16.gmra.mrb[0].mxu0 %v4678
        %v4994 = vpop.f32.mrb[0].mxu0
        %v4995 = vadd.f32 0.0, %v4994
        %v4996 = vpop.f32.mrb[0].mxu0
        %v4997 = vpop.f32.mrb[0].mxu0
        %v4998 = vadd.f32 0.0, %v4997
        %v4999 = vpop.f32.mrb[0].mxu0
        %5000 = vmatprep.mubr.bf16.mxu0 0
        %5001 = vmatmul.mubr.bf16.gmra.mrb[0].mxu0 %v4679
        %v5002 = vpop.f32.mrb[0].mxu0
        %v5003 = vadd.f32 0.0, %v5002
        %v5004 = vpop.f32.mrb[0].mxu0
        %v5005 = vpop.f32.mrb[0].mxu0
        %v5006 = vadd.f32 0.0, %v5005
        %v5007 = vpop.f32.mrb[0].mxu0
        %5008 = vmatprep.mubr.bf16.mxu0 0
        %5009 = vmatmul.mubr.bf16.gmra.mrb[0].mxu0 %v4680
        %v5010 = vpop.f32.mrb[0].mxu0
        %v5011 = vadd.f32 0.0, %v5010
        %v5012 = vpop.f32.mrb[0].mxu0
        %v5013 = vpop.f32.mrb[0].mxu0
        %v5014 = vadd.f32 0.0, %v5013
        %v5015 = vpop.f32.mrb[0].mxu0
        %5016 = vmatprep.mubr.bf16.mxu0 0
        %5017 = vmatmul.mubr.bf16.gmra.mrb[0].mxu0 %v4878
        %v5018 = vpop.f32.mrb[0].mxu0
        %v5019 = vadd.f32 0.0, %v5018
        %v5020 = vpop.f32.mrb[0].mxu0
        %v5021 = vpop.f32.mrb[0].mxu0
        %v5022 = vadd.f32 0.0, %v5021
        %v5023 = vpop.f32.mrb[0].mxu0
        %5024 = vdwg.mxu0
        %v5025 = vadd.f32 %v4834, %v4963
        %v5026 = vadd.f32 %v4835, %v4966
        %v5027 = vadd.f32 %v4836, %v4971
        %v5028 = vadd.f32 %v4837, %v4974
        %v5029 = vadd.f32 %v4838, %v4979
        %v5030 = vadd.f32 %v4839, %v4982
        %v5031 = vadd.f32 %v4840, %v4987
        %v5032 = vadd.f32 %v4841, %v4990
        %v5033 = vadd.f32 %v4842, %v4995
        %v5034 = vadd.f32 %v4843, %v4998
        %v5035 = vadd.f32 %v4844, %v5003
        %v5036 = vadd.f32 %v4845, %v5006
        %v5037 = vadd.f32 %v4846, %v5011
        %v5038 = vadd.f32 %v4847, %v5014
        %v5039 = vadd.f32 %v4848, %v5019
        %v5040 = vadd.f32 %v4849, %v5022
        %v5044 = vrot.slane %v4560, 5
        %v5045 = vrot.slane %v5044, 4
        %v5046 = vrot.slane %v3738, 5
        %v5047 = vsel %vm2210, %v5045, %v5046
        %v5048 = vrot.slane %v5046, 4
        %v5049 = vrot.slane %v3739, 5
        %v5050 = vsel %vm2210, %v5048, %v5049
        %v5051 = vld [vmem:[%s2679] sm:$0xf]
        %v5052 = vld [vmem:[%s2679 + $0x4] sm:$0xf]
        %v5053 = vld [vmem:[%s2679 + $0x8] sm:$0xf]
        %v5054 = vld [vmem:[%s2679 + $0xc] sm:$0xf]
        %v5055 = vld [vmem:[%s2679 + $0x10] sm:$0xf]
        %v5056 = vld [vmem:[%s2679 + $0x14] sm:$0xf]
        %v5057 = vld [vmem:[%s2679 + $0x18] sm:$0xf]
        %v5058 = vld [vmem:[%s2679 + $0x1c] sm:$0xf]
        %v5059 = vld [vmem:[%s2679 + $0x20] sm:$0xf]
        %v5060 = vld [vmem:[%s2679 + $0x24] sm:$0xf]
        %v5061 = vld [vmem:[%s2679 + $0x28] sm:$0xf]
        %v5062 = vld [vmem:[%s2679 + $0x2c] sm:$0xf]
        %v5063 = vld [vmem:[%s2679 + $0x30] sm:$0xf]
        %v5064 = vld [vmem:[%s2679 + $0x34] sm:$0xf]
        %v5065 = vld [vmem:[%s2679 + $0x38] sm:$0xf]
        %v5066 = vld [vmem:[%s2679 + $0x3c] sm:$0xf]
        %v5067 = vunpack.c.l.b16 %v5047
        %v5068 = vunpack.c.l.b16 %v5050
        %v5069 = vpack.c.b16 %v5068, %v5067
        %v5087 = vunpack.c.l.b16 %v5051
        %v5088 = vunpack.c.l.b16 %v5052
        %v5089 = vunpack.c.l.b16 %v5053
        %v5090 = vunpack.c.l.b16 %v5054
        %v5091 = vunpack.c.l.b16 %v5055
        %v5092 = vunpack.c.l.b16 %v5056
        %v5093 = vunpack.c.l.b16 %v5057
        %v5094 = vunpack.c.l.b16 %v5058
        %v5095 = vunpack.c.l.b16 %v5059
        %v5096 = vunpack.c.l.b16 %v5060
        %v5097 = vunpack.c.l.b16 %v5061
        %v5098 = vunpack.c.l.b16 %v5062
        %v5099 = vunpack.c.l.b16 %v5063
        %v5100 = vunpack.c.l.b16 %v5064
        %v5101 = vunpack.c.l.b16 %v5065
        %v5102 = vunpack.c.l.b16 %v5066
        %v5103 = vpack.c.b16 %v5088, %v5087
        %v5104 = vpack.c.b16 %v5090, %v5089
        %v5105 = vpack.c.b16 %v5092, %v5091
        %v5106 = vpack.c.b16 %v5094, %v5093
        %v5107 = vpack.c.b16 %v5096, %v5095
        %v5108 = vpack.c.b16 %v5098, %v5097
        %v5109 = vpack.c.b16 %v5100, %v5099
        %v5110 = vpack.c.b16 %v5102, %v5101
        %5119 = vmatprep.subr.bf16.mxu0 0
        %5120 = vmatpush1.bf16.msra.mxu0 %v5103
        %5121 = vmatprep.subr.bf16.mxu0 0
        %5122 = vmatpush1.bf16.msra.mxu0 %v5104
        %5123 = vmatprep.subr.bf16.mxu0 0
        %5124 = vmatpush1.bf16.msra.mxu0 %v5105
        %5125 = vmatprep.subr.bf16.mxu0 0
        %5126 = vmatpush1.bf16.msra.mxu0 %v5106
        %5127 = vmatprep.subr.bf16.mxu0 0
        %5128 = vmatpush1.bf16.msra.mxu0 %v5107
        %5129 = vmatprep.subr.bf16.mxu0 0
        %5130 = vmatpush1.bf16.msra.mxu0 %v5108
        %5131 = vmatprep.subr.bf16.mxu0 0
        %5132 = vmatpush1.bf16.msra.mxu0 %v5109
        %5133 = vmatprep.subr.bf16.mxu0 0
        %5134 = vmatpush1.bf16.msra.mxu0 %v5110
        %5135 = vmatprep.subr.bf16.mxu0 0
        %5136 = vmatpush1.bf16.msra.mxu0 0
        %5137 = vmatprep.subr.bf16.mxu0 0
        %5138 = vmatpush1.bf16.msra.mxu0 0
        %5139 = vmatprep.subr.bf16.mxu0 0
        %5140 = vmatpush1.bf16.msra.mxu0 0
        %5141 = vmatprep.subr.bf16.mxu0 0
        %5142 = vmatpush1.bf16.msra.mxu0 0
        %5143 = vmatprep.subr.bf16.mxu0 0
        %5144 = vmatpush1.bf16.msra.mxu0 0
        %5145 = vmatprep.subr.bf16.mxu0 0
        %5146 = vmatpush1.bf16.msra.mxu0 0
        %5147 = vmatprep.subr.bf16.mxu0 0
        %5148 = vmatpush1.bf16.msra.mxu0 0
        %5149 = vmatprep.subr.bf16.mxu0 0
        %5150 = vmatpush1.bf16.msra.mxu0 0
        %5151 = vmatprep.mubr.bf16.mxu0 0
        %5152 = vmatmul.mubr.bf16.gmra.mrb[0].mxu0 %v4675
        %v5153 = vpop.f32.mrb[0].mxu0
        %v5154 = vadd.f32 0.0, %v5153
        %v5155 = vpop.f32.mrb[0].mxu0
        %v5156 = vpop.f32.mrb[0].mxu0
        %v5157 = vadd.f32 0.0, %v5156
        %v5158 = vpop.f32.mrb[0].mxu0
        %5159 = vmatprep.mubr.bf16.mxu0 0
        %5160 = vmatmul.mubr.bf16.gmra.mrb[0].mxu0 %v4676
        %v5161 = vpop.f32.mrb[0].mxu0
        %v5162 = vadd.f32 0.0, %v5161
        %v5163 = vpop.f32.mrb[0].mxu0
        %v5164 = vpop.f32.mrb[0].mxu0
        %v5165 = vadd.f32 0.0, %v5164
        %v5166 = vpop.f32.mrb[0].mxu0
        %5167 = vmatprep.mubr.bf16.mxu0 0
        %5168 = vmatmul.mubr.bf16.gmra.mrb[0].mxu0 %v4677
        %v5169 = vpop.f32.mrb[0].mxu0
        %v5170 = vadd.f32 0.0, %v5169
        %v5171 = vpop.f32.mrb[0].mxu0
        %v5172 = vpop.f32.mrb[0].mxu0
        %v5173 = vadd.f32 0.0, %v5172
        %v5174 = vpop.f32.mrb[0].mxu0
        %5175 = vmatprep.mubr.bf16.mxu0 0
        %5176 = vmatmul.mubr.bf16.gmra.mrb[0].mxu0 %v4678
        %v5177 = vpop.f32.mrb[0].mxu0
        %v5178 = vadd.f32 0.0, %v5177
        %v5179 = vpop.f32.mrb[0].mxu0
        %v5180 = vpop.f32.mrb[0].mxu0
        %v5181 = vadd.f32 0.0, %v5180
        %v5182 = vpop.f32.mrb[0].mxu0
        %5183 = vmatprep.mubr.bf16.mxu0 0
        %5184 = vmatmul.mubr.bf16.gmra.mrb[0].mxu0 %v4679
        %v5185 = vpop.f32.mrb[0].mxu0
        %v5186 = vadd.f32 0.0, %v5185
        %v5187 = vpop.f32.mrb[0].mxu0
        %v5188 = vpop.f32.mrb[0].mxu0
        %v5189 = vadd.f32 0.0, %v5188
        %v5190 = vpop.f32.mrb[0].mxu0
        %5191 = vmatprep.mubr.bf16.mxu0 0
        %5192 = vmatmul.mubr.bf16.gmra.mrb[0].mxu0 %v4680
        %v5193 = vpop.f32.mrb[0].mxu0
        %v5194 = vadd.f32 0.0, %v5193
        %v5195 = vpop.f32.mrb[0].mxu0
        %v5196 = vpop.f32.mrb[0].mxu0
        %v5197 = vadd.f32 0.0, %v5196
        %v5198 = vpop.f32.mrb[0].mxu0
        %5199 = vmatprep.mubr.bf16.mxu0 0
        %5200 = vmatmul.mubr.bf16.gmra.mrb[0].mxu0 %v4878
        %v5201 = vpop.f32.mrb[0].mxu0
        %v5202 = vadd.f32 0.0, %v5201
        %v5203 = vpop.f32.mrb[0].mxu0
        %v5204 = vpop.f32.mrb[0].mxu0
        %v5205 = vadd.f32 0.0, %v5204
        %v5206 = vpop.f32.mrb[0].mxu0
        %5207 = vmatprep.mubr.bf16.mxu0 0
        %5208 = vmatmul.mubr.bf16.gmra.mrb[0].mxu0 %v5069
        %v5209 = vpop.f32.mrb[0].mxu0
        %v5210 = vadd.f32 0.0, %v5209
        %v5211 = vpop.f32.mrb[0].mxu0
        %v5212 = vpop.f32.mrb[0].mxu0
        %v5213 = vadd.f32 0.0, %v5212
        %v5214 = vpop.f32.mrb[0].mxu0
        %5215 = vdwg.mxu0
        %v5216 = vadd.f32 %v5025, %v5154
        %v5217 = vadd.f32 %v5026, %v5157
        %v5218 = vadd.f32 %v5027, %v5162
        %v5219 = vadd.f32 %v5028, %v5165
        %v5220 = vadd.f32 %v5029, %v5170
        %v5221 = vadd.f32 %v5030, %v5173
        %v5222 = vadd.f32 %v5031, %v5178
        %v5223 = vadd.f32 %v5032, %v5181
        %v5224 = vadd.f32 %v5033, %v5186
        %v5225 = vadd.f32 %v5034, %v5189
        %v5226 = vadd.f32 %v5035, %v5194
        %v5227 = vadd.f32 %v5036, %v5197
        %v5228 = vadd.f32 %v5037, %v5202
        %v5229 = vadd.f32 %v5038, %v5205
        %v5230 = vadd.f32 %v5039, %v5210
        %v5231 = vadd.f32 %v5040, %v5213
        %v5232 = vmul.f32 %v5216, %v2865
        %v5233 = vmul.f32 %v5217, %v2865
        %v5234 = vmul.f32 %v5218, %v2865
        %v5235 = vmul.f32 %v5219, %v2865
        %v5236 = vmul.f32 %v5220, %v2865
        %v5237 = vmul.f32 %v5221, %v2865
        %v5238 = vmul.f32 %v5222, %v2865
        %v5239 = vmul.f32 %v5223, %v2865
        %v5240 = vmul.f32 %v5224, %v2865
        %v5241 = vmul.f32 %v5225, %v2865
        %v5242 = vmul.f32 %v5226, %v2865
        %v5243 = vmul.f32 %v5227, %v2865
        %v5244 = vmul.f32 %v5228, %v2865
        %v5245 = vmul.f32 %v5229, %v2865
        %v5246 = vmul.f32 %v5230, %v2865
        %v5247 = vmul.f32 %v5231, %v2865
        %v5248 = vadd.f32 %v5232, %v2887
        %v5249 = vadd.f32 %v5233, %v2887
        %v5250 = vadd.f32 %v5234, %v2887
        %v5251 = vadd.f32 %v5235, %v2887
        %v5252 = vadd.f32 %v5236, %v2887
        %v5253 = vadd.f32 %v5237, %v2887
        %v5254 = vadd.f32 %v5238, %v2887
        %v5255 = vadd.f32 %v5239, %v2887
        %v5256 = vadd.f32 %v5240, %v2887
        %v5257 = vadd.f32 %v5241, %v2887
        %v5258 = vadd.f32 %v5242, %v2887
        %v5259 = vadd.f32 %v5243, %v2887
        %v5260 = vadd.f32 %v5244, %v2887
        %v5261 = vadd.f32 %v5245, %v2887
        %v5262 = vadd.f32 %v5246, %v2887
        %v5263 = vadd.f32 %v5247, %v2887
        %v5264 = vmax.f32 %v5248, 0.0
        %v5265 = vmax.f32 %v5249, 0.0
        %v5266 = vmax.f32 %v5250, 0.0
        %v5267 = vmax.f32 %v5251, 0.0
        %v5268 = vmax.f32 %v5252, 0.0
        %v5269 = vmax.f32 %v5253, 0.0
        %v5270 = vmax.f32 %v5254, 0.0
        %v5271 = vmax.f32 %v5255, 0.0
        %v5272 = vmax.f32 %v5256, 0.0
        %v5273 = vmax.f32 %v5257, 0.0
        %v5274 = vmax.f32 %v5258, 0.0
        %v5275 = vmax.f32 %v5259, 0.0
        %v5276 = vmax.f32 %v5260, 0.0
        %v5277 = vmax.f32 %v5261, 0.0
        %v5278 = vmax.f32 %v5262, 0.0
        %v5279 = vmax.f32 %v5263, 0.0
        %v5280 = vpack.c.bf16 %v5265, %v5264
        %v5281 = vpack.c.bf16 %v5267, %v5266
        %v5282 = vpack.c.bf16 %v5269, %v5268
        %v5283 = vpack.c.bf16 %v5271, %v5270
        %v5284 = vpack.c.bf16 %v5273, %v5272
        %v5285 = vpack.c.bf16 %v5275, %v5274
        %v5286 = vpack.c.bf16 %v5277, %v5276
        %v5287 = vpack.c.bf16 %v5279, %v5278
        %v5289 = vshrl.u32 %v5280, 16
        %v5291 = vrot.slane %v5289, 7
        %v5292 = vshll.u32 %v5280, 16
        %v5294 = vor.u32 %v5291, %v5292
        %v5296 = vshrl.u32 %v5281, 16
        %v5298 = vrot.slane %v5296, 7
        %v5299 = vshll.u32 %v5281, 16
        %v5301 = vor.u32 %v5298, %v5299
        %v5303 = vshrl.u32 %v5282, 16
        %v5305 = vrot.slane %v5303, 7
        %v5306 = vshll.u32 %v5282, 16
        %v5308 = vor.u32 %v5305, %v5306
        %v5310 = vshrl.u32 %v5283, 16
        %v5312 = vrot.slane %v5310, 7
        %v5313 = vshll.u32 %v5283, 16
        %v5315 = vor.u32 %v5312, %v5313
        %v5317 = vshrl.u32 %v5284, 16
        %v5319 = vrot.slane %v5317, 7
        %v5320 = vshll.u32 %v5284, 16
        %v5322 = vor.u32 %v5319, %v5320
        %v5324 = vshrl.u32 %v5285, 16
        %v5326 = vrot.slane %v5324, 7
        %v5327 = vshll.u32 %v5285, 16
        %v5329 = vor.u32 %v5326, %v5327
        %v5331 = vshrl.u32 %v5286, 16
        %v5333 = vrot.slane %v5331, 7
        %v5334 = vshll.u32 %v5286, 16
        %v5336 = vor.u32 %v5333, %v5334
        %v5338 = vshrl.u32 %v5287, 16
        %v5340 = vrot.slane %v5338, 7
        %v5341 = vshll.u32 %v5287, 16
        %v5343 = vor.u32 %v5340, %v5341
        %v5360 = vsel %vm486, 0, %v5294
        %v5361 = vsel %vm486, 0, %v5301
        %v5362 = vsel %vm486, 0, %v5308
        %v5363 = vsel %vm486, 0, %v5315
        %v5364 = vsel %vm486, 0, %v5322
        %v5365 = vsel %vm486, 0, %v5329
        %v5366 = vsel %vm486, 0, %v5336
        %v5367 = vsel %vm486, 0, %v5343
        %v5368 = vsel %vm486, %v5291, 0
        %v5369 = vsel %vm486, %v5298, 0
        %v5370 = vsel %vm486, %v5305, 0
        %v5371 = vsel %vm486, %v5312, 0
        %v5372 = vsel %vm486, %v5319, 0
        %v5373 = vsel %vm486, %v5326, 0
        %v5374 = vsel %vm486, %v5333, 0
        %v5375 = vsel %vm486, %v5340, 0
        %v5392 = vunpack.c.l.b16 %v5360
        %v5393 = vunpack.c.h.b16 %v5360
        %v5394 = vunpack.c.l.b16 %v5368
        %v5395 = vunpack.c.l.b16 %v5361
        %v5396 = vunpack.c.h.b16 %v5361
        %v5397 = vunpack.c.l.b16 %v5369
        %v5398 = vunpack.c.l.b16 %v5362
        %v5399 = vunpack.c.h.b16 %v5362
        %v5400 = vunpack.c.l.b16 %v5370
        %v5401 = vunpack.c.l.b16 %v5363
        %v5402 = vunpack.c.h.b16 %v5363
        %v5403 = vunpack.c.l.b16 %v5371
        %v5404 = vunpack.c.l.b16 %v5364
        %v5405 = vunpack.c.h.b16 %v5364
        %v5406 = vunpack.c.l.b16 %v5372
        %v5407 = vunpack.c.l.b16 %v5365
        %v5408 = vunpack.c.h.b16 %v5365
        %v5409 = vunpack.c.l.b16 %v5373
        %v5410 = vunpack.c.l.b16 %v5366
        %v5411 = vunpack.c.h.b16 %v5366
        %v5412 = vunpack.c.l.b16 %v5374
        %v5413 = vunpack.c.l.b16 %v5367
        %v5414 = vunpack.c.h.b16 %v5367
        %v5415 = vunpack.c.l.b16 %v5375
        %v5416 = vpack.c.b16 %v5392, %v5392
        %v5417 = vpack.c.b16 %v5393, %v5393
        %v5418 = vpack.c.b16 %v5394, %v5394
        %v5419 = vpack.c.b16 %v5395, %v5395
        %v5420 = vpack.c.b16 %v5396, %v5396
        %v5421 = vpack.c.b16 %v5397, %v5397
        %v5422 = vpack.c.b16 %v5398, %v5398
        %v5423 = vpack.c.b16 %v5399, %v5399
        %v5424 = vpack.c.b16 %v5400, %v5400
        %v5425 = vpack.c.b16 %v5401, %v5401
        %v5426 = vpack.c.b16 %v5402, %v5402
        %v5427 = vpack.c.b16 %v5403, %v5403
        %v5428 = vpack.c.b16 %v5404, %v5404
        %v5429 = vpack.c.b16 %v5405, %v5405
        %v5430 = vpack.c.b16 %v5406, %v5406
        %v5431 = vpack.c.b16 %v5407, %v5407
        %v5432 = vpack.c.b16 %v5408, %v5408
        %v5433 = vpack.c.b16 %v5409, %v5409
        %v5434 = vpack.c.b16 %v5410, %v5410
        %v5435 = vpack.c.b16 %v5411, %v5411
        %v5436 = vpack.c.b16 %v5412, %v5412
        %v5437 = vpack.c.b16 %v5413, %v5413
        %v5438 = vpack.c.b16 %v5414, %v5414
        %v5439 = vpack.c.b16 %v5415, %v5415
        %s5464 = scalar_lea.vmem [#allocation3], 108
        %5465 = vst [vmem:[%s5464] sm:$0xf] %v5416
        %5466 = vst [vmem:[%s5464 + $0x4] sm:$0xf] %v5417
        %5467 = vst [vmem:[%s5464 + $0x8] sm:$0x1] %v5418
        %5468 = vst [vmem:[%s5464 + $0xc] sm:$0xf] %v5419
        %5469 = vst [vmem:[%s5464 + $0x10] sm:$0xf] %v5420
        %5470 = vst [vmem:[%s5464 + $0x14] sm:$0x1] %v5421
        %5471 = vst [vmem:[%s5464 + $0x18] sm:$0xf] %v5422
        %5472 = vst [vmem:[%s5464 + $0x1c] sm:$0xf] %v5423
        %5473 = vst [vmem:[%s5464 + $0x20] sm:$0x1] %v5424
        %5474 = vst [vmem:[%s5464 + $0x24] sm:$0xf] %v5425
        %5475 = vst [vmem:[%s5464 + $0x28] sm:$0xf] %v5426
        %5476 = vst [vmem:[%s5464 + $0x2c] sm:$0x1] %v5427
        %5477 = vst [vmem:[%s5464 + $0x30] sm:$0xf] %v5428
        %5478 = vst [vmem:[%s5464 + $0x34] sm:$0xf] %v5429
        %5479 = vst [vmem:[%s5464 + $0x38] sm:$0x1] %v5430
        %5480 = vst [vmem:[%s5464 + $0x3c] sm:$0xf] %v5431
        %5481 = vst [vmem:[%s5464 + $0x40] sm:$0xf] %v5432
        %5482 = vst [vmem:[%s5464 + $0x44] sm:$0x1] %v5433
        %5483 = vst [vmem:[%s5464 + $0x48] sm:$0xf] %v5434
        %5484 = vst [vmem:[%s5464 + $0x4c] sm:$0xf] %v5435
        %5485 = vst [vmem:[%s5464 + $0x50] sm:$0x1] %v5436
        %5486 = vst [vmem:[%s5464 + $0x54] sm:$0xf] %v5437
        %5487 = vst [vmem:[%s5464 + $0x58] sm:$0xf] %v5438
        %5488 = vst [vmem:[%s5464 + $0x5c] sm:$0x1] %v5439
        %v5489 = vld [vmem:[%s5] sm:$0x1]
        %v5490 = vld [vmem:[%s6] sm:$0x1]
        %v5491 = vld [vmem:[#allocation3] sm:$0xf]
        %v5492 = vld [vmem:[#allocation3 + $0x4] sm:$0xf]
        %v5493 = vld [vmem:[#allocation3 + $0xc] sm:$0xf]
        %v5494 = vld [vmem:[#allocation3 + $0x10] sm:$0xf]
        %v5495 = vld [vmem:[#allocation3 + $0x18] sm:$0xf]
        %v5496 = vld [vmem:[#allocation3 + $0x1c] sm:$0xf]
        %v5497 = vld [vmem:[#allocation3 + $0x24] sm:$0xf]
        %v5498 = vld [vmem:[#allocation3 + $0x28] sm:$0xf]
        %v5499 = vld [vmem:[#allocation3 + $0x30] sm:$0xf]
        %v5500 = vld [vmem:[#allocation3 + $0x34] sm:$0xf]
        %v5501 = vld [vmem:[#allocation3 + $0x3c] sm:$0xf]
        %v5502 = vld [vmem:[#allocation3 + $0x40] sm:$0xf]
        %v5503 = vld [vmem:[#allocation3 + $0x48] sm:$0xf]
        %v5504 = vld [vmem:[#allocation3 + $0x4c] sm:$0xf]
        %v5505 = vld [vmem:[#allocation3 + $0x54] sm:$0xf]
        %v5506 = vld [vmem:[#allocation3 + $0x58] sm:$0xf]
        %v5507 = vld [vmem:[#allocation3 + $0x60] sm:$0xf]
        %v5508 = vld [vmem:[#allocation3 + $0x64] sm:$0xf]
        %v5509 = vld [vmem:[#allocation3 + $0x6c] sm:$0xf]
        %v5510 = vld [vmem:[#allocation3 + $0x70] sm:$0xf]
        %v5511 = vld [vmem:[%s4] sm:$0xf]
        %v5512 = vld [vmem:[%s4 + $0x4] sm:$0xf]
        %v5513 = vld [vmem:[%s4 + $0x8] sm:$0xf]
        %v5514 = vld [vmem:[%s4 + $0xc] sm:$0xf]
        %v5515 = vld [vmem:[%s4 + $0x10] sm:$0xf]
        %v5516 = vld [vmem:[%s4 + $0x14] sm:$0xf]
        %v5517 = vld [vmem:[%s4 + $0x18] sm:$0xf]
        %v5518 = vld [vmem:[%s4 + $0x1c] sm:$0xf]
        %v5519 = vld [vmem:[%s4 + $0x20] sm:$0xf]
        %v5520 = vld [vmem:[%s4 + $0x24] sm:$0xf]
        %v5521 = vld [vmem:[%s4 + $0x28] sm:$0xf]
        %v5522 = vld [vmem:[%s4 + $0x2c] sm:$0xf]
        %v5523 = vld [vmem:[%s4 + $0x30] sm:$0xf]
        %v5524 = vld [vmem:[%s4 + $0x34] sm:$0xf]
        %v5525 = vld [vmem:[%s4 + $0x38] sm:$0xf]
        %v5526 = vld [vmem:[%s4 + $0x3c] sm:$0xf]
        %s5527 = scalar_lea.vmem %s4, 192
        %v5528 = vld [vmem:[%s5527] sm:$0xf]
        %v5529 = vld [vmem:[%s5527 + $0x4] sm:$0xf]
        %v5530 = vld [vmem:[%s5527 + $0x8] sm:$0xf]
        %v5531 = vld [vmem:[%s5527 + $0xc] sm:$0xf]
        %v5532 = vld [vmem:[%s5527 + $0x10] sm:$0xf]
        %v5533 = vld [vmem:[%s5527 + $0x14] sm:$0xf]
        %v5534 = vld [vmem:[%s5527 + $0x18] sm:$0xf]
        %v5535 = vld [vmem:[%s5527 + $0x1c] sm:$0xf]
        %v5536 = vld [vmem:[%s5527 + $0x20] sm:$0xf]
        %v5537 = vld [vmem:[%s5527 + $0x24] sm:$0xf]
        %v5538 = vld [vmem:[%s5527 + $0x28] sm:$0xf]
        %v5539 = vld [vmem:[%s5527 + $0x2c] sm:$0xf]
        %v5540 = vld [vmem:[%s5527 + $0x30] sm:$0xf]
        %v5541 = vld [vmem:[%s5527 + $0x34] sm:$0xf]
        %v5542 = vld [vmem:[%s5527 + $0x38] sm:$0xf]
        %v5543 = vld [vmem:[%s5527 + $0x3c] sm:$0xf]
        %v5560 = vunpack.c.l.b16 %v5493
        %v5561 = vunpack.c.l.b16 %v5494
        %v5562 = vunpack.c.l.b16 %v5495
        %v5563 = vunpack.c.l.b16 %v5496
        %v5564 = vunpack.c.l.b16 %v5497
        %v5565 = vunpack.c.l.b16 %v5498
        %v5566 = vunpack.c.l.b16 %v5499
        %v5567 = vunpack.c.l.b16 %v5500
        %v5568 = vunpack.c.l.b16 %v5501
        %v5569 = vunpack.c.l.b16 %v5502
        %v5570 = vunpack.c.l.b16 %v5503
        %v5571 = vunpack.c.l.b16 %v5504
        %v5572 = vunpack.c.l.b16 %v5505
        %v5573 = vunpack.c.l.b16 %v5506
        %v5574 = vunpack.c.l.b16 %v5507
        %v5575 = vunpack.c.l.b16 %v5508
        %v5576 = vpack.c.b16 %v5561, %v5560
        %v5577 = vpack.c.b16 %v5563, %v5562
        %v5578 = vpack.c.b16 %v5565, %v5564
        %v5579 = vpack.c.b16 %v5567, %v5566
        %v5580 = vpack.c.b16 %v5569, %v5568
        %v5581 = vpack.c.b16 %v5571, %v5570
        %v5582 = vpack.c.b16 %v5573, %v5572
        %v5583 = vpack.c.b16 %v5575, %v5574
        %v5608 = vunpack.c.l.b16 %v5528
        %v5609 = vunpack.c.l.b16 %v5529
        %v5610 = vunpack.c.l.b16 %v5530
        %v5611 = vunpack.c.l.b16 %v5531
        %v5612 = vunpack.c.l.b16 %v5532
        %v5613 = vunpack.c.l.b16 %v5533
        %v5614 = vunpack.c.l.b16 %v5534
        %v5615 = vunpack.c.l.b16 %v5535
        %v5616 = vunpack.c.l.b16 %v5536
        %v5617 = vunpack.c.l.b16 %v5537
        %v5618 = vunpack.c.l.b16 %v5538
        %v5619 = vunpack.c.l.b16 %v5539
        %v5620 = vunpack.c.l.b16 %v5540
        %v5621 = vunpack.c.l.b16 %v5541
        %v5622 = vunpack.c.l.b16 %v5542
        %v5623 = vunpack.c.l.b16 %v5543
        %v5624 = vpack.c.b16 %v5609, %v5608
        %v5625 = vpack.c.b16 %v5611, %v5610
        %v5626 = vpack.c.b16 %v5613, %v5612
        %v5627 = vpack.c.b16 %v5615, %v5614
        %v5628 = vpack.c.b16 %v5617, %v5616
        %v5629 = vpack.c.b16 %v5619, %v5618
        %v5630 = vpack.c.b16 %v5621, %v5620
        %v5631 = vpack.c.b16 %v5623, %v5622
        %5640 = vmatprep.subr.bf16.mxu0 0
        %5641 = vmatpush1.bf16.msra.mxu0 %v5624
        %5642 = vmatprep.subr.bf16.mxu0 0
        %5643 = vmatpush1.bf16.msra.mxu0 %v5625
        %5644 = vmatprep.subr.bf16.mxu0 0
        %5645 = vmatpush1.bf16.msra.mxu0 %v5626
        %5646 = vmatprep.subr.bf16.mxu0 0
        %5647 = vmatpush1.bf16.msra.mxu0 %v5627
        %5648 = vmatprep.subr.bf16.mxu0 0
        %5649 = vmatpush1.bf16.msra.mxu0 %v5628
        %5650 = vmatprep.subr.bf16.mxu0 0
        %5651 = vmatpush1.bf16.msra.mxu0 %v5629
        %5652 = vmatprep.subr.bf16.mxu0 0
        %5653 = vmatpush1.bf16.msra.mxu0 %v5630
        %5654 = vmatprep.subr.bf16.mxu0 0
        %5655 = vmatpush1.bf16.msra.mxu0 %v5631
        %5656 = vmatprep.subr.bf16.mxu0 0
        %5657 = vmatpush1.bf16.msra.mxu0 0
        %5658 = vmatprep.subr.bf16.mxu0 0
        %5659 = vmatpush1.bf16.msra.mxu0 0
        %5660 = vmatprep.subr.bf16.mxu0 0
        %5661 = vmatpush1.bf16.msra.mxu0 0
        %5662 = vmatprep.subr.bf16.mxu0 0
        %5663 = vmatpush1.bf16.msra.mxu0 0
        %5664 = vmatprep.subr.bf16.mxu0 0
        %5665 = vmatpush1.bf16.msra.mxu0 0
        %5666 = vmatprep.subr.bf16.mxu0 0
        %5667 = vmatpush1.bf16.msra.mxu0 0
        %5668 = vmatprep.subr.bf16.mxu0 0
        %5669 = vmatpush1.bf16.msra.mxu0 0
        %5670 = vmatprep.subr.bf16.mxu0 0
        %5671 = vmatpush1.bf16.msra.mxu0 0
        %5672 = vmatprep.mubr.bf16.mxu0 0
        %5673 = vmatmul.mubr.bf16.gmra.mrb[0].mxu0 %v5576
        %v5674 = vpop.f32.mrb[0].mxu0
        %v5675 = vadd.f32 0.0, %v5674
        %v5676 = vpop.f32.mrb[0].mxu0
        %v5677 = vpop.f32.mrb[0].mxu0
        %v5678 = vadd.f32 0.0, %v5677
        %v5679 = vpop.f32.mrb[0].mxu0
        %5680 = vmatprep.mubr.bf16.mxu0 0
        %5681 = vmatmul.mubr.bf16.gmra.mrb[0].mxu0 %v5577
        %v5682 = vpop.f32.mrb[0].mxu0
        %v5683 = vadd.f32 0.0, %v5682
        %v5684 = vpop.f32.mrb[0].mxu0
        %v5685 = vpop.f32.mrb[0].mxu0
        %v5686 = vadd.f32 0.0, %v5685
        %v5687 = vpop.f32.mrb[0].mxu0
        %5688 = vmatprep.mubr.bf16.mxu0 0
        %5689 = vmatmul.mubr.bf16.gmra.mrb[0].mxu0 %v5578
        %v5690 = vpop.f32.mrb[0].mxu0
        %v5691 = vadd.f32 0.0, %v5690
        %v5692 = vpop.f32.mrb[0].mxu0
        %v5693 = vpop.f32.mrb[0].mxu0
        %v5694 = vadd.f32 0.0, %v5693
        %v5695 = vpop.f32.mrb[0].mxu0
        %5696 = vmatprep.mubr.bf16.mxu0 0
        %5697 = vmatmul.mubr.bf16.gmra.mrb[0].mxu0 %v5579
        %v5698 = vpop.f32.mrb[0].mxu0
        %v5699 = vadd.f32 0.0, %v5698
        %v5700 = vpop.f32.mrb[0].mxu0
        %v5701 = vpop.f32.mrb[0].mxu0
        %v5702 = vadd.f32 0.0, %v5701
        %v5703 = vpop.f32.mrb[0].mxu0
        %5704 = vmatprep.mubr.bf16.mxu0 0
        %5705 = vmatmul.mubr.bf16.gmra.mrb[0].mxu0 %v5580
        %v5706 = vpop.f32.mrb[0].mxu0
        %v5707 = vadd.f32 0.0, %v5706
        %v5708 = vpop.f32.mrb[0].mxu0
        %v5709 = vpop.f32.mrb[0].mxu0
        %v5710 = vadd.f32 0.0, %v5709
        %v5711 = vpop.f32.mrb[0].mxu0
        %5712 = vmatprep.mubr.bf16.mxu0 0
        %5713 = vmatmul.mubr.bf16.gmra.mrb[0].mxu0 %v5581
        %v5714 = vpop.f32.mrb[0].mxu0
        %v5715 = vadd.f32 0.0, %v5714
        %v5716 = vpop.f32.mrb[0].mxu0
        %v5717 = vpop.f32.mrb[0].mxu0
        %v5718 = vadd.f32 0.0, %v5717
        %v5719 = vpop.f32.mrb[0].mxu0
        %5720 = vmatprep.mubr.bf16.mxu0 0
        %5721 = vmatmul.mubr.bf16.gmra.mrb[0].mxu0 %v5582
        %v5722 = vpop.f32.mrb[0].mxu0
        %v5723 = vadd.f32 0.0, %v5722
        %v5724 = vpop.f32.mrb[0].mxu0
        %v5725 = vpop.f32.mrb[0].mxu0
        %v5726 = vadd.f32 0.0, %v5725
        %v5727 = vpop.f32.mrb[0].mxu0
        %5728 = vmatprep.mubr.bf16.mxu0 0
        %5729 = vmatmul.mubr.bf16.gmra.mrb[0].mxu0 %v5583
        %v5730 = vpop.f32.mrb[0].mxu0
        %v5731 = vadd.f32 0.0, %v5730
        %v5732 = vpop.f32.mrb[0].mxu0
        %v5733 = vpop.f32.mrb[0].mxu0
        %v5734 = vadd.f32 0.0, %v5733
        %v5735 = vpop.f32.mrb[0].mxu0
        %5736 = vdwg.mxu0
        %v5739 = vunpack.c.l.b16 %v5491
        %v5740 = vunpack.c.l.b16 %v5492
        %v5741 = vpack.c.b16 %v5740, %v5739
        %v5759 = vunpack.c.l.b16 %v5511
        %v5760 = vunpack.c.l.b16 %v5512
        %v5761 = vunpack.c.l.b16 %v5513
        %v5762 = vunpack.c.l.b16 %v5514
        %v5763 = vunpack.c.l.b16 %v5515
        %v5764 = vunpack.c.l.b16 %v5516
        %v5765 = vunpack.c.l.b16 %v5517
        %v5766 = vunpack.c.l.b16 %v5518
        %v5767 = vunpack.c.l.b16 %v5519
        %v5768 = vunpack.c.l.b16 %v5520
        %v5769 = vunpack.c.l.b16 %v5521
        %v5770 = vunpack.c.l.b16 %v5522
        %v5771 = vunpack.c.l.b16 %v5523
        %v5772 = vunpack.c.l.b16 %v5524
        %v5773 = vunpack.c.l.b16 %v5525
        %v5774 = vunpack.c.l.b16 %v5526
        %v5775 = vpack.c.b16 %v5760, %v5759
        %v5776 = vpack.c.b16 %v5762, %v5761
        %v5777 = vpack.c.b16 %v5764, %v5763
        %v5778 = vpack.c.b16 %v5766, %v5765
        %v5779 = vpack.c.b16 %v5768, %v5767
        %v5780 = vpack.c.b16 %v5770, %v5769
        %v5781 = vpack.c.b16 %v5772, %v5771
        %v5782 = vpack.c.b16 %v5774, %v5773
        %5791 = vmatprep.subr.bf16.mxu0 0
        %5792 = vmatpush1.bf16.msra.mxu0 %v5775
        %5793 = vmatprep.subr.bf16.mxu0 0
        %5794 = vmatpush1.bf16.msra.mxu0 %v5776
        %5795 = vmatprep.subr.bf16.mxu0 0
        %5796 = vmatpush1.bf16.msra.mxu0 %v5777
        %5797 = vmatprep.subr.bf16.mxu0 0
        %5798 = vmatpush1.bf16.msra.mxu0 %v5778
        %5799 = vmatprep.subr.bf16.mxu0 0
        %5800 = vmatpush1.bf16.msra.mxu0 %v5779
        %5801 = vmatprep.subr.bf16.mxu0 0
        %5802 = vmatpush1.bf16.msra.mxu0 %v5780
        %5803 = vmatprep.subr.bf16.mxu0 0
        %5804 = vmatpush1.bf16.msra.mxu0 %v5781
        %5805 = vmatprep.subr.bf16.mxu0 0
        %5806 = vmatpush1.bf16.msra.mxu0 %v5782
        %5807 = vmatprep.subr.bf16.mxu0 0
        %5808 = vmatpush1.bf16.msra.mxu0 0
        %5809 = vmatprep.subr.bf16.mxu0 0
        %5810 = vmatpush1.bf16.msra.mxu0 0
        %5811 = vmatprep.subr.bf16.mxu0 0
        %5812 = vmatpush1.bf16.msra.mxu0 0
        %5813 = vmatprep.subr.bf16.mxu0 0
        %5814 = vmatpush1.bf16.msra.mxu0 0
        %5815 = vmatprep.subr.bf16.mxu0 0
        %5816 = vmatpush1.bf16.msra.mxu0 0
        %5817 = vmatprep.subr.bf16.mxu0 0
        %5818 = vmatpush1.bf16.msra.mxu0 0
        %5819 = vmatprep.subr.bf16.mxu0 0
        %5820 = vmatpush1.bf16.msra.mxu0 0
        %5821 = vmatprep.subr.bf16.mxu0 0
        %5822 = vmatpush1.bf16.msra.mxu0 0
        %5823 = vmatprep.mubr.bf16.mxu0 0
        %5824 = vmatmul.mubr.bf16.gmra.mrb[0].mxu0 %v5741
        %v5825 = vpop.f32.mrb[0].mxu0
        %v5826 = vadd.f32 %v5675, %v5825
        %v5827 = vpop.f32.mrb[0].mxu0
        %v5828 = vpop.f32.mrb[0].mxu0
        %v5829 = vadd.f32 %v5678, %v5828
        %v5830 = vpop.f32.mrb[0].mxu0
        %5831 = vmatprep.mubr.bf16.mxu0 0
        %5832 = vmatmul.mubr.bf16.gmra.mrb[0].mxu0 %v5576
        %v5833 = vpop.f32.mrb[0].mxu0
        %v5834 = vadd.f32 %v5683, %v5833
        %v5835 = vpop.f32.mrb[0].mxu0
        %v5836 = vpop.f32.mrb[0].mxu0
        %v5837 = vadd.f32 %v5686, %v5836
        %v5838 = vpop.f32.mrb[0].mxu0
        %5839 = vmatprep.mubr.bf16.mxu0 0
        %5840 = vmatmul.mubr.bf16.gmra.mrb[0].mxu0 %v5577
        %v5841 = vpop.f32.mrb[0].mxu0
        %v5842 = vadd.f32 %v5691, %v5841
        %v5843 = vpop.f32.mrb[0].mxu0
        %v5844 = vpop.f32.mrb[0].mxu0
        %v5845 = vadd.f32 %v5694, %v5844
        %v5846 = vpop.f32.mrb[0].mxu0
        %5847 = vmatprep.mubr.bf16.mxu0 0
        %5848 = vmatmul.mubr.bf16.gmra.mrb[0].mxu0 %v5578
        %v5849 = vpop.f32.mrb[0].mxu0
        %v5850 = vadd.f32 %v5699, %v5849
        %v5851 = vpop.f32.mrb[0].mxu0
        %v5852 = vpop.f32.mrb[0].mxu0
        %v5853 = vadd.f32 %v5702, %v5852
        %v5854 = vpop.f32.mrb[0].mxu0
        %5855 = vmatprep.mubr.bf16.mxu0 0
        %5856 = vmatmul.mubr.bf16.gmra.mrb[0].mxu0 %v5579
        %v5857 = vpop.f32.mrb[0].mxu0
        %v5858 = vadd.f32 %v5707, %v5857
        %v5859 = vpop.f32.mrb[0].mxu0
        %v5860 = vpop.f32.mrb[0].mxu0
        %v5861 = vadd.f32 %v5710, %v5860
        %v5862 = vpop.f32.mrb[0].mxu0
        %5863 = vmatprep.mubr.bf16.mxu0 0
        %5864 = vmatmul.mubr.bf16.gmra.mrb[0].mxu0 %v5580
        %v5865 = vpop.f32.mrb[0].mxu0
        %v5866 = vadd.f32 %v5715, %v5865
        %v5867 = vpop.f32.mrb[0].mxu0
        %v5868 = vpop.f32.mrb[0].mxu0
        %v5869 = vadd.f32 %v5718, %v5868
        %v5870 = vpop.f32.mrb[0].mxu0
        %5871 = vmatprep.mubr.bf16.mxu0 0
        %5872 = vmatmul.mubr.bf16.gmra.mrb[0].mxu0 %v5581
        %v5873 = vpop.f32.mrb[0].mxu0
        %v5874 = vadd.f32 %v5723, %v5873
        %v5875 = vpop.f32.mrb[0].mxu0
        %v5876 = vpop.f32.mrb[0].mxu0
        %v5877 = vadd.f32 %v5726, %v5876
        %v5878 = vpop.f32.mrb[0].mxu0
        %5879 = vmatprep.mubr.bf16.mxu0 0
        %5880 = vmatmul.mubr.bf16.gmra.mrb[0].mxu0 %v5582
        %v5881 = vpop.f32.mrb[0].mxu0
        %v5882 = vadd.f32 %v5731, %v5881
        %v5883 = vpop.f32.mrb[0].mxu0
        %v5884 = vpop.f32.mrb[0].mxu0
        %v5885 = vadd.f32 %v5734, %v5884
        %v5886 = vpop.f32.mrb[0].mxu0
        %5887 = vdwg.mxu0
        %s5888 = scalar_lea.vmem %s4, 384
        %v5889 = vld [vmem:[%s5888] sm:$0xf]
        %v5890 = vld [vmem:[%s5888 + $0x4] sm:$0xf]
        %v5891 = vld [vmem:[%s5888 + $0x8] sm:$0xf]
        %v5892 = vld [vmem:[%s5888 + $0xc] sm:$0xf]
        %v5893 = vld [vmem:[%s5888 + $0x10] sm:$0xf]
        %v5894 = vld [vmem:[%s5888 + $0x14] sm:$0xf]
        %v5895 = vld [vmem:[%s5888 + $0x18] sm:$0xf]
        %v5896 = vld [vmem:[%s5888 + $0x1c] sm:$0xf]
        %v5897 = vld [vmem:[%s5888 + $0x20] sm:$0xf]
        %v5898 = vld [vmem:[%s5888 + $0x24] sm:$0xf]
        %v5899 = vld [vmem:[%s5888 + $0x28] sm:$0xf]
        %v5900 = vld [vmem:[%s5888 + $0x2c] sm:$0xf]
        %v5901 = vld [vmem:[%s5888 + $0x30] sm:$0xf]
        %v5902 = vld [vmem:[%s5888 + $0x34] sm:$0xf]
        %v5903 = vld [vmem:[%s5888 + $0x38] sm:$0xf]
        %v5904 = vld [vmem:[%s5888 + $0x3c] sm:$0xf]
        %v5907 = vunpack.c.l.b16 %v5509
        %v5908 = vunpack.c.l.b16 %v5510
        %v5909 = vpack.c.b16 %v5908, %v5907
        %v5927 = vunpack.c.l.b16 %v5889
        %v5928 = vunpack.c.l.b16 %v5890
        %v5929 = vunpack.c.l.b16 %v5891
        %v5930 = vunpack.c.l.b16 %v5892
        %v5931 = vunpack.c.l.b16 %v5893
        %v5932 = vunpack.c.l.b16 %v5894
        %v5933 = vunpack.c.l.b16 %v5895
        %v5934 = vunpack.c.l.b16 %v5896
        %v5935 = vunpack.c.l.b16 %v5897
        %v5936 = vunpack.c.l.b16 %v5898
        %v5937 = vunpack.c.l.b16 %v5899
        %v5938 = vunpack.c.l.b16 %v5900
        %v5939 = vunpack.c.l.b16 %v5901
        %v5940 = vunpack.c.l.b16 %v5902
        %v5941 = vunpack.c.l.b16 %v5903
        %v5942 = vunpack.c.l.b16 %v5904
        %v5943 = vpack.c.b16 %v5928, %v5927
        %v5944 = vpack.c.b16 %v5930, %v5929
        %v5945 = vpack.c.b16 %v5932, %v5931
        %v5946 = vpack.c.b16 %v5934, %v5933
        %v5947 = vpack.c.b16 %v5936, %v5935
        %v5948 = vpack.c.b16 %v5938, %v5937
        %v5949 = vpack.c.b16 %v5940, %v5939
        %v5950 = vpack.c.b16 %v5942, %v5941
        %5959 = vmatprep.subr.bf16.mxu0 0
        %5960 = vmatpush1.bf16.msra.mxu0 %v5943
        %5961 = vmatprep.subr.bf16.mxu0 0
        %5962 = vmatpush1.bf16.msra.mxu0 %v5944
        %5963 = vmatprep.subr.bf16.mxu0 0
        %5964 = vmatpush1.bf16.msra.mxu0 %v5945
        %5965 = vmatprep.subr.bf16.mxu0 0
        %5966 = vmatpush1.bf16.msra.mxu0 %v5946
        %5967 = vmatprep.subr.bf16.mxu0 0
        %5968 = vmatpush1.bf16.msra.mxu0 %v5947
        %5969 = vmatprep.subr.bf16.mxu0 0
        %5970 = vmatpush1.bf16.msra.mxu0 %v5948
        %5971 = vmatprep.subr.bf16.mxu0 0
        %5972 = vmatpush1.bf16.msra.mxu0 %v5949
        %5973 = vmatprep.subr.bf16.mxu0 0
        %5974 = vmatpush1.bf16.msra.mxu0 %v5950
        %5975 = vmatprep.subr.bf16.mxu0 0
        %5976 = vmatpush1.bf16.msra.mxu0 0
        %5977 = vmatprep.subr.bf16.mxu0 0
        %5978 = vmatpush1.bf16.msra.mxu0 0
        %5979 = vmatprep.subr.bf16.mxu0 0
        %5980 = vmatpush1.bf16.msra.mxu0 0
        %5981 = vmatprep.subr.bf16.mxu0 0
        %5982 = vmatpush1.bf16.msra.mxu0 0
        %5983 = vmatprep.subr.bf16.mxu0 0
        %5984 = vmatpush1.bf16.msra.mxu0 0
        %5985 = vmatprep.subr.bf16.mxu0 0
        %5986 = vmatpush1.bf16.msra.mxu0 0
        %5987 = vmatprep.subr.bf16.mxu0 0
        %5988 = vmatpush1.bf16.msra.mxu0 0
        %5989 = vmatprep.subr.bf16.mxu0 0
        %5990 = vmatpush1.bf16.msra.mxu0 0
        %5991 = vmatprep.mubr.bf16.mxu0 0
        %5992 = vmatmul.mubr.bf16.gmra.mrb[0].mxu0 %v5577
        %v5993 = vpop.f32.mrb[0].mxu0
        %v5994 = vadd.f32 0.0, %v5993
        %v5995 = vpop.f32.mrb[0].mxu0
        %v5996 = vpop.f32.mrb[0].mxu0
        %v5997 = vadd.f32 0.0, %v5996
        %v5998 = vpop.f32.mrb[0].mxu0
        %5999 = vmatprep.mubr.bf16.mxu0 0
        %6000 = vmatmul.mubr.bf16.gmra.mrb[0].mxu0 %v5578
        %v6001 = vpop.f32.mrb[0].mxu0
        %v6002 = vadd.f32 0.0, %v6001
        %v6003 = vpop.f32.mrb[0].mxu0
        %v6004 = vpop.f32.mrb[0].mxu0
        %v6005 = vadd.f32 0.0, %v6004
        %v6006 = vpop.f32.mrb[0].mxu0
        %6007 = vmatprep.mubr.bf16.mxu0 0
        %6008 = vmatmul.mubr.bf16.gmra.mrb[0].mxu0 %v5579
        %v6009 = vpop.f32.mrb[0].mxu0
        %v6010 = vadd.f32 0.0, %v6009
        %v6011 = vpop.f32.mrb[0].mxu0
        %v6012 = vpop.f32.mrb[0].mxu0
        %v6013 = vadd.f32 0.0, %v6012
        %v6014 = vpop.f32.mrb[0].mxu0
        %6015 = vmatprep.mubr.bf16.mxu0 0
        %6016 = vmatmul.mubr.bf16.gmra.mrb[0].mxu0 %v5580
        %v6017 = vpop.f32.mrb[0].mxu0
        %v6018 = vadd.f32 0.0, %v6017
        %v6019 = vpop.f32.mrb[0].mxu0
        %v6020 = vpop.f32.mrb[0].mxu0
        %v6021 = vadd.f32 0.0, %v6020
        %v6022 = vpop.f32.mrb[0].mxu0
        %6023 = vmatprep.mubr.bf16.mxu0 0
        %6024 = vmatmul.mubr.bf16.gmra.mrb[0].mxu0 %v5581
        %v6025 = vpop.f32.mrb[0].mxu0
        %v6026 = vadd.f32 0.0, %v6025
        %v6027 = vpop.f32.mrb[0].mxu0
        %v6028 = vpop.f32.mrb[0].mxu0
        %v6029 = vadd.f32 0.0, %v6028
        %v6030 = vpop.f32.mrb[0].mxu0
        %6031 = vmatprep.mubr.bf16.mxu0 0
        %6032 = vmatmul.mubr.bf16.gmra.mrb[0].mxu0 %v5582
        %v6033 = vpop.f32.mrb[0].mxu0
        %v6034 = vadd.f32 0.0, %v6033
        %v6035 = vpop.f32.mrb[0].mxu0
        %v6036 = vpop.f32.mrb[0].mxu0
        %v6037 = vadd.f32 0.0, %v6036
        %v6038 = vpop.f32.mrb[0].mxu0
        %6039 = vmatprep.mubr.bf16.mxu0 0
        %6040 = vmatmul.mubr.bf16.gmra.mrb[0].mxu0 %v5583
        %v6041 = vpop.f32.mrb[0].mxu0
        %v6042 = vadd.f32 0.0, %v6041
        %v6043 = vpop.f32.mrb[0].mxu0
        %v6044 = vpop.f32.mrb[0].mxu0
        %v6045 = vadd.f32 0.0, %v6044
        %v6046 = vpop.f32.mrb[0].mxu0
        %6047 = vmatprep.mubr.bf16.mxu0 0
        %6048 = vmatmul.mubr.bf16.gmra.mrb[0].mxu0 %v5909
        %v6049 = vpop.f32.mrb[0].mxu0
        %v6050 = vadd.f32 0.0, %v6049
        %v6051 = vpop.f32.mrb[0].mxu0
        %v6052 = vpop.f32.mrb[0].mxu0
        %v6053 = vadd.f32 0.0, %v6052
        %v6054 = vpop.f32.mrb[0].mxu0
        %6055 = vdwg.mxu0
        %v6056 = vadd.f32 %v5826, %v5994
        %v6057 = vadd.f32 %v5829, %v5997
        %v6058 = vadd.f32 %v5834, %v6002
        %v6059 = vadd.f32 %v5837, %v6005
        %v6060 = vadd.f32 %v5842, %v6010
        %v6061 = vadd.f32 %v5845, %v6013
        %v6062 = vadd.f32 %v5850, %v6018
        %v6063 = vadd.f32 %v5853, %v6021
        %v6064 = vadd.f32 %v5858, %v6026
        %v6065 = vadd.f32 %v5861, %v6029
        %v6066 = vadd.f32 %v5866, %v6034
        %v6067 = vadd.f32 %v5869, %v6037
        %v6068 = vadd.f32 %v5874, %v6042
        %v6069 = vadd.f32 %v5877, %v6045
        %v6070 = vadd.f32 %v5882, %v6050
        %v6071 = vadd.f32 %v5885, %v6053
        %v6072 = vld [vmem:[#allocation3] sm:$0xf]
        %v6073 = vld [vmem:[#allocation3 + $0x4] sm:$0xf]
        %v6074 = vld [vmem:[#allocation3 + $0x8] sm:$0x1]
        %v6075 = vld [vmem:[#allocation3 + $0xc] sm:$0xf]
        %v6076 = vld [vmem:[#allocation3 + $0x10] sm:$0xf]
        %v6077 = vld [vmem:[#allocation3 + $0x14] sm:$0x1]
        %v6078 = vld [vmem:[#allocation3 + $0x18] sm:$0xf]
        %v6079 = vld [vmem:[#allocation3 + $0x1c] sm:$0xf]
        %v6080 = vld [vmem:[#allocation3 + $0x20] sm:$0x1]
        %v6081 = vld [vmem:[#allocation3 + $0x24] sm:$0xf]
        %v6082 = vld [vmem:[#allocation3 + $0x28] sm:$0xf]
        %v6083 = vld [vmem:[#allocation3 + $0x2c] sm:$0x1]
        %v6084 = vld [vmem:[#allocation3 + $0x30] sm:$0xf]
        %v6085 = vld [vmem:[#allocation3 + $0x34] sm:$0xf]
        %v6086 = vld [vmem:[#allocation3 + $0x38] sm:$0x1]
        %v6087 = vld [vmem:[#allocation3 + $0x3c] sm:$0xf]
        %v6088 = vld [vmem:[#allocation3 + $0x40] sm:$0xf]
        %v6089 = vld [vmem:[#allocation3 + $0x44] sm:$0x1]
        %v6090 = vld [vmem:[#allocation3 + $0x48] sm:$0xf]
        %v6091 = vld [vmem:[#allocation3 + $0x4c] sm:$0xf]
        %v6092 = vld [vmem:[#allocation3 + $0x50] sm:$0x1]
        %v6093 = vld [vmem:[#allocation3 + $0x54] sm:$0xf]
        %v6094 = vld [vmem:[#allocation3 + $0x58] sm:$0xf]
        %v6095 = vld [vmem:[#allocation3 + $0x5c] sm:$0x1]
        %v6096 = vld [vmem:[#allocation3 + $0x60] sm:$0xf]
        %v6097 = vld [vmem:[#allocation3 + $0x64] sm:$0xf]
        %v6098 = vld [vmem:[#allocation3 + $0x68] sm:$0x1]
        %v6099 = vld [vmem:[#allocation3 + $0x6c] sm:$0xf]
        %v6100 = vld [vmem:[#allocation3 + $0x70] sm:$0xf]
        %v6101 = vld [vmem:[#allocation3 + $0x74] sm:$0x1]
        %v6103 = vshrl.u32 %v6072, 16
        %v6105 = vrot.slane %v6103, 4
        %v6106 = vshll.u32 %v6072, 16
        %v6108 = vrot.slane %v6106, 5
        %v6109 = vor.u32 %v6105, %v6108
        %v6110 = vrot.slane %v6109, 4
        %v6112 = vshll.u32 %v6073, 16
        %v6114 = vrot.slane %v6112, 5
        %v6115 = vsel %vm1359, %v6110, %v6114
        %v6116 = vshrl.u32 %v6073, 16
        %v6118 = vrot.slane %v6116, 4
        %v6119 = vor.u32 %v6118, %v6114
        %v6120 = vrot.slane %v6119, 4
        %v6122 = vshll.u32 %v6074, 16
        %v6124 = vrot.slane %v6122, 5
        %v6125 = vsel %vm1359, %v6120, %v6124
        %v6127 = vshrl.u32 %v6075, 16
        %v6129 = vrot.slane %v6127, 4
        %v6130 = vshll.u32 %v6075, 16
        %v6132 = vrot.slane %v6130, 5
        %v6133 = vor.u32 %v6129, %v6132
        %v6134 = vrot.slane %v6133, 4
        %v6136 = vshll.u32 %v6076, 16
        %v6138 = vrot.slane %v6136, 5
        %v6139 = vsel %vm1359, %v6134, %v6138
        %v6140 = vshrl.u32 %v6076, 16
        %v6142 = vrot.slane %v6140, 4
        %v6143 = vor.u32 %v6142, %v6138
        %v6144 = vrot.slane %v6143, 4
        %v6146 = vshll.u32 %v6077, 16
        %v6148 = vrot.slane %v6146, 5
        %v6149 = vsel %vm1359, %v6144, %v6148
        %v6151 = vshrl.u32 %v6078, 16
        %v6153 = vrot.slane %v6151, 4
        %v6154 = vshll.u32 %v6078, 16
        %v6156 = vrot.slane %v6154, 5
        %v6157 = vor.u32 %v6153, %v6156
        %v6158 = vrot.slane %v6157, 4
        %v6160 = vshll.u32 %v6079, 16
        %v6162 = vrot.slane %v6160, 5
        %v6163 = vsel %vm1359, %v6158, %v6162
        %v6164 = vshrl.u32 %v6079, 16
        %v6166 = vrot.slane %v6164, 4
        %v6167 = vor.u32 %v6166, %v6162
        %v6168 = vrot.slane %v6167, 4
        %v6170 = vshll.u32 %v6080, 16
        %v6172 = vrot.slane %v6170, 5
        %v6173 = vsel %vm1359, %v6168, %v6172
        %v6175 = vshrl.u32 %v6081, 16
        %v6177 = vrot.slane %v6175, 4
        %v6178 = vshll.u32 %v6081, 16
        %v6180 = vrot.slane %v6178, 5
        %v6181 = vor.u32 %v6177, %v6180
        %v6182 = vrot.slane %v6181, 4
        %v6184 = vshll.u32 %v6082, 16
        %v6186 = vrot.slane %v6184, 5
        %v6187 = vsel %vm1359, %v6182, %v6186
        %v6188 = vshrl.u32 %v6082, 16
        %v6190 = vrot.slane %v6188, 4
        %v6191 = vor.u32 %v6190, %v6186
        %v6192 = vrot.slane %v6191, 4
        %v6194 = vshll.u32 %v6083, 16
        %v6196 = vrot.slane %v6194, 5
        %v6197 = vsel %vm1359, %v6192, %v6196
        %v6199 = vshrl.u32 %v6084, 16
        %v6201 = vrot.slane %v6199, 4
        %v6202 = vshll.u32 %v6084, 16
        %v6204 = vrot.slane %v6202, 5
        %v6205 = vor.u32 %v6201, %v6204
        %v6206 = vrot.slane %v6205, 4
        %v6208 = vshll.u32 %v6085, 16
        %v6210 = vrot.slane %v6208, 5
        %v6211 = vsel %vm1359, %v6206, %v6210
        %v6212 = vshrl.u32 %v6085, 16
        %v6214 = vrot.slane %v6212, 4
        %v6215 = vor.u32 %v6214, %v6210
        %v6216 = vrot.slane %v6215, 4
        %v6218 = vshll.u32 %v6086, 16
        %v6220 = vrot.slane %v6218, 5
        %v6221 = vsel %vm1359, %v6216, %v6220
        %v6223 = vshrl.u32 %v6087, 16
        %v6225 = vrot.slane %v6223, 4
        %v6226 = vshll.u32 %v6087, 16
        %v6228 = vrot.slane %v6226, 5
        %v6229 = vor.u32 %v6225, %v6228
        %v6230 = vrot.slane %v6229, 4
        %v6232 = vshll.u32 %v6088, 16
        %v6234 = vrot.slane %v6232, 5
        %v6235 = vsel %vm1359, %v6230, %v6234
        %v6236 = vshrl.u32 %v6088, 16
        %v6238 = vrot.slane %v6236, 4
        %v6239 = vor.u32 %v6238, %v6234
        %v6240 = vrot.slane %v6239, 4
        %v6242 = vshll.u32 %v6089, 16
        %v6244 = vrot.slane %v6242, 5
        %v6245 = vsel %vm1359, %v6240, %v6244
        %v6247 = vshrl.u32 %v6090, 16
        %v6249 = vrot.slane %v6247, 4
        %v6250 = vshll.u32 %v6090, 16
        %v6252 = vrot.slane %v6250, 5
        %v6253 = vor.u32 %v6249, %v6252
        %v6254 = vrot.slane %v6253, 4
        %v6256 = vshll.u32 %v6091, 16
        %v6258 = vrot.slane %v6256, 5
        %v6259 = vsel %vm1359, %v6254, %v6258
        %v6260 = vshrl.u32 %v6091, 16
        %v6262 = vrot.slane %v6260, 4
        %v6263 = vor.u32 %v6262, %v6258
        %v6264 = vrot.slane %v6263, 4
        %v6266 = vshll.u32 %v6092, 16
        %v6268 = vrot.slane %v6266, 5
        %v6269 = vsel %vm1359, %v6264, %v6268
        %v6271 = vshrl.u32 %v6093, 16
        %v6273 = vrot.slane %v6271, 4
        %v6274 = vshll.u32 %v6093, 16
        %v6276 = vrot.slane %v6274, 5
        %v6277 = vor.u32 %v6273, %v6276
        %v6278 = vrot.slane %v6277, 4
        %v6280 = vshll.u32 %v6094, 16
        %v6282 = vrot.slane %v6280, 5
        %v6283 = vsel %vm1359, %v6278, %v6282
        %v6284 = vshrl.u32 %v6094, 16
        %v6286 = vrot.slane %v6284, 4
        %v6287 = vor.u32 %v6286, %v6282
        %v6288 = vrot.slane %v6287, 4
        %v6290 = vshll.u32 %v6095, 16
        %v6292 = vrot.slane %v6290, 5
        %v6293 = vsel %vm1359, %v6288, %v6292
        %s6294 = scalar_lea.vmem %s4, 64
        %v6295 = vld [vmem:[%s6294] sm:$0xf]
        %v6296 = vld [vmem:[%s6294 + $0x4] sm:$0xf]
        %v6297 = vld [vmem:[%s6294 + $0x8] sm:$0xf]
        %v6298 = vld [vmem:[%s6294 + $0xc] sm:$0xf]
        %v6299 = vld [vmem:[%s6294 + $0x10] sm:$0xf]
        %v6300 = vld [vmem:[%s6294 + $0x14] sm:$0xf]
        %v6301 = vld [vmem:[%s6294 + $0x18] sm:$0xf]
        %v6302 = vld [vmem:[%s6294 + $0x1c] sm:$0xf]
        %v6303 = vld [vmem:[%s6294 + $0x20] sm:$0xf]
        %v6304 = vld [vmem:[%s6294 + $0x24] sm:$0xf]
        %v6305 = vld [vmem:[%s6294 + $0x28] sm:$0xf]
        %v6306 = vld [vmem:[%s6294 + $0x2c] sm:$0xf]
        %v6307 = vld [vmem:[%s6294 + $0x30] sm:$0xf]
        %v6308 = vld [vmem:[%s6294 + $0x34] sm:$0xf]
        %v6309 = vld [vmem:[%s6294 + $0x38] sm:$0xf]
        %v6310 = vld [vmem:[%s6294 + $0x3c] sm:$0xf]
        %v6311 = vunpack.c.l.b16 %v6115
        %v6312 = vunpack.c.l.b16 %v6125
        %v6313 = vunpack.c.l.b16 %v6139
        %v6314 = vunpack.c.l.b16 %v6149
        %v6315 = vunpack.c.l.b16 %v6163
        %v6316 = vunpack.c.l.b16 %v6173
        %v6317 = vunpack.c.l.b16 %v6187
        %v6318 = vunpack.c.l.b16 %v6197
        %v6319 = vunpack.c.l.b16 %v6211
        %v6320 = vunpack.c.l.b16 %v6221
        %v6321 = vunpack.c.l.b16 %v6235
        %v6322 = vunpack.c.l.b16 %v6245
        %v6323 = vunpack.c.l.b16 %v6259
        %v6324 = vunpack.c.l.b16 %v6269
        %v6325 = vunpack.c.l.b16 %v6283
        %v6326 = vunpack.c.l.b16 %v6293
        %v6327 = vpack.c.b16 %v6312, %v6311
        %v6328 = vpack.c.b16 %v6314, %v6313
        %v6329 = vpack.c.b16 %v6316, %v6315
        %v6330 = vpack.c.b16 %v6318, %v6317
        %v6331 = vpack.c.b16 %v6320, %v6319
        %v6332 = vpack.c.b16 %v6322, %v6321
        %v6333 = vpack.c.b16 %v6324, %v6323
        %v6334 = vpack.c.b16 %v6326, %v6325
        %v6359 = vunpack.c.l.b16 %v6295
        %v6360 = vunpack.c.l.b16 %v6296
        %v6361 = vunpack.c.l.b16 %v6297
        %v6362 = vunpack.c.l.b16 %v6298
        %v6363 = vunpack.c.l.b16 %v6299
        %v6364 = vunpack.c.l.b16 %v6300
        %v6365 = vunpack.c.l.b16 %v6301
        %v6366 = vunpack.c.l.b16 %v6302
        %v6367 = vunpack.c.l.b16 %v6303
        %v6368 = vunpack.c.l.b16 %v6304
        %v6369 = vunpack.c.l.b16 %v6305
        %v6370 = vunpack.c.l.b16 %v6306
        %v6371 = vunpack.c.l.b16 %v6307
        %v6372 = vunpack.c.l.b16 %v6308
        %v6373 = vunpack.c.l.b16 %v6309
        %v6374 = vunpack.c.l.b16 %v6310
        %v6375 = vpack.c.b16 %v6360, %v6359
        %v6376 = vpack.c.b16 %v6362, %v6361
        %v6377 = vpack.c.b16 %v6364, %v6363
        %v6378 = vpack.c.b16 %v6366, %v6365
        %v6379 = vpack.c.b16 %v6368, %v6367
        %v6380 = vpack.c.b16 %v6370, %v6369
        %v6381 = vpack.c.b16 %v6372, %v6371
        %v6382 = vpack.c.b16 %v6374, %v6373
        %6391 = vmatprep.subr.bf16.mxu0 0
        %6392 = vmatpush1.bf16.msra.mxu0 %v6375
        %6393 = vmatprep.subr.bf16.mxu0 0
        %6394 = vmatpush1.bf16.msra.mxu0 %v6376
        %6395 = vmatprep.subr.bf16.mxu0 0
        %6396 = vmatpush1.bf16.msra.mxu0 %v6377
        %6397 = vmatprep.subr.bf16.mxu0 0
        %6398 = vmatpush1.bf16.msra.mxu0 %v6378
        %6399 = vmatprep.subr.bf16.mxu0 0
        %6400 = vmatpush1.bf16.msra.mxu0 %v6379
        %6401 = vmatprep.subr.bf16.mxu0 0
        %6402 = vmatpush1.bf16.msra.mxu0 %v6380
        %6403 = vmatprep.subr.bf16.mxu0 0
        %6404 = vmatpush1.bf16.msra.mxu0 %v6381
        %6405 = vmatprep.subr.bf16.mxu0 0
        %6406 = vmatpush1.bf16.msra.mxu0 %v6382
        %6407 = vmatprep.subr.bf16.mxu0 0
        %6408 = vmatpush1.bf16.msra.mxu0 0
        %6409 = vmatprep.subr.bf16.mxu0 0
        %6410 = vmatpush1.bf16.msra.mxu0 0
        %6411 = vmatprep.subr.bf16.mxu0 0
        %6412 = vmatpush1.bf16.msra.mxu0 0
        %6413 = vmatprep.subr.bf16.mxu0 0
        %6414 = vmatpush1.bf16.msra.mxu0 0
        %6415 = vmatprep.subr.bf16.mxu0 0
        %6416 = vmatpush1.bf16.msra.mxu0 0
        %6417 = vmatprep.subr.bf16.mxu0 0
        %6418 = vmatpush1.bf16.msra.mxu0 0
        %6419 = vmatprep.subr.bf16.mxu0 0
        %6420 = vmatpush1.bf16.msra.mxu0 0
        %6421 = vmatprep.subr.bf16.mxu0 0
        %6422 = vmatpush1.bf16.msra.mxu0 0
        %6423 = vmatprep.mubr.bf16.mxu0 0
        %6424 = vmatmul.mubr.bf16.gmra.mrb[0].mxu0 %v6327
        %v6425 = vpop.f32.mrb[0].mxu0
        %v6426 = vadd.f32 0.0, %v6425
        %v6427 = vpop.f32.mrb[0].mxu0
        %v6428 = vpop.f32.mrb[0].mxu0
        %v6429 = vadd.f32 0.0, %v6428
        %v6430 = vpop.f32.mrb[0].mxu0
        %6431 = vmatprep.mubr.bf16.mxu0 0
        %6432 = vmatmul.mubr.bf16.gmra.mrb[0].mxu0 %v6328
        %v6433 = vpop.f32.mrb[0].mxu0
        %v6434 = vadd.f32 0.0, %v6433
        %v6435 = vpop.f32.mrb[0].mxu0
        %v6436 = vpop.f32.mrb[0].mxu0
        %v6437 = vadd.f32 0.0, %v6436
        %v6438 = vpop.f32.mrb[0].mxu0
        %6439 = vmatprep.mubr.bf16.mxu0 0
        %6440 = vmatmul.mubr.bf16.gmra.mrb[0].mxu0 %v6329
        %v6441 = vpop.f32.mrb[0].mxu0
        %v6442 = vadd.f32 0.0, %v6441
        %v6443 = vpop.f32.mrb[0].mxu0
        %v6444 = vpop.f32.mrb[0].mxu0
        %v6445 = vadd.f32 0.0, %v6444
        %v6446 = vpop.f32.mrb[0].mxu0
        %6447 = vmatprep.mubr.bf16.mxu0 0
        %6448 = vmatmul.mubr.bf16.gmra.mrb[0].mxu0 %v6330
        %v6449 = vpop.f32.mrb[0].mxu0
        %v6450 = vadd.f32 0.0, %v6449
        %v6451 = vpop.f32.mrb[0].mxu0
        %v6452 = vpop.f32.mrb[0].mxu0
        %v6453 = vadd.f32 0.0, %v6452
        %v6454 = vpop.f32.mrb[0].mxu0
        %6455 = vmatprep.mubr.bf16.mxu0 0
        %6456 = vmatmul.mubr.bf16.gmra.mrb[0].mxu0 %v6331
        %v6457 = vpop.f32.mrb[0].mxu0
        %v6458 = vadd.f32 0.0, %v6457
        %v6459 = vpop.f32.mrb[0].mxu0
        %v6460 = vpop.f32.mrb[0].mxu0
        %v6461 = vadd.f32 0.0, %v6460
        %v6462 = vpop.f32.mrb[0].mxu0
        %6463 = vmatprep.mubr.bf16.mxu0 0
        %6464 = vmatmul.mubr.bf16.gmra.mrb[0].mxu0 %v6332
        %v6465 = vpop.f32.mrb[0].mxu0
        %v6466 = vadd.f32 0.0, %v6465
        %v6467 = vpop.f32.mrb[0].mxu0
        %v6468 = vpop.f32.mrb[0].mxu0
        %v6469 = vadd.f32 0.0, %v6468
        %v6470 = vpop.f32.mrb[0].mxu0
        %6471 = vmatprep.mubr.bf16.mxu0 0
        %6472 = vmatmul.mubr.bf16.gmra.mrb[0].mxu0 %v6333
        %v6473 = vpop.f32.mrb[0].mxu0
        %v6474 = vadd.f32 0.0, %v6473
        %v6475 = vpop.f32.mrb[0].mxu0
        %v6476 = vpop.f32.mrb[0].mxu0
        %v6477 = vadd.f32 0.0, %v6476
        %v6478 = vpop.f32.mrb[0].mxu0
        %6479 = vmatprep.mubr.bf16.mxu0 0
        %6480 = vmatmul.mubr.bf16.gmra.mrb[0].mxu0 %v6334
        %v6481 = vpop.f32.mrb[0].mxu0
        %v6482 = vadd.f32 0.0, %v6481
        %v6483 = vpop.f32.mrb[0].mxu0
        %v6484 = vpop.f32.mrb[0].mxu0
        %v6485 = vadd.f32 0.0, %v6484
        %v6486 = vpop.f32.mrb[0].mxu0
        %6487 = vdwg.mxu0
        %v6488 = vadd.f32 %v6056, %v6426
        %v6489 = vadd.f32 %v6057, %v6429
        %v6490 = vadd.f32 %v6058, %v6434
        %v6491 = vadd.f32 %v6059, %v6437
        %v6492 = vadd.f32 %v6060, %v6442
        %v6493 = vadd.f32 %v6061, %v6445
        %v6494 = vadd.f32 %v6062, %v6450
        %v6495 = vadd.f32 %v6063, %v6453
        %v6496 = vadd.f32 %v6064, %v6458
        %v6497 = vadd.f32 %v6065, %v6461
        %v6498 = vadd.f32 %v6066, %v6466
        %v6499 = vadd.f32 %v6067, %v6469
        %v6500 = vadd.f32 %v6068, %v6474
        %v6501 = vadd.f32 %v6069, %v6477
        %v6502 = vadd.f32 %v6070, %v6482
        %v6503 = vadd.f32 %v6071, %v6485
        %v6505 = vshrl.u32 %v6096, 16
        %v6507 = vrot.slane %v6505, 4
        %v6508 = vshll.u32 %v6096, 16
        %v6510 = vrot.slane %v6508, 5
        %v6511 = vor.u32 %v6507, %v6510
        %v6512 = vrot.slane %v6511, 4
        %v6514 = vshll.u32 %v6097, 16
        %v6516 = vrot.slane %v6514, 5
        %v6517 = vsel %vm1359, %v6512, %v6516
        %v6518 = vshrl.u32 %v6097, 16
        %v6520 = vrot.slane %v6518, 4
        %v6521 = vor.u32 %v6520, %v6516
        %v6522 = vrot.slane %v6521, 4
        %v6524 = vshll.u32 %v6098, 16
        %v6526 = vrot.slane %v6524, 5
        %v6527 = vsel %vm1359, %v6522, %v6526
        %s6528 = scalar_lea.vmem %s4, 256
        %v6529 = vld [vmem:[%s6528] sm:$0xf]
        %v6530 = vld [vmem:[%s6528 + $0x4] sm:$0xf]
        %v6531 = vld [vmem:[%s6528 + $0x8] sm:$0xf]
        %v6532 = vld [vmem:[%s6528 + $0xc] sm:$0xf]
        %v6533 = vld [vmem:[%s6528 + $0x10] sm:$0xf]
        %v6534 = vld [vmem:[%s6528 + $0x14] sm:$0xf]
        %v6535 = vld [vmem:[%s6528 + $0x18] sm:$0xf]
        %v6536 = vld [vmem:[%s6528 + $0x1c] sm:$0xf]
        %v6537 = vld [vmem:[%s6528 + $0x20] sm:$0xf]
        %v6538 = vld [vmem:[%s6528 + $0x24] sm:$0xf]
        %v6539 = vld [vmem:[%s6528 + $0x28] sm:$0xf]
        %v6540 = vld [vmem:[%s6528 + $0x2c] sm:$0xf]
        %v6541 = vld [vmem:[%s6528 + $0x30] sm:$0xf]
        %v6542 = vld [vmem:[%s6528 + $0x34] sm:$0xf]
        %v6543 = vld [vmem:[%s6528 + $0x38] sm:$0xf]
        %v6544 = vld [vmem:[%s6528 + $0x3c] sm:$0xf]
        %v6545 = vunpack.c.l.b16 %v6517
        %v6546 = vunpack.c.l.b16 %v6527
        %v6547 = vpack.c.b16 %v6546, %v6545
        %v6565 = vunpack.c.l.b16 %v6529
        %v6566 = vunpack.c.l.b16 %v6530
        %v6567 = vunpack.c.l.b16 %v6531
        %v6568 = vunpack.c.l.b16 %v6532
        %v6569 = vunpack.c.l.b16 %v6533
        %v6570 = vunpack.c.l.b16 %v6534
        %v6571 = vunpack.c.l.b16 %v6535
        %v6572 = vunpack.c.l.b16 %v6536
        %v6573 = vunpack.c.l.b16 %v6537
        %v6574 = vunpack.c.l.b16 %v6538
        %v6575 = vunpack.c.l.b16 %v6539
        %v6576 = vunpack.c.l.b16 %v6540
        %v6577 = vunpack.c.l.b16 %v6541
        %v6578 = vunpack.c.l.b16 %v6542
        %v6579 = vunpack.c.l.b16 %v6543
        %v6580 = vunpack.c.l.b16 %v6544
        %v6581 = vpack.c.b16 %v6566, %v6565
        %v6582 = vpack.c.b16 %v6568, %v6567
        %v6583 = vpack.c.b16 %v6570, %v6569
        %v6584 = vpack.c.b16 %v6572, %v6571
        %v6585 = vpack.c.b16 %v6574, %v6573
        %v6586 = vpack.c.b16 %v6576, %v6575
        %v6587 = vpack.c.b16 %v6578, %v6577
        %v6588 = vpack.c.b16 %v6580, %v6579
        %6597 = vmatprep.subr.bf16.mxu0 0
        %6598 = vmatpush1.bf16.msra.mxu0 %v6581
        %6599 = vmatprep.subr.bf16.mxu0 0
        %6600 = vmatpush1.bf16.msra.mxu0 %v6582
        %6601 = vmatprep.subr.bf16.mxu0 0
        %6602 = vmatpush1.bf16.msra.mxu0 %v6583
        %6603 = vmatprep.subr.bf16.mxu0 0
        %6604 = vmatpush1.bf16.msra.mxu0 %v6584
        %6605 = vmatprep.subr.bf16.mxu0 0
        %6606 = vmatpush1.bf16.msra.mxu0 %v6585
        %6607 = vmatprep.subr.bf16.mxu0 0
        %6608 = vmatpush1.bf16.msra.mxu0 %v6586
        %6609 = vmatprep.subr.bf16.mxu0 0
        %6610 = vmatpush1.bf16.msra.mxu0 %v6587
        %6611 = vmatprep.subr.bf16.mxu0 0
        %6612 = vmatpush1.bf16.msra.mxu0 %v6588
        %6613 = vmatprep.subr.bf16.mxu0 0
        %6614 = vmatpush1.bf16.msra.mxu0 0
        %6615 = vmatprep.subr.bf16.mxu0 0
        %6616 = vmatpush1.bf16.msra.mxu0 0
        %6617 = vmatprep.subr.bf16.mxu0 0
        %6618 = vmatpush1.bf16.msra.mxu0 0
        %6619 = vmatprep.subr.bf16.mxu0 0
        %6620 = vmatpush1.bf16.msra.mxu0 0
        %6621 = vmatprep.subr.bf16.mxu0 0
        %6622 = vmatpush1.bf16.msra.mxu0 0
        %6623 = vmatprep.subr.bf16.mxu0 0
        %6624 = vmatpush1.bf16.msra.mxu0 0
        %6625 = vmatprep.subr.bf16.mxu0 0
        %6626 = vmatpush1.bf16.msra.mxu0 0
        %6627 = vmatprep.subr.bf16.mxu0 0
        %6628 = vmatpush1.bf16.msra.mxu0 0
        %6629 = vmatprep.mubr.bf16.mxu0 0
        %6630 = vmatmul.mubr.bf16.gmra.mrb[0].mxu0 %v6328
        %v6631 = vpop.f32.mrb[0].mxu0
        %v6632 = vadd.f32 0.0, %v6631
        %v6633 = vpop.f32.mrb[0].mxu0
        %v6634 = vpop.f32.mrb[0].mxu0
        %v6635 = vadd.f32 0.0, %v6634
        %v6636 = vpop.f32.mrb[0].mxu0
        %6637 = vmatprep.mubr.bf16.mxu0 0
        %6638 = vmatmul.mubr.bf16.gmra.mrb[0].mxu0 %v6329
        %v6639 = vpop.f32.mrb[0].mxu0
        %v6640 = vadd.f32 0.0, %v6639
        %v6641 = vpop.f32.mrb[0].mxu0
        %v6642 = vpop.f32.mrb[0].mxu0
        %v6643 = vadd.f32 0.0, %v6642
        %v6644 = vpop.f32.mrb[0].mxu0
        %6645 = vmatprep.mubr.bf16.mxu0 0
        %6646 = vmatmul.mubr.bf16.gmra.mrb[0].mxu0 %v6330
        %v6647 = vpop.f32.mrb[0].mxu0
        %v6648 = vadd.f32 0.0, %v6647
        %v6649 = vpop.f32.mrb[0].mxu0
        %v6650 = vpop.f32.mrb[0].mxu0
        %v6651 = vadd.f32 0.0, %v6650
        %v6652 = vpop.f32.mrb[0].mxu0
        %6653 = vmatprep.mubr.bf16.mxu0 0
        %6654 = vmatmul.mubr.bf16.gmra.mrb[0].mxu0 %v6331
        %v6655 = vpop.f32.mrb[0].mxu0
        %v6656 = vadd.f32 0.0, %v6655
        %v6657 = vpop.f32.mrb[0].mxu0
        %v6658 = vpop.f32.mrb[0].mxu0
        %v6659 = vadd.f32 0.0, %v6658
        %v6660 = vpop.f32.mrb[0].mxu0
        %6661 = vmatprep.mubr.bf16.mxu0 0
        %6662 = vmatmul.mubr.bf16.gmra.mrb[0].mxu0 %v6332
        %v6663 = vpop.f32.mrb[0].mxu0
        %v6664 = vadd.f32 0.0, %v6663
        %v6665 = vpop.f32.mrb[0].mxu0
        %v6666 = vpop.f32.mrb[0].mxu0
        %v6667 = vadd.f32 0.0, %v6666
        %v6668 = vpop.f32.mrb[0].mxu0
        %6669 = vmatprep.mubr.bf16.mxu0 0
        %6670 = vmatmul.mubr.bf16.gmra.mrb[0].mxu0 %v6333
        %v6671 = vpop.f32.mrb[0].mxu0
        %v6672 = vadd.f32 0.0, %v6671
        %v6673 = vpop.f32.mrb[0].mxu0
        %v6674 = vpop.f32.mrb[0].mxu0
        %v6675 = vadd.f32 0.0, %v6674
        %v6676 = vpop.f32.mrb[0].mxu0
        %6677 = vmatprep.mubr.bf16.mxu0 0
        %6678 = vmatmul.mubr.bf16.gmra.mrb[0].mxu0 %v6334
        %v6679 = vpop.f32.mrb[0].mxu0
        %v6680 = vadd.f32 0.0, %v6679
        %v6681 = vpop.f32.mrb[0].mxu0
        %v6682 = vpop.f32.mrb[0].mxu0
        %v6683 = vadd.f32 0.0, %v6682
        %v6684 = vpop.f32.mrb[0].mxu0
        %6685 = vmatprep.mubr.bf16.mxu0 0
        %6686 = vmatmul.mubr.bf16.gmra.mrb[0].mxu0 %v6547
        %v6687 = vpop.f32.mrb[0].mxu0
        %v6688 = vadd.f32 0.0, %v6687
        %v6689 = vpop.f32.mrb[0].mxu0
        %v6690 = vpop.f32.mrb[0].mxu0
        %v6691 = vadd.f32 0.0, %v6690
        %v6692 = vpop.f32.mrb[0].mxu0
        %6693 = vdwg.mxu0
        %v6694 = vadd.f32 %v6488, %v6632
        %v6695 = vadd.f32 %v6489, %v6635
        %v6696 = vadd.f32 %v6490, %v6640
        %v6697 = vadd.f32 %v6491, %v6643
        %v6698 = vadd.f32 %v6492, %v6648
        %v6699 = vadd.f32 %v6493, %v6651
        %v6700 = vadd.f32 %v6494, %v6656
        %v6701 = vadd.f32 %v6495, %v6659
        %v6702 = vadd.f32 %v6496, %v6664
        %v6703 = vadd.f32 %v6497, %v6667
        %v6704 = vadd.f32 %v6498, %v6672
        %v6705 = vadd.f32 %v6499, %v6675
        %v6706 = vadd.f32 %v6500, %v6680
        %v6707 = vadd.f32 %v6501, %v6683
        %v6708 = vadd.f32 %v6502, %v6688
        %v6709 = vadd.f32 %v6503, %v6691
        %v6711 = vshrl.u32 %v6099, 16
        %v6713 = vrot.slane %v6711, 4
        %v6714 = vshll.u32 %v6099, 16
        %v6716 = vrot.slane %v6714, 5
        %v6717 = vor.u32 %v6713, %v6716
        %v6718 = vrot.slane %v6717, 4
        %v6720 = vshll.u32 %v6100, 16
        %v6722 = vrot.slane %v6720, 5
        %v6723 = vsel %vm1359, %v6718, %v6722
        %v6724 = vshrl.u32 %v6100, 16
        %v6726 = vrot.slane %v6724, 4
        %v6727 = vor.u32 %v6726, %v6722
        %v6728 = vrot.slane %v6727, 4
        %v6730 = vshll.u32 %v6101, 16
        %v6732 = vrot.slane %v6730, 5
        %v6733 = vsel %vm1359, %v6728, %v6732
        %s6734 = scalar_lea.vmem %s4, 448
        %v6735 = vld [vmem:[%s6734] sm:$0xf]
        %v6736 = vld [vmem:[%s6734 + $0x4] sm:$0xf]
        %v6737 = vld [vmem:[%s6734 + $0x8] sm:$0xf]
        %v6738 = vld [vmem:[%s6734 + $0xc] sm:$0xf]
        %v6739 = vld [vmem:[%s6734 + $0x10] sm:$0xf]
        %v6740 = vld [vmem:[%s6734 + $0x14] sm:$0xf]
        %v6741 = vld [vmem:[%s6734 + $0x18] sm:$0xf]
        %v6742 = vld [vmem:[%s6734 + $0x1c] sm:$0xf]
        %v6743 = vld [vmem:[%s6734 + $0x20] sm:$0xf]
        %v6744 = vld [vmem:[%s6734 + $0x24] sm:$0xf]
        %v6745 = vld [vmem:[%s6734 + $0x28] sm:$0xf]
        %v6746 = vld [vmem:[%s6734 + $0x2c] sm:$0xf]
        %v6747 = vld [vmem:[%s6734 + $0x30] sm:$0xf]
        %v6748 = vld [vmem:[%s6734 + $0x34] sm:$0xf]
        %v6749 = vld [vmem:[%s6734 + $0x38] sm:$0xf]
        %v6750 = vld [vmem:[%s6734 + $0x3c] sm:$0xf]
        %v6751 = vunpack.c.l.b16 %v6723
        %v6752 = vunpack.c.l.b16 %v6733
        %v6753 = vpack.c.b16 %v6752, %v6751
        %v6771 = vunpack.c.l.b16 %v6735
        %v6772 = vunpack.c.l.b16 %v6736
        %v6773 = vunpack.c.l.b16 %v6737
        %v6774 = vunpack.c.l.b16 %v6738
        %v6775 = vunpack.c.l.b16 %v6739
        %v6776 = vunpack.c.l.b16 %v6740
        %v6777 = vunpack.c.l.b16 %v6741
        %v6778 = vunpack.c.l.b16 %v6742
        %v6779 = vunpack.c.l.b16 %v6743
        %v6780 = vunpack.c.l.b16 %v6744
        %v6781 = vunpack.c.l.b16 %v6745
        %v6782 = vunpack.c.l.b16 %v6746
        %v6783 = vunpack.c.l.b16 %v6747
        %v6784 = vunpack.c.l.b16 %v6748
        %v6785 = vunpack.c.l.b16 %v6749
        %v6786 = vunpack.c.l.b16 %v6750
        %v6787 = vpack.c.b16 %v6772, %v6771
        %v6788 = vpack.c.b16 %v6774, %v6773
        %v6789 = vpack.c.b16 %v6776, %v6775
        %v6790 = vpack.c.b16 %v6778, %v6777
        %v6791 = vpack.c.b16 %v6780, %v6779
        %v6792 = vpack.c.b16 %v6782, %v6781
        %v6793 = vpack.c.b16 %v6784, %v6783
        %v6794 = vpack.c.b16 %v6786, %v6785
        %6803 = vmatprep.subr.bf16.mxu0 0
        %6804 = vmatpush1.bf16.msra.mxu0 %v6787
        %6805 = vmatprep.subr.bf16.mxu0 0
        %6806 = vmatpush1.bf16.msra.mxu0 %v6788
        %6807 = vmatprep.subr.bf16.mxu0 0
        %6808 = vmatpush1.bf16.msra.mxu0 %v6789
        %6809 = vmatprep.subr.bf16.mxu0 0
        %6810 = vmatpush1.bf16.msra.mxu0 %v6790
        %6811 = vmatprep.subr.bf16.mxu0 0
        %6812 = vmatpush1.bf16.msra.mxu0 %v6791
        %6813 = vmatprep.subr.bf16.mxu0 0
        %6814 = vmatpush1.bf16.msra.mxu0 %v6792
        %6815 = vmatprep.subr.bf16.mxu0 0
        %6816 = vmatpush1.bf16.msra.mxu0 %v6793
        %6817 = vmatprep.subr.bf16.mxu0 0
        %6818 = vmatpush1.bf16.msra.mxu0 %v6794
        %6819 = vmatprep.subr.bf16.mxu0 0
        %6820 = vmatpush1.bf16.msra.mxu0 0
        %6821 = vmatprep.subr.bf16.mxu0 0
        %6822 = vmatpush1.bf16.msra.mxu0 0
        %6823 = vmatprep.subr.bf16.mxu0 0
        %6824 = vmatpush1.bf16.msra.mxu0 0
        %6825 = vmatprep.subr.bf16.mxu0 0
        %6826 = vmatpush1.bf16.msra.mxu0 0
        %6827 = vmatprep.subr.bf16.mxu0 0
        %6828 = vmatpush1.bf16.msra.mxu0 0
        %6829 = vmatprep.subr.bf16.mxu0 0
        %6830 = vmatpush1.bf16.msra.mxu0 0
        %6831 = vmatprep.subr.bf16.mxu0 0
        %6832 = vmatpush1.bf16.msra.mxu0 0
        %6833 = vmatprep.subr.bf16.mxu0 0
        %6834 = vmatpush1.bf16.msra.mxu0 0
        %6835 = vmatprep.mubr.bf16.mxu0 0
        %6836 = vmatmul.mubr.bf16.gmra.mrb[0].mxu0 %v6329
        %v6837 = vpop.f32.mrb[0].mxu0
        %v6838 = vadd.f32 0.0, %v6837
        %v6839 = vpop.f32.mrb[0].mxu0
        %v6840 = vpop.f32.mrb[0].mxu0
        %v6841 = vadd.f32 0.0, %v6840
        %v6842 = vpop.f32.mrb[0].mxu0
        %6843 = vmatprep.mubr.bf16.mxu0 0
        %6844 = vmatmul.mubr.bf16.gmra.mrb[0].mxu0 %v6330
        %v6845 = vpop.f32.mrb[0].mxu0
        %v6846 = vadd.f32 0.0, %v6845
        %v6847 = vpop.f32.mrb[0].mxu0
        %v6848 = vpop.f32.mrb[0].mxu0
        %v6849 = vadd.f32 0.0, %v6848
        %v6850 = vpop.f32.mrb[0].mxu0
        %6851 = vmatprep.mubr.bf16.mxu0 0
        %6852 = vmatmul.mubr.bf16.gmra.mrb[0].mxu0 %v6331
        %v6853 = vpop.f32.mrb[0].mxu0
        %v6854 = vadd.f32 0.0, %v6853
        %v6855 = vpop.f32.mrb[0].mxu0
        %v6856 = vpop.f32.mrb[0].mxu0
        %v6857 = vadd.f32 0.0, %v6856
        %v6858 = vpop.f32.mrb[0].mxu0
        %6859 = vmatprep.mubr.bf16.mxu0 0
        %6860 = vmatmul.mubr.bf16.gmra.mrb[0].mxu0 %v6332
        %v6861 = vpop.f32.mrb[0].mxu0
        %v6862 = vadd.f32 0.0, %v6861
        %v6863 = vpop.f32.mrb[0].mxu0
        %v6864 = vpop.f32.mrb[0].mxu0
        %v6865 = vadd.f32 0.0, %v6864
        %v6866 = vpop.f32.mrb[0].mxu0
        %6867 = vmatprep.mubr.bf16.mxu0 0
        %6868 = vmatmul.mubr.bf16.gmra.mrb[0].mxu0 %v6333
        %v6869 = vpop.f32.mrb[0].mxu0
        %v6870 = vadd.f32 0.0, %v6869
        %v6871 = vpop.f32.mrb[0].mxu0
        %v6872 = vpop.f32.mrb[0].mxu0
        %v6873 = vadd.f32 0.0, %v6872
        %v6874 = vpop.f32.mrb[0].mxu0
        %6875 = vmatprep.mubr.bf16.mxu0 0
        %6876 = vmatmul.mubr.bf16.gmra.mrb[0].mxu0 %v6334
        %v6877 = vpop.f32.mrb[0].mxu0
        %v6878 = vadd.f32 0.0, %v6877
        %v6879 = vpop.f32.mrb[0].mxu0
        %v6880 = vpop.f32.mrb[0].mxu0
        %v6881 = vadd.f32 0.0, %v6880
        %v6882 = vpop.f32.mrb[0].mxu0
        %6883 = vmatprep.mubr.bf16.mxu0 0
        %6884 = vmatmul.mubr.bf16.gmra.mrb[0].mxu0 %v6547
        %v6885 = vpop.f32.mrb[0].mxu0
        %v6886 = vadd.f32 0.0, %v6885
        %v6887 = vpop.f32.mrb[0].mxu0
        %v6888 = vpop.f32.mrb[0].mxu0
        %v6889 = vadd.f32 0.0, %v6888
        %v6890 = vpop.f32.mrb[0].mxu0
        %6891 = vmatprep.mubr.bf16.mxu0 0
        %6892 = vmatmul.mubr.bf16.gmra.mrb[0].mxu0 %v6753
        %v6893 = vpop.f32.mrb[0].mxu0
        %v6894 = vadd.f32 0.0, %v6893
        %v6895 = vpop.f32.mrb[0].mxu0
        %v6896 = vpop.f32.mrb[0].mxu0
        %v6897 = vadd.f32 0.0, %v6896
        %v6898 = vpop.f32.mrb[0].mxu0
        %6899 = vdwg.mxu0
        %v6900 = vadd.f32 %v6694, %v6838
        %v6901 = vadd.f32 %v6695, %v6841
        %v6902 = vadd.f32 %v6696, %v6846
        %v6903 = vadd.f32 %v6697, %v6849
        %v6904 = vadd.f32 %v6698, %v6854
        %v6905 = vadd.f32 %v6699, %v6857
        %v6906 = vadd.f32 %v6700, %v6862
        %v6907 = vadd.f32 %v6701, %v6865
        %v6908 = vadd.f32 %v6702, %v6870
        %v6909 = vadd.f32 %v6703, %v6873
        %v6910 = vadd.f32 %v6704, %v6878
        %v6911 = vadd.f32 %v6705, %v6881
        %v6912 = vadd.f32 %v6706, %v6886
        %v6913 = vadd.f32 %v6707, %v6889
        %v6914 = vadd.f32 %v6708, %v6894
        %v6915 = vadd.f32 %v6709, %v6897
        %v6916 = vld [vmem:[#allocation3] sm:$0xe]
        %v6917 = vld [vmem:[#allocation3 + $0xc] sm:$0xe]
        %v6918 = vld [vmem:[#allocation3 + $0x18] sm:$0xe]
        %v6919 = vld [vmem:[#allocation3 + $0x24] sm:$0xe]
        %v6920 = vld [vmem:[#allocation3 + $0x30] sm:$0xe]
        %v6921 = vld [vmem:[#allocation3 + $0x3c] sm:$0xe]
        %v6922 = vld [vmem:[#allocation3 + $0x48] sm:$0xe]
        %v6923 = vld [vmem:[#allocation3 + $0x54] sm:$0xe]
        %v6924 = vld [vmem:[#allocation3 + $0x60] sm:$0xe]
        %v6925 = vld [vmem:[#allocation3 + $0x6c] sm:$0xe]
        %v6950 = vrot.slane %v6916, 5
        %v6951 = vrot.slane %v6950, 4
        %v6952 = vrot.slane %v6073, 5
        %v6953 = vsel %vm2210, %v6951, %v6952
        %v6954 = vrot.slane %v6952, 4
        %v6955 = vrot.slane %v6074, 5
        %v6956 = vsel %vm2210, %v6954, %v6955
        %v6957 = vrot.slane %v6917, 5
        %v6958 = vrot.slane %v6957, 4
        %v6959 = vrot.slane %v6076, 5
        %v6960 = vsel %vm2210, %v6958, %v6959
        %v6961 = vrot.slane %v6959, 4
        %v6962 = vrot.slane %v6077, 5
        %v6963 = vsel %vm2210, %v6961, %v6962
        %v6964 = vrot.slane %v6918, 5
        %v6965 = vrot.slane %v6964, 4
        %v6966 = vrot.slane %v6079, 5
        %v6967 = vsel %vm2210, %v6965, %v6966
        %v6968 = vrot.slane %v6966, 4
        %v6969 = vrot.slane %v6080, 5
        %v6970 = vsel %vm2210, %v6968, %v6969
        %v6971 = vrot.slane %v6919, 5
        %v6972 = vrot.slane %v6971, 4
        %v6973 = vrot.slane %v6082, 5
        %v6974 = vsel %vm2210, %v6972, %v6973
        %v6975 = vrot.slane %v6973, 4
        %v6976 = vrot.slane %v6083, 5
        %v6977 = vsel %vm2210, %v6975, %v6976
        %v6978 = vrot.slane %v6920, 5
        %v6979 = vrot.slane %v6978, 4
        %v6980 = vrot.slane %v6085, 5
        %v6981 = vsel %vm2210, %v6979, %v6980
        %v6982 = vrot.slane %v6980, 4
        %v6983 = vrot.slane %v6086, 5
        %v6984 = vsel %vm2210, %v6982, %v6983
        %v6985 = vrot.slane %v6921, 5
        %v6986 = vrot.slane %v6985, 4
        %v6987 = vrot.slane %v6088, 5
        %v6988 = vsel %vm2210, %v6986, %v6987
        %v6989 = vrot.slane %v6987, 4
        %v6990 = vrot.slane %v6089, 5
        %v6991 = vsel %vm2210, %v6989, %v6990
        %v6992 = vrot.slane %v6922, 5
        %v6993 = vrot.slane %v6992, 4
        %v6994 = vrot.slane %v6091, 5
        %v6995 = vsel %vm2210, %v6993, %v6994
        %v6996 = vrot.slane %v6994, 4
        %v6997 = vrot.slane %v6092, 5
        %v6998 = vsel %vm2210, %v6996, %v6997
        %v6999 = vrot.slane %v6923, 5
        %v7000 = vrot.slane %v6999, 4
        %v7001 = vrot.slane %v6094, 5
        %v7002 = vsel %vm2210, %v7000, %v7001
        %v7003 = vrot.slane %v7001, 4
        %v7004 = vrot.slane %v6095, 5
        %v7005 = vsel %vm2210, %v7003, %v7004
        %s7006 = scalar_lea.vmem %s4, 128
        %v7007 = vld [vmem:[%s7006] sm:$0xf]
        %v7008 = vld [vmem:[%s7006 + $0x4] sm:$0xf]
        %v7009 = vld [vmem:[%s7006 + $0x8] sm:$0xf]
        %v7010 = vld [vmem:[%s7006 + $0xc] sm:$0xf]
        %v7011 = vld [vmem:[%s7006 + $0x10] sm:$0xf]
        %v7012 = vld [vmem:[%s7006 + $0x14] sm:$0xf]
        %v7013 = vld [vmem:[%s7006 + $0x18] sm:$0xf]
        %v7014 = vld [vmem:[%s7006 + $0x1c] sm:$0xf]
        %v7015 = vld [vmem:[%s7006 + $0x20] sm:$0xf]
        %v7016 = vld [vmem:[%s7006 + $0x24] sm:$0xf]
        %v7017 = vld [vmem:[%s7006 + $0x28] sm:$0xf]
        %v7018 = vld [vmem:[%s7006 + $0x2c] sm:$0xf]
        %v7019 = vld [vmem:[%s7006 + $0x30] sm:$0xf]
        %v7020 = vld [vmem:[%s7006 + $0x34] sm:$0xf]
        %v7021 = vld [vmem:[%s7006 + $0x38] sm:$0xf]
        %v7022 = vld [vmem:[%s7006 + $0x3c] sm:$0xf]
        %v7023 = vunpack.c.l.b16 %v6953
        %v7024 = vunpack.c.l.b16 %v6956
        %v7025 = vunpack.c.l.b16 %v6960
        %v7026 = vunpack.c.l.b16 %v6963
        %v7027 = vunpack.c.l.b16 %v6967
        %v7028 = vunpack.c.l.b16 %v6970
        %v7029 = vunpack.c.l.b16 %v6974
        %v7030 = vunpack.c.l.b16 %v6977
        %v7031 = vunpack.c.l.b16 %v6981
        %v7032 = vunpack.c.l.b16 %v6984
        %v7033 = vunpack.c.l.b16 %v6988
        %v7034 = vunpack.c.l.b16 %v6991
        %v7035 = vunpack.c.l.b16 %v6995
        %v7036 = vunpack.c.l.b16 %v6998
        %v7037 = vunpack.c.l.b16 %v7002
        %v7038 = vunpack.c.l.b16 %v7005
        %v7039 = vpack.c.b16 %v7024, %v7023
        %v7040 = vpack.c.b16 %v7026, %v7025
        %v7041 = vpack.c.b16 %v7028, %v7027
        %v7042 = vpack.c.b16 %v7030, %v7029
        %v7043 = vpack.c.b16 %v7032, %v7031
        %v7044 = vpack.c.b16 %v7034, %v7033
        %v7045 = vpack.c.b16 %v7036, %v7035
        %v7046 = vpack.c.b16 %v7038, %v7037
        %v7071 = vunpack.c.l.b16 %v7007
        %v7072 = vunpack.c.l.b16 %v7008
        %v7073 = vunpack.c.l.b16 %v7009
        %v7074 = vunpack.c.l.b16 %v7010
        %v7075 = vunpack.c.l.b16 %v7011
        %v7076 = vunpack.c.l.b16 %v7012
        %v7077 = vunpack.c.l.b16 %v7013
        %v7078 = vunpack.c.l.b16 %v7014
        %v7079 = vunpack.c.l.b16 %v7015
        %v7080 = vunpack.c.l.b16 %v7016
        %v7081 = vunpack.c.l.b16 %v7017
        %v7082 = vunpack.c.l.b16 %v7018
        %v7083 = vunpack.c.l.b16 %v7019
        %v7084 = vunpack.c.l.b16 %v7020
        %v7085 = vunpack.c.l.b16 %v7021
        %v7086 = vunpack.c.l.b16 %v7022
        %v7087 = vpack.c.b16 %v7072, %v7071
        %v7088 = vpack.c.b16 %v7074, %v7073
        %v7089 = vpack.c.b16 %v7076, %v7075
        %v7090 = vpack.c.b16 %v7078, %v7077
        %v7091 = vpack.c.b16 %v7080, %v7079
        %v7092 = vpack.c.b16 %v7082, %v7081
        %v7093 = vpack.c.b16 %v7084, %v7083
        %v7094 = vpack.c.b16 %v7086, %v7085
        %7103 = vmatprep.subr.bf16.mxu0 0
        %7104 = vmatpush1.bf16.msra.mxu0 %v7087
        %7105 = vmatprep.subr.bf16.mxu0 0
        %7106 = vmatpush1.bf16.msra.mxu0 %v7088
        %7107 = vmatprep.subr.bf16.mxu0 0
        %7108 = vmatpush1.bf16.msra.mxu0 %v7089
        %7109 = vmatprep.subr.bf16.mxu0 0
        %7110 = vmatpush1.bf16.msra.mxu0 %v7090
        %7111 = vmatprep.subr.bf16.mxu0 0
        %7112 = vmatpush1.bf16.msra.mxu0 %v7091
        %7113 = vmatprep.subr.bf16.mxu0 0
        %7114 = vmatpush1.bf16.msra.mxu0 %v7092
        %7115 = vmatprep.subr.bf16.mxu0 0
        %7116 = vmatpush1.bf16.msra.mxu0 %v7093
        %7117 = vmatprep.subr.bf16.mxu0 0
        %7118 = vmatpush1.bf16.msra.mxu0 %v7094
        %7119 = vmatprep.subr.bf16.mxu0 0
        %7120 = vmatpush1.bf16.msra.mxu0 0
        %7121 = vmatprep.subr.bf16.mxu0 0
        %7122 = vmatpush1.bf16.msra.mxu0 0
        %7123 = vmatprep.subr.bf16.mxu0 0
        %7124 = vmatpush1.bf16.msra.mxu0 0
        %7125 = vmatprep.subr.bf16.mxu0 0
        %7126 = vmatpush1.bf16.msra.mxu0 0
        %7127 = vmatprep.subr.bf16.mxu0 0
        %7128 = vmatpush1.bf16.msra.mxu0 0
        %7129 = vmatprep.subr.bf16.mxu0 0
        %7130 = vmatpush1.bf16.msra.mxu0 0
        %7131 = vmatprep.subr.bf16.mxu0 0
        %7132 = vmatpush1.bf16.msra.mxu0 0
        %7133 = vmatprep.subr.bf16.mxu0 0
        %7134 = vmatpush1.bf16.msra.mxu0 0
        %7135 = vmatprep.mubr.bf16.mxu0 0
        %7136 = vmatmul.mubr.bf16.gmra.mrb[0].mxu0 %v7039
        %v7137 = vpop.f32.mrb[0].mxu0
        %v7138 = vadd.f32 0.0, %v7137
        %v7139 = vpop.f32.mrb[0].mxu0
        %v7140 = vpop.f32.mrb[0].mxu0
        %v7141 = vadd.f32 0.0, %v7140
        %v7142 = vpop.f32.mrb[0].mxu0
        %7143 = vmatprep.mubr.bf16.mxu0 0
        %7144 = vmatmul.mubr.bf16.gmra.mrb[0].mxu0 %v7040
        %v7145 = vpop.f32.mrb[0].mxu0
        %v7146 = vadd.f32 0.0, %v7145
        %v7147 = vpop.f32.mrb[0].mxu0
        %v7148 = vpop.f32.mrb[0].mxu0
        %v7149 = vadd.f32 0.0, %v7148
        %v7150 = vpop.f32.mrb[0].mxu0
        %7151 = vmatprep.mubr.bf16.mxu0 0
        %7152 = vmatmul.mubr.bf16.gmra.mrb[0].mxu0 %v7041
        %v7153 = vpop.f32.mrb[0].mxu0
        %v7154 = vadd.f32 0.0, %v7153
        %v7155 = vpop.f32.mrb[0].mxu0
        %v7156 = vpop.f32.mrb[0].mxu0
        %v7157 = vadd.f32 0.0, %v7156
        %v7158 = vpop.f32.mrb[0].mxu0
        %7159 = vmatprep.mubr.bf16.mxu0 0
        %7160 = vmatmul.mubr.bf16.gmra.mrb[0].mxu0 %v7042
        %v7161 = vpop.f32.mrb[0].mxu0
        %v7162 = vadd.f32 0.0, %v7161
        %v7163 = vpop.f32.mrb[0].mxu0
        %v7164 = vpop.f32.mrb[0].mxu0
        %v7165 = vadd.f32 0.0, %v7164
        %v7166 = vpop.f32.mrb[0].mxu0
        %7167 = vmatprep.mubr.bf16.mxu0 0
        %7168 = vmatmul.mubr.bf16.gmra.mrb[0].mxu0 %v7043
        %v7169 = vpop.f32.mrb[0].mxu0
        %v7170 = vadd.f32 0.0, %v7169
        %v7171 = vpop.f32.mrb[0].mxu0
        %v7172 = vpop.f32.mrb[0].mxu0
        %v7173 = vadd.f32 0.0, %v7172
        %v7174 = vpop.f32.mrb[0].mxu0
        %7175 = vmatprep.mubr.bf16.mxu0 0
        %7176 = vmatmul.mubr.bf16.gmra.mrb[0].mxu0 %v7044
        %v7177 = vpop.f32.mrb[0].mxu0
        %v7178 = vadd.f32 0.0, %v7177
        %v7179 = vpop.f32.mrb[0].mxu0
        %v7180 = vpop.f32.mrb[0].mxu0
        %v7181 = vadd.f32 0.0, %v7180
        %v7182 = vpop.f32.mrb[0].mxu0
        %7183 = vmatprep.mubr.bf16.mxu0 0
        %7184 = vmatmul.mubr.bf16.gmra.mrb[0].mxu0 %v7045
        %v7185 = vpop.f32.mrb[0].mxu0
        %v7186 = vadd.f32 0.0, %v7185
        %v7187 = vpop.f32.mrb[0].mxu0
        %v7188 = vpop.f32.mrb[0].mxu0
        %v7189 = vadd.f32 0.0, %v7188
        %v7190 = vpop.f32.mrb[0].mxu0
        %7191 = vmatprep.mubr.bf16.mxu0 0
        %7192 = vmatmul.mubr.bf16.gmra.mrb[0].mxu0 %v7046
        %v7193 = vpop.f32.mrb[0].mxu0
        %v7194 = vadd.f32 0.0, %v7193
        %v7195 = vpop.f32.mrb[0].mxu0
        %v7196 = vpop.f32.mrb[0].mxu0
        %v7197 = vadd.f32 0.0, %v7196
        %v7198 = vpop.f32.mrb[0].mxu0
        %7199 = vdwg.mxu0
        %v7200 = vadd.f32 %v6900, %v7138
        %v7201 = vadd.f32 %v6901, %v7141
        %v7202 = vadd.f32 %v6902, %v7146
        %v7203 = vadd.f32 %v6903, %v7149
        %v7204 = vadd.f32 %v6904, %v7154
        %v7205 = vadd.f32 %v6905, %v7157
        %v7206 = vadd.f32 %v6906, %v7162
        %v7207 = vadd.f32 %v6907, %v7165
        %v7208 = vadd.f32 %v6908, %v7170
        %v7209 = vadd.f32 %v6909, %v7173
        %v7210 = vadd.f32 %v6910, %v7178
        %v7211 = vadd.f32 %v6911, %v7181
        %v7212 = vadd.f32 %v6912, %v7186
        %v7213 = vadd.f32 %v6913, %v7189
        %v7214 = vadd.f32 %v6914, %v7194
        %v7215 = vadd.f32 %v6915, %v7197
        %v7219 = vrot.slane %v6924, 5
        %v7220 = vrot.slane %v7219, 4
        %v7221 = vrot.slane %v6097, 5
        %v7222 = vsel %vm2210, %v7220, %v7221
        %v7223 = vrot.slane %v7221, 4
        %v7224 = vrot.slane %v6098, 5
        %v7225 = vsel %vm2210, %v7223, %v7224
        %s7226 = scalar_lea.vmem %s4, 320
        %v7227 = vld [vmem:[%s7226] sm:$0xf]
        %v7228 = vld [vmem:[%s7226 + $0x4] sm:$0xf]
        %v7229 = vld [vmem:[%s7226 + $0x8] sm:$0xf]
        %v7230 = vld [vmem:[%s7226 + $0xc] sm:$0xf]
        %v7231 = vld [vmem:[%s7226 + $0x10] sm:$0xf]
        %v7232 = vld [vmem:[%s7226 + $0x14] sm:$0xf]
        %v7233 = vld [vmem:[%s7226 + $0x18] sm:$0xf]
        %v7234 = vld [vmem:[%s7226 + $0x1c] sm:$0xf]
        %v7235 = vld [vmem:[%s7226 + $0x20] sm:$0xf]
        %v7236 = vld [vmem:[%s7226 + $0x24] sm:$0xf]
        %v7237 = vld [vmem:[%s7226 + $0x28] sm:$0xf]
        %v7238 = vld [vmem:[%s7226 + $0x2c] sm:$0xf]
        %v7239 = vld [vmem:[%s7226 + $0x30] sm:$0xf]
        %v7240 = vld [vmem:[%s7226 + $0x34] sm:$0xf]
        %v7241 = vld [vmem:[%s7226 + $0x38] sm:$0xf]
        %v7242 = vld [vmem:[%s7226 + $0x3c] sm:$0xf]
        %v7243 = vunpack.c.l.b16 %v7222
        %v7244 = vunpack.c.l.b16 %v7225
        %v7245 = vpack.c.b16 %v7244, %v7243
        %v7263 = vunpack.c.l.b16 %v7227
        %v7264 = vunpack.c.l.b16 %v7228
        %v7265 = vunpack.c.l.b16 %v7229
        %v7266 = vunpack.c.l.b16 %v7230
        %v7267 = vunpack.c.l.b16 %v7231
        %v7268 = vunpack.c.l.b16 %v7232
        %v7269 = vunpack.c.l.b16 %v7233
        %v7270 = vunpack.c.l.b16 %v7234
        %v7271 = vunpack.c.l.b16 %v7235
        %v7272 = vunpack.c.l.b16 %v7236
        %v7273 = vunpack.c.l.b16 %v7237
        %v7274 = vunpack.c.l.b16 %v7238
        %v7275 = vunpack.c.l.b16 %v7239
        %v7276 = vunpack.c.l.b16 %v7240
        %v7277 = vunpack.c.l.b16 %v7241
        %v7278 = vunpack.c.l.b16 %v7242
        %v7279 = vpack.c.b16 %v7264, %v7263
        %v7280 = vpack.c.b16 %v7266, %v7265
        %v7281 = vpack.c.b16 %v7268, %v7267
        %v7282 = vpack.c.b16 %v7270, %v7269
        %v7283 = vpack.c.b16 %v7272, %v7271
        %v7284 = vpack.c.b16 %v7274, %v7273
        %v7285 = vpack.c.b16 %v7276, %v7275
        %v7286 = vpack.c.b16 %v7278, %v7277
        %7295 = vmatprep.subr.bf16.mxu0 0
        %7296 = vmatpush1.bf16.msra.mxu0 %v7279
        %7297 = vmatprep.subr.bf16.mxu0 0
        %7298 = vmatpush1.bf16.msra.mxu0 %v7280
        %7299 = vmatprep.subr.bf16.mxu0 0
        %7300 = vmatpush1.bf16.msra.mxu0 %v7281
        %7301 = vmatprep.subr.bf16.mxu0 0
        %7302 = vmatpush1.bf16.msra.mxu0 %v7282
        %7303 = vmatprep.subr.bf16.mxu0 0
        %7304 = vmatpush1.bf16.msra.mxu0 %v7283
        %7305 = vmatprep.subr.bf16.mxu0 0
        %7306 = vmatpush1.bf16.msra.mxu0 %v7284
        %7307 = vmatprep.subr.bf16.mxu0 0
        %7308 = vmatpush1.bf16.msra.mxu0 %v7285
        %7309 = vmatprep.subr.bf16.mxu0 0
        %7310 = vmatpush1.bf16.msra.mxu0 %v7286
        %7311 = vmatprep.subr.bf16.mxu0 0
        %7312 = vmatpush1.bf16.msra.mxu0 0
        %7313 = vmatprep.subr.bf16.mxu0 0
        %7314 = vmatpush1.bf16.msra.mxu0 0
        %7315 = vmatprep.subr.bf16.mxu0 0
        %7316 = vmatpush1.bf16.msra.mxu0 0
        %7317 = vmatprep.subr.bf16.mxu0 0
        %7318 = vmatpush1.bf16.msra.mxu0 0
        %7319 = vmatprep.subr.bf16.mxu0 0
        %7320 = vmatpush1.bf16.msra.mxu0 0
        %7321 = vmatprep.subr.bf16.mxu0 0
        %7322 = vmatpush1.bf16.msra.mxu0 0
        %7323 = vmatprep.subr.bf16.mxu0 0
        %7324 = vmatpush1.bf16.msra.mxu0 0
        %7325 = vmatprep.subr.bf16.mxu0 0
        %7326 = vmatpush1.bf16.msra.mxu0 0
        %7327 = vmatprep.mubr.bf16.mxu0 0
        %7328 = vmatmul.mubr.bf16.gmra.mrb[0].mxu0 %v7040
        %v7329 = vpop.f32.mrb[0].mxu0
        %v7330 = vadd.f32 0.0, %v7329
        %v7331 = vpop.f32.mrb[0].mxu0
        %v7332 = vpop.f32.mrb[0].mxu0
        %v7333 = vadd.f32 0.0, %v7332
        %v7334 = vpop.f32.mrb[0].mxu0
        %7335 = vmatprep.mubr.bf16.mxu0 0
        %7336 = vmatmul.mubr.bf16.gmra.mrb[0].mxu0 %v7041
        %v7337 = vpop.f32.mrb[0].mxu0
        %v7338 = vadd.f32 0.0, %v7337
        %v7339 = vpop.f32.mrb[0].mxu0
        %v7340 = vpop.f32.mrb[0].mxu0
        %v7341 = vadd.f32 0.0, %v7340
        %v7342 = vpop.f32.mrb[0].mxu0
        %7343 = vmatprep.mubr.bf16.mxu0 0
        %7344 = vmatmul.mubr.bf16.gmra.mrb[0].mxu0 %v7042
        %v7345 = vpop.f32.mrb[0].mxu0
        %v7346 = vadd.f32 0.0, %v7345
        %v7347 = vpop.f32.mrb[0].mxu0
        %v7348 = vpop.f32.mrb[0].mxu0
        %v7349 = vadd.f32 0.0, %v7348
        %v7350 = vpop.f32.mrb[0].mxu0
        %7351 = vmatprep.mubr.bf16.mxu0 0
        %7352 = vmatmul.mubr.bf16.gmra.mrb[0].mxu0 %v7043
        %v7353 = vpop.f32.mrb[0].mxu0
        %v7354 = vadd.f32 0.0, %v7353
        %v7355 = vpop.f32.mrb[0].mxu0
        %v7356 = vpop.f32.mrb[0].mxu0
        %v7357 = vadd.f32 0.0, %v7356
        %v7358 = vpop.f32.mrb[0].mxu0
        %7359 = vmatprep.mubr.bf16.mxu0 0
        %7360 = vmatmul.mubr.bf16.gmra.mrb[0].mxu0 %v7044
        %v7361 = vpop.f32.mrb[0].mxu0
        %v7362 = vadd.f32 0.0, %v7361
        %v7363 = vpop.f32.mrb[0].mxu0
        %v7364 = vpop.f32.mrb[0].mxu0
        %v7365 = vadd.f32 0.0, %v7364
        %v7366 = vpop.f32.mrb[0].mxu0
        %7367 = vmatprep.mubr.bf16.mxu0 0
        %7368 = vmatmul.mubr.bf16.gmra.mrb[0].mxu0 %v7045
        %v7369 = vpop.f32.mrb[0].mxu0
        %v7370 = vadd.f32 0.0, %v7369
        %v7371 = vpop.f32.mrb[0].mxu0
        %v7372 = vpop.f32.mrb[0].mxu0
        %v7373 = vadd.f32 0.0, %v7372
        %v7374 = vpop.f32.mrb[0].mxu0
        %7375 = vmatprep.mubr.bf16.mxu0 0
        %7376 = vmatmul.mubr.bf16.gmra.mrb[0].mxu0 %v7046
        %v7377 = vpop.f32.mrb[0].mxu0
        %v7378 = vadd.f32 0.0, %v7377
        %v7379 = vpop.f32.mrb[0].mxu0
        %v7380 = vpop.f32.mrb[0].mxu0
        %v7381 = vadd.f32 0.0, %v7380
        %v7382 = vpop.f32.mrb[0].mxu0
        %7383 = vmatprep.mubr.bf16.mxu0 0
        %7384 = vmatmul.mubr.bf16.gmra.mrb[0].mxu0 %v7245
        %v7385 = vpop.f32.mrb[0].mxu0
        %v7386 = vadd.f32 0.0, %v7385
        %v7387 = vpop.f32.mrb[0].mxu0
        %v7388 = vpop.f32.mrb[0].mxu0
        %v7389 = vadd.f32 0.0, %v7388
        %v7390 = vpop.f32.mrb[0].mxu0
        %7391 = vdwg.mxu0
        %v7392 = vadd.f32 %v7200, %v7330
        %v7393 = vadd.f32 %v7201, %v7333
        %v7394 = vadd.f32 %v7202, %v7338
        %v7395 = vadd.f32 %v7203, %v7341
        %v7396 = vadd.f32 %v7204, %v7346
        %v7397 = vadd.f32 %v7205, %v7349
        %v7398 = vadd.f32 %v7206, %v7354
        %v7399 = vadd.f32 %v7207, %v7357
        %v7400 = vadd.f32 %v7208, %v7362
        %v7401 = vadd.f32 %v7209, %v7365
        %v7402 = vadd.f32 %v7210, %v7370
        %v7403 = vadd.f32 %v7211, %v7373
        %v7404 = vadd.f32 %v7212, %v7378
        %v7405 = vadd.f32 %v7213, %v7381
        %v7406 = vadd.f32 %v7214, %v7386
        %v7407 = vadd.f32 %v7215, %v7389
        %v7411 = vrot.slane %v6925, 5
        %v7412 = vrot.slane %v7411, 4
        %v7413 = vrot.slane %v6100, 5
        %v7414 = vsel %vm2210, %v7412, %v7413
        %v7415 = vrot.slane %v7413, 4
        %v7416 = vrot.slane %v6101, 5
        %v7417 = vsel %vm2210, %v7415, %v7416
        %s7418 = scalar_lea.vmem %s4, 512
        %v7419 = vld [vmem:[%s7418] sm:$0xf]
        %v7420 = vld [vmem:[%s7418 + $0x4] sm:$0xf]
        %v7421 = vld [vmem:[%s7418 + $0x8] sm:$0xf]
        %v7422 = vld [vmem:[%s7418 + $0xc] sm:$0xf]
        %v7423 = vld [vmem:[%s7418 + $0x10] sm:$0xf]
        %v7424 = vld [vmem:[%s7418 + $0x14] sm:$0xf]
        %v7425 = vld [vmem:[%s7418 + $0x18] sm:$0xf]
        %v7426 = vld [vmem:[%s7418 + $0x1c] sm:$0xf]
        %v7427 = vld [vmem:[%s7418 + $0x20] sm:$0xf]
        %v7428 = vld [vmem:[%s7418 + $0x24] sm:$0xf]
        %v7429 = vld [vmem:[%s7418 + $0x28] sm:$0xf]
        %v7430 = vld [vmem:[%s7418 + $0x2c] sm:$0xf]
        %v7431 = vld [vmem:[%s7418 + $0x30] sm:$0xf]
        %v7432 = vld [vmem:[%s7418 + $0x34] sm:$0xf]
        %v7433 = vld [vmem:[%s7418 + $0x38] sm:$0xf]
        %v7434 = vld [vmem:[%s7418 + $0x3c] sm:$0xf]
        %v7435 = vunpack.c.l.b16 %v7414
        %v7436 = vunpack.c.l.b16 %v7417
        %v7437 = vpack.c.b16 %v7436, %v7435
        %v7455 = vunpack.c.l.b16 %v7419
        %v7456 = vunpack.c.l.b16 %v7420
        %v7457 = vunpack.c.l.b16 %v7421
        %v7458 = vunpack.c.l.b16 %v7422
        %v7459 = vunpack.c.l.b16 %v7423
        %v7460 = vunpack.c.l.b16 %v7424
        %v7461 = vunpack.c.l.b16 %v7425
        %v7462 = vunpack.c.l.b16 %v7426
        %v7463 = vunpack.c.l.b16 %v7427
        %v7464 = vunpack.c.l.b16 %v7428
        %v7465 = vunpack.c.l.b16 %v7429
        %v7466 = vunpack.c.l.b16 %v7430
        %v7467 = vunpack.c.l.b16 %v7431
        %v7468 = vunpack.c.l.b16 %v7432
        %v7469 = vunpack.c.l.b16 %v7433
        %v7470 = vunpack.c.l.b16 %v7434
        %v7471 = vpack.c.b16 %v7456, %v7455
        %v7472 = vpack.c.b16 %v7458, %v7457
        %v7473 = vpack.c.b16 %v7460, %v7459
        %v7474 = vpack.c.b16 %v7462, %v7461
        %v7475 = vpack.c.b16 %v7464, %v7463
        %v7476 = vpack.c.b16 %v7466, %v7465
        %v7477 = vpack.c.b16 %v7468, %v7467
        %v7478 = vpack.c.b16 %v7470, %v7469
        %7487 = vmatprep.subr.bf16.mxu0 0
        %7488 = vmatpush1.bf16.msra.mxu0 %v7471
        %7489 = vmatprep.subr.bf16.mxu0 0
        %7490 = vmatpush1.bf16.msra.mxu0 %v7472
        %7491 = vmatprep.subr.bf16.mxu0 0
        %7492 = vmatpush1.bf16.msra.mxu0 %v7473
        %7493 = vmatprep.subr.bf16.mxu0 0
        %7494 = vmatpush1.bf16.msra.mxu0 %v7474
        %7495 = vmatprep.subr.bf16.mxu0 0
        %7496 = vmatpush1.bf16.msra.mxu0 %v7475
        %7497 = vmatprep.subr.bf16.mxu0 0
        %7498 = vmatpush1.bf16.msra.mxu0 %v7476
        %7499 = vmatprep.subr.bf16.mxu0 0
        %7500 = vmatpush1.bf16.msra.mxu0 %v7477
        %7501 = vmatprep.subr.bf16.mxu0 0
        %7502 = vmatpush1.bf16.msra.mxu0 %v7478
        %7503 = vmatprep.subr.bf16.mxu0 0
        %7504 = vmatpush1.bf16.msra.mxu0 0
        %7505 = vmatprep.subr.bf16.mxu0 0
        %7506 = vmatpush1.bf16.msra.mxu0 0
        %7507 = vmatprep.subr.bf16.mxu0 0
        %7508 = vmatpush1.bf16.msra.mxu0 0
        %7509 = vmatprep.subr.bf16.mxu0 0
        %7510 = vmatpush1.bf16.msra.mxu0 0
        %7511 = vmatprep.subr.bf16.mxu0 0
        %7512 = vmatpush1.bf16.msra.mxu0 0
        %7513 = vmatprep.subr.bf16.mxu0 0
        %7514 = vmatpush1.bf16.msra.mxu0 0
        %7515 = vmatprep.subr.bf16.mxu0 0
        %7516 = vmatpush1.bf16.msra.mxu0 0
        %7517 = vmatprep.subr.bf16.mxu0 0
        %7518 = vmatpush1.bf16.msra.mxu0 0
        %7519 = vmatprep.mubr.bf16.mxu0 0
        %7520 = vmatmul.mubr.bf16.gmra.mrb[0].mxu0 %v7041
        %v7521 = vpop.f32.mrb[0].mxu0
        %v7522 = vadd.f32 0.0, %v7521
        %v7523 = vpop.f32.mrb[0].mxu0
        %v7524 = vpop.f32.mrb[0].mxu0
        %v7525 = vadd.f32 0.0, %v7524
        %v7526 = vpop.f32.mrb[0].mxu0
        %7527 = vmatprep.mubr.bf16.mxu0 0
        %7528 = vmatmul.mubr.bf16.gmra.mrb[0].mxu0 %v7042
        %v7529 = vpop.f32.mrb[0].mxu0
        %v7530 = vadd.f32 0.0, %v7529
        %v7531 = vpop.f32.mrb[0].mxu0
        %v7532 = vpop.f32.mrb[0].mxu0
        %v7533 = vadd.f32 0.0, %v7532
        %v7534 = vpop.f32.mrb[0].mxu0
        %7535 = vmatprep.mubr.bf16.mxu0 0
        %7536 = vmatmul.mubr.bf16.gmra.mrb[0].mxu0 %v7043
        %v7537 = vpop.f32.mrb[0].mxu0
        %v7538 = vadd.f32 0.0, %v7537
        %v7539 = vpop.f32.mrb[0].mxu0
        %v7540 = vpop.f32.mrb[0].mxu0
        %v7541 = vadd.f32 0.0, %v7540
        %v7542 = vpop.f32.mrb[0].mxu0
        %7543 = vmatprep.mubr.bf16.mxu0 0
        %7544 = vmatmul.mubr.bf16.gmra.mrb[0].mxu0 %v7044
        %v7545 = vpop.f32.mrb[0].mxu0
        %v7546 = vadd.f32 0.0, %v7545
        %v7547 = vpop.f32.mrb[0].mxu0
        %v7548 = vpop.f32.mrb[0].mxu0
        %v7549 = vadd.f32 0.0, %v7548
        %v7550 = vpop.f32.mrb[0].mxu0
        %7551 = vmatprep.mubr.bf16.mxu0 0
        %7552 = vmatmul.mubr.bf16.gmra.mrb[0].mxu0 %v7045
        %v7553 = vpop.f32.mrb[0].mxu0
        %v7554 = vadd.f32 0.0, %v7553
        %v7555 = vpop.f32.mrb[0].mxu0
        %v7556 = vpop.f32.mrb[0].mxu0
        %v7557 = vadd.f32 0.0, %v7556
        %v7558 = vpop.f32.mrb[0].mxu0
        %7559 = vmatprep.mubr.bf16.mxu0 0
        %7560 = vmatmul.mubr.bf16.gmra.mrb[0].mxu0 %v7046
        %v7561 = vpop.f32.mrb[0].mxu0
        %v7562 = vadd.f32 0.0, %v7561
        %v7563 = vpop.f32.mrb[0].mxu0
        %v7564 = vpop.f32.mrb[0].mxu0
        %v7565 = vadd.f32 0.0, %v7564
        %v7566 = vpop.f32.mrb[0].mxu0
        %7567 = vmatprep.mubr.bf16.mxu0 0
        %7568 = vmatmul.mubr.bf16.gmra.mrb[0].mxu0 %v7245
        %v7569 = vpop.f32.mrb[0].mxu0
        %v7570 = vadd.f32 0.0, %v7569
        %v7571 = vpop.f32.mrb[0].mxu0
        %v7572 = vpop.f32.mrb[0].mxu0
        %v7573 = vadd.f32 0.0, %v7572
        %v7574 = vpop.f32.mrb[0].mxu0
        %7575 = vmatprep.mubr.bf16.mxu0 0
        %7576 = vmatmul.mubr.bf16.gmra.mrb[0].mxu0 %v7437
        %v7577 = vpop.f32.mrb[0].mxu0
        %v7578 = vadd.f32 0.0, %v7577
        %v7579 = vpop.f32.mrb[0].mxu0
        %v7580 = vpop.f32.mrb[0].mxu0
        %v7581 = vadd.f32 0.0, %v7580
        %v7582 = vpop.f32.mrb[0].mxu0
        %7583 = vdwg.mxu0
        %v7584 = vadd.f32 %v7392, %v7522
        %v7585 = vadd.f32 %v7393, %v7525
        %v7586 = vadd.f32 %v7394, %v7530
        %v7587 = vadd.f32 %v7395, %v7533
        %v7588 = vadd.f32 %v7396, %v7538
        %v7589 = vadd.f32 %v7397, %v7541
        %v7590 = vadd.f32 %v7398, %v7546
        %v7591 = vadd.f32 %v7399, %v7549
        %v7592 = vadd.f32 %v7400, %v7554
        %v7593 = vadd.f32 %v7401, %v7557
        %v7594 = vadd.f32 %v7402, %v7562
        %v7595 = vadd.f32 %v7403, %v7565
        %v7596 = vadd.f32 %v7404, %v7570
        %v7597 = vadd.f32 %v7405, %v7573
        %v7598 = vadd.f32 %v7406, %v7578
        %v7599 = vadd.f32 %v7407, %v7581
        %v7600 = vld [vmem:[%s276] sm:$0xff]
        %v7601 = vld [vmem:[%s276 + $0x8] sm:$0xff]
        %v7602 = vld [vmem:[%s276 + $0x10] sm:$0xff]
        %v7603 = vld [vmem:[%s276 + $0x18] sm:$0xff]
        %v7604 = vld [vmem:[%s276 + $0x20] sm:$0xff]
        %v7605 = vld [vmem:[%s276 + $0x28] sm:$0xff]
        %v7606 = vld [vmem:[%s276 + $0x30] sm:$0xff]
        %v7607 = vld [vmem:[%s276 + $0x38] sm:$0xff]
        %v7608 = vld [vmem:[%s276 + $0x40] sm:$0xff]
        %v7609 = vld [vmem:[%s276 + $0x48] sm:$0xff]
        %v7610 = vld [vmem:[%s276 + $0x50] sm:$0xff]
        %v7611 = vld [vmem:[%s276 + $0x58] sm:$0xff]
        %v7612 = vld [vmem:[%s276 + $0x60] sm:$0xff]
        %v7613 = vld [vmem:[%s276 + $0x68] sm:$0xff]
        %v7614 = vld [vmem:[%s276 + $0x70] sm:$0xff]
        %v7615 = vld [vmem:[%s276 + $0x78] sm:$0xff]
        %v7617 = vlaneseq
        %v7618 = vshrl.u32 %v7617, 7
        %v7619 = vsub.s32 0, %v7618
        %v7620 = vrot.slane %v5489, %v7619
        %v7622 = vmul.f32 %v7584, %v7620
        %v7623 = vmul.f32 %v7585, %v7620
        %v7624 = vmul.f32 %v7586, %v7620
        %v7625 = vmul.f32 %v7587, %v7620
        %v7626 = vmul.f32 %v7588, %v7620
        %v7627 = vmul.f32 %v7589, %v7620
        %v7628 = vmul.f32 %v7590, %v7620
        %v7629 = vmul.f32 %v7591, %v7620
        %v7630 = vmul.f32 %v7592, %v7620
        %v7631 = vmul.f32 %v7593, %v7620
        %v7632 = vmul.f32 %v7594, %v7620
        %v7633 = vmul.f32 %v7595, %v7620
        %v7634 = vmul.f32 %v7596, %v7620
        %v7635 = vmul.f32 %v7597, %v7620
        %v7636 = vmul.f32 %v7598, %v7620
        %v7637 = vmul.f32 %v7599, %v7620
        %v7639 = vlaneseq
        %v7640 = vshrl.u32 %v7639, 7
        %v7641 = vsub.s32 0, %v7640
        %v7642 = vrot.slane %v5490, %v7641
        %v7644 = vadd.f32 %v7622, %v7642
        %v7645 = vadd.f32 %v7623, %v7642
        %v7646 = vadd.f32 %v7624, %v7642
        %v7647 = vadd.f32 %v7625, %v7642
        %v7648 = vadd.f32 %v7626, %v7642
        %v7649 = vadd.f32 %v7627, %v7642
        %v7650 = vadd.f32 %v7628, %v7642
        %v7651 = vadd.f32 %v7629, %v7642
        %v7652 = vadd.f32 %v7630, %v7642
        %v7653 = vadd.f32 %v7631, %v7642
        %v7654 = vadd.f32 %v7632, %v7642
        %v7655 = vadd.f32 %v7633, %v7642
        %v7656 = vadd.f32 %v7634, %v7642
        %v7657 = vadd.f32 %v7635, %v7642
        %v7658 = vadd.f32 %v7636, %v7642
        %v7659 = vadd.f32 %v7637, %v7642
        %v7660 = vadd.f32 %v7644, %v7600
        %v7661 = vadd.f32 %v7645, %v7601
        %v7662 = vadd.f32 %v7646, %v7602
        %v7663 = vadd.f32 %v7647, %v7603
        %v7664 = vadd.f32 %v7648, %v7604
        %v7665 = vadd.f32 %v7649, %v7605
        %v7666 = vadd.f32 %v7650, %v7606
        %v7667 = vadd.f32 %v7651, %v7607
        %v7668 = vadd.f32 %v7652, %v7608
        %v7669 = vadd.f32 %v7653, %v7609
        %v7670 = vadd.f32 %v7654, %v7610
        %v7671 = vadd.f32 %v7655, %v7611
        %v7672 = vadd.f32 %v7656, %v7612
        %v7673 = vadd.f32 %v7657, %v7613
        %v7674 = vadd.f32 %v7658, %v7614
        %v7675 = vadd.f32 %v7659, %v7615
        %v7676 = vmax.f32 %v7660, 0.0
        %v7677 = vmax.f32 %v7661, 0.0
        %v7678 = vmax.f32 %v7662, 0.0
        %v7679 = vmax.f32 %v7663, 0.0
        %v7680 = vmax.f32 %v7664, 0.0
        %v7681 = vmax.f32 %v7665, 0.0
        %v7682 = vmax.f32 %v7666, 0.0
        %v7683 = vmax.f32 %v7667, 0.0
        %v7684 = vmax.f32 %v7668, 0.0
        %v7685 = vmax.f32 %v7669, 0.0
        %v7686 = vmax.f32 %v7670, 0.0
        %v7687 = vmax.f32 %v7671, 0.0
        %v7688 = vmax.f32 %v7672, 0.0
        %v7689 = vmax.f32 %v7673, 0.0
        %v7690 = vmax.f32 %v7674, 0.0
        %v7691 = vmax.f32 %v7675, 0.0
        %7692 = vst [vmem:[%s271] sm:$0xff] %v7676
        %7693 = vst [vmem:[%s271 + $0x8] sm:$0xff] %v7677
        %7694 = vst [vmem:[%s271 + $0x10] sm:$0xff] %v7678
        %7695 = vst [vmem:[%s271 + $0x18] sm:$0xff] %v7679
        %7696 = vst [vmem:[%s271 + $0x20] sm:$0xff] %v7680
        %7697 = vst [vmem:[%s271 + $0x28] sm:$0xff] %v7681
        %7698 = vst [vmem:[%s271 + $0x30] sm:$0xff] %v7682
        %7699 = vst [vmem:[%s271 + $0x38] sm:$0xff] %v7683
        %7700 = vst [vmem:[%s271 + $0x40] sm:$0xff] %v7684
        %7701 = vst [vmem:[%s271 + $0x48] sm:$0xff] %v7685
        %7702 = vst [vmem:[%s271 + $0x50] sm:$0xff] %v7686
        %7703 = vst [vmem:[%s271 + $0x58] sm:$0xff] %v7687
        %7704 = vst [vmem:[%s271 + $0x60] sm:$0xff] %v7688
        %7705 = vst [vmem:[%s271 + $0x68] sm:$0xff] %v7689
        %7706 = vst [vmem:[%s271 + $0x70] sm:$0xff] %v7690
        %7707 = vst [vmem:[%s271 + $0x78] sm:$0xff] %v7691
        %s7708 = scalar_lea.vmem [#allocation3], 96
        %v7709 = vld [vmem:[%s7708] sm:$0xf]
        %v7710 = vld [vmem:[%s7708 + $0x4] sm:$0xf]
        %v7711 = vld [vmem:[%s7708 + $0xc] sm:$0xf]
        %v7712 = vld [vmem:[%s7708 + $0x10] sm:$0xf]
        %v7713 = vld [vmem:[%s7708 + $0x18] sm:$0xf]
        %v7714 = vld [vmem:[%s7708 + $0x1c] sm:$0xf]
        %v7715 = vld [vmem:[%s7708 + $0x24] sm:$0xf]
        %v7716 = vld [vmem:[%s7708 + $0x28] sm:$0xf]
        %v7717 = vld [vmem:[%s7708 + $0x30] sm:$0xf]
        %v7718 = vld [vmem:[%s7708 + $0x34] sm:$0xf]
        %v7719 = vld [vmem:[%s7708 + $0x3c] sm:$0xf]
        %v7720 = vld [vmem:[%s7708 + $0x40] sm:$0xf]
        %v7721 = vld [vmem:[%s7708 + $0x48] sm:$0xf]
        %v7722 = vld [vmem:[%s7708 + $0x4c] sm:$0xf]
        %v7723 = vld [vmem:[%s7708 + $0x54] sm:$0xf]
        %v7724 = vld [vmem:[%s7708 + $0x58] sm:$0xf]
        %v7725 = vld [vmem:[%s7708 + $0x60] sm:$0xf]
        %v7726 = vld [vmem:[%s7708 + $0x64] sm:$0xf]
        %v7727 = vld [vmem:[%s7708 + $0x6c] sm:$0xf]
        %v7728 = vld [vmem:[%s7708 + $0x70] sm:$0xf]
        %v7729 = vld [vmem:[%s4] sm:$0xf]
        %v7730 = vld [vmem:[%s4 + $0x4] sm:$0xf]
        %v7731 = vld [vmem:[%s4 + $0x8] sm:$0xf]
        %v7732 = vld [vmem:[%s4 + $0xc] sm:$0xf]
        %v7733 = vld [vmem:[%s4 + $0x10] sm:$0xf]
        %v7734 = vld [vmem:[%s4 + $0x14] sm:$0xf]
        %v7735 = vld [vmem:[%s4 + $0x18] sm:$0xf]
        %v7736 = vld [vmem:[%s4 + $0x1c] sm:$0xf]
        %v7737 = vld [vmem:[%s4 + $0x20] sm:$0xf]
        %v7738 = vld [vmem:[%s4 + $0x24] sm:$0xf]
        %v7739 = vld [vmem:[%s4 + $0x28] sm:$0xf]
        %v7740 = vld [vmem:[%s4 + $0x2c] sm:$0xf]
        %v7741 = vld [vmem:[%s4 + $0x30] sm:$0xf]
        %v7742 = vld [vmem:[%s4 + $0x34] sm:$0xf]
        %v7743 = vld [vmem:[%s4 + $0x38] sm:$0xf]
        %v7744 = vld [vmem:[%s4 + $0x3c] sm:$0xf]
        %v7745 = vld [vmem:[%s5527] sm:$0xf]
        %v7746 = vld [vmem:[%s5527 + $0x4] sm:$0xf]
        %v7747 = vld [vmem:[%s5527 + $0x8] sm:$0xf]
        %v7748 = vld [vmem:[%s5527 + $0xc] sm:$0xf]
        %v7749 = vld [vmem:[%s5527 + $0x10] sm:$0xf]
        %v7750 = vld [vmem:[%s5527 + $0x14] sm:$0xf]
        %v7751 = vld [vmem:[%s5527 + $0x18] sm:$0xf]
        %v7752 = vld [vmem:[%s5527 + $0x1c] sm:$0xf]
        %v7753 = vld [vmem:[%s5527 + $0x20] sm:$0xf]
        %v7754 = vld [vmem:[%s5527 + $0x24] sm:$0xf]
        %v7755 = vld [vmem:[%s5527 + $0x28] sm:$0xf]
        %v7756 = vld [vmem:[%s5527 + $0x2c] sm:$0xf]
        %v7757 = vld [vmem:[%s5527 + $0x30] sm:$0xf]
        %v7758 = vld [vmem:[%s5527 + $0x34] sm:$0xf]
        %v7759 = vld [vmem:[%s5527 + $0x38] sm:$0xf]
        %v7760 = vld [vmem:[%s5527 + $0x3c] sm:$0xf]
        %v7777 = vunpack.c.l.b16 %v7711
        %v7778 = vunpack.c.l.b16 %v7712
        %v7779 = vunpack.c.l.b16 %v7713
        %v7780 = vunpack.c.l.b16 %v7714
        %v7781 = vunpack.c.l.b16 %v7715
        %v7782 = vunpack.c.l.b16 %v7716
        %v7783 = vunpack.c.l.b16 %v7717
        %v7784 = vunpack.c.l.b16 %v7718
        %v7785 = vunpack.c.l.b16 %v7719
        %v7786 = vunpack.c.l.b16 %v7720
        %v7787 = vunpack.c.l.b16 %v7721
        %v7788 = vunpack.c.l.b16 %v7722
        %v7789 = vunpack.c.l.b16 %v7723
        %v7790 = vunpack.c.l.b16 %v7724
        %v7791 = vunpack.c.l.b16 %v7725
        %v7792 = vunpack.c.l.b16 %v7726
        %v7793 = vpack.c.b16 %v7778, %v7777
        %v7794 = vpack.c.b16 %v7780, %v7779
        %v7795 = vpack.c.b16 %v7782, %v7781
        %v7796 = vpack.c.b16 %v7784, %v7783
        %v7797 = vpack.c.b16 %v7786, %v7785
        %v7798 = vpack.c.b16 %v7788, %v7787
        %v7799 = vpack.c.b16 %v7790, %v7789
        %v7800 = vpack.c.b16 %v7792, %v7791
        %v7825 = vunpack.c.l.b16 %v7745
        %v7826 = vunpack.c.l.b16 %v7746
        %v7827 = vunpack.c.l.b16 %v7747
        %v7828 = vunpack.c.l.b16 %v7748
        %v7829 = vunpack.c.l.b16 %v7749
        %v7830 = vunpack.c.l.b16 %v7750
        %v7831 = vunpack.c.l.b16 %v7751
        %v7832 = vunpack.c.l.b16 %v7752
        %v7833 = vunpack.c.l.b16 %v7753
        %v7834 = vunpack.c.l.b16 %v7754
        %v7835 = vunpack.c.l.b16 %v7755
        %v7836 = vunpack.c.l.b16 %v7756
        %v7837 = vunpack.c.l.b16 %v7757
        %v7838 = vunpack.c.l.b16 %v7758
        %v7839 = vunpack.c.l.b16 %v7759
        %v7840 = vunpack.c.l.b16 %v7760
        %v7841 = vpack.c.b16 %v7826, %v7825
        %v7842 = vpack.c.b16 %v7828, %v7827
        %v7843 = vpack.c.b16 %v7830, %v7829
        %v7844 = vpack.c.b16 %v7832, %v7831
        %v7845 = vpack.c.b16 %v7834, %v7833
        %v7846 = vpack.c.b16 %v7836, %v7835
        %v7847 = vpack.c.b16 %v7838, %v7837
        %v7848 = vpack.c.b16 %v7840, %v7839
        %7857 = vmatprep.subr.bf16.mxu0 0
        %7858 = vmatpush1.bf16.msra.mxu0 %v7841
        %7859 = vmatprep.subr.bf16.mxu0 0
        %7860 = vmatpush1.bf16.msra.mxu0 %v7842
        %7861 = vmatprep.subr.bf16.mxu0 0
        %7862 = vmatpush1.bf16.msra.mxu0 %v7843
        %7863 = vmatprep.subr.bf16.mxu0 0
        %7864 = vmatpush1.bf16.msra.mxu0 %v7844
        %7865 = vmatprep.subr.bf16.mxu0 0
        %7866 = vmatpush1.bf16.msra.mxu0 %v7845
        %7867 = vmatprep.subr.bf16.mxu0 0
        %7868 = vmatpush1.bf16.msra.mxu0 %v7846
        %7869 = vmatprep.subr.bf16.mxu0 0
        %7870 = vmatpush1.bf16.msra.mxu0 %v7847
        %7871 = vmatprep.subr.bf16.mxu0 0
        %7872 = vmatpush1.bf16.msra.mxu0 %v7848
        %7873 = vmatprep.subr.bf16.mxu0 0
        %7874 = vmatpush1.bf16.msra.mxu0 0
        %7875 = vmatprep.subr.bf16.mxu0 0
        %7876 = vmatpush1.bf16.msra.mxu0 0
        %7877 = vmatprep.subr.bf16.mxu0 0
        %7878 = vmatpush1.bf16.msra.mxu0 0
        %7879 = vmatprep.subr.bf16.mxu0 0
        %7880 = vmatpush1.bf16.msra.mxu0 0
        %7881 = vmatprep.subr.bf16.mxu0 0
        %7882 = vmatpush1.bf16.msra.mxu0 0
        %7883 = vmatprep.subr.bf16.mxu0 0
        %7884 = vmatpush1.bf16.msra.mxu0 0
        %7885 = vmatprep.subr.bf16.mxu0 0
        %7886 = vmatpush1.bf16.msra.mxu0 0
        %7887 = vmatprep.subr.bf16.mxu0 0
        %7888 = vmatpush1.bf16.msra.mxu0 0
        %7889 = vmatprep.mubr.bf16.mxu0 0
        %7890 = vmatmul.mubr.bf16.gmra.mrb[0].mxu0 %v7793
        %v7891 = vpop.f32.mrb[0].mxu0
        %v7892 = vadd.f32 0.0, %v7891
        %v7893 = vpop.f32.mrb[0].mxu0
        %v7894 = vpop.f32.mrb[0].mxu0
        %v7895 = vadd.f32 0.0, %v7894
        %v7896 = vpop.f32.mrb[0].mxu0
        %7897 = vmatprep.mubr.bf16.mxu0 0
        %7898 = vmatmul.mubr.bf16.gmra.mrb[0].mxu0 %v7794
        %v7899 = vpop.f32.mrb[0].mxu0
        %v7900 = vadd.f32 0.0, %v7899
        %v7901 = vpop.f32.mrb[0].mxu0
        %v7902 = vpop.f32.mrb[0].mxu0
        %v7903 = vadd.f32 0.0, %v7902
        %v7904 = vpop.f32.mrb[0].mxu0
        %7905 = vmatprep.mubr.bf16.mxu0 0
        %7906 = vmatmul.mubr.bf16.gmra.mrb[0].mxu0 %v7795
        %v7907 = vpop.f32.mrb[0].mxu0
        %v7908 = vadd.f32 0.0, %v7907
        %v7909 = vpop.f32.mrb[0].mxu0
        %v7910 = vpop.f32.mrb[0].mxu0
        %v7911 = vadd.f32 0.0, %v7910
        %v7912 = vpop.f32.mrb[0].mxu0
        %7913 = vmatprep.mubr.bf16.mxu0 0
        %7914 = vmatmul.mubr.bf16.gmra.mrb[0].mxu0 %v7796
        %v7915 = vpop.f32.mrb[0].mxu0
        %v7916 = vadd.f32 0.0, %v7915
        %v7917 = vpop.f32.mrb[0].mxu0
        %v7918 = vpop.f32.mrb[0].mxu0
        %v7919 = vadd.f32 0.0, %v7918
        %v7920 = vpop.f32.mrb[0].mxu0
        %7921 = vmatprep.mubr.bf16.mxu0 0
        %7922 = vmatmul.mubr.bf16.gmra.mrb[0].mxu0 %v7797
        %v7923 = vpop.f32.mrb[0].mxu0
        %v7924 = vadd.f32 0.0, %v7923
        %v7925 = vpop.f32.mrb[0].mxu0
        %v7926 = vpop.f32.mrb[0].mxu0
        %v7927 = vadd.f32 0.0, %v7926
        %v7928 = vpop.f32.mrb[0].mxu0
        %7929 = vmatprep.mubr.bf16.mxu0 0
        %7930 = vmatmul.mubr.bf16.gmra.mrb[0].mxu0 %v7798
        %v7931 = vpop.f32.mrb[0].mxu0
        %v7932 = vadd.f32 0.0, %v7931
        %v7933 = vpop.f32.mrb[0].mxu0
        %v7934 = vpop.f32.mrb[0].mxu0
        %v7935 = vadd.f32 0.0, %v7934
        %v7936 = vpop.f32.mrb[0].mxu0
        %7937 = vmatprep.mubr.bf16.mxu0 0
        %7938 = vmatmul.mubr.bf16.gmra.mrb[0].mxu0 %v7799
        %v7939 = vpop.f32.mrb[0].mxu0
        %v7940 = vadd.f32 0.0, %v7939
        %v7941 = vpop.f32.mrb[0].mxu0
        %v7942 = vpop.f32.mrb[0].mxu0
        %v7943 = vadd.f32 0.0, %v7942
        %v7944 = vpop.f32.mrb[0].mxu0
        %7945 = vmatprep.mubr.bf16.mxu0 0
        %7946 = vmatmul.mubr.bf16.gmra.mrb[0].mxu0 %v7800
        %v7947 = vpop.f32.mrb[0].mxu0
        %v7948 = vadd.f32 0.0, %v7947
        %v7949 = vpop.f32.mrb[0].mxu0
        %v7950 = vpop.f32.mrb[0].mxu0
        %v7951 = vadd.f32 0.0, %v7950
        %v7952 = vpop.f32.mrb[0].mxu0
        %7953 = vdwg.mxu0
        %v7956 = vunpack.c.l.b16 %v7709
        %v7957 = vunpack.c.l.b16 %v7710
        %v7958 = vpack.c.b16 %v7957, %v7956
        %v7976 = vunpack.c.l.b16 %v7729
        %v7977 = vunpack.c.l.b16 %v7730
        %v7978 = vunpack.c.l.b16 %v7731
        %v7979 = vunpack.c.l.b16 %v7732
        %v7980 = vunpack.c.l.b16 %v7733
        %v7981 = vunpack.c.l.b16 %v7734
        %v7982 = vunpack.c.l.b16 %v7735
        %v7983 = vunpack.c.l.b16 %v7736
        %v7984 = vunpack.c.l.b16 %v7737
        %v7985 = vunpack.c.l.b16 %v7738
        %v7986 = vunpack.c.l.b16 %v7739
        %v7987 = vunpack.c.l.b16 %v7740
        %v7988 = vunpack.c.l.b16 %v7741
        %v7989 = vunpack.c.l.b16 %v7742
        %v7990 = vunpack.c.l.b16 %v7743
        %v7991 = vunpack.c.l.b16 %v7744
        %v7992 = vpack.c.b16 %v7977, %v7976
        %v7993 = vpack.c.b16 %v7979, %v7978
        %v7994 = vpack.c.b16 %v7981, %v7980
        %v7995 = vpack.c.b16 %v7983, %v7982
        %v7996 = vpack.c.b16 %v7985, %v7984
        %v7997 = vpack.c.b16 %v7987, %v7986
        %v7998 = vpack.c.b16 %v7989, %v7988
        %v7999 = vpack.c.b16 %v7991, %v7990
        %8008 = vmatprep.subr.bf16.mxu0 0
        %8009 = vmatpush1.bf16.msra.mxu0 %v7992
        %8010 = vmatprep.subr.bf16.mxu0 0
        %8011 = vmatpush1.bf16.msra.mxu0 %v7993
        %8012 = vmatprep.subr.bf16.mxu0 0
        %8013 = vmatpush1.bf16.msra.mxu0 %v7994
        %8014 = vmatprep.subr.bf16.mxu0 0
        %8015 = vmatpush1.bf16.msra.mxu0 %v7995
        %8016 = vmatprep.subr.bf16.mxu0 0
        %8017 = vmatpush1.bf16.msra.mxu0 %v7996
        %8018 = vmatprep.subr.bf16.mxu0 0
        %8019 = vmatpush1.bf16.msra.mxu0 %v7997
        %8020 = vmatprep.subr.bf16.mxu0 0
        %8021 = vmatpush1.bf16.msra.mxu0 %v7998
        %8022 = vmatprep.subr.bf16.mxu0 0
        %8023 = vmatpush1.bf16.msra.mxu0 %v7999
        %8024 = vmatprep.subr.bf16.mxu0 0
        %8025 = vmatpush1.bf16.msra.mxu0 0
        %8026 = vmatprep.subr.bf16.mxu0 0
        %8027 = vmatpush1.bf16.msra.mxu0 0
        %8028 = vmatprep.subr.bf16.mxu0 0
        %8029 = vmatpush1.bf16.msra.mxu0 0
        %8030 = vmatprep.subr.bf16.mxu0 0
        %8031 = vmatpush1.bf16.msra.mxu0 0
        %8032 = vmatprep.subr.bf16.mxu0 0
        %8033 = vmatpush1.bf16.msra.mxu0 0
        %8034 = vmatprep.subr.bf16.mxu0 0
        %8035 = vmatpush1.bf16.msra.mxu0 0
        %8036 = vmatprep.subr.bf16.mxu0 0
        %8037 = vmatpush1.bf16.msra.mxu0 0
        %8038 = vmatprep.subr.bf16.mxu0 0
        %8039 = vmatpush1.bf16.msra.mxu0 0
        %8040 = vmatprep.mubr.bf16.mxu0 0
        %8041 = vmatmul.mubr.bf16.gmra.mrb[0].mxu0 %v7958
        %v8042 = vpop.f32.mrb[0].mxu0
        %v8043 = vadd.f32 %v7892, %v8042
        %v8044 = vpop.f32.mrb[0].mxu0
        %v8045 = vpop.f32.mrb[0].mxu0
        %v8046 = vadd.f32 %v7895, %v8045
        %v8047 = vpop.f32.mrb[0].mxu0
        %8048 = vmatprep.mubr.bf16.mxu0 0
        %8049 = vmatmul.mubr.bf16.gmra.mrb[0].mxu0 %v7793
        %v8050 = vpop.f32.mrb[0].mxu0
        %v8051 = vadd.f32 %v7900, %v8050
        %v8052 = vpop.f32.mrb[0].mxu0
        %v8053 = vpop.f32.mrb[0].mxu0
        %v8054 = vadd.f32 %v7903, %v8053
        %v8055 = vpop.f32.mrb[0].mxu0
        %8056 = vmatprep.mubr.bf16.mxu0 0
        %8057 = vmatmul.mubr.bf16.gmra.mrb[0].mxu0 %v7794
        %v8058 = vpop.f32.mrb[0].mxu0
        %v8059 = vadd.f32 %v7908, %v8058
        %v8060 = vpop.f32.mrb[0].mxu0
        %v8061 = vpop.f32.mrb[0].mxu0
        %v8062 = vadd.f32 %v7911, %v8061
        %v8063 = vpop.f32.mrb[0].mxu0
        %8064 = vmatprep.mubr.bf16.mxu0 0
        %8065 = vmatmul.mubr.bf16.gmra.mrb[0].mxu0 %v7795
        %v8066 = vpop.f32.mrb[0].mxu0
        %v8067 = vadd.f32 %v7916, %v8066
        %v8068 = vpop.f32.mrb[0].mxu0
        %v8069 = vpop.f32.mrb[0].mxu0
        %v8070 = vadd.f32 %v7919, %v8069
        %v8071 = vpop.f32.mrb[0].mxu0
        %8072 = vmatprep.mubr.bf16.mxu0 0
        %8073 = vmatmul.mubr.bf16.gmra.mrb[0].mxu0 %v7796
        %v8074 = vpop.f32.mrb[0].mxu0
        %v8075 = vadd.f32 %v7924, %v8074
        %v8076 = vpop.f32.mrb[0].mxu0
        %v8077 = vpop.f32.mrb[0].mxu0
        %v8078 = vadd.f32 %v7927, %v8077
        %v8079 = vpop.f32.mrb[0].mxu0
        %8080 = vmatprep.mubr.bf16.mxu0 0
        %8081 = vmatmul.mubr.bf16.gmra.mrb[0].mxu0 %v7797
        %v8082 = vpop.f32.mrb[0].mxu0
        %v8083 = vadd.f32 %v7932, %v8082
        %v8084 = vpop.f32.mrb[0].mxu0
        %v8085 = vpop.f32.mrb[0].mxu0
        %v8086 = vadd.f32 %v7935, %v8085
        %v8087 = vpop.f32.mrb[0].mxu0
        %8088 = vmatprep.mubr.bf16.mxu0 0
        %8089 = vmatmul.mubr.bf16.gmra.mrb[0].mxu0 %v7798
        %v8090 = vpop.f32.mrb[0].mxu0
        %v8091 = vadd.f32 %v7940, %v8090
        %v8092 = vpop.f32.mrb[0].mxu0
        %v8093 = vpop.f32.mrb[0].mxu0
        %v8094 = vadd.f32 %v7943, %v8093
        %v8095 = vpop.f32.mrb[0].mxu0
        %8096 = vmatprep.mubr.bf16.mxu0 0
        %8097 = vmatmul.mubr.bf16.gmra.mrb[0].mxu0 %v7799
        %v8098 = vpop.f32.mrb[0].mxu0
        %v8099 = vadd.f32 %v7948, %v8098
        %v8100 = vpop.f32.mrb[0].mxu0
        %v8101 = vpop.f32.mrb[0].mxu0
        %v8102 = vadd.f32 %v7951, %v8101
        %v8103 = vpop.f32.mrb[0].mxu0
        %8104 = vdwg.mxu0
        %v8105 = vld [vmem:[%s5888] sm:$0xf]
        %v8106 = vld [vmem:[%s5888 + $0x4] sm:$0xf]
        %v8107 = vld [vmem:[%s5888 + $0x8] sm:$0xf]
        %v8108 = vld [vmem:[%s5888 + $0xc] sm:$0xf]
        %v8109 = vld [vmem:[%s5888 + $0x10] sm:$0xf]
        %v8110 = vld [vmem:[%s5888 + $0x14] sm:$0xf]
        %v8111 = vld [vmem:[%s5888 + $0x18] sm:$0xf]
        %v8112 = vld [vmem:[%s5888 + $0x1c] sm:$0xf]
        %v8113 = vld [vmem:[%s5888 + $0x20] sm:$0xf]
        %v8114 = vld [vmem:[%s5888 + $0x24] sm:$0xf]
        %v8115 = vld [vmem:[%s5888 + $0x28] sm:$0xf]
        %v8116 = vld [vmem:[%s5888 + $0x2c] sm:$0xf]
        %v8117 = vld [vmem:[%s5888 + $0x30] sm:$0xf]
        %v8118 = vld [vmem:[%s5888 + $0x34] sm:$0xf]
        %v8119 = vld [vmem:[%s5888 + $0x38] sm:$0xf]
        %v8120 = vld [vmem:[%s5888 + $0x3c] sm:$0xf]
        %v8123 = vunpack.c.l.b16 %v7727
        %v8124 = vunpack.c.l.b16 %v7728
        %v8125 = vpack.c.b16 %v8124, %v8123
        %v8143 = vunpack.c.l.b16 %v8105
        %v8144 = vunpack.c.l.b16 %v8106
        %v8145 = vunpack.c.l.b16 %v8107
        %v8146 = vunpack.c.l.b16 %v8108
        %v8147 = vunpack.c.l.b16 %v8109
        %v8148 = vunpack.c.l.b16 %v8110
        %v8149 = vunpack.c.l.b16 %v8111
        %v8150 = vunpack.c.l.b16 %v8112
        %v8151 = vunpack.c.l.b16 %v8113
        %v8152 = vunpack.c.l.b16 %v8114
        %v8153 = vunpack.c.l.b16 %v8115
        %v8154 = vunpack.c.l.b16 %v8116
        %v8155 = vunpack.c.l.b16 %v8117
        %v8156 = vunpack.c.l.b16 %v8118
        %v8157 = vunpack.c.l.b16 %v8119
        %v8158 = vunpack.c.l.b16 %v8120
        %v8159 = vpack.c.b16 %v8144, %v8143
        %v8160 = vpack.c.b16 %v8146, %v8145
        %v8161 = vpack.c.b16 %v8148, %v8147
        %v8162 = vpack.c.b16 %v8150, %v8149
        %v8163 = vpack.c.b16 %v8152, %v8151
        %v8164 = vpack.c.b16 %v8154, %v8153
        %v8165 = vpack.c.b16 %v8156, %v8155
        %v8166 = vpack.c.b16 %v8158, %v8157
        %8175 = vmatprep.subr.bf16.mxu0 0
        %8176 = vmatpush1.bf16.msra.mxu0 %v8159
        %8177 = vmatprep.subr.bf16.mxu0 0
        %8178 = vmatpush1.bf16.msra.mxu0 %v8160
        %8179 = vmatprep.subr.bf16.mxu0 0
        %8180 = vmatpush1.bf16.msra.mxu0 %v8161
        %8181 = vmatprep.subr.bf16.mxu0 0
        %8182 = vmatpush1.bf16.msra.mxu0 %v8162
        %8183 = vmatprep.subr.bf16.mxu0 0
        %8184 = vmatpush1.bf16.msra.mxu0 %v8163
        %8185 = vmatprep.subr.bf16.mxu0 0
        %8186 = vmatpush1.bf16.msra.mxu0 %v8164
        %8187 = vmatprep.subr.bf16.mxu0 0
        %8188 = vmatpush1.bf16.msra.mxu0 %v8165
        %8189 = vmatprep.subr.bf16.mxu0 0
        %8190 = vmatpush1.bf16.msra.mxu0 %v8166
        %8191 = vmatprep.subr.bf16.mxu0 0
        %8192 = vmatpush1.bf16.msra.mxu0 0
        %8193 = vmatprep.subr.bf16.mxu0 0
        %8194 = vmatpush1.bf16.msra.mxu0 0
        %8195 = vmatprep.subr.bf16.mxu0 0
        %8196 = vmatpush1.bf16.msra.mxu0 0
        %8197 = vmatprep.subr.bf16.mxu0 0
        %8198 = vmatpush1.bf16.msra.mxu0 0
        %8199 = vmatprep.subr.bf16.mxu0 0
        %8200 = vmatpush1.bf16.msra.mxu0 0
        %8201 = vmatprep.subr.bf16.mxu0 0
        %8202 = vmatpush1.bf16.msra.mxu0 0
        %8203 = vmatprep.subr.bf16.mxu0 0
        %8204 = vmatpush1.bf16.msra.mxu0 0
        %8205 = vmatprep.subr.bf16.mxu0 0
        %8206 = vmatpush1.bf16.msra.mxu0 0
        %8207 = vmatprep.mubr.bf16.mxu0 0
        %8208 = vmatmul.mubr.bf16.gmra.mrb[0].mxu0 %v7794
        %v8209 = vpop.f32.mrb[0].mxu0
        %v8210 = vadd.f32 0.0, %v8209
        %v8211 = vpop.f32.mrb[0].mxu0
        %v8212 = vpop.f32.mrb[0].mxu0
        %v8213 = vadd.f32 0.0, %v8212
        %v8214 = vpop.f32.mrb[0].mxu0
        %8215 = vmatprep.mubr.bf16.mxu0 0
        %8216 = vmatmul.mubr.bf16.gmra.mrb[0].mxu0 %v7795
        %v8217 = vpop.f32.mrb[0].mxu0
        %v8218 = vadd.f32 0.0, %v8217
        %v8219 = vpop.f32.mrb[0].mxu0
        %v8220 = vpop.f32.mrb[0].mxu0
        %v8221 = vadd.f32 0.0, %v8220
        %v8222 = vpop.f32.mrb[0].mxu0
        %8223 = vmatprep.mubr.bf16.mxu0 0
        %8224 = vmatmul.mubr.bf16.gmra.mrb[0].mxu0 %v7796
        %v8225 = vpop.f32.mrb[0].mxu0
        %v8226 = vadd.f32 0.0, %v8225
        %v8227 = vpop.f32.mrb[0].mxu0
        %v8228 = vpop.f32.mrb[0].mxu0
        %v8229 = vadd.f32 0.0, %v8228
        %v8230 = vpop.f32.mrb[0].mxu0
        %8231 = vmatprep.mubr.bf16.mxu0 0
        %8232 = vmatmul.mubr.bf16.gmra.mrb[0].mxu0 %v7797
        %v8233 = vpop.f32.mrb[0].mxu0
        %v8234 = vadd.f32 0.0, %v8233
        %v8235 = vpop.f32.mrb[0].mxu0
        %v8236 = vpop.f32.mrb[0].mxu0
        %v8237 = vadd.f32 0.0, %v8236
        %v8238 = vpop.f32.mrb[0].mxu0
        %8239 = vmatprep.mubr.bf16.mxu0 0
        %8240 = vmatmul.mubr.bf16.gmra.mrb[0].mxu0 %v7798
        %v8241 = vpop.f32.mrb[0].mxu0
        %v8242 = vadd.f32 0.0, %v8241
        %v8243 = vpop.f32.mrb[0].mxu0
        %v8244 = vpop.f32.mrb[0].mxu0
        %v8245 = vadd.f32 0.0, %v8244
        %v8246 = vpop.f32.mrb[0].mxu0
        %8247 = vmatprep.mubr.bf16.mxu0 0
        %8248 = vmatmul.mubr.bf16.gmra.mrb[0].mxu0 %v7799
        %v8249 = vpop.f32.mrb[0].mxu0
        %v8250 = vadd.f32 0.0, %v8249
        %v8251 = vpop.f32.mrb[0].mxu0
        %v8252 = vpop.f32.mrb[0].mxu0
        %v8253 = vadd.f32 0.0, %v8252
        %v8254 = vpop.f32.mrb[0].mxu0
        %8255 = vmatprep.mubr.bf16.mxu0 0
        %8256 = vmatmul.mubr.bf16.gmra.mrb[0].mxu0 %v7800
        %v8257 = vpop.f32.mrb[0].mxu0
        %v8258 = vadd.f32 0.0, %v8257
        %v8259 = vpop.f32.mrb[0].mxu0
        %v8260 = vpop.f32.mrb[0].mxu0
        %v8261 = vadd.f32 0.0, %v8260
        %v8262 = vpop.f32.mrb[0].mxu0
        %8263 = vmatprep.mubr.bf16.mxu0 0
        %8264 = vmatmul.mubr.bf16.gmra.mrb[0].mxu0 %v8125
        %v8265 = vpop.f32.mrb[0].mxu0
        %v8266 = vadd.f32 0.0, %v8265
        %v8267 = vpop.f32.mrb[0].mxu0
        %v8268 = vpop.f32.mrb[0].mxu0
        %v8269 = vadd.f32 0.0, %v8268
        %v8270 = vpop.f32.mrb[0].mxu0
        %8271 = vdwg.mxu0
        %v8272 = vadd.f32 %v8043, %v8210
        %v8273 = vadd.f32 %v8046, %v8213
        %v8274 = vadd.f32 %v8051, %v8218
        %v8275 = vadd.f32 %v8054, %v8221
        %v8276 = vadd.f32 %v8059, %v8226
        %v8277 = vadd.f32 %v8062, %v8229
        %v8278 = vadd.f32 %v8067, %v8234
        %v8279 = vadd.f32 %v8070, %v8237
        %v8280 = vadd.f32 %v8075, %v8242
        %v8281 = vadd.f32 %v8078, %v8245
        %v8282 = vadd.f32 %v8083, %v8250
        %v8283 = vadd.f32 %v8086, %v8253
        %v8284 = vadd.f32 %v8091, %v8258
        %v8285 = vadd.f32 %v8094, %v8261
        %v8286 = vadd.f32 %v8099, %v8266
        %v8287 = vadd.f32 %v8102, %v8269
        %v8288 = vld [vmem:[%s7708] sm:$0xf]
        %v8289 = vld [vmem:[%s7708 + $0x4] sm:$0xf]
        %v8290 = vld [vmem:[%s7708 + $0x8] sm:$0x1]
        %v8291 = vld [vmem:[%s7708 + $0xc] sm:$0xf]
        %v8292 = vld [vmem:[%s7708 + $0x10] sm:$0xf]
        %v8293 = vld [vmem:[%s7708 + $0x14] sm:$0x1]
        %v8294 = vld [vmem:[%s7708 + $0x18] sm:$0xf]
        %v8295 = vld [vmem:[%s7708 + $0x1c] sm:$0xf]
        %v8296 = vld [vmem:[%s7708 + $0x20] sm:$0x1]
        %v8297 = vld [vmem:[%s7708 + $0x24] sm:$0xf]
        %v8298 = vld [vmem:[%s7708 + $0x28] sm:$0xf]
        %v8299 = vld [vmem:[%s7708 + $0x2c] sm:$0x1]
        %v8300 = vld [vmem:[%s7708 + $0x30] sm:$0xf]
        %v8301 = vld [vmem:[%s7708 + $0x34] sm:$0xf]
        %v8302 = vld [vmem:[%s7708 + $0x38] sm:$0x1]
        %v8303 = vld [vmem:[%s7708 + $0x3c] sm:$0xf]
        %v8304 = vld [vmem:[%s7708 + $0x40] sm:$0xf]
        %v8305 = vld [vmem:[%s7708 + $0x44] sm:$0x1]
        %v8306 = vld [vmem:[%s7708 + $0x48] sm:$0xf]
        %v8307 = vld [vmem:[%s7708 + $0x4c] sm:$0xf]
        %v8308 = vld [vmem:[%s7708 + $0x50] sm:$0x1]
        %v8309 = vld [vmem:[%s7708 + $0x54] sm:$0xf]
        %v8310 = vld [vmem:[%s7708 + $0x58] sm:$0xf]
        %v8311 = vld [vmem:[%s7708 + $0x5c] sm:$0x1]
        %v8312 = vld [vmem:[%s7708 + $0x60] sm:$0xf]
        %v8313 = vld [vmem:[%s7708 + $0x64] sm:$0xf]
        %v8314 = vld [vmem:[%s7708 + $0x68] sm:$0x1]
        %v8315 = vld [vmem:[%s7708 + $0x6c] sm:$0xf]
        %v8316 = vld [vmem:[%s7708 + $0x70] sm:$0xf]
        %v8317 = vld [vmem:[%s7708 + $0x74] sm:$0x1]
        %v8319 = vshrl.u32 %v8288, 16
        %v8321 = vrot.slane %v8319, 4
        %v8322 = vshll.u32 %v8288, 16
        %v8324 = vrot.slane %v8322, 5
        %v8325 = vor.u32 %v8321, %v8324
        %v8326 = vrot.slane %v8325, 4
        %v8328 = vshll.u32 %v8289, 16
        %v8330 = vrot.slane %v8328, 5
        %v8331 = vsel %vm1359, %v8326, %v8330
        %v8332 = vshrl.u32 %v8289, 16
        %v8334 = vrot.slane %v8332, 4
        %v8335 = vor.u32 %v8334, %v8330
        %v8336 = vrot.slane %v8335, 4
        %v8338 = vshll.u32 %v8290, 16
        %v8340 = vrot.slane %v8338, 5
        %v8341 = vsel %vm1359, %v8336, %v8340
        %v8343 = vshrl.u32 %v8291, 16
        %v8345 = vrot.slane %v8343, 4
        %v8346 = vshll.u32 %v8291, 16
        %v8348 = vrot.slane %v8346, 5
        %v8349 = vor.u32 %v8345, %v8348
        %v8350 = vrot.slane %v8349, 4
        %v8352 = vshll.u32 %v8292, 16
        %v8354 = vrot.slane %v8352, 5
        %v8355 = vsel %vm1359, %v8350, %v8354
        %v8356 = vshrl.u32 %v8292, 16
        %v8358 = vrot.slane %v8356, 4
        %v8359 = vor.u32 %v8358, %v8354
        %v8360 = vrot.slane %v8359, 4
        %v8362 = vshll.u32 %v8293, 16
        %v8364 = vrot.slane %v8362, 5
        %v8365 = vsel %vm1359, %v8360, %v8364
        %v8367 = vshrl.u32 %v8294, 16
        %v8369 = vrot.slane %v8367, 4
        %v8370 = vshll.u32 %v8294, 16
        %v8372 = vrot.slane %v8370, 5
        %v8373 = vor.u32 %v8369, %v8372
        %v8374 = vrot.slane %v8373, 4
        %v8376 = vshll.u32 %v8295, 16
        %v8378 = vrot.slane %v8376, 5
        %v8379 = vsel %vm1359, %v8374, %v8378
        %v8380 = vshrl.u32 %v8295, 16
        %v8382 = vrot.slane %v8380, 4
        %v8383 = vor.u32 %v8382, %v8378
        %v8384 = vrot.slane %v8383, 4
        %v8386 = vshll.u32 %v8296, 16
        %v8388 = vrot.slane %v8386, 5
        %v8389 = vsel %vm1359, %v8384, %v8388
        %v8391 = vshrl.u32 %v8297, 16
        %v8393 = vrot.slane %v8391, 4
        %v8394 = vshll.u32 %v8297, 16
        %v8396 = vrot.slane %v8394, 5
        %v8397 = vor.u32 %v8393, %v8396
        %v8398 = vrot.slane %v8397, 4
        %v8400 = vshll.u32 %v8298, 16
        %v8402 = vrot.slane %v8400, 5
        %v8403 = vsel %vm1359, %v8398, %v8402
        %v8404 = vshrl.u32 %v8298, 16
        %v8406 = vrot.slane %v8404, 4
        %v8407 = vor.u32 %v8406, %v8402
        %v8408 = vrot.slane %v8407, 4
        %v8410 = vshll.u32 %v8299, 16
        %v8412 = vrot.slane %v8410, 5
        %v8413 = vsel %vm1359, %v8408, %v8412
        %v8415 = vshrl.u32 %v8300, 16
        %v8417 = vrot.slane %v8415, 4
        %v8418 = vshll.u32 %v8300, 16
        %v8420 = vrot.slane %v8418, 5
        %v8421 = vor.u32 %v8417, %v8420
        %v8422 = vrot.slane %v8421, 4
        %v8424 = vshll.u32 %v8301, 16
        %v8426 = vrot.slane %v8424, 5
        %v8427 = vsel %vm1359, %v8422, %v8426
        %v8428 = vshrl.u32 %v8301, 16
        %v8430 = vrot.slane %v8428, 4
        %v8431 = vor.u32 %v8430, %v8426
        %v8432 = vrot.slane %v8431, 4
        %v8434 = vshll.u32 %v8302, 16
        %v8436 = vrot.slane %v8434, 5
        %v8437 = vsel %vm1359, %v8432, %v8436
        %v8439 = vshrl.u32 %v8303, 16
        %v8441 = vrot.slane %v8439, 4
        %v8442 = vshll.u32 %v8303, 16
        %v8444 = vrot.slane %v8442, 5
        %v8445 = vor.u32 %v8441, %v8444
        %v8446 = vrot.slane %v8445, 4
        %v8448 = vshll.u32 %v8304, 16
        %v8450 = vrot.slane %v8448, 5
        %v8451 = vsel %vm1359, %v8446, %v8450
        %v8452 = vshrl.u32 %v8304, 16
        %v8454 = vrot.slane %v8452, 4
        %v8455 = vor.u32 %v8454, %v8450
        %v8456 = vrot.slane %v8455, 4
        %v8458 = vshll.u32 %v8305, 16
        %v8460 = vrot.slane %v8458, 5
        %v8461 = vsel %vm1359, %v8456, %v8460
        %v8463 = vshrl.u32 %v8306, 16
        %v8465 = vrot.slane %v8463, 4
        %v8466 = vshll.u32 %v8306, 16
        %v8468 = vrot.slane %v8466, 5
        %v8469 = vor.u32 %v8465, %v8468
        %v8470 = vrot.slane %v8469, 4
        %v8472 = vshll.u32 %v8307, 16
        %v8474 = vrot.slane %v8472, 5
        %v8475 = vsel %vm1359, %v8470, %v8474
        %v8476 = vshrl.u32 %v8307, 16
        %v8478 = vrot.slane %v8476, 4
        %v8479 = vor.u32 %v8478, %v8474
        %v8480 = vrot.slane %v8479, 4
        %v8482 = vshll.u32 %v8308, 16
        %v8484 = vrot.slane %v8482, 5
        %v8485 = vsel %vm1359, %v8480, %v8484
        %v8487 = vshrl.u32 %v8309, 16
        %v8489 = vrot.slane %v8487, 4
        %v8490 = vshll.u32 %v8309, 16
        %v8492 = vrot.slane %v8490, 5
        %v8493 = vor.u32 %v8489, %v8492
        %v8494 = vrot.slane %v8493, 4
        %v8496 = vshll.u32 %v8310, 16
        %v8498 = vrot.slane %v8496, 5
        %v8499 = vsel %vm1359, %v8494, %v8498
        %v8500 = vshrl.u32 %v8310, 16
        %v8502 = vrot.slane %v8500, 4
        %v8503 = vor.u32 %v8502, %v8498
        %v8504 = vrot.slane %v8503, 4
        %v8506 = vshll.u32 %v8311, 16
        %v8508 = vrot.slane %v8506, 5
        %v8509 = vsel %vm1359, %v8504, %v8508
        %v8510 = vld [vmem:[%s6294] sm:$0xf]
        %v8511 = vld [vmem:[%s6294 + $0x4] sm:$0xf]
        %v8512 = vld [vmem:[%s6294 + $0x8] sm:$0xf]
        %v8513 = vld [vmem:[%s6294 + $0xc] sm:$0xf]
        %v8514 = vld [vmem:[%s6294 + $0x10] sm:$0xf]
        %v8515 = vld [vmem:[%s6294 + $0x14] sm:$0xf]
        %v8516 = vld [vmem:[%s6294 + $0x18] sm:$0xf]
        %v8517 = vld [vmem:[%s6294 + $0x1c] sm:$0xf]
        %v8518 = vld [vmem:[%s6294 + $0x20] sm:$0xf]
        %v8519 = vld [vmem:[%s6294 + $0x24] sm:$0xf]
        %v8520 = vld [vmem:[%s6294 + $0x28] sm:$0xf]
        %v8521 = vld [vmem:[%s6294 + $0x2c] sm:$0xf]
        %v8522 = vld [vmem:[%s6294 + $0x30] sm:$0xf]
        %v8523 = vld [vmem:[%s6294 + $0x34] sm:$0xf]
        %v8524 = vld [vmem:[%s6294 + $0x38] sm:$0xf]
        %v8525 = vld [vmem:[%s6294 + $0x3c] sm:$0xf]
        %v8526 = vunpack.c.l.b16 %v8331
        %v8527 = vunpack.c.l.b16 %v8341
        %v8528 = vunpack.c.l.b16 %v8355
        %v8529 = vunpack.c.l.b16 %v8365
        %v8530 = vunpack.c.l.b16 %v8379
        %v8531 = vunpack.c.l.b16 %v8389
        %v8532 = vunpack.c.l.b16 %v8403
        %v8533 = vunpack.c.l.b16 %v8413
        %v8534 = vunpack.c.l.b16 %v8427
        %v8535 = vunpack.c.l.b16 %v8437
        %v8536 = vunpack.c.l.b16 %v8451
        %v8537 = vunpack.c.l.b16 %v8461
        %v8538 = vunpack.c.l.b16 %v8475
        %v8539 = vunpack.c.l.b16 %v8485
        %v8540 = vunpack.c.l.b16 %v8499
        %v8541 = vunpack.c.l.b16 %v8509
        %v8542 = vpack.c.b16 %v8527, %v8526
        %v8543 = vpack.c.b16 %v8529, %v8528
        %v8544 = vpack.c.b16 %v8531, %v8530
        %v8545 = vpack.c.b16 %v8533, %v8532
        %v8546 = vpack.c.b16 %v8535, %v8534
        %v8547 = vpack.c.b16 %v8537, %v8536
        %v8548 = vpack.c.b16 %v8539, %v8538
        %v8549 = vpack.c.b16 %v8541, %v8540
        %v8574 = vunpack.c.l.b16 %v8510
        %v8575 = vunpack.c.l.b16 %v8511
        %v8576 = vunpack.c.l.b16 %v8512
        %v8577 = vunpack.c.l.b16 %v8513
        %v8578 = vunpack.c.l.b16 %v8514
        %v8579 = vunpack.c.l.b16 %v8515
        %v8580 = vunpack.c.l.b16 %v8516
        %v8581 = vunpack.c.l.b16 %v8517
        %v8582 = vunpack.c.l.b16 %v8518
        %v8583 = vunpack.c.l.b16 %v8519
        %v8584 = vunpack.c.l.b16 %v8520
        %v8585 = vunpack.c.l.b16 %v8521
        %v8586 = vunpack.c.l.b16 %v8522
        %v8587 = vunpack.c.l.b16 %v8523
        %v8588 = vunpack.c.l.b16 %v8524
        %v8589 = vunpack.c.l.b16 %v8525
        %v8590 = vpack.c.b16 %v8575, %v8574
        %v8591 = vpack.c.b16 %v8577, %v8576
        %v8592 = vpack.c.b16 %v8579, %v8578
        %v8593 = vpack.c.b16 %v8581, %v8580
        %v8594 = vpack.c.b16 %v8583, %v8582
        %v8595 = vpack.c.b16 %v8585, %v8584
        %v8596 = vpack.c.b16 %v8587, %v8586
        %v8597 = vpack.c.b16 %v8589, %v8588
        %8606 = vmatprep.subr.bf16.mxu0 0
        %8607 = vmatpush1.bf16.msra.mxu0 %v8590
        %8608 = vmatprep.subr.bf16.mxu0 0
        %8609 = vmatpush1.bf16.msra.mxu0 %v8591
        %8610 = vmatprep.subr.bf16.mxu0 0
        %8611 = vmatpush1.bf16.msra.mxu0 %v8592
        %8612 = vmatprep.subr.bf16.mxu0 0
        %8613 = vmatpush1.bf16.msra.mxu0 %v8593
        %8614 = vmatprep.subr.bf16.mxu0 0
        %8615 = vmatpush1.bf16.msra.mxu0 %v8594
        %8616 = vmatprep.subr.bf16.mxu0 0
        %8617 = vmatpush1.bf16.msra.mxu0 %v8595
        %8618 = vmatprep.subr.bf16.mxu0 0
        %8619 = vmatpush1.bf16.msra.mxu0 %v8596
        %8620 = vmatprep.subr.bf16.mxu0 0
        %8621 = vmatpush1.bf16.msra.mxu0 %v8597
        %8622 = vmatprep.subr.bf16.mxu0 0
        %8623 = vmatpush1.bf16.msra.mxu0 0
        %8624 = vmatprep.subr.bf16.mxu0 0
        %8625 = vmatpush1.bf16.msra.mxu0 0
        %8626 = vmatprep.subr.bf16.mxu0 0
        %8627 = vmatpush1.bf16.msra.mxu0 0
        %8628 = vmatprep.subr.bf16.mxu0 0
        %8629 = vmatpush1.bf16.msra.mxu0 0
        %8630 = vmatprep.subr.bf16.mxu0 0
        %8631 = vmatpush1.bf16.msra.mxu0 0
        %8632 = vmatprep.subr.bf16.mxu0 0
        %8633 = vmatpush1.bf16.msra.mxu0 0
        %8634 = vmatprep.subr.bf16.mxu0 0
        %8635 = vmatpush1.bf16.msra.mxu0 0
        %8636 = vmatprep.subr.bf16.mxu0 0
        %8637 = vmatpush1.bf16.msra.mxu0 0
        %8638 = vmatprep.mubr.bf16.mxu0 0
        %8639 = vmatmul.mubr.bf16.gmra.mrb[0].mxu0 %v8542
        %v8640 = vpop.f32.mrb[0].mxu0
        %v8641 = vadd.f32 0.0, %v8640
        %v8642 = vpop.f32.mrb[0].mxu0
        %v8643 = vpop.f32.mrb[0].mxu0
        %v8644 = vadd.f32 0.0, %v8643
        %v8645 = vpop.f32.mrb[0].mxu0
        %8646 = vmatprep.mubr.bf16.mxu0 0
        %8647 = vmatmul.mubr.bf16.gmra.mrb[0].mxu0 %v8543
        %v8648 = vpop.f32.mrb[0].mxu0
        %v8649 = vadd.f32 0.0, %v8648
        %v8650 = vpop.f32.mrb[0].mxu0
        %v8651 = vpop.f32.mrb[0].mxu0
        %v8652 = vadd.f32 0.0, %v8651
        %v8653 = vpop.f32.mrb[0].mxu0
        %8654 = vmatprep.mubr.bf16.mxu0 0
        %8655 = vmatmul.mubr.bf16.gmra.mrb[0].mxu0 %v8544
        %v8656 = vpop.f32.mrb[0].mxu0
        %v8657 = vadd.f32 0.0, %v8656
        %v8658 = vpop.f32.mrb[0].mxu0
        %v8659 = vpop.f32.mrb[0].mxu0
        %v8660 = vadd.f32 0.0, %v8659
        %v8661 = vpop.f32.mrb[0].mxu0
        %8662 = vmatprep.mubr.bf16.mxu0 0
        %8663 = vmatmul.mubr.bf16.gmra.mrb[0].mxu0 %v8545
        %v8664 = vpop.f32.mrb[0].mxu0
        %v8665 = vadd.f32 0.0, %v8664
        %v8666 = vpop.f32.mrb[0].mxu0
        %v8667 = vpop.f32.mrb[0].mxu0
        %v8668 = vadd.f32 0.0, %v8667
        %v8669 = vpop.f32.mrb[0].mxu0
        %8670 = vmatprep.mubr.bf16.mxu0 0
        %8671 = vmatmul.mubr.bf16.gmra.mrb[0].mxu0 %v8546
        %v8672 = vpop.f32.mrb[0].mxu0
        %v8673 = vadd.f32 0.0, %v8672
        %v8674 = vpop.f32.mrb[0].mxu0
        %v8675 = vpop.f32.mrb[0].mxu0
        %v8676 = vadd.f32 0.0, %v8675
        %v8677 = vpop.f32.mrb[0].mxu0
        %8678 = vmatprep.mubr.bf16.mxu0 0
        %8679 = vmatmul.mubr.bf16.gmra.mrb[0].mxu0 %v8547
        %v8680 = vpop.f32.mrb[0].mxu0
        %v8681 = vadd.f32 0.0, %v8680
        %v8682 = vpop.f32.mrb[0].mxu0
        %v8683 = vpop.f32.mrb[0].mxu0
        %v8684 = vadd.f32 0.0, %v8683
        %v8685 = vpop.f32.mrb[0].mxu0
        %8686 = vmatprep.mubr.bf16.mxu0 0
        %8687 = vmatmul.mubr.bf16.gmra.mrb[0].mxu0 %v8548
        %v8688 = vpop.f32.mrb[0].mxu0
        %v8689 = vadd.f32 0.0, %v8688
        %v8690 = vpop.f32.mrb[0].mxu0
        %v8691 = vpop.f32.mrb[0].mxu0
        %v8692 = vadd.f32 0.0, %v8691
        %v8693 = vpop.f32.mrb[0].mxu0
        %8694 = vmatprep.mubr.bf16.mxu0 0
        %8695 = vmatmul.mubr.bf16.gmra.mrb[0].mxu0 %v8549
        %v8696 = vpop.f32.mrb[0].mxu0
        %v8697 = vadd.f32 0.0, %v8696
        %v8698 = vpop.f32.mrb[0].mxu0
        %v8699 = vpop.f32.mrb[0].mxu0
        %v8700 = vadd.f32 0.0, %v8699
        %v8701 = vpop.f32.mrb[0].mxu0
        %8702 = vdwg.mxu0
        %v8703 = vadd.f32 %v8272, %v8641
        %v8704 = vadd.f32 %v8273, %v8644
        %v8705 = vadd.f32 %v8274, %v8649
        %v8706 = vadd.f32 %v8275, %v8652
        %v8707 = vadd.f32 %v8276, %v8657
        %v8708 = vadd.f32 %v8277, %v8660
        %v8709 = vadd.f32 %v8278, %v8665
        %v8710 = vadd.f32 %v8279, %v8668
        %v8711 = vadd.f32 %v8280, %v8673
        %v8712 = vadd.f32 %v8281, %v8676
        %v8713 = vadd.f32 %v8282, %v8681
        %v8714 = vadd.f32 %v8283, %v8684
        %v8715 = vadd.f32 %v8284, %v8689
        %v8716 = vadd.f32 %v8285, %v8692
        %v8717 = vadd.f32 %v8286, %v8697
        %v8718 = vadd.f32 %v8287, %v8700
        %v8720 = vshrl.u32 %v8312, 16
        %v8722 = vrot.slane %v8720, 4
        %v8723 = vshll.u32 %v8312, 16
        %v8725 = vrot.slane %v8723, 5
        %v8726 = vor.u32 %v8722, %v8725
        %v8727 = vrot.slane %v8726, 4
        %v8729 = vshll.u32 %v8313, 16
        %v8731 = vrot.slane %v8729, 5
        %v8732 = vsel %vm1359, %v8727, %v8731
        %v8733 = vshrl.u32 %v8313, 16
        %v8735 = vrot.slane %v8733, 4
        %v8736 = vor.u32 %v8735, %v8731
        %v8737 = vrot.slane %v8736, 4
        %v8739 = vshll.u32 %v8314, 16
        %v8741 = vrot.slane %v8739, 5
        %v8742 = vsel %vm1359, %v8737, %v8741
        %v8743 = vld [vmem:[%s6528] sm:$0xf]
        %v8744 = vld [vmem:[%s6528 + $0x4] sm:$0xf]
        %v8745 = vld [vmem:[%s6528 + $0x8] sm:$0xf]
        %v8746 = vld [vmem:[%s6528 + $0xc] sm:$0xf]
        %v8747 = vld [vmem:[%s6528 + $0x10] sm:$0xf]
        %v8748 = vld [vmem:[%s6528 + $0x14] sm:$0xf]
        %v8749 = vld [vmem:[%s6528 + $0x18] sm:$0xf]
        %v8750 = vld [vmem:[%s6528 + $0x1c] sm:$0xf]
        %v8751 = vld [vmem:[%s6528 + $0x20] sm:$0xf]
        %v8752 = vld [vmem:[%s6528 + $0x24] sm:$0xf]
        %v8753 = vld [vmem:[%s6528 + $0x28] sm:$0xf]
        %v8754 = vld [vmem:[%s6528 + $0x2c] sm:$0xf]
        %v8755 = vld [vmem:[%s6528 + $0x30] sm:$0xf]
        %v8756 = vld [vmem:[%s6528 + $0x34] sm:$0xf]
        %v8757 = vld [vmem:[%s6528 + $0x38] sm:$0xf]
        %v8758 = vld [vmem:[%s6528 + $0x3c] sm:$0xf]
        %v8759 = vunpack.c.l.b16 %v8732
        %v8760 = vunpack.c.l.b16 %v8742
        %v8761 = vpack.c.b16 %v8760, %v8759
        %v8779 = vunpack.c.l.b16 %v8743
        %v8780 = vunpack.c.l.b16 %v8744
        %v8781 = vunpack.c.l.b16 %v8745
        %v8782 = vunpack.c.l.b16 %v8746
        %v8783 = vunpack.c.l.b16 %v8747
        %v8784 = vunpack.c.l.b16 %v8748
        %v8785 = vunpack.c.l.b16 %v8749
        %v8786 = vunpack.c.l.b16 %v8750
        %v8787 = vunpack.c.l.b16 %v8751
        %v8788 = vunpack.c.l.b16 %v8752
        %v8789 = vunpack.c.l.b16 %v8753
        %v8790 = vunpack.c.l.b16 %v8754
        %v8791 = vunpack.c.l.b16 %v8755
        %v8792 = vunpack.c.l.b16 %v8756
        %v8793 = vunpack.c.l.b16 %v8757
        %v8794 = vunpack.c.l.b16 %v8758
        %v8795 = vpack.c.b16 %v8780, %v8779
        %v8796 = vpack.c.b16 %v8782, %v8781
        %v8797 = vpack.c.b16 %v8784, %v8783
        %v8798 = vpack.c.b16 %v8786, %v8785
        %v8799 = vpack.c.b16 %v8788, %v8787
        %v8800 = vpack.c.b16 %v8790, %v8789
        %v8801 = vpack.c.b16 %v8792, %v8791
        %v8802 = vpack.c.b16 %v8794, %v8793
        %8811 = vmatprep.subr.bf16.mxu0 0
        %8812 = vmatpush1.bf16.msra.mxu0 %v8795
        %8813 = vmatprep.subr.bf16.mxu0 0
        %8814 = vmatpush1.bf16.msra.mxu0 %v8796
        %8815 = vmatprep.subr.bf16.mxu0 0
        %8816 = vmatpush1.bf16.msra.mxu0 %v8797
        %8817 = vmatprep.subr.bf16.mxu0 0
        %8818 = vmatpush1.bf16.msra.mxu0 %v8798
        %8819 = vmatprep.subr.bf16.mxu0 0
        %8820 = vmatpush1.bf16.msra.mxu0 %v8799
        %8821 = vmatprep.subr.bf16.mxu0 0
        %8822 = vmatpush1.bf16.msra.mxu0 %v8800
        %8823 = vmatprep.subr.bf16.mxu0 0
        %8824 = vmatpush1.bf16.msra.mxu0 %v8801
        %8825 = vmatprep.subr.bf16.mxu0 0
        %8826 = vmatpush1.bf16.msra.mxu0 %v8802
        %8827 = vmatprep.subr.bf16.mxu0 0
        %8828 = vmatpush1.bf16.msra.mxu0 0
        %8829 = vmatprep.subr.bf16.mxu0 0
        %8830 = vmatpush1.bf16.msra.mxu0 0
        %8831 = vmatprep.subr.bf16.mxu0 0
        %8832 = vmatpush1.bf16.msra.mxu0 0
        %8833 = vmatprep.subr.bf16.mxu0 0
        %8834 = vmatpush1.bf16.msra.mxu0 0
        %8835 = vmatprep.subr.bf16.mxu0 0
        %8836 = vmatpush1.bf16.msra.mxu0 0
        %8837 = vmatprep.subr.bf16.mxu0 0
        %8838 = vmatpush1.bf16.msra.mxu0 0
        %8839 = vmatprep.subr.bf16.mxu0 0
        %8840 = vmatpush1.bf16.msra.mxu0 0
        %8841 = vmatprep.subr.bf16.mxu0 0
        %8842 = vmatpush1.bf16.msra.mxu0 0
        %8843 = vmatprep.mubr.bf16.mxu0 0
        %8844 = vmatmul.mubr.bf16.gmra.mrb[0].mxu0 %v8543
        %v8845 = vpop.f32.mrb[0].mxu0
        %v8846 = vadd.f32 0.0, %v8845
        %v8847 = vpop.f32.mrb[0].mxu0
        %v8848 = vpop.f32.mrb[0].mxu0
        %v8849 = vadd.f32 0.0, %v8848
        %v8850 = vpop.f32.mrb[0].mxu0
        %8851 = vmatprep.mubr.bf16.mxu0 0
        %8852 = vmatmul.mubr.bf16.gmra.mrb[0].mxu0 %v8544
        %v8853 = vpop.f32.mrb[0].mxu0
        %v8854 = vadd.f32 0.0, %v8853
        %v8855 = vpop.f32.mrb[0].mxu0
        %v8856 = vpop.f32.mrb[0].mxu0
        %v8857 = vadd.f32 0.0, %v8856
        %v8858 = vpop.f32.mrb[0].mxu0
        %8859 = vmatprep.mubr.bf16.mxu0 0
        %8860 = vmatmul.mubr.bf16.gmra.mrb[0].mxu0 %v8545
        %v8861 = vpop.f32.mrb[0].mxu0
        %v8862 = vadd.f32 0.0, %v8861
        %v8863 = vpop.f32.mrb[0].mxu0
        %v8864 = vpop.f32.mrb[0].mxu0
        %v8865 = vadd.f32 0.0, %v8864
        %v8866 = vpop.f32.mrb[0].mxu0
        %8867 = vmatprep.mubr.bf16.mxu0 0
        %8868 = vmatmul.mubr.bf16.gmra.mrb[0].mxu0 %v8546
        %v8869 = vpop.f32.mrb[0].mxu0
        %v8870 = vadd.f32 0.0, %v8869
        %v8871 = vpop.f32.mrb[0].mxu0
        %v8872 = vpop.f32.mrb[0].mxu0
        %v8873 = vadd.f32 0.0, %v8872
        %v8874 = vpop.f32.mrb[0].mxu0
        %8875 = vmatprep.mubr.bf16.mxu0 0
        %8876 = vmatmul.mubr.bf16.gmra.mrb[0].mxu0 %v8547
        %v8877 = vpop.f32.mrb[0].mxu0
        %v8878 = vadd.f32 0.0, %v8877
        %v8879 = vpop.f32.mrb[0].mxu0
        %v8880 = vpop.f32.mrb[0].mxu0
        %v8881 = vadd.f32 0.0, %v8880
        %v8882 = vpop.f32.mrb[0].mxu0
        %8883 = vmatprep.mubr.bf16.mxu0 0
        %8884 = vmatmul.mubr.bf16.gmra.mrb[0].mxu0 %v8548
        %v8885 = vpop.f32.mrb[0].mxu0
        %v8886 = vadd.f32 0.0, %v8885
        %v8887 = vpop.f32.mrb[0].mxu0
        %v8888 = vpop.f32.mrb[0].mxu0
        %v8889 = vadd.f32 0.0, %v8888
        %v8890 = vpop.f32.mrb[0].mxu0
        %8891 = vmatprep.mubr.bf16.mxu0 0
        %8892 = vmatmul.mubr.bf16.gmra.mrb[0].mxu0 %v8549
        %v8893 = vpop.f32.mrb[0].mxu0
        %v8894 = vadd.f32 0.0, %v8893
        %v8895 = vpop.f32.mrb[0].mxu0
        %v8896 = vpop.f32.mrb[0].mxu0
        %v8897 = vadd.f32 0.0, %v8896
        %v8898 = vpop.f32.mrb[0].mxu0
        %8899 = vmatprep.mubr.bf16.mxu0 0
        %8900 = vmatmul.mubr.bf16.gmra.mrb[0].mxu0 %v8761
        %v8901 = vpop.f32.mrb[0].mxu0
        %v8902 = vadd.f32 0.0, %v8901
        %v8903 = vpop.f32.mrb[0].mxu0
        %v8904 = vpop.f32.mrb[0].mxu0
        %v8905 = vadd.f32 0.0, %v8904
        %v8906 = vpop.f32.mrb[0].mxu0
        %8907 = vdwg.mxu0
        %v8908 = vadd.f32 %v8703, %v8846
        %v8909 = vadd.f32 %v8704, %v8849
        %v8910 = vadd.f32 %v8705, %v8854
        %v8911 = vadd.f32 %v8706, %v8857
        %v8912 = vadd.f32 %v8707, %v8862
        %v8913 = vadd.f32 %v8708, %v8865
        %v8914 = vadd.f32 %v8709, %v8870
        %v8915 = vadd.f32 %v8710, %v8873
        %v8916 = vadd.f32 %v8711, %v8878
        %v8917 = vadd.f32 %v8712, %v8881
        %v8918 = vadd.f32 %v8713, %v8886
        %v8919 = vadd.f32 %v8714, %v8889
        %v8920 = vadd.f32 %v8715, %v8894
        %v8921 = vadd.f32 %v8716, %v8897
        %v8922 = vadd.f32 %v8717, %v8902
        %v8923 = vadd.f32 %v8718, %v8905
        %v8925 = vshrl.u32 %v8315, 16
        %v8927 = vrot.slane %v8925, 4
        %v8928 = vshll.u32 %v8315, 16
        %v8930 = vrot.slane %v8928, 5
        %v8931 = vor.u32 %v8927, %v8930
        %v8932 = vrot.slane %v8931, 4
        %v8934 = vshll.u32 %v8316, 16
        %v8936 = vrot.slane %v8934, 5
        %v8937 = vsel %vm1359, %v8932, %v8936
        %v8938 = vshrl.u32 %v8316, 16
        %v8940 = vrot.slane %v8938, 4
        %v8941 = vor.u32 %v8940, %v8936
        %v8942 = vrot.slane %v8941, 4
        %v8944 = vshll.u32 %v8317, 16
        %v8946 = vrot.slane %v8944, 5
        %v8947 = vsel %vm1359, %v8942, %v8946
        %v8948 = vld [vmem:[%s6734] sm:$0xf]
        %v8949 = vld [vmem:[%s6734 + $0x4] sm:$0xf]
        %v8950 = vld [vmem:[%s6734 + $0x8] sm:$0xf]
        %v8951 = vld [vmem:[%s6734 + $0xc] sm:$0xf]
        %v8952 = vld [vmem:[%s6734 + $0x10] sm:$0xf]
        %v8953 = vld [vmem:[%s6734 + $0x14] sm:$0xf]
        %v8954 = vld [vmem:[%s6734 + $0x18] sm:$0xf]
        %v8955 = vld [vmem:[%s6734 + $0x1c] sm:$0xf]
        %v8956 = vld [vmem:[%s6734 + $0x20] sm:$0xf]
        %v8957 = vld [vmem:[%s6734 + $0x24] sm:$0xf]
        %v8958 = vld [vmem:[%s6734 + $0x28] sm:$0xf]
        %v8959 = vld [vmem:[%s6734 + $0x2c] sm:$0xf]
        %v8960 = vld [vmem:[%s6734 + $0x30] sm:$0xf]
        %v8961 = vld [vmem:[%s6734 + $0x34] sm:$0xf]
        %v8962 = vld [vmem:[%s6734 + $0x38] sm:$0xf]
        %v8963 = vld [vmem:[%s6734 + $0x3c] sm:$0xf]
        %v8964 = vunpack.c.l.b16 %v8937
        %v8965 = vunpack.c.l.b16 %v8947
        %v8966 = vpack.c.b16 %v8965, %v8964
        %v8984 = vunpack.c.l.b16 %v8948
        %v8985 = vunpack.c.l.b16 %v8949
        %v8986 = vunpack.c.l.b16 %v8950
        %v8987 = vunpack.c.l.b16 %v8951
        %v8988 = vunpack.c.l.b16 %v8952
        %v8989 = vunpack.c.l.b16 %v8953
        %v8990 = vunpack.c.l.b16 %v8954
        %v8991 = vunpack.c.l.b16 %v8955
        %v8992 = vunpack.c.l.b16 %v8956
        %v8993 = vunpack.c.l.b16 %v8957
        %v8994 = vunpack.c.l.b16 %v8958
        %v8995 = vunpack.c.l.b16 %v8959
        %v8996 = vunpack.c.l.b16 %v8960
        %v8997 = vunpack.c.l.b16 %v8961
        %v8998 = vunpack.c.l.b16 %v8962
        %v8999 = vunpack.c.l.b16 %v8963
        %v9000 = vpack.c.b16 %v8985, %v8984
        %v9001 = vpack.c.b16 %v8987, %v8986
        %v9002 = vpack.c.b16 %v8989, %v8988
        %v9003 = vpack.c.b16 %v8991, %v8990
        %v9004 = vpack.c.b16 %v8993, %v8992
        %v9005 = vpack.c.b16 %v8995, %v8994
        %v9006 = vpack.c.b16 %v8997, %v8996
        %v9007 = vpack.c.b16 %v8999, %v8998
        %9016 = vmatprep.subr.bf16.mxu0 0
        %9017 = vmatpush1.bf16.msra.mxu0 %v9000
        %9018 = vmatprep.subr.bf16.mxu0 0
        %9019 = vmatpush1.bf16.msra.mxu0 %v9001
        %9020 = vmatprep.subr.bf16.mxu0 0
        %9021 = vmatpush1.bf16.msra.mxu0 %v9002
        %9022 = vmatprep.subr.bf16.mxu0 0
        %9023 = vmatpush1.bf16.msra.mxu0 %v9003
        %9024 = vmatprep.subr.bf16.mxu0 0
        %9025 = vmatpush1.bf16.msra.mxu0 %v9004
        %9026 = vmatprep.subr.bf16.mxu0 0
        %9027 = vmatpush1.bf16.msra.mxu0 %v9005
        %9028 = vmatprep.subr.bf16.mxu0 0
        %9029 = vmatpush1.bf16.msra.mxu0 %v9006
        %9030 = vmatprep.subr.bf16.mxu0 0
        %9031 = vmatpush1.bf16.msra.mxu0 %v9007
        %9032 = vmatprep.subr.bf16.mxu0 0
        %9033 = vmatpush1.bf16.msra.mxu0 0
        %9034 = vmatprep.subr.bf16.mxu0 0
        %9035 = vmatpush1.bf16.msra.mxu0 0
        %9036 = vmatprep.subr.bf16.mxu0 0
        %9037 = vmatpush1.bf16.msra.mxu0 0
        %9038 = vmatprep.subr.bf16.mxu0 0
        %9039 = vmatpush1.bf16.msra.mxu0 0
        %9040 = vmatprep.subr.bf16.mxu0 0
        %9041 = vmatpush1.bf16.msra.mxu0 0
        %9042 = vmatprep.subr.bf16.mxu0 0
        %9043 = vmatpush1.bf16.msra.mxu0 0
        %9044 = vmatprep.subr.bf16.mxu0 0
        %9045 = vmatpush1.bf16.msra.mxu0 0
        %9046 = vmatprep.subr.bf16.mxu0 0
        %9047 = vmatpush1.bf16.msra.mxu0 0
        %9048 = vmatprep.mubr.bf16.mxu0 0
        %9049 = vmatmul.mubr.bf16.gmra.mrb[0].mxu0 %v8544
        %v9050 = vpop.f32.mrb[0].mxu0
        %v9051 = vadd.f32 0.0, %v9050
        %v9052 = vpop.f32.mrb[0].mxu0
        %v9053 = vpop.f32.mrb[0].mxu0
        %v9054 = vadd.f32 0.0, %v9053
        %v9055 = vpop.f32.mrb[0].mxu0
        %9056 = vmatprep.mubr.bf16.mxu0 0
        %9057 = vmatmul.mubr.bf16.gmra.mrb[0].mxu0 %v8545
        %v9058 = vpop.f32.mrb[0].mxu0
        %v9059 = vadd.f32 0.0, %v9058
        %v9060 = vpop.f32.mrb[0].mxu0
        %v9061 = vpop.f32.mrb[0].mxu0
        %v9062 = vadd.f32 0.0, %v9061
        %v9063 = vpop.f32.mrb[0].mxu0
        %9064 = vmatprep.mubr.bf16.mxu0 0
        %9065 = vmatmul.mubr.bf16.gmra.mrb[0].mxu0 %v8546
        %v9066 = vpop.f32.mrb[0].mxu0
        %v9067 = vadd.f32 0.0, %v9066
        %v9068 = vpop.f32.mrb[0].mxu0
        %v9069 = vpop.f32.mrb[0].mxu0
        %v9070 = vadd.f32 0.0, %v9069
        %v9071 = vpop.f32.mrb[0].mxu0
        %9072 = vmatprep.mubr.bf16.mxu0 0
        %9073 = vmatmul.mubr.bf16.gmra.mrb[0].mxu0 %v8547
        %v9074 = vpop.f32.mrb[0].mxu0
        %v9075 = vadd.f32 0.0, %v9074
        %v9076 = vpop.f32.mrb[0].mxu0
        %v9077 = vpop.f32.mrb[0].mxu0
        %v9078 = vadd.f32 0.0, %v9077
        %v9079 = vpop.f32.mrb[0].mxu0
        %9080 = vmatprep.mubr.bf16.mxu0 0
        %9081 = vmatmul.mubr.bf16.gmra.mrb[0].mxu0 %v8548
        %v9082 = vpop.f32.mrb[0].mxu0
        %v9083 = vadd.f32 0.0, %v9082
        %v9084 = vpop.f32.mrb[0].mxu0
        %v9085 = vpop.f32.mrb[0].mxu0
        %v9086 = vadd.f32 0.0, %v9085
        %v9087 = vpop.f32.mrb[0].mxu0
        %9088 = vmatprep.mubr.bf16.mxu0 0
        %9089 = vmatmul.mubr.bf16.gmra.mrb[0].mxu0 %v8549
        %v9090 = vpop.f32.mrb[0].mxu0
        %v9091 = vadd.f32 0.0, %v9090
        %v9092 = vpop.f32.mrb[0].mxu0
        %v9093 = vpop.f32.mrb[0].mxu0
        %v9094 = vadd.f32 0.0, %v9093
        %v9095 = vpop.f32.mrb[0].mxu0
        %9096 = vmatprep.mubr.bf16.mxu0 0
        %9097 = vmatmul.mubr.bf16.gmra.mrb[0].mxu0 %v8761
        %v9098 = vpop.f32.mrb[0].mxu0
        %v9099 = vadd.f32 0.0, %v9098
        %v9100 = vpop.f32.mrb[0].mxu0
        %v9101 = vpop.f32.mrb[0].mxu0
        %v9102 = vadd.f32 0.0, %v9101
        %v9103 = vpop.f32.mrb[0].mxu0
        %9104 = vmatprep.mubr.bf16.mxu0 0
        %9105 = vmatmul.mubr.bf16.gmra.mrb[0].mxu0 %v8966
        %v9106 = vpop.f32.mrb[0].mxu0
        %v9107 = vadd.f32 0.0, %v9106
        %v9108 = vpop.f32.mrb[0].mxu0
        %v9109 = vpop.f32.mrb[0].mxu0
        %v9110 = vadd.f32 0.0, %v9109
        %v9111 = vpop.f32.mrb[0].mxu0
        %9112 = vdwg.mxu0
        %v9113 = vadd.f32 %v8908, %v9051
        %v9114 = vadd.f32 %v8909, %v9054
        %v9115 = vadd.f32 %v8910, %v9059
        %v9116 = vadd.f32 %v8911, %v9062
        %v9117 = vadd.f32 %v8912, %v9067
        %v9118 = vadd.f32 %v8913, %v9070
        %v9119 = vadd.f32 %v8914, %v9075
        %v9120 = vadd.f32 %v8915, %v9078
        %v9121 = vadd.f32 %v8916, %v9083
        %v9122 = vadd.f32 %v8917, %v9086
        %v9123 = vadd.f32 %v8918, %v9091
        %v9124 = vadd.f32 %v8919, %v9094
        %v9125 = vadd.f32 %v8920, %v9099
        %v9126 = vadd.f32 %v8921, %v9102
        %v9127 = vadd.f32 %v8922, %v9107
        %v9128 = vadd.f32 %v8923, %v9110
        %v9129 = vld [vmem:[%s7708] sm:$0xe]
        %v9130 = vld [vmem:[%s7708 + $0xc] sm:$0xe]
        %v9131 = vld [vmem:[%s7708 + $0x18] sm:$0xe]
        %v9132 = vld [vmem:[%s7708 + $0x24] sm:$0xe]
        %v9133 = vld [vmem:[%s7708 + $0x30] sm:$0xe]
        %v9134 = vld [vmem:[%s7708 + $0x3c] sm:$0xe]
        %v9135 = vld [vmem:[%s7708 + $0x48] sm:$0xe]
        %v9136 = vld [vmem:[%s7708 + $0x54] sm:$0xe]
        %v9137 = vld [vmem:[%s7708 + $0x60] sm:$0xe]
        %v9138 = vld [vmem:[%s7708 + $0x6c] sm:$0xe]
        %v9163 = vrot.slane %v9129, 5
        %v9164 = vrot.slane %v9163, 4
        %v9165 = vrot.slane %v8289, 5
        %v9166 = vsel %vm2210, %v9164, %v9165
        %v9167 = vrot.slane %v9165, 4
        %v9168 = vrot.slane %v8290, 5
        %v9169 = vsel %vm2210, %v9167, %v9168
        %v9170 = vrot.slane %v9130, 5
        %v9171 = vrot.slane %v9170, 4
        %v9172 = vrot.slane %v8292, 5
        %v9173 = vsel %vm2210, %v9171, %v9172
        %v9174 = vrot.slane %v9172, 4
        %v9175 = vrot.slane %v8293, 5
        %v9176 = vsel %vm2210, %v9174, %v9175
        %v9177 = vrot.slane %v9131, 5
        %v9178 = vrot.slane %v9177, 4
        %v9179 = vrot.slane %v8295, 5
        %v9180 = vsel %vm2210, %v9178, %v9179
        %v9181 = vrot.slane %v9179, 4
        %v9182 = vrot.slane %v8296, 5
        %v9183 = vsel %vm2210, %v9181, %v9182
        %v9184 = vrot.slane %v9132, 5
        %v9185 = vrot.slane %v9184, 4
        %v9186 = vrot.slane %v8298, 5
        %v9187 = vsel %vm2210, %v9185, %v9186
        %v9188 = vrot.slane %v9186, 4
        %v9189 = vrot.slane %v8299, 5
        %v9190 = vsel %vm2210, %v9188, %v9189
        %v9191 = vrot.slane %v9133, 5
        %v9192 = vrot.slane %v9191, 4
        %v9193 = vrot.slane %v8301, 5
        %v9194 = vsel %vm2210, %v9192, %v9193
        %v9195 = vrot.slane %v9193, 4
        %v9196 = vrot.slane %v8302, 5
        %v9197 = vsel %vm2210, %v9195, %v9196
        %v9198 = vrot.slane %v9134, 5
        %v9199 = vrot.slane %v9198, 4
        %v9200 = vrot.slane %v8304, 5
        %v9201 = vsel %vm2210, %v9199, %v9200
        %v9202 = vrot.slane %v9200, 4
        %v9203 = vrot.slane %v8305, 5
        %v9204 = vsel %vm2210, %v9202, %v9203
        %v9205 = vrot.slane %v9135, 5
        %v9206 = vrot.slane %v9205, 4
        %v9207 = vrot.slane %v8307, 5
        %v9208 = vsel %vm2210, %v9206, %v9207
        %v9209 = vrot.slane %v9207, 4
        %v9210 = vrot.slane %v8308, 5
        %v9211 = vsel %vm2210, %v9209, %v9210
        %v9212 = vrot.slane %v9136, 5
        %v9213 = vrot.slane %v9212, 4
        %v9214 = vrot.slane %v8310, 5
        %v9215 = vsel %vm2210, %v9213, %v9214
        %v9216 = vrot.slane %v9214, 4
        %v9217 = vrot.slane %v8311, 5
        %v9218 = vsel %vm2210, %v9216, %v9217
        %v9219 = vld [vmem:[%s7006] sm:$0xf]
        %v9220 = vld [vmem:[%s7006 + $0x4] sm:$0xf]
        %v9221 = vld [vmem:[%s7006 + $0x8] sm:$0xf]
        %v9222 = vld [vmem:[%s7006 + $0xc] sm:$0xf]
        %v9223 = vld [vmem:[%s7006 + $0x10] sm:$0xf]
        %v9224 = vld [vmem:[%s7006 + $0x14] sm:$0xf]
        %v9225 = vld [vmem:[%s7006 + $0x18] sm:$0xf]
        %v9226 = vld [vmem:[%s7006 + $0x1c] sm:$0xf]
        %v9227 = vld [vmem:[%s7006 + $0x20] sm:$0xf]
        %v9228 = vld [vmem:[%s7006 + $0x24] sm:$0xf]
        %v9229 = vld [vmem:[%s7006 + $0x28] sm:$0xf]
        %v9230 = vld [vmem:[%s7006 + $0x2c] sm:$0xf]
        %v9231 = vld [vmem:[%s7006 + $0x30] sm:$0xf]
        %v9232 = vld [vmem:[%s7006 + $0x34] sm:$0xf]
        %v9233 = vld [vmem:[%s7006 + $0x38] sm:$0xf]
        %v9234 = vld [vmem:[%s7006 + $0x3c] sm:$0xf]
        %v9235 = vunpack.c.l.b16 %v9166
        %v9236 = vunpack.c.l.b16 %v9169
        %v9237 = vunpack.c.l.b16 %v9173
        %v9238 = vunpack.c.l.b16 %v9176
        %v9239 = vunpack.c.l.b16 %v9180
        %v9240 = vunpack.c.l.b16 %v9183
        %v9241 = vunpack.c.l.b16 %v9187
        %v9242 = vunpack.c.l.b16 %v9190
        %v9243 = vunpack.c.l.b16 %v9194
        %v9244 = vunpack.c.l.b16 %v9197
        %v9245 = vunpack.c.l.b16 %v9201
        %v9246 = vunpack.c.l.b16 %v9204
        %v9247 = vunpack.c.l.b16 %v9208
        %v9248 = vunpack.c.l.b16 %v9211
        %v9249 = vunpack.c.l.b16 %v9215
        %v9250 = vunpack.c.l.b16 %v9218
        %v9251 = vpack.c.b16 %v9236, %v9235
        %v9252 = vpack.c.b16 %v9238, %v9237
        %v9253 = vpack.c.b16 %v9240, %v9239
        %v9254 = vpack.c.b16 %v9242, %v9241
        %v9255 = vpack.c.b16 %v9244, %v9243
        %v9256 = vpack.c.b16 %v9246, %v9245
        %v9257 = vpack.c.b16 %v9248, %v9247
        %v9258 = vpack.c.b16 %v9250, %v9249
        %v9283 = vunpack.c.l.b16 %v9219
        %v9284 = vunpack.c.l.b16 %v9220
        %v9285 = vunpack.c.l.b16 %v9221
        %v9286 = vunpack.c.l.b16 %v9222
        %v9287 = vunpack.c.l.b16 %v9223
        %v9288 = vunpack.c.l.b16 %v9224
        %v9289 = vunpack.c.l.b16 %v9225
        %v9290 = vunpack.c.l.b16 %v9226
        %v9291 = vunpack.c.l.b16 %v9227
        %v9292 = vunpack.c.l.b16 %v9228
        %v9293 = vunpack.c.l.b16 %v9229
        %v9294 = vunpack.c.l.b16 %v9230
        %v9295 = vunpack.c.l.b16 %v9231
        %v9296 = vunpack.c.l.b16 %v9232
        %v9297 = vunpack.c.l.b16 %v9233
        %v9298 = vunpack.c.l.b16 %v9234
        %v9299 = vpack.c.b16 %v9284, %v9283
        %v9300 = vpack.c.b16 %v9286, %v9285
        %v9301 = vpack.c.b16 %v9288, %v9287
        %v9302 = vpack.c.b16 %v9290, %v9289
        %v9303 = vpack.c.b16 %v9292, %v9291
        %v9304 = vpack.c.b16 %v9294, %v9293
        %v9305 = vpack.c.b16 %v9296, %v9295
        %v9306 = vpack.c.b16 %v9298, %v9297
        %9315 = vmatprep.subr.bf16.mxu0 0
        %9316 = vmatpush1.bf16.msra.mxu0 %v9299
        %9317 = vmatprep.subr.bf16.mxu0 0
        %9318 = vmatpush1.bf16.msra.mxu0 %v9300
        %9319 = vmatprep.subr.bf16.mxu0 0
        %9320 = vmatpush1.bf16.msra.mxu0 %v9301
        %9321 = vmatprep.subr.bf16.mxu0 0
        %9322 = vmatpush1.bf16.msra.mxu0 %v9302
        %9323 = vmatprep.subr.bf16.mxu0 0
        %9324 = vmatpush1.bf16.msra.mxu0 %v9303
        %9325 = vmatprep.subr.bf16.mxu0 0
        %9326 = vmatpush1.bf16.msra.mxu0 %v9304
        %9327 = vmatprep.subr.bf16.mxu0 0
        %9328 = vmatpush1.bf16.msra.mxu0 %v9305
        %9329 = vmatprep.subr.bf16.mxu0 0
        %9330 = vmatpush1.bf16.msra.mxu0 %v9306
        %9331 = vmatprep.subr.bf16.mxu0 0
        %9332 = vmatpush1.bf16.msra.mxu0 0
        %9333 = vmatprep.subr.bf16.mxu0 0
        %9334 = vmatpush1.bf16.msra.mxu0 0
        %9335 = vmatprep.subr.bf16.mxu0 0
        %9336 = vmatpush1.bf16.msra.mxu0 0
        %9337 = vmatprep.subr.bf16.mxu0 0
        %9338 = vmatpush1.bf16.msra.mxu0 0
        %9339 = vmatprep.subr.bf16.mxu0 0
        %9340 = vmatpush1.bf16.msra.mxu0 0
        %9341 = vmatprep.subr.bf16.mxu0 0
        %9342 = vmatpush1.bf16.msra.mxu0 0
        %9343 = vmatprep.subr.bf16.mxu0 0
        %9344 = vmatpush1.bf16.msra.mxu0 0
        %9345 = vmatprep.subr.bf16.mxu0 0
        %9346 = vmatpush1.bf16.msra.mxu0 0
        %9347 = vmatprep.mubr.bf16.mxu0 0
        %9348 = vmatmul.mubr.bf16.gmra.mrb[0].mxu0 %v9251
        %v9349 = vpop.f32.mrb[0].mxu0
        %v9350 = vadd.f32 0.0, %v9349
        %v9351 = vpop.f32.mrb[0].mxu0
        %v9352 = vpop.f32.mrb[0].mxu0
        %v9353 = vadd.f32 0.0, %v9352
        %v9354 = vpop.f32.mrb[0].mxu0
        %9355 = vmatprep.mubr.bf16.mxu0 0
        %9356 = vmatmul.mubr.bf16.gmra.mrb[0].mxu0 %v9252
        %v9357 = vpop.f32.mrb[0].mxu0
        %v9358 = vadd.f32 0.0, %v9357
        %v9359 = vpop.f32.mrb[0].mxu0
        %v9360 = vpop.f32.mrb[0].mxu0
        %v9361 = vadd.f32 0.0, %v9360
        %v9362 = vpop.f32.mrb[0].mxu0
        %9363 = vmatprep.mubr.bf16.mxu0 0
        %9364 = vmatmul.mubr.bf16.gmra.mrb[0].mxu0 %v9253
        %v9365 = vpop.f32.mrb[0].mxu0
        %v9366 = vadd.f32 0.0, %v9365
        %v9367 = vpop.f32.mrb[0].mxu0
        %v9368 = vpop.f32.mrb[0].mxu0
        %v9369 = vadd.f32 0.0, %v9368
        %v9370 = vpop.f32.mrb[0].mxu0
        %9371 = vmatprep.mubr.bf16.mxu0 0
        %9372 = vmatmul.mubr.bf16.gmra.mrb[0].mxu0 %v9254
        %v9373 = vpop.f32.mrb[0].mxu0
        %v9374 = vadd.f32 0.0, %v9373
        %v9375 = vpop.f32.mrb[0].mxu0
        %v9376 = vpop.f32.mrb[0].mxu0
        %v9377 = vadd.f32 0.0, %v9376
        %v9378 = vpop.f32.mrb[0].mxu0
        %9379 = vmatprep.mubr.bf16.mxu0 0
        %9380 = vmatmul.mubr.bf16.gmra.mrb[0].mxu0 %v9255
        %v9381 = vpop.f32.mrb[0].mxu0
        %v9382 = vadd.f32 0.0, %v9381
        %v9383 = vpop.f32.mrb[0].mxu0
        %v9384 = vpop.f32.mrb[0].mxu0
        %v9385 = vadd.f32 0.0, %v9384
        %v9386 = vpop.f32.mrb[0].mxu0
        %9387 = vmatprep.mubr.bf16.mxu0 0
        %9388 = vmatmul.mubr.bf16.gmra.mrb[0].mxu0 %v9256
        %v9389 = vpop.f32.mrb[0].mxu0
        %v9390 = vadd.f32 0.0, %v9389
        %v9391 = vpop.f32.mrb[0].mxu0
        %v9392 = vpop.f32.mrb[0].mxu0
        %v9393 = vadd.f32 0.0, %v9392
        %v9394 = vpop.f32.mrb[0].mxu0
        %9395 = vmatprep.mubr.bf16.mxu0 0
        %9396 = vmatmul.mubr.bf16.gmra.mrb[0].mxu0 %v9257
        %v9397 = vpop.f32.mrb[0].mxu0
        %v9398 = vadd.f32 0.0, %v9397
        %v9399 = vpop.f32.mrb[0].mxu0
        %v9400 = vpop.f32.mrb[0].mxu0
        %v9401 = vadd.f32 0.0, %v9400
        %v9402 = vpop.f32.mrb[0].mxu0
        %9403 = vmatprep.mubr.bf16.mxu0 0
        %9404 = vmatmul.mubr.bf16.gmra.mrb[0].mxu0 %v9258
        %v9405 = vpop.f32.mrb[0].mxu0
        %v9406 = vadd.f32 0.0, %v9405
        %v9407 = vpop.f32.mrb[0].mxu0
        %v9408 = vpop.f32.mrb[0].mxu0
        %v9409 = vadd.f32 0.0, %v9408
        %v9410 = vpop.f32.mrb[0].mxu0
        %9411 = vdwg.mxu0
        %v9412 = vadd.f32 %v9113, %v9350
        %v9413 = vadd.f32 %v9114, %v9353
        %v9414 = vadd.f32 %v9115, %v9358
        %v9415 = vadd.f32 %v9116, %v9361
        %v9416 = vadd.f32 %v9117, %v9366
        %v9417 = vadd.f32 %v9118, %v9369
        %v9418 = vadd.f32 %v9119, %v9374
        %v9419 = vadd.f32 %v9120, %v9377
        %v9420 = vadd.f32 %v9121, %v9382
        %v9421 = vadd.f32 %v9122, %v9385
        %v9422 = vadd.f32 %v9123, %v9390
        %v9423 = vadd.f32 %v9124, %v9393
        %v9424 = vadd.f32 %v9125, %v9398
        %v9425 = vadd.f32 %v9126, %v9401
        %v9426 = vadd.f32 %v9127, %v9406
        %v9427 = vadd.f32 %v9128, %v9409
        %v9431 = vrot.slane %v9137, 5
        %v9432 = vrot.slane %v9431, 4
        %v9433 = vrot.slane %v8313, 5
        %v9434 = vsel %vm2210, %v9432, %v9433
        %v9435 = vrot.slane %v9433, 4
        %v9436 = vrot.slane %v8314, 5
        %v9437 = vsel %vm2210, %v9435, %v9436
        %v9438 = vld [vmem:[%s7226] sm:$0xf]
        %v9439 = vld [vmem:[%s7226 + $0x4] sm:$0xf]
        %v9440 = vld [vmem:[%s7226 + $0x8] sm:$0xf]
        %v9441 = vld [vmem:[%s7226 + $0xc] sm:$0xf]
        %v9442 = vld [vmem:[%s7226 + $0x10] sm:$0xf]
        %v9443 = vld [vmem:[%s7226 + $0x14] sm:$0xf]
        %v9444 = vld [vmem:[%s7226 + $0x18] sm:$0xf]
        %v9445 = vld [vmem:[%s7226 + $0x1c] sm:$0xf]
        %v9446 = vld [vmem:[%s7226 + $0x20] sm:$0xf]
        %v9447 = vld [vmem:[%s7226 + $0x24] sm:$0xf]
        %v9448 = vld [vmem:[%s7226 + $0x28] sm:$0xf]
        %v9449 = vld [vmem:[%s7226 + $0x2c] sm:$0xf]
        %v9450 = vld [vmem:[%s7226 + $0x30] sm:$0xf]
        %v9451 = vld [vmem:[%s7226 + $0x34] sm:$0xf]
        %v9452 = vld [vmem:[%s7226 + $0x38] sm:$0xf]
        %v9453 = vld [vmem:[%s7226 + $0x3c] sm:$0xf]
        %v9454 = vunpack.c.l.b16 %v9434
        %v9455 = vunpack.c.l.b16 %v9437
        %v9456 = vpack.c.b16 %v9455, %v9454
        %v9474 = vunpack.c.l.b16 %v9438
        %v9475 = vunpack.c.l.b16 %v9439
        %v9476 = vunpack.c.l.b16 %v9440
        %v9477 = vunpack.c.l.b16 %v9441
        %v9478 = vunpack.c.l.b16 %v9442
        %v9479 = vunpack.c.l.b16 %v9443
        %v9480 = vunpack.c.l.b16 %v9444
        %v9481 = vunpack.c.l.b16 %v9445
        %v9482 = vunpack.c.l.b16 %v9446
        %v9483 = vunpack.c.l.b16 %v9447
        %v9484 = vunpack.c.l.b16 %v9448
        %v9485 = vunpack.c.l.b16 %v9449
        %v9486 = vunpack.c.l.b16 %v9450
        %v9487 = vunpack.c.l.b16 %v9451
        %v9488 = vunpack.c.l.b16 %v9452
        %v9489 = vunpack.c.l.b16 %v9453
        %v9490 = vpack.c.b16 %v9475, %v9474
        %v9491 = vpack.c.b16 %v9477, %v9476
        %v9492 = vpack.c.b16 %v9479, %v9478
        %v9493 = vpack.c.b16 %v9481, %v9480
        %v9494 = vpack.c.b16 %v9483, %v9482
        %v9495 = vpack.c.b16 %v9485, %v9484
        %v9496 = vpack.c.b16 %v9487, %v9486
        %v9497 = vpack.c.b16 %v9489, %v9488
        %9506 = vmatprep.subr.bf16.mxu0 0
        %9507 = vmatpush1.bf16.msra.mxu0 %v9490
        %9508 = vmatprep.subr.bf16.mxu0 0
        %9509 = vmatpush1.bf16.msra.mxu0 %v9491
        %9510 = vmatprep.subr.bf16.mxu0 0
        %9511 = vmatpush1.bf16.msra.mxu0 %v9492
        %9512 = vmatprep.subr.bf16.mxu0 0
        %9513 = vmatpush1.bf16.msra.mxu0 %v9493
        %9514 = vmatprep.subr.bf16.mxu0 0
        %9515 = vmatpush1.bf16.msra.mxu0 %v9494
        %9516 = vmatprep.subr.bf16.mxu0 0
        %9517 = vmatpush1.bf16.msra.mxu0 %v9495
        %9518 = vmatprep.subr.bf16.mxu0 0
        %9519 = vmatpush1.bf16.msra.mxu0 %v9496
        %9520 = vmatprep.subr.bf16.mxu0 0
        %9521 = vmatpush1.bf16.msra.mxu0 %v9497
        %9522 = vmatprep.subr.bf16.mxu0 0
        %9523 = vmatpush1.bf16.msra.mxu0 0
        %9524 = vmatprep.subr.bf16.mxu0 0
        %9525 = vmatpush1.bf16.msra.mxu0 0
        %9526 = vmatprep.subr.bf16.mxu0 0
        %9527 = vmatpush1.bf16.msra.mxu0 0
        %9528 = vmatprep.subr.bf16.mxu0 0
        %9529 = vmatpush1.bf16.msra.mxu0 0
        %9530 = vmatprep.subr.bf16.mxu0 0
        %9531 = vmatpush1.bf16.msra.mxu0 0
        %9532 = vmatprep.subr.bf16.mxu0 0
        %9533 = vmatpush1.bf16.msra.mxu0 0
        %9534 = vmatprep.subr.bf16.mxu0 0
        %9535 = vmatpush1.bf16.msra.mxu0 0
        %9536 = vmatprep.subr.bf16.mxu0 0
        %9537 = vmatpush1.bf16.msra.mxu0 0
        %9538 = vmatprep.mubr.bf16.mxu0 0
        %9539 = vmatmul.mubr.bf16.gmra.mrb[0].mxu0 %v9252
        %v9540 = vpop.f32.mrb[0].mxu0
        %v9541 = vadd.f32 0.0, %v9540
        %v9542 = vpop.f32.mrb[0].mxu0
        %v9543 = vpop.f32.mrb[0].mxu0
        %v9544 = vadd.f32 0.0, %v9543
        %v9545 = vpop.f32.mrb[0].mxu0
        %9546 = vmatprep.mubr.bf16.mxu0 0
        %9547 = vmatmul.mubr.bf16.gmra.mrb[0].mxu0 %v9253
        %v9548 = vpop.f32.mrb[0].mxu0
        %v9549 = vadd.f32 0.0, %v9548
        %v9550 = vpop.f32.mrb[0].mxu0
        %v9551 = vpop.f32.mrb[0].mxu0
        %v9552 = vadd.f32 0.0, %v9551
        %v9553 = vpop.f32.mrb[0].mxu0
        %9554 = vmatprep.mubr.bf16.mxu0 0
        %9555 = vmatmul.mubr.bf16.gmra.mrb[0].mxu0 %v9254
        %v9556 = vpop.f32.mrb[0].mxu0
        %v9557 = vadd.f32 0.0, %v9556
        %v9558 = vpop.f32.mrb[0].mxu0
        %v9559 = vpop.f32.mrb[0].mxu0
        %v9560 = vadd.f32 0.0, %v9559
        %v9561 = vpop.f32.mrb[0].mxu0
        %9562 = vmatprep.mubr.bf16.mxu0 0
        %9563 = vmatmul.mubr.bf16.gmra.mrb[0].mxu0 %v9255
        %v9564 = vpop.f32.mrb[0].mxu0
        %v9565 = vadd.f32 0.0, %v9564
        %v9566 = vpop.f32.mrb[0].mxu0
        %v9567 = vpop.f32.mrb[0].mxu0
        %v9568 = vadd.f32 0.0, %v9567
        %v9569 = vpop.f32.mrb[0].mxu0
        %9570 = vmatprep.mubr.bf16.mxu0 0
        %9571 = vmatmul.mubr.bf16.gmra.mrb[0].mxu0 %v9256
        %v9572 = vpop.f32.mrb[0].mxu0
        %v9573 = vadd.f32 0.0, %v9572
        %v9574 = vpop.f32.mrb[0].mxu0
        %v9575 = vpop.f32.mrb[0].mxu0
        %v9576 = vadd.f32 0.0, %v9575
        %v9577 = vpop.f32.mrb[0].mxu0
        %9578 = vmatprep.mubr.bf16.mxu0 0
        %9579 = vmatmul.mubr.bf16.gmra.mrb[0].mxu0 %v9257
        %v9580 = vpop.f32.mrb[0].mxu0
        %v9581 = vadd.f32 0.0, %v9580
        %v9582 = vpop.f32.mrb[0].mxu0
        %v9583 = vpop.f32.mrb[0].mxu0
        %v9584 = vadd.f32 0.0, %v9583
        %v9585 = vpop.f32.mrb[0].mxu0
        %9586 = vmatprep.mubr.bf16.mxu0 0
        %9587 = vmatmul.mubr.bf16.gmra.mrb[0].mxu0 %v9258
        %v9588 = vpop.f32.mrb[0].mxu0
        %v9589 = vadd.f32 0.0, %v9588
        %v9590 = vpop.f32.mrb[0].mxu0
        %v9591 = vpop.f32.mrb[0].mxu0
        %v9592 = vadd.f32 0.0, %v9591
        %v9593 = vpop.f32.mrb[0].mxu0
        %9594 = vmatprep.mubr.bf16.mxu0 0
        %9595 = vmatmul.mubr.bf16.gmra.mrb[0].mxu0 %v9456
        %v9596 = vpop.f32.mrb[0].mxu0
        %v9597 = vadd.f32 0.0, %v9596
        %v9598 = vpop.f32.mrb[0].mxu0
        %v9599 = vpop.f32.mrb[0].mxu0
        %v9600 = vadd.f32 0.0, %v9599
        %v9601 = vpop.f32.mrb[0].mxu0
        %9602 = vdwg.mxu0
        %v9603 = vadd.f32 %v9412, %v9541
        %v9604 = vadd.f32 %v9413, %v9544
        %v9605 = vadd.f32 %v9414, %v9549
        %v9606 = vadd.f32 %v9415, %v9552
        %v9607 = vadd.f32 %v9416, %v9557
        %v9608 = vadd.f32 %v9417, %v9560
        %v9609 = vadd.f32 %v9418, %v9565
        %v9610 = vadd.f32 %v9419, %v9568
        %v9611 = vadd.f32 %v9420, %v9573
        %v9612 = vadd.f32 %v9421, %v9576
        %v9613 = vadd.f32 %v9422, %v9581
        %v9614 = vadd.f32 %v9423, %v9584
        %v9615 = vadd.f32 %v9424, %v9589
        %v9616 = vadd.f32 %v9425, %v9592
        %v9617 = vadd.f32 %v9426, %v9597
        %v9618 = vadd.f32 %v9427, %v9600
        %v9622 = vrot.slane %v9138, 5
        %v9623 = vrot.slane %v9622, 4
        %v9624 = vrot.slane %v8316, 5
        %v9625 = vsel %vm2210, %v9623, %v9624
        %v9626 = vrot.slane %v9624, 4
        %v9627 = vrot.slane %v8317, 5
        %v9628 = vsel %vm2210, %v9626, %v9627
        %v9629 = vld [vmem:[%s7418] sm:$0xf]
        %v9630 = vld [vmem:[%s7418 + $0x4] sm:$0xf]
        %v9631 = vld [vmem:[%s7418 + $0x8] sm:$0xf]
        %v9632 = vld [vmem:[%s7418 + $0xc] sm:$0xf]
        %v9633 = vld [vmem:[%s7418 + $0x10] sm:$0xf]
        %v9634 = vld [vmem:[%s7418 + $0x14] sm:$0xf]
        %v9635 = vld [vmem:[%s7418 + $0x18] sm:$0xf]
        %v9636 = vld [vmem:[%s7418 + $0x1c] sm:$0xf]
        %v9637 = vld [vmem:[%s7418 + $0x20] sm:$0xf]
        %v9638 = vld [vmem:[%s7418 + $0x24] sm:$0xf]
        %v9639 = vld [vmem:[%s7418 + $0x28] sm:$0xf]
        %v9640 = vld [vmem:[%s7418 + $0x2c] sm:$0xf]
        %v9641 = vld [vmem:[%s7418 + $0x30] sm:$0xf]
        %v9642 = vld [vmem:[%s7418 + $0x34] sm:$0xf]
        %v9643 = vld [vmem:[%s7418 + $0x38] sm:$0xf]
        %v9644 = vld [vmem:[%s7418 + $0x3c] sm:$0xf]
        %v9645 = vunpack.c.l.b16 %v9625
        %v9646 = vunpack.c.l.b16 %v9628
        %v9647 = vpack.c.b16 %v9646, %v9645
        %v9665 = vunpack.c.l.b16 %v9629
        %v9666 = vunpack.c.l.b16 %v9630
        %v9667 = vunpack.c.l.b16 %v9631
        %v9668 = vunpack.c.l.b16 %v9632
        %v9669 = vunpack.c.l.b16 %v9633
        %v9670 = vunpack.c.l.b16 %v9634
        %v9671 = vunpack.c.l.b16 %v9635
        %v9672 = vunpack.c.l.b16 %v9636
        %v9673 = vunpack.c.l.b16 %v9637
        %v9674 = vunpack.c.l.b16 %v9638
        %v9675 = vunpack.c.l.b16 %v9639
        %v9676 = vunpack.c.l.b16 %v9640
        %v9677 = vunpack.c.l.b16 %v9641
        %v9678 = vunpack.c.l.b16 %v9642
        %v9679 = vunpack.c.l.b16 %v9643
        %v9680 = vunpack.c.l.b16 %v9644
        %v9681 = vpack.c.b16 %v9666, %v9665
        %v9682 = vpack.c.b16 %v9668, %v9667
        %v9683 = vpack.c.b16 %v9670, %v9669
        %v9684 = vpack.c.b16 %v9672, %v9671
        %v9685 = vpack.c.b16 %v9674, %v9673
        %v9686 = vpack.c.b16 %v9676, %v9675
        %v9687 = vpack.c.b16 %v9678, %v9677
        %v9688 = vpack.c.b16 %v9680, %v9679
        %9697 = vmatprep.subr.bf16.mxu0 0
        %9698 = vmatpush1.bf16.msra.mxu0 %v9681
        %9699 = vmatprep.subr.bf16.mxu0 0
        %9700 = vmatpush1.bf16.msra.mxu0 %v9682
        %9701 = vmatprep.subr.bf16.mxu0 0
        %9702 = vmatpush1.bf16.msra.mxu0 %v9683
        %9703 = vmatprep.subr.bf16.mxu0 0
        %9704 = vmatpush1.bf16.msra.mxu0 %v9684
        %9705 = vmatprep.subr.bf16.mxu0 0
        %9706 = vmatpush1.bf16.msra.mxu0 %v9685
        %9707 = vmatprep.subr.bf16.mxu0 0
        %9708 = vmatpush1.bf16.msra.mxu0 %v9686
        %9709 = vmatprep.subr.bf16.mxu0 0
        %9710 = vmatpush1.bf16.msra.mxu0 %v9687
        %9711 = vmatprep.subr.bf16.mxu0 0
        %9712 = vmatpush1.bf16.msra.mxu0 %v9688
        %9713 = vmatprep.subr.bf16.mxu0 0
        %9714 = vmatpush1.bf16.msra.mxu0 0
        %9715 = vmatprep.subr.bf16.mxu0 0
        %9716 = vmatpush1.bf16.msra.mxu0 0
        %9717 = vmatprep.subr.bf16.mxu0 0
        %9718 = vmatpush1.bf16.msra.mxu0 0
        %9719 = vmatprep.subr.bf16.mxu0 0
        %9720 = vmatpush1.bf16.msra.mxu0 0
        %9721 = vmatprep.subr.bf16.mxu0 0
        %9722 = vmatpush1.bf16.msra.mxu0 0
        %9723 = vmatprep.subr.bf16.mxu0 0
        %9724 = vmatpush1.bf16.msra.mxu0 0
        %9725 = vmatprep.subr.bf16.mxu0 0
        %9726 = vmatpush1.bf16.msra.mxu0 0
        %9727 = vmatprep.subr.bf16.mxu0 0
        %9728 = vmatpush1.bf16.msra.mxu0 0
        %9729 = vmatprep.mubr.bf16.mxu0 0
        %9730 = vmatmul.mubr.bf16.gmra.mrb[0].mxu0 %v9253
        %v9731 = vpop.f32.mrb[0].mxu0
        %v9732 = vadd.f32 0.0, %v9731
        %v9733 = vpop.f32.mrb[0].mxu0
        %v9734 = vpop.f32.mrb[0].mxu0
        %v9735 = vadd.f32 0.0, %v9734
        %v9736 = vpop.f32.mrb[0].mxu0
        %9737 = vmatprep.mubr.bf16.mxu0 0
        %9738 = vmatmul.mubr.bf16.gmra.mrb[0].mxu0 %v9254
        %v9739 = vpop.f32.mrb[0].mxu0
        %v9740 = vadd.f32 0.0, %v9739
        %v9741 = vpop.f32.mrb[0].mxu0
        %v9742 = vpop.f32.mrb[0].mxu0
        %v9743 = vadd.f32 0.0, %v9742
        %v9744 = vpop.f32.mrb[0].mxu0
        %9745 = vmatprep.mubr.bf16.mxu0 0
        %9746 = vmatmul.mubr.bf16.gmra.mrb[0].mxu0 %v9255
        %v9747 = vpop.f32.mrb[0].mxu0
        %v9748 = vadd.f32 0.0, %v9747
        %v9749 = vpop.f32.mrb[0].mxu0
        %v9750 = vpop.f32.mrb[0].mxu0
        %v9751 = vadd.f32 0.0, %v9750
        %v9752 = vpop.f32.mrb[0].mxu0
        %9753 = vmatprep.mubr.bf16.mxu0 0
        %9754 = vmatmul.mubr.bf16.gmra.mrb[0].mxu0 %v9256
        %v9755 = vpop.f32.mrb[0].mxu0
        %v9756 = vadd.f32 0.0, %v9755
        %v9757 = vpop.f32.mrb[0].mxu0
        %v9758 = vpop.f32.mrb[0].mxu0
        %v9759 = vadd.f32 0.0, %v9758
        %v9760 = vpop.f32.mrb[0].mxu0
        %9761 = vmatprep.mubr.bf16.mxu0 0
        %9762 = vmatmul.mubr.bf16.gmra.mrb[0].mxu0 %v9257
        %v9763 = vpop.f32.mrb[0].mxu0
        %v9764 = vadd.f32 0.0, %v9763
        %v9765 = vpop.f32.mrb[0].mxu0
        %v9766 = vpop.f32.mrb[0].mxu0
        %v9767 = vadd.f32 0.0, %v9766
        %v9768 = vpop.f32.mrb[0].mxu0
        %9769 = vmatprep.mubr.bf16.mxu0 0
        %9770 = vmatmul.mubr.bf16.gmra.mrb[0].mxu0 %v9258
        %v9771 = vpop.f32.mrb[0].mxu0
        %v9772 = vadd.f32 0.0, %v9771
        %v9773 = vpop.f32.mrb[0].mxu0
        %v9774 = vpop.f32.mrb[0].mxu0
        %v9775 = vadd.f32 0.0, %v9774
        %v9776 = vpop.f32.mrb[0].mxu0
        %9777 = vmatprep.mubr.bf16.mxu0 0
        %9778 = vmatmul.mubr.bf16.gmra.mrb[0].mxu0 %v9456
        %v9779 = vpop.f32.mrb[0].mxu0
        %v9780 = vadd.f32 0.0, %v9779
        %v9781 = vpop.f32.mrb[0].mxu0
        %v9782 = vpop.f32.mrb[0].mxu0
        %v9783 = vadd.f32 0.0, %v9782
        %v9784 = vpop.f32.mrb[0].mxu0
        %9785 = vmatprep.mubr.bf16.mxu0 0
        %9786 = vmatmul.mubr.bf16.gmra.mrb[0].mxu0 %v9647
        %v9787 = vpop.f32.mrb[0].mxu0
        %v9788 = vadd.f32 0.0, %v9787
        %v9789 = vpop.f32.mrb[0].mxu0
        %v9790 = vpop.f32.mrb[0].mxu0
        %v9791 = vadd.f32 0.0, %v9790
        %v9792 = vpop.f32.mrb[0].mxu0
        %9793 = vdwg.mxu0
        %v9794 = vadd.f32 %v9603, %v9732
        %v9795 = vadd.f32 %v9604, %v9735
        %v9796 = vadd.f32 %v9605, %v9740
        %v9797 = vadd.f32 %v9606, %v9743
        %v9798 = vadd.f32 %v9607, %v9748
        %v9799 = vadd.f32 %v9608, %v9751
        %v9800 = vadd.f32 %v9609, %v9756
        %v9801 = vadd.f32 %v9610, %v9759
        %v9802 = vadd.f32 %v9611, %v9764
        %v9803 = vadd.f32 %v9612, %v9767
        %v9804 = vadd.f32 %v9613, %v9772
        %v9805 = vadd.f32 %v9614, %v9775
        %v9806 = vadd.f32 %v9615, %v9780
        %v9807 = vadd.f32 %v9616, %v9783
        %v9808 = vadd.f32 %v9617, %v9788
        %v9809 = vadd.f32 %v9618, %v9791
        %s9810 = scalar_lea.vmem %s276, 128
        %v9811 = vld [vmem:[%s9810] sm:$0xff]
        %v9812 = vld [vmem:[%s9810 + $0x8] sm:$0xff]
        %v9813 = vld [vmem:[%s9810 + $0x10] sm:$0xff]
        %v9814 = vld [vmem:[%s9810 + $0x18] sm:$0xff]
        %v9815 = vld [vmem:[%s9810 + $0x20] sm:$0xff]
        %v9816 = vld [vmem:[%s9810 + $0x28] sm:$0xff]
        %v9817 = vld [vmem:[%s9810 + $0x30] sm:$0xff]
        %v9818 = vld [vmem:[%s9810 + $0x38] sm:$0xff]
        %v9819 = vld [vmem:[%s9810 + $0x40] sm:$0xff]
        %v9820 = vld [vmem:[%s9810 + $0x48] sm:$0xff]
        %v9821 = vld [vmem:[%s9810 + $0x50] sm:$0xff]
        %v9822 = vld [vmem:[%s9810 + $0x58] sm:$0xff]
        %v9823 = vld [vmem:[%s9810 + $0x60] sm:$0xff]
        %v9824 = vld [vmem:[%s9810 + $0x68] sm:$0xff]
        %v9825 = vld [vmem:[%s9810 + $0x70] sm:$0xff]
        %v9826 = vld [vmem:[%s9810 + $0x78] sm:$0xff]
        %v9827 = vmul.f32 %v9794, %v7620
        %v9828 = vmul.f32 %v9795, %v7620
        %v9829 = vmul.f32 %v9796, %v7620
        %v9830 = vmul.f32 %v9797, %v7620
        %v9831 = vmul.f32 %v9798, %v7620
        %v9832 = vmul.f32 %v9799, %v7620
        %v9833 = vmul.f32 %v9800, %v7620
        %v9834 = vmul.f32 %v9801, %v7620
        %v9835 = vmul.f32 %v9802, %v7620
        %v9836 = vmul.f32 %v9803, %v7620
        %v9837 = vmul.f32 %v9804, %v7620
        %v9838 = vmul.f32 %v9805, %v7620
        %v9839 = vmul.f32 %v9806, %v7620
        %v9840 = vmul.f32 %v9807, %v7620
        %v9841 = vmul.f32 %v9808, %v7620
        %v9842 = vmul.f32 %v9809, %v7620
        %v9843 = vadd.f32 %v9827, %v7642
        %v9844 = vadd.f32 %v9828, %v7642
        %v9845 = vadd.f32 %v9829, %v7642
        %v9846 = vadd.f32 %v9830, %v7642
        %v9847 = vadd.f32 %v9831, %v7642
        %v9848 = vadd.f32 %v9832, %v7642
        %v9849 = vadd.f32 %v9833, %v7642
        %v9850 = vadd.f32 %v9834, %v7642
        %v9851 = vadd.f32 %v9835, %v7642
        %v9852 = vadd.f32 %v9836, %v7642
        %v9853 = vadd.f32 %v9837, %v7642
        %v9854 = vadd.f32 %v9838, %v7642
        %v9855 = vadd.f32 %v9839, %v7642
        %v9856 = vadd.f32 %v9840, %v7642
        %v9857 = vadd.f32 %v9841, %v7642
        %v9858 = vadd.f32 %v9842, %v7642
        %v9859 = vadd.f32 %v9843, %v9811
        %v9860 = vadd.f32 %v9844, %v9812
        %v9861 = vadd.f32 %v9845, %v9813
        %v9862 = vadd.f32 %v9846, %v9814
        %v9863 = vadd.f32 %v9847, %v9815
        %v9864 = vadd.f32 %v9848, %v9816
        %v9865 = vadd.f32 %v9849, %v9817
        %v9866 = vadd.f32 %v9850, %v9818
        %v9867 = vadd.f32 %v9851, %v9819
        %v9868 = vadd.f32 %v9852, %v9820
        %v9869 = vadd.f32 %v9853, %v9821
        %v9870 = vadd.f32 %v9854, %v9822
        %v9871 = vadd.f32 %v9855, %v9823
        %v9872 = vadd.f32 %v9856, %v9824
        %v9873 = vadd.f32 %v9857, %v9825
        %v9874 = vadd.f32 %v9858, %v9826
        %v9875 = vmax.f32 %v9859, 0.0
        %v9876 = vmax.f32 %v9860, 0.0
        %v9877 = vmax.f32 %v9861, 0.0
        %v9878 = vmax.f32 %v9862, 0.0
        %v9879 = vmax.f32 %v9863, 0.0
        %v9880 = vmax.f32 %v9864, 0.0
        %v9881 = vmax.f32 %v9865, 0.0
        %v9882 = vmax.f32 %v9866, 0.0
        %v9883 = vmax.f32 %v9867, 0.0
        %v9884 = vmax.f32 %v9868, 0.0
        %v9885 = vmax.f32 %v9869, 0.0
        %v9886 = vmax.f32 %v9870, 0.0
        %v9887 = vmax.f32 %v9871, 0.0
        %v9888 = vmax.f32 %v9872, 0.0
        %v9889 = vmax.f32 %v9873, 0.0
        %v9890 = vmax.f32 %v9874, 0.0
        %s9891 = scalar_lea.vmem %s271, 128 [#allocation4]
        %9892 = vst [vmem:[%s9891] sm:$0xff] %v9875
        %9893 = vst [vmem:[%s9891 + $0x8] sm:$0xff] %v9876
        %9894 = vst [vmem:[%s9891 + $0x10] sm:$0xff] %v9877
        %9895 = vst [vmem:[%s9891 + $0x18] sm:$0xff] %v9878
        %9896 = vst [vmem:[%s9891 + $0x20] sm:$0xff] %v9879
        %9897 = vst [vmem:[%s9891 + $0x28] sm:$0xff] %v9880
        %9898 = vst [vmem:[%s9891 + $0x30] sm:$0xff] %v9881
        %9899 = vst [vmem:[%s9891 + $0x38] sm:$0xff] %v9882
        %9900 = vst [vmem:[%s9891 + $0x40] sm:$0xff] %v9883
        %9901 = vst [vmem:[%s9891 + $0x48] sm:$0xff] %v9884
        %9902 = vst [vmem:[%s9891 + $0x50] sm:$0xff] %v9885
        %9903 = vst [vmem:[%s9891 + $0x58] sm:$0xff] %v9886
        %9904 = vst [vmem:[%s9891 + $0x60] sm:$0xff] %v9887
        %9905 = vst [vmem:[%s9891 + $0x68] sm:$0xff] %v9888
        %9906 = vst [vmem:[%s9891 + $0x70] sm:$0xff] %v9889
        %9907 = vst [vmem:[%s9891 + $0x78] sm:$0xff] %v9890
        %s9908 = sand.u32 %s181, 1
        %s9909 = scalar_lea.sflag [#allocation5], %s9908
        %s9910 = sand.u32 %s181, 1
        %s9911 = smul.addr %s9910, 256
        %s9912 = scalar_lea.vmem [#allocation4], %s9911
        // Predicated region
        $region49: #{basic_block_forward.1} parent=47 // pred_check
          %p9913 = pneg %p191
        $region50: #{basic_block_forward.1} parent=47 // pred_check_branch
          %9915 = sbr.rel (%p9913) target = $region52
        $region51: #{basic_block_forward.1} parent=47 // pred_region
          %s9917 = ssub.s32 4096, 4096
          %9918 = vsyncadd %s9909, %s9917
          %s9919 = smul.addr %s21, 32
          %s9920 = smul.addr %s9919, 128
          %s9921 = scalar_lea.hbm %s7, %s9920
          %s9922 = sshll.u32 %s9912, 4
          %s9923 = int_to_ptr.vmem [resolvable:$true] %s9922
          %9928 = dma.vmem_to_hbm [thread:$0]  %s9923, 4096, %s9921, %s9909, 128, 128, 8
        $region52: #{basic_block_forward.1} parent=47 // pred_fallthru
          _
      $region48: #{basic_block_forward.1} parent=5 // pred_fallthru
        _
      %p9929 = scmp.le.s32.totalorder 2, %s16
      // Predicated region
      $region53: #{basic_block_forward.1} parent=5 // pred_check
        %p9930 = pneg %p9929
      $region54: #{basic_block_forward.1} parent=5 // pred_check_branch
        %9932 = sbr.rel (%p9930) target = $region56
      $region55: #{basic_block_forward.1} parent=5 // pred_region
        %s9933 = ssub.s32 %s16, 2
        // Predicated region
        $region57: #{basic_block_forward.1} parent=55 // pred_check
          %p9934 = pneg %p197
        $region58: #{basic_block_forward.1} parent=55 // pred_check_branch
          %9936 = sbr.rel (%p9934) target = $region60
        $region59: #{basic_block_forward.1} parent=55 // pred_region
          %s9937 = sand.u32 %s182, 1
          %s9938 = scalar_lea.sflag [#allocation5], %s9937
          %s9939 = sand.u32 %s182, 1
          %s9940 = smul.addr %s9939, 256
          %s9941 = scalar_lea.vmem [#allocation4], %s9940
          %9942 = dma.done %s9938, 4096
        $region60: #{basic_block_forward.1} parent=55 // pred_fallthru
          _
      $region56: #{basic_block_forward.1} parent=5 // pred_fallthru
        _
    $region6: #{basic_block_forward.1} parent=1 // loop_footer
      %s20 = sadd.s32 1, %s16
    $region7: #{basic_block_forward.1} parent=1 // loop_footer_branch
      %15 = sbr.rel target = $region3
    $region8: #{basic_block_forward.1} parent=1 // loop_exit
      _
    %9943 = vsyncpa [#allocation5], 1
    %s9944 = scalar_lea.sflag [#allocation5], 1
    %9945 = vsyncpa %s9944, 1

</llo_original>
